<compile_context>
chip_gen: v6e
topology: v6e:2x2x1
jax: 0.10.0
libtpu: 0.0.40
codegen_flags: <defaults>
</compile_context>

<pallas_src>
import functools
import jax
import jax.numpy as jnp
from jax.experimental import pallas as pl
from jax.experimental.pallas import tpu as pltpu


def _align8(n):
    return (n + 7) & ~7


# ----------------------------------------------------------------------------
# Fused kernel: 5 x (MPNN -> BN(folded) -> +residual -> ReLU) -> LayerNorm
# ----------------------------------------------------------------------------
def _make_fused_kernel(layer_meta, ln_off, c_final):
    """layer_meta: list of (in_c, out_c, identity_res, {row offsets into slab})."""

    def kernel(x_ref, gd_ref, gs_ref, gdt_ref, slab_ref, out_ref):
        gd = gd_ref[...]      # (Bt*E, Bt*P) block-diag one-hot of edge dst nodes
        gs = gs_ref[...]      # (Bt*E, Bt*P) block-diag one-hot of edge src nodes
        gdt = gdt_ref[...]    # (Bt*P, Bt*E) host-transposed dst gather (aggregation)
        h = x_ref[...]        # (Bt*P, in_c) node features of Bt graphs, flattened

        # statically unrolled layer loop (channel dims differ per layer)
        for (in_c, out_c, ident, off) in layer_meta:
            C = out_c
            ncat = 3 if ident else 4
            wcat = slab_ref[off["wcat"]:off["wcat"] + in_c, 0:ncat * C]
            wm2 = slab_ref[off["wm2"]:off["wm2"] + C, 0:C]
            wu1b = slab_ref[off["wu1b"]:off["wu1b"] + C, 0:C]
            wu2 = slab_ref[off["wu2"]:off["wu2"] + C, 0:C]
            b0 = off["bias"]
            bm1 = slab_ref[b0 + 0:b0 + 1, 0:C]
            bm2 = slab_ref[b0 + 1:b0 + 2, 0:C]
            bu1 = slab_ref[b0 + 2:b0 + 3, 0:C]
            bu2 = slab_ref[b0 + 3:b0 + 4, 0:C]   # BN already folded into wu2/bu2

            # one fused node-wise projection; static lane slices are cheap
            y = jnp.dot(h, wcat, preferred_element_type=jnp.float32)   # (Bt*P, ncat*C)
            xa = y[:, 0:C]             # x_i (dst) part of message_net Linear1
            xb = y[:, C:2 * C]         # x_j (src) part
            uh = y[:, 2 * C:3 * C]     # x part of update_net Linear1
            if ident:
                res = h                                # nn.Identity residual (exact)
            else:
                bres = slab_ref[b0 + 4:b0 + 5, 0:C]
                res = y[:, 3 * C:4 * C] + bres         # residual Linear

            # message_net: per-edge gather (block-diag keeps graphs independent)
            hm = jnp.dot(gd, xa, preferred_element_type=jnp.float32)
            hm = hm + jnp.dot(gs, xb, preferred_element_type=jnp.float32) + bm1
            hm = jnp.maximum(hm, 0.0)                  # ReLU (Dropout = id in eval)
            msg = jnp.dot(hm, wm2, preferred_element_type=jnp.float32) + bm2

            # aggr='add' at target nodes via host-transposed gather (no in-kernel XLU)
            aggr = jnp.dot(gdt, msg, preferred_element_type=jnp.float32)  # (Bt*P, C)

            # update_net (BN folded), residual add, ReLU
            u = jnp.maximum(
                uh + jnp.dot(aggr, wu1b, preferred_element_type=jnp.float32) + bu1, 0.0)
            mp_bn = jnp.dot(u, wu2, preferred_element_type=jnp.float32) + bu2
            h = jnp.maximum(mp_bn + res, 0.0)

        # final LayerNorm over channels
        ln_g = slab_ref[ln_off:ln_off + 1, 0:c_final]
        ln_b = slab_ref[ln_off + 1:ln_off + 2, 0:c_final]
        mean = jnp.mean(h, axis=-1, keepdims=True)
        var = jnp.mean((h - mean) ** 2, axis=-1, keepdims=True)
        out_ref[...] = (h - mean) * jax.lax.rsqrt(var + 1e-5) * ln_g + ln_b

    return kernel


# ----------------------------------------------------------------------------
# Host-side packing: BN fold, Wcat fusion, single weight slab
# ----------------------------------------------------------------------------
def _pack_weight_slab(params):
    """Fold eval BatchNorm, fuse [wm1a|wm1b|wu1a|wres], pack everything into one slab."""
    prepared, layer_meta, max_w = [], [], 0
    for lp in params["layers"]:
        in_c, out_c = lp["wm1a"].shape
        ident = "wres" not in lp                    # nn.Identity residual (layer 0, m==hidden)
        ncat = 3 if ident else 4
        max_w = max(max_w, ncat * out_c)

        scale = lp["bn_g"] * jax.lax.rsqrt(lp["bn_v"] + 1e-5)          # (1, C)
        wu2f = lp["wu2"] * scale                                       # fold BN into Linear
        bu2f = (lp["bu2"] - lp["bn_m"]) * scale + lp["bn_b"]

        cat = [lp["wm1a"], lp["wm1b"], lp["wu1a"]]
        biases = [lp["bm1"], lp["bm2"], lp["bu1"], bu2f]
        if not ident:
            cat.append(lp["wres"])
            biases.append(lp["bres"])
        wcat = jnp.concatenate(cat, axis=1)                            # (in_c, ncat*C)
        prepared.append((in_c, out_c, ident, wcat, lp["wm2"], lp["wu1b"], wu2f, biases))

    lanew = ((max_w + 127) // 128) * 128
    r = 0
    for (in_c, out_c, ident, *_rest) in prepared:
        off = {"wcat": r}; r += _align8(in_c)
        off["wm2"] = r;    r += _align8(out_c)
        off["wu1b"] = r;   r += _align8(out_c)
        off["wu2"] = r;    r += _align8(out_c)
        off["bias"] = r;   r += 8
        layer_meta.append((in_c, out_c, ident, off))
    ln_off = r
    r += 8

    slab = jnp.zeros((r, lanew), jnp.float32)
    for (in_c, out_c, ident, wcat, wm2, wu1b, wu2f, biases), (_, _, _, off) in zip(
            prepared, layer_meta):
        ncat = 3 if ident else 4
        slab = slab.at[off["wcat"]:off["wcat"] + in_c, :ncat * out_c].set(wcat)
        slab = slab.at[off["wm2"]:off["wm2"] + out_c, :out_c].set(wm2)
        slab = slab.at[off["wu1b"]:off["wu1b"] + out_c, :out_c].set(wu1b)
        slab = slab.at[off["wu2"]:off["wu2"] + out_c, :out_c].set(wu2f)
        for i, b in enumerate(biases):
            slab = slab.at[off["bias"] + i, :out_c].set(b[0])
    c_final = params["ln_g"].shape[-1]
    slab = slab.at[ln_off, :c_final].set(params["ln_g"][0])
    slab = slab.at[ln_off + 1, :c_final].set(params["ln_b"][0])
    return slab, layer_meta, ln_off, c_final


# ----------------------------------------------------------------------------
# Wrapper
# ----------------------------------------------------------------------------
@functools.partial(jax.jit, static_argnames=("block_batch",))
def gnn_hypernetwork4_forward(x, gsrc, gdst, params, block_batch=None):
    """x: (B, P, m, 1); gsrc/gdst: (E, P) one-hot (same graph for every batch element)."""
    B, P, m, _ = x.shape

    # Graphs per grid step: fill MXU rows (Bt*P), but keep >= 2 grid steps when possible
    # so both v7x TensorCores get work under "parallel" semantics (v5e/v6e: 1 TC, fewer
    # serial steps is strictly better).
    bt = block_batch if block_batch is not None else max(1, min(16, B // 2 if B > 1 else 1))
    nb = pl.cdiv(B, bt)
    b_pad = nb * bt

    slab, layer_meta, ln_off, c_final = _pack_weight_slab(params)

    # node features flattened host-side -> node-wise matmuls see bt*P rows, no in-kernel reshape
    h0 = jnp.squeeze(x, -1).reshape(B * P, m)
    if b_pad != B:
        h0 = jnp.concatenate([h0, jnp.zeros(((b_pad - B) * P, m), h0.dtype)], axis=0)

    # block-diagonal gather matrices (graph shared across the batch); the dst-transpose is
    # built on the host so the aggregation is a plain matmul (no per-layer XLU transpose).
    # TODO(synk): for large graphs these dense one-hot gathers are O((Bt*E)*(Bt*P)) VMEM /
    # MXU work; switch to a scalar-prefetch / DMA row-gather design before scaling up.
    eye = jnp.eye(bt, dtype=jnp.float32)
    gd_bd = jnp.kron(eye, gdst)       # (bt*E, bt*P)
    gs_bd = jnp.kron(eye, gsrc)       # (bt*E, bt*P)
    gdt_bd = jnp.kron(eye, gdst.T)    # (bt*P, bt*E)

    out = pl.pallas_call(
        _make_fused_kernel(layer_meta, ln_off, c_final),
        out_shape=jax.ShapeDtypeStruct((b_pad * P, c_final), jnp.float32),
        grid=(nb,),
        in_specs=[
            pl.BlockSpec((bt * P, m), lambda b: (b, 0)),
            pl.BlockSpec(gd_bd.shape, lambda b: (0, 0)),   # replicated across the grid
            pl.BlockSpec(gs_bd.shape, lambda b: (0, 0)),
            pl.BlockSpec(gdt_bd.shape, lambda b: (0, 0)),
            pl.BlockSpec(slab.shape, lambda b: (0, 0)),
        ],
        out_specs=pl.BlockSpec((bt * P, c_final), lambda b: (b, 0)),
        compiler_params=pltpu.CompilerParams(
            dimension_semantics=("parallel",),
            vmem_limit_bytes=32 * 1024 * 1024),
    )(h0, gd_bd, gs_bd, gdt_bd, slab)

    return out[:B * P].reshape(B, P * c_final)     # hyp.view(batch_size, -1)


# ----------------------------------------------------------------------------
# Parameter construction (deterministic, xavier_uniform like reset_parameters)
# ----------------------------------------------------------------------------
def _xavier(key, in_c, out_c):
    bound = (6.0 / (in_c + out_c)) ** 0.5
    return jax.random.uniform(key, (in_c, out_c), jnp.float32, -bound, bound)


def init_mpnn_block_params(key, in_c, out_c, residual_identity=False):
    ks = jax.random.split(key, 5)
    wm1 = _xavier(ks[0], 2 * in_c, out_c)          # message_net Linear1 (cat[x_i, x_j])
    wu1 = _xavier(ks[2], in_c + out_c, out_c)      # update_net Linear1 (cat[x, aggr])
    p = dict(
        wm1a=wm1[:in_c], wm1b=wm1[in_c:], bm1=jnp.zeros((1, out_c), jnp.float32),
        wm2=_xavier(ks[1], out_c, out_c), bm2=jnp.zeros((1, out_c), jnp.float32),
        wu1a=wu1[:in_c], wu1b=wu1[in_c:], bu1=jnp.zeros((1, out_c), jnp.float32),
        wu2=_xavier(ks[3], out_c, out_c), bu2=jnp.zeros((1, out_c), jnp.float32),
        # BatchNorm1d default state (eval mode, running stats)
        bn_g=jnp.ones((1, out_c), jnp.float32), bn_b=jnp.zeros((1, out_c), jnp.float32),
        bn_m=jnp.zeros((1, out_c), jnp.float32), bn_v=jnp.ones((1, out_c), jnp.float32),
    )
    if not residual_identity:   # only residual1 can be nn.Identity in the reference
        p["wres"] = _xavier(ks[4], in_c, out_c)
        p["bres"] = jnp.zeros((1, out_c), jnp.float32)
    return p


def init_gnn_hypernetwork4(key, P, m, hidden_dim):
    dims = [(m, hidden_dim),
            (hidden_dim, 2 * hidden_dim),
            (2 * hidden_dim, 4 * hidden_dim),
            (4 * hidden_dim, 4 * hidden_dim),
            (4 * hidden_dim, 4 * hidden_dim)]
    keys = jax.random.split(key, len(dims))
    layers = [init_mpnn_block_params(k, ic, oc,
                                     residual_identity=(i == 0 and m == hidden_dim))
              for i, ((ic, oc), k) in enumerate(zip(dims, keys))]
    return dict(layers=layers,
                ln_g=jnp.ones((1, 4 * hidden_dim), jnp.float32),
                ln_b=jnp.zeros((1, 4 * hidden_dim), jnp.float32))


def make_cycle_graph_edges(P):
    """Undirected cycle graph -> directed edge_index with both directions
    (what from_networkx produces)."""
    src, dst = [], []
    for i in range(P):
        j = (i + 1) % P
        src += [i, j]
        dst += [j, i]
    return jnp.array(src, jnp.int32), jnp.array(dst, jnp.int32)


if __name__ == "__main__":
    B, P, m, hidden = 32, 8, 4, 8       # 4*hidden = 32 output channels per node

    key = jax.random.PRNGKey(0)
    k_x, k_p = jax.random.split(key)

    # node features, shaped like the PyTorch input (B, P, m, 1)
    x = jax.random.normal(k_x, (B, P, m, 1), jnp.float32)

    # graph_list: same deterministic cycle graph for every batch element, encoded once
    # as (E, P) one-hot gather matrices.
    # TODO(synk): graphs with different node/edge counts per batch element would need
    # per-batch padded gather matrices.
    src, dst = make_cycle_graph_edges(P)
    gsrc = jax.nn.one_hot(src, P, dtype=jnp.float32)   # (E, P)
    gdst = jax.nn.one_hot(dst, P, dtype=jnp.float32)   # (E, P)

    params = init_gnn_hypernetwork4(k_p, P, m, hidden)

    out = gnn_hypernetwork4_forward(x, gsrc, gdst, params)
    out = jax.block_until_ready(out)
    assert out.shape == (B, P * 4 * hidden), out.shape
    assert bool(jnp.all(jnp.isfinite(out)))
    print("KERNEL_OK")
</pallas_src>

<mosaic_0001>
module attributes {stable_mosaic.version = 11 : i64} {
  func.func @kernel(%arg0: i32, %arg1: memref<128x4xf32, #tpu.memory_space<vmem>>, %arg2: memref<256x128xf32, #tpu.memory_space<vmem>>, %arg3: memref<256x128xf32, #tpu.memory_space<vmem>>, %arg4: memref<128x256xf32, #tpu.memory_space<vmem>>, %arg5: memref<504x128xf32, #tpu.memory_space<vmem>>, %arg6: memref<128x32xf32, #tpu.memory_space<vmem>>) attributes {dimension_semantics = [#tpu.dimension_semantics<parallel>], iteration_bounds = array<i64: 2>, scalar_prefetch = 0 : i64, scratch_operands = 0 : i64, tpu.core_type = #tpu.core_type<tc>, window_params = [{transform_indices = @transform_0, window_bounds = array<i64: 128, 4>}, {pipeline_mode = #tpu.pipeline_mode<synchronous>, transform_indices = @transform_1, window_bounds = array<i64: 256, 128>}, {pipeline_mode = #tpu.pipeline_mode<synchronous>, transform_indices = @transform_2, window_bounds = array<i64: 256, 128>}, {pipeline_mode = #tpu.pipeline_mode<synchronous>, transform_indices = @transform_3, window_bounds = array<i64: 128, 256>}, {pipeline_mode = #tpu.pipeline_mode<synchronous>, transform_indices = @transform_4, window_bounds = array<i64: 504, 128>}, {transform_indices = @transform_5, window_bounds = array<i64: 128, 32>}]} {
    %c0 = arith.constant 0 : index
    %c0_0 = arith.constant 0 : index
    %0 = vector.load %arg2[%c0, %c0_0] : memref<256x128xf32, #tpu.memory_space<vmem>>, vector<256x128xf32>
    %c0_1 = arith.constant 0 : index
    %c0_2 = arith.constant 0 : index
    %1 = vector.load %arg3[%c0_1, %c0_2] : memref<256x128xf32, #tpu.memory_space<vmem>>, vector<256x128xf32>
    %c0_3 = arith.constant 0 : index
    %c0_4 = arith.constant 0 : index
    %2 = vector.load %arg4[%c0_3, %c0_4] : memref<128x256xf32, #tpu.memory_space<vmem>>, vector<128x256xf32>
    %c0_5 = arith.constant 0 : index
    %c0_6 = arith.constant 0 : index
    %3 = vector.load %arg1[%c0_5, %c0_6] : memref<128x4xf32, #tpu.memory_space<vmem>>, vector<128x4xf32>
    %c0_7 = arith.constant 0 : index
    %c0_8 = arith.constant 0 : index
    %4 = vector.load %arg5[%c0_7, %c0_8] : memref<504x128xf32, #tpu.memory_space<vmem>>, vector<4x32xf32>
    %c8 = arith.constant 8 : index
    %c0_9 = arith.constant 0 : index
    %5 = vector.load %arg5[%c8, %c0_9] : memref<504x128xf32, #tpu.memory_space<vmem>>, vector<8x8xf32>
    %c16 = arith.constant 16 : index
    %c0_10 = arith.constant 0 : index
    %6 = vector.load %arg5[%c16, %c0_10] : memref<504x128xf32, #tpu.memory_space<vmem>>, vector<8x8xf32>
    %c24 = arith.constant 24 : index
    %c0_11 = arith.constant 0 : index
    %7 = vector.load %arg5[%c24, %c0_11] : memref<504x128xf32, #tpu.memory_space<vmem>>, vector<8x8xf32>
    %c32 = arith.constant 32 : index
    %c0_12 = arith.constant 0 : index
    %8 = vector.load %arg5[%c32, %c0_12] : memref<504x128xf32, #tpu.memory_space<vmem>>, vector<1x8xf32>
    %c33 = arith.constant 33 : index
    %c0_13 = arith.constant 0 : index
    %9 = vector.load %arg5[%c33, %c0_13] : memref<504x128xf32, #tpu.memory_space<vmem>>, vector<1x8xf32>
    %c34 = arith.constant 34 : index
    %c0_14 = arith.constant 0 : index
    %10 = vector.load %arg5[%c34, %c0_14] : memref<504x128xf32, #tpu.memory_space<vmem>>, vector<1x8xf32>
    %c35 = arith.constant 35 : index
    %c0_15 = arith.constant 0 : index
    %11 = vector.load %arg5[%c35, %c0_15] : memref<504x128xf32, #tpu.memory_space<vmem>>, vector<1x8xf32>
    %cst = arith.constant dense<0.000000e+00> : vector<128x32xf32>
    %12 = tpu.matmul %3, %4, %cst {dimension_numbers = #tpu.dot_dimension_numbers<[1], [0], [0], [1], [0, 0, 1, 1], [], []>} : vector<128x4xf32>, vector<4x32xf32>, vector<128x32xf32> -> vector<128x32xf32>
    %13 = vector.extract_strided_slice %12 {offsets = [0, 0], sizes = [128, 8], strides = [1, 1]} : vector<128x32xf32> to vector<128x8xf32>
    %14 = vector.extract_strided_slice %12 {offsets = [0, 8], sizes = [128, 8], strides = [1, 1]} : vector<128x32xf32> to vector<128x8xf32>
    %15 = vector.extract_strided_slice %12 {offsets = [0, 16], sizes = [128, 8], strides = [1, 1]} : vector<128x32xf32> to vector<128x8xf32>
    %c36 = arith.constant 36 : index
    %c0_16 = arith.constant 0 : index
    %16 = vector.load %arg5[%c36, %c0_16] : memref<504x128xf32, #tpu.memory_space<vmem>>, vector<1x8xf32>
    %17 = vector.extract_strided_slice %12 {offsets = [0, 24], sizes = [128, 8], strides = [1, 1]} : vector<128x32xf32> to vector<128x8xf32>
    %18 = vector.broadcast %16 : vector<1x8xf32> to vector<128x8xf32>
    %19 = arith.addf %17, %18 : vector<128x8xf32>
    %cst_17 = arith.constant dense<0.000000e+00> : vector<256x8xf32>
    %20 = tpu.matmul %0, %13, %cst_17 {dimension_numbers = #tpu.dot_dimension_numbers<[1], [0], [0], [1], [0, 0, 1, 1], [], []>} : vector<256x128xf32>, vector<128x8xf32>, vector<256x8xf32> -> vector<256x8xf32>
    %cst_18 = arith.constant dense<0.000000e+00> : vector<256x8xf32>
    %21 = tpu.matmul %1, %14, %cst_18 {dimension_numbers = #tpu.dot_dimension_numbers<[1], [0], [0], [1], [0, 0, 1, 1], [], []>} : vector<256x128xf32>, vector<128x8xf32>, vector<256x8xf32> -> vector<256x8xf32>
    %22 = arith.addf %20, %21 : vector<256x8xf32>
    %23 = vector.broadcast %8 : vector<1x8xf32> to vector<256x8xf32>
    %24 = arith.addf %22, %23 : vector<256x8xf32>
    %cst_19 = arith.constant 0.000000e+00 : f32
    %25 = vector.broadcast %cst_19 : f32 to vector<256x8xf32>
    %26 = arith.maximumf %24, %25 : vector<256x8xf32>
    %cst_20 = arith.constant dense<0.000000e+00> : vector<256x8xf32>
    %27 = tpu.matmul %26, %5, %cst_20 {dimension_numbers = #tpu.dot_dimension_numbers<[1], [0], [0], [1], [0, 0, 1, 1], [], []>} : vector<256x8xf32>, vector<8x8xf32>, vector<256x8xf32> -> vector<256x8xf32>
    %28 = vector.broadcast %9 : vector<1x8xf32> to vector<256x8xf32>
    %29 = arith.addf %27, %28 : vector<256x8xf32>
    %cst_21 = arith.constant dense<0.000000e+00> : vector<128x8xf32>
    %30 = tpu.matmul %2, %29, %cst_21 {dimension_numbers = #tpu.dot_dimension_numbers<[1], [0], [0], [1], [0, 0, 1, 1], [], []>} : vector<128x256xf32>, vector<256x8xf32>, vector<128x8xf32> -> vector<128x8xf32>
    %cst_22 = arith.constant dense<0.000000e+00> : vector<128x8xf32>
    %31 = tpu.matmul %30, %6, %cst_22 {dimension_numbers = #tpu.dot_dimension_numbers<[1], [0], [0], [1], [0, 0, 1, 1], [], []>} : vector<128x8xf32>, vector<8x8xf32>, vector<128x8xf32> -> vector<128x8xf32>
    %32 = arith.addf %15, %31 : vector<128x8xf32>
    %33 = vector.broadcast %10 : vector<1x8xf32> to vector<128x8xf32>
    %34 = arith.addf %32, %33 : vector<128x8xf32>
    %cst_23 = arith.constant 0.000000e+00 : f32
    %35 = vector.broadcast %cst_23 : f32 to vector<128x8xf32>
    %36 = arith.maximumf %34, %35 : vector<128x8xf32>
    %cst_24 = arith.constant dense<0.000000e+00> : vector<128x8xf32>
    %37 = tpu.matmul %36, %7, %cst_24 {dimension_numbers = #tpu.dot_dimension_numbers<[1], [0], [0], [1], [0, 0, 1, 1], [], []>} : vector<128x8xf32>, vector<8x8xf32>, vector<128x8xf32> -> vector<128x8xf32>
    %38 = vector.broadcast %11 : vector<1x8xf32> to vector<128x8xf32>
    %39 = arith.addf %37, %38 : vector<128x8xf32>
    %40 = arith.addf %39, %19 : vector<128x8xf32>
    %cst_25 = arith.constant 0.000000e+00 : f32
    %41 = vector.broadcast %cst_25 : f32 to vector<128x8xf32>
    %42 = arith.maximumf %40, %41 : vector<128x8xf32>
    %c40 = arith.constant 40 : index
    %c0_26 = arith.constant 0 : index
    %43 = vector.load %arg5[%c40, %c0_26] : memref<504x128xf32, #tpu.memory_space<vmem>>, vector<8x64xf32>
    %c48 = arith.constant 48 : index
    %c0_27 = arith.constant 0 : index
    %44 = vector.load %arg5[%c48, %c0_27] : memref<504x128xf32, #tpu.memory_space<vmem>>, vector<16x16xf32>
    %c64 = arith.constant 64 : index
    %c0_28 = arith.constant 0 : index
    %45 = vector.load %arg5[%c64, %c0_28] : memref<504x128xf32, #tpu.memory_space<vmem>>, vector<16x16xf32>
    %c80 = arith.constant 80 : index
    %c0_29 = arith.constant 0 : index
    %46 = vector.load %arg5[%c80, %c0_29] : memref<504x128xf32, #tpu.memory_space<vmem>>, vector<16x16xf32>
    %c96 = arith.constant 96 : index
    %c0_30 = arith.constant 0 : index
    %47 = vector.load %arg5[%c96, %c0_30] : memref<504x128xf32, #tpu.memory_space<vmem>>, vector<1x16xf32>
    %c97 = arith.constant 97 : index
    %c0_31 = arith.constant 0 : index
    %48 = vector.load %arg5[%c97, %c0_31] : memref<504x128xf32, #tpu.memory_space<vmem>>, vector<1x16xf32>
    %c98 = arith.constant 98 : index
    %c0_32 = arith.constant 0 : index
    %49 = vector.load %arg5[%c98, %c0_32] : memref<504x128xf32, #tpu.memory_space<vmem>>, vector<1x16xf32>
    %c99 = arith.constant 99 : index
    %c0_33 = arith.constant 0 : index
    %50 = vector.load %arg5[%c99, %c0_33] : memref<504x128xf32, #tpu.memory_space<vmem>>, vector<1x16xf32>
    %cst_34 = arith.constant dense<0.000000e+00> : vector<128x64xf32>
    %51 = tpu.matmul %42, %43, %cst_34 {dimension_numbers = #tpu.dot_dimension_numbers<[1], [0], [0], [1], [0, 0, 1, 1], [], []>} : vector<128x8xf32>, vector<8x64xf32>, vector<128x64xf32> -> vector<128x64xf32>
    %52 = vector.extract_strided_slice %51 {offsets = [0, 0], sizes = [128, 16], strides = [1, 1]} : vector<128x64xf32> to vector<128x16xf32>
    %53 = vector.extract_strided_slice %51 {offsets = [0, 16], sizes = [128, 16], strides = [1, 1]} : vector<128x64xf32> to vector<128x16xf32>
    %54 = vector.extract_strided_slice %51 {offsets = [0, 32], sizes = [128, 16], strides = [1, 1]} : vector<128x64xf32> to vector<128x16xf32>
    %c100 = arith.constant 100 : index
    %c0_35 = arith.constant 0 : index
    %55 = vector.load %arg5[%c100, %c0_35] : memref<504x128xf32, #tpu.memory_space<vmem>>, vector<1x16xf32>
    %56 = vector.extract_strided_slice %51 {offsets = [0, 48], sizes = [128, 16], strides = [1, 1]} : vector<128x64xf32> to vector<128x16xf32>
    %57 = vector.broadcast %55 : vector<1x16xf32> to vector<128x16xf32>
    %58 = arith.addf %56, %57 : vector<128x16xf32>
    %cst_36 = arith.constant dense<0.000000e+00> : vector<256x16xf32>
    %59 = tpu.matmul %0, %52, %cst_36 {dimension_numbers = #tpu.dot_dimension_numbers<[1], [0], [0], [1], [0, 0, 1, 1], [], []>} : vector<256x128xf32>, vector<128x16xf32>, vector<256x16xf32> -> vector<256x16xf32>
    %cst_37 = arith.constant dense<0.000000e+00> : vector<256x16xf32>
    %60 = tpu.matmul %1, %53, %cst_37 {dimension_numbers = #tpu.dot_dimension_numbers<[1], [0], [0], [1], [0, 0, 1, 1], [], []>} : vector<256x128xf32>, vector<128x16xf32>, vector<256x16xf32> -> vector<256x16xf32>
    %61 = arith.addf %59, %60 : vector<256x16xf32>
    %62 = vector.broadcast %47 : vector<1x16xf32> to vector<256x16xf32>
    %63 = arith.addf %61, %62 : vector<256x16xf32>
    %cst_38 = arith.constant 0.000000e+00 : f32
    %64 = vector.broadcast %cst_38 : f32 to vector<256x16xf32>
    %65 = arith.maximumf %63, %64 : vector<256x16xf32>
    %cst_39 = arith.constant dense<0.000000e+00> : vector<256x16xf32>
    %66 = tpu.matmul %65, %44, %cst_39 {dimension_numbers = #tpu.dot_dimension_numbers<[1], [0], [0], [1], [0, 0, 1, 1], [], []>} : vector<256x16xf32>, vector<16x16xf32>, vector<256x16xf32> -> vector<256x16xf32>
    %67 = vector.broadcast %48 : vector<1x16xf32> to vector<256x16xf32>
    %68 = arith.addf %66, %67 : vector<256x16xf32>
    %cst_40 = arith.constant dense<0.000000e+00> : vector<128x16xf32>
    %69 = tpu.matmul %2, %68, %cst_40 {dimension_numbers = #tpu.dot_dimension_numbers<[1], [0], [0], [1], [0, 0, 1, 1], [], []>} : vector<128x256xf32>, vector<256x16xf32>, vector<128x16xf32> -> vector<128x16xf32>
    %cst_41 = arith.constant dense<0.000000e+00> : vector<128x16xf32>
    %70 = tpu.matmul %69, %45, %cst_41 {dimension_numbers = #tpu.dot_dimension_numbers<[1], [0], [0], [1], [0, 0, 1, 1], [], []>} : vector<128x16xf32>, vector<16x16xf32>, vector<128x16xf32> -> vector<128x16xf32>
    %71 = arith.addf %54, %70 : vector<128x16xf32>
    %72 = vector.broadcast %49 : vector<1x16xf32> to vector<128x16xf32>
    %73 = arith.addf %71, %72 : vector<128x16xf32>
    %cst_42 = arith.constant 0.000000e+00 : f32
    %74 = vector.broadcast %cst_42 : f32 to vector<128x16xf32>
    %75 = arith.maximumf %73, %74 : vector<128x16xf32>
    %cst_43 = arith.constant dense<0.000000e+00> : vector<128x16xf32>
    %76 = tpu.matmul %75, %46, %cst_43 {dimension_numbers = #tpu.dot_dimension_numbers<[1], [0], [0], [1], [0, 0, 1, 1], [], []>} : vector<128x16xf32>, vector<16x16xf32>, vector<128x16xf32> -> vector<128x16xf32>
    %77 = vector.broadcast %50 : vector<1x16xf32> to vector<128x16xf32>
    %78 = arith.addf %76, %77 : vector<128x16xf32>
    %79 = arith.addf %78, %58 : vector<128x16xf32>
    %cst_44 = arith.constant 0.000000e+00 : f32
    %80 = vector.broadcast %cst_44 : f32 to vector<128x16xf32>
    %81 = arith.maximumf %79, %80 : vector<128x16xf32>
    %c104 = arith.constant 104 : index
    %c0_45 = arith.constant 0 : index
    %82 = vector.load %arg5[%c104, %c0_45] : memref<504x128xf32, #tpu.memory_space<vmem>>, vector<16x128xf32>
    %c120 = arith.constant 120 : index
    %c0_46 = arith.constant 0 : index
    %83 = vector.load %arg5[%c120, %c0_46] : memref<504x128xf32, #tpu.memory_space<vmem>>, vector<32x32xf32>
    %c152 = arith.constant 152 : index
    %c0_47 = arith.constant 0 : index
    %84 = vector.load %arg5[%c152, %c0_47] : memref<504x128xf32, #tpu.memory_space<vmem>>, vector<32x32xf32>
    %c184 = arith.constant 184 : index
    %c0_48 = arith.constant 0 : index
    %85 = vector.load %arg5[%c184, %c0_48] : memref<504x128xf32, #tpu.memory_space<vmem>>, vector<32x32xf32>
    %c216 = arith.constant 216 : index
    %c0_49 = arith.constant 0 : index
    %86 = vector.load %arg5[%c216, %c0_49] : memref<504x128xf32, #tpu.memory_space<vmem>>, vector<1x32xf32>
    %c217 = arith.constant 217 : index
    %c0_50 = arith.constant 0 : index
    %87 = vector.load %arg5[%c217, %c0_50] : memref<504x128xf32, #tpu.memory_space<vmem>>, vector<1x32xf32>
    %c218 = arith.constant 218 : index
    %c0_51 = arith.constant 0 : index
    %88 = vector.load %arg5[%c218, %c0_51] : memref<504x128xf32, #tpu.memory_space<vmem>>, vector<1x32xf32>
    %c219 = arith.constant 219 : index
    %c0_52 = arith.constant 0 : index
    %89 = vector.load %arg5[%c219, %c0_52] : memref<504x128xf32, #tpu.memory_space<vmem>>, vector<1x32xf32>
    %cst_53 = arith.constant dense<0.000000e+00> : vector<128x128xf32>
    %90 = tpu.matmul %81, %82, %cst_53 {dimension_numbers = #tpu.dot_dimension_numbers<[1], [0], [0], [1], [0, 0, 1, 1], [], []>} : vector<128x16xf32>, vector<16x128xf32>, vector<128x128xf32> -> vector<128x128xf32>
    %91 = vector.extract_strided_slice %90 {offsets = [0, 0], sizes = [128, 32], strides = [1, 1]} : vector<128x128xf32> to vector<128x32xf32>
    %92 = vector.extract_strided_slice %90 {offsets = [0, 32], sizes = [128, 32], strides = [1, 1]} : vector<128x128xf32> to vector<128x32xf32>
    %93 = vector.extract_strided_slice %90 {offsets = [0, 64], sizes = [128, 32], strides = [1, 1]} : vector<128x128xf32> to vector<128x32xf32>
    %c220 = arith.constant 220 : index
    %c0_54 = arith.constant 0 : index
    %94 = vector.load %arg5[%c220, %c0_54] : memref<504x128xf32, #tpu.memory_space<vmem>>, vector<1x32xf32>
    %95 = vector.extract_strided_slice %90 {offsets = [0, 96], sizes = [128, 32], strides = [1, 1]} : vector<128x128xf32> to vector<128x32xf32>
    %96 = vector.broadcast %94 : vector<1x32xf32> to vector<128x32xf32>
    %97 = arith.addf %95, %96 : vector<128x32xf32>
    %cst_55 = arith.constant dense<0.000000e+00> : vector<256x32xf32>
    %98 = tpu.matmul %0, %91, %cst_55 {dimension_numbers = #tpu.dot_dimension_numbers<[1], [0], [0], [1], [0, 0, 1, 1], [], []>} : vector<256x128xf32>, vector<128x32xf32>, vector<256x32xf32> -> vector<256x32xf32>
    %cst_56 = arith.constant dense<0.000000e+00> : vector<256x32xf32>
    %99 = tpu.matmul %1, %92, %cst_56 {dimension_numbers = #tpu.dot_dimension_numbers<[1], [0], [0], [1], [0, 0, 1, 1], [], []>} : vector<256x128xf32>, vector<128x32xf32>, vector<256x32xf32> -> vector<256x32xf32>
    %100 = arith.addf %98, %99 : vector<256x32xf32>
    %101 = vector.broadcast %86 : vector<1x32xf32> to vector<256x32xf32>
    %102 = arith.addf %100, %101 : vector<256x32xf32>
    %cst_57 = arith.constant 0.000000e+00 : f32
    %103 = vector.broadcast %cst_57 : f32 to vector<256x32xf32>
    %104 = arith.maximumf %102, %103 : vector<256x32xf32>
    %cst_58 = arith.constant dense<0.000000e+00> : vector<256x32xf32>
    %105 = tpu.matmul %104, %83, %cst_58 {dimension_numbers = #tpu.dot_dimension_numbers<[1], [0], [0], [1], [0, 0, 1, 1], [], []>} : vector<256x32xf32>, vector<32x32xf32>, vector<256x32xf32> -> vector<256x32xf32>
    %106 = vector.broadcast %87 : vector<1x32xf32> to vector<256x32xf32>
    %107 = arith.addf %105, %106 : vector<256x32xf32>
    %cst_59 = arith.constant dense<0.000000e+00> : vector<128x32xf32>
    %108 = tpu.matmul %2, %107, %cst_59 {dimension_numbers = #tpu.dot_dimension_numbers<[1], [0], [0], [1], [0, 0, 1, 1], [], []>} : vector<128x256xf32>, vector<256x32xf32>, vector<128x32xf32> -> vector<128x32xf32>
    %cst_60 = arith.constant dense<0.000000e+00> : vector<128x32xf32>
    %109 = tpu.matmul %108, %84, %cst_60 {dimension_numbers = #tpu.dot_dimension_numbers<[1], [0], [0], [1], [0, 0, 1, 1], [], []>} : vector<128x32xf32>, vector<32x32xf32>, vector<128x32xf32> -> vector<128x32xf32>
    %110 = arith.addf %93, %109 : vector<128x32xf32>
    %111 = vector.broadcast %88 : vector<1x32xf32> to vector<128x32xf32>
    %112 = arith.addf %110, %111 : vector<128x32xf32>
    %cst_61 = arith.constant 0.000000e+00 : f32
    %113 = vector.broadcast %cst_61 : f32 to vector<128x32xf32>
    %114 = arith.maximumf %112, %113 : vector<128x32xf32>
    %cst_62 = arith.constant dense<0.000000e+00> : vector<128x32xf32>
    %115 = tpu.matmul %114, %85, %cst_62 {dimension_numbers = #tpu.dot_dimension_numbers<[1], [0], [0], [1], [0, 0, 1, 1], [], []>} : vector<128x32xf32>, vector<32x32xf32>, vector<128x32xf32> -> vector<128x32xf32>
    %116 = vector.broadcast %89 : vector<1x32xf32> to vector<128x32xf32>
    %117 = arith.addf %115, %116 : vector<128x32xf32>
    %118 = arith.addf %117, %97 : vector<128x32xf32>
    %cst_63 = arith.constant 0.000000e+00 : f32
    %119 = vector.broadcast %cst_63 : f32 to vector<128x32xf32>
    %120 = arith.maximumf %118, %119 : vector<128x32xf32>
    %c224 = arith.constant 224 : index
    %c0_64 = arith.constant 0 : index
    %121 = vector.load %arg5[%c224, %c0_64] : memref<504x128xf32, #tpu.memory_space<vmem>>, vector<32x128xf32>
    %c256 = arith.constant 256 : index
    %c0_65 = arith.constant 0 : index
    %122 = vector.load %arg5[%c256, %c0_65] : memref<504x128xf32, #tpu.memory_space<vmem>>, vector<32x32xf32>
    %c288 = arith.constant 288 : index
    %c0_66 = arith.constant 0 : index
    %123 = vector.load %arg5[%c288, %c0_66] : memref<504x128xf32, #tpu.memory_space<vmem>>, vector<32x32xf32>
    %c320 = arith.constant 320 : index
    %c0_67 = arith.constant 0 : index
    %124 = vector.load %arg5[%c320, %c0_67] : memref<504x128xf32, #tpu.memory_space<vmem>>, vector<32x32xf32>
    %c352 = arith.constant 352 : index
    %c0_68 = arith.constant 0 : index
    %125 = vector.load %arg5[%c352, %c0_68] : memref<504x128xf32, #tpu.memory_space<vmem>>, vector<1x32xf32>
    %c353 = arith.constant 353 : index
    %c0_69 = arith.constant 0 : index
    %126 = vector.load %arg5[%c353, %c0_69] : memref<504x128xf32, #tpu.memory_space<vmem>>, vector<1x32xf32>
    %c354 = arith.constant 354 : index
    %c0_70 = arith.constant 0 : index
    %127 = vector.load %arg5[%c354, %c0_70] : memref<504x128xf32, #tpu.memory_space<vmem>>, vector<1x32xf32>
    %c355 = arith.constant 355 : index
    %c0_71 = arith.constant 0 : index
    %128 = vector.load %arg5[%c355, %c0_71] : memref<504x128xf32, #tpu.memory_space<vmem>>, vector<1x32xf32>
    %cst_72 = arith.constant dense<0.000000e+00> : vector<128x128xf32>
    %129 = tpu.matmul %120, %121, %cst_72 {dimension_numbers = #tpu.dot_dimension_numbers<[1], [0], [0], [1], [0, 0, 1, 1], [], []>} : vector<128x32xf32>, vector<32x128xf32>, vector<128x128xf32> -> vector<128x128xf32>
    %130 = vector.extract_strided_slice %129 {offsets = [0, 0], sizes = [128, 32], strides = [1, 1]} : vector<128x128xf32> to vector<128x32xf32>
    %131 = vector.extract_strided_slice %129 {offsets = [0, 32], sizes = [128, 32], strides = [1, 1]} : vector<128x128xf32> to vector<128x32xf32>
    %132 = vector.extract_strided_slice %129 {offsets = [0, 64], sizes = [128, 32], strides = [1, 1]} : vector<128x128xf32> to vector<128x32xf32>
    %c356 = arith.constant 356 : index
    %c0_73 = arith.constant 0 : index
    %133 = vector.load %arg5[%c356, %c0_73] : memref<504x128xf32, #tpu.memory_space<vmem>>, vector<1x32xf32>
    %134 = vector.extract_strided_slice %129 {offsets = [0, 96], sizes = [128, 32], strides = [1, 1]} : vector<128x128xf32> to vector<128x32xf32>
    %135 = vector.broadcast %133 : vector<1x32xf32> to vector<128x32xf32>
    %136 = arith.addf %134, %135 : vector<128x32xf32>
    %cst_74 = arith.constant dense<0.000000e+00> : vector<256x32xf32>
    %137 = tpu.matmul %0, %130, %cst_74 {dimension_numbers = #tpu.dot_dimension_numbers<[1], [0], [0], [1], [0, 0, 1, 1], [], []>} : vector<256x128xf32>, vector<128x32xf32>, vector<256x32xf32> -> vector<256x32xf32>
    %cst_75 = arith.constant dense<0.000000e+00> : vector<256x32xf32>
    %138 = tpu.matmul %1, %131, %cst_75 {dimension_numbers = #tpu.dot_dimension_numbers<[1], [0], [0], [1], [0, 0, 1, 1], [], []>} : vector<256x128xf32>, vector<128x32xf32>, vector<256x32xf32> -> vector<256x32xf32>
    %139 = arith.addf %137, %138 : vector<256x32xf32>
    %140 = vector.broadcast %125 : vector<1x32xf32> to vector<256x32xf32>
    %141 = arith.addf %139, %140 : vector<256x32xf32>
    %cst_76 = arith.constant 0.000000e+00 : f32
    %142 = vector.broadcast %cst_76 : f32 to vector<256x32xf32>
    %143 = arith.maximumf %141, %142 : vector<256x32xf32>
    %cst_77 = arith.constant dense<0.000000e+00> : vector<256x32xf32>
    %144 = tpu.matmul %143, %122, %cst_77 {dimension_numbers = #tpu.dot_dimension_numbers<[1], [0], [0], [1], [0, 0, 1, 1], [], []>} : vector<256x32xf32>, vector<32x32xf32>, vector<256x32xf32> -> vector<256x32xf32>
    %145 = vector.broadcast %126 : vector<1x32xf32> to vector<256x32xf32>
    %146 = arith.addf %144, %145 : vector<256x32xf32>
    %cst_78 = arith.constant dense<0.000000e+00> : vector<128x32xf32>
    %147 = tpu.matmul %2, %146, %cst_78 {dimension_numbers = #tpu.dot_dimension_numbers<[1], [0], [0], [1], [0, 0, 1, 1], [], []>} : vector<128x256xf32>, vector<256x32xf32>, vector<128x32xf32> -> vector<128x32xf32>
    %cst_79 = arith.constant dense<0.000000e+00> : vector<128x32xf32>
    %148 = tpu.matmul %147, %123, %cst_79 {dimension_numbers = #tpu.dot_dimension_numbers<[1], [0], [0], [1], [0, 0, 1, 1], [], []>} : vector<128x32xf32>, vector<32x32xf32>, vector<128x32xf32> -> vector<128x32xf32>
    %149 = arith.addf %132, %148 : vector<128x32xf32>
    %150 = vector.broadcast %127 : vector<1x32xf32> to vector<128x32xf32>
    %151 = arith.addf %149, %150 : vector<128x32xf32>
    %cst_80 = arith.constant 0.000000e+00 : f32
    %152 = vector.broadcast %cst_80 : f32 to vector<128x32xf32>
    %153 = arith.maximumf %151, %152 : vector<128x32xf32>
    %cst_81 = arith.constant dense<0.000000e+00> : vector<128x32xf32>
    %154 = tpu.matmul %153, %124, %cst_81 {dimension_numbers = #tpu.dot_dimension_numbers<[1], [0], [0], [1], [0, 0, 1, 1], [], []>} : vector<128x32xf32>, vector<32x32xf32>, vector<128x32xf32> -> vector<128x32xf32>
    %155 = vector.broadcast %128 : vector<1x32xf32> to vector<128x32xf32>
    %156 = arith.addf %154, %155 : vector<128x32xf32>
    %157 = arith.addf %156, %136 : vector<128x32xf32>
    %cst_82 = arith.constant 0.000000e+00 : f32
    %158 = vector.broadcast %cst_82 : f32 to vector<128x32xf32>
    %159 = arith.maximumf %157, %158 : vector<128x32xf32>
    %c360 = arith.constant 360 : index
    %c0_83 = arith.constant 0 : index
    %160 = vector.load %arg5[%c360, %c0_83] : memref<504x128xf32, #tpu.memory_space<vmem>>, vector<32x128xf32>
    %c392 = arith.constant 392 : index
    %c0_84 = arith.constant 0 : index
    %161 = vector.load %arg5[%c392, %c0_84] : memref<504x128xf32, #tpu.memory_space<vmem>>, vector<32x32xf32>
    %c424 = arith.constant 424 : index
    %c0_85 = arith.constant 0 : index
    %162 = vector.load %arg5[%c424, %c0_85] : memref<504x128xf32, #tpu.memory_space<vmem>>, vector<32x32xf32>
    %c456 = arith.constant 456 : index
    %c0_86 = arith.constant 0 : index
    %163 = vector.load %arg5[%c456, %c0_86] : memref<504x128xf32, #tpu.memory_space<vmem>>, vector<32x32xf32>
    %c488 = arith.constant 488 : index
    %c0_87 = arith.constant 0 : index
    %164 = vector.load %arg5[%c488, %c0_87] : memref<504x128xf32, #tpu.memory_space<vmem>>, vector<1x32xf32>
    %c489 = arith.constant 489 : index
    %c0_88 = arith.constant 0 : index
    %165 = vector.load %arg5[%c489, %c0_88] : memref<504x128xf32, #tpu.memory_space<vmem>>, vector<1x32xf32>
    %c490 = arith.constant 490 : index
    %c0_89 = arith.constant 0 : index
    %166 = vector.load %arg5[%c490, %c0_89] : memref<504x128xf32, #tpu.memory_space<vmem>>, vector<1x32xf32>
    %c491 = arith.constant 491 : index
    %c0_90 = arith.constant 0 : index
    %167 = vector.load %arg5[%c491, %c0_90] : memref<504x128xf32, #tpu.memory_space<vmem>>, vector<1x32xf32>
    %cst_91 = arith.constant dense<0.000000e+00> : vector<128x128xf32>
    %168 = tpu.matmul %159, %160, %cst_91 {dimension_numbers = #tpu.dot_dimension_numbers<[1], [0], [0], [1], [0, 0, 1, 1], [], []>} : vector<128x32xf32>, vector<32x128xf32>, vector<128x128xf32> -> vector<128x128xf32>
    %169 = vector.extract_strided_slice %168 {offsets = [0, 0], sizes = [128, 32], strides = [1, 1]} : vector<128x128xf32> to vector<128x32xf32>
    %170 = vector.extract_strided_slice %168 {offsets = [0, 32], sizes = [128, 32], strides = [1, 1]} : vector<128x128xf32> to vector<128x32xf32>
    %171 = vector.extract_strided_slice %168 {offsets = [0, 64], sizes = [128, 32], strides = [1, 1]} : vector<128x128xf32> to vector<128x32xf32>
    %c492 = arith.constant 492 : index
    %c0_92 = arith.constant 0 : index
    %172 = vector.load %arg5[%c492, %c0_92] : memref<504x128xf32, #tpu.memory_space<vmem>>, vector<1x32xf32>
    %173 = vector.extract_strided_slice %168 {offsets = [0, 96], sizes = [128, 32], strides = [1, 1]} : vector<128x128xf32> to vector<128x32xf32>
    %174 = vector.broadcast %172 : vector<1x32xf32> to vector<128x32xf32>
    %175 = arith.addf %173, %174 : vector<128x32xf32>
    %cst_93 = arith.constant dense<0.000000e+00> : vector<256x32xf32>
    %176 = tpu.matmul %0, %169, %cst_93 {dimension_numbers = #tpu.dot_dimension_numbers<[1], [0], [0], [1], [0, 0, 1, 1], [], []>} : vector<256x128xf32>, vector<128x32xf32>, vector<256x32xf32> -> vector<256x32xf32>
    %cst_94 = arith.constant dense<0.000000e+00> : vector<256x32xf32>
    %177 = tpu.matmul %1, %170, %cst_94 {dimension_numbers = #tpu.dot_dimension_numbers<[1], [0], [0], [1], [0, 0, 1, 1], [], []>} : vector<256x128xf32>, vector<128x32xf32>, vector<256x32xf32> -> vector<256x32xf32>
    %178 = arith.addf %176, %177 : vector<256x32xf32>
    %179 = vector.broadcast %164 : vector<1x32xf32> to vector<256x32xf32>
    %180 = arith.addf %178, %179 : vector<256x32xf32>
    %cst_95 = arith.constant 0.000000e+00 : f32
    %181 = vector.broadcast %cst_95 : f32 to vector<256x32xf32>
    %182 = arith.maximumf %180, %181 : vector<256x32xf32>
    %cst_96 = arith.constant dense<0.000000e+00> : vector<256x32xf32>
    %183 = tpu.matmul %182, %161, %cst_96 {dimension_numbers = #tpu.dot_dimension_numbers<[1], [0], [0], [1], [0, 0, 1, 1], [], []>} : vector<256x32xf32>, vector<32x32xf32>, vector<256x32xf32> -> vector<256x32xf32>
    %184 = vector.broadcast %165 : vector<1x32xf32> to vector<256x32xf32>
    %185 = arith.addf %183, %184 : vector<256x32xf32>
    %cst_97 = arith.constant dense<0.000000e+00> : vector<128x32xf32>
    %186 = tpu.matmul %2, %185, %cst_97 {dimension_numbers = #tpu.dot_dimension_numbers<[1], [0], [0], [1], [0, 0, 1, 1], [], []>} : vector<128x256xf32>, vector<256x32xf32>, vector<128x32xf32> -> vector<128x32xf32>
    %cst_98 = arith.constant dense<0.000000e+00> : vector<128x32xf32>
    %187 = tpu.matmul %186, %162, %cst_98 {dimension_numbers = #tpu.dot_dimension_numbers<[1], [0], [0], [1], [0, 0, 1, 1], [], []>} : vector<128x32xf32>, vector<32x32xf32>, vector<128x32xf32> -> vector<128x32xf32>
    %188 = arith.addf %171, %187 : vector<128x32xf32>
    %189 = vector.broadcast %166 : vector<1x32xf32> to vector<128x32xf32>
    %190 = arith.addf %188, %189 : vector<128x32xf32>
    %cst_99 = arith.constant 0.000000e+00 : f32
    %191 = vector.broadcast %cst_99 : f32 to vector<128x32xf32>
    %192 = arith.maximumf %190, %191 : vector<128x32xf32>
    %cst_100 = arith.constant dense<0.000000e+00> : vector<128x32xf32>
    %193 = tpu.matmul %192, %163, %cst_100 {dimension_numbers = #tpu.dot_dimension_numbers<[1], [0], [0], [1], [0, 0, 1, 1], [], []>} : vector<128x32xf32>, vector<32x32xf32>, vector<128x32xf32> -> vector<128x32xf32>
    %194 = vector.broadcast %167 : vector<1x32xf32> to vector<128x32xf32>
    %195 = arith.addf %193, %194 : vector<128x32xf32>
    %196 = arith.addf %195, %175 : vector<128x32xf32>
    %cst_101 = arith.constant 0.000000e+00 : f32
    %197 = vector.broadcast %cst_101 : f32 to vector<128x32xf32>
    %198 = arith.maximumf %196, %197 : vector<128x32xf32>
    %c496 = arith.constant 496 : index
    %c0_102 = arith.constant 0 : index
    %199 = vector.load %arg5[%c496, %c0_102] : memref<504x128xf32, #tpu.memory_space<vmem>>, vector<1x32xf32>
    %c497 = arith.constant 497 : index
    %c0_103 = arith.constant 0 : index
    %200 = vector.load %arg5[%c497, %c0_103] : memref<504x128xf32, #tpu.memory_space<vmem>>, vector<1x32xf32>
    %cst_104 = arith.constant dense<0.000000e+00> : vector<128xf32>
    %201 = vector.multi_reduction <add>, %198, %cst_104 [1] : vector<128x32xf32> to vector<128xf32>
    %202 = vector.shape_cast %201 : vector<128xf32> to vector<128x1xf32>
    %cst_105 = arith.constant 3.200000e+01 : f32
    %203 = vector.broadcast %cst_105 : f32 to vector<128x1xf32>
    %204 = arith.divf %202, %203 : vector<128x1xf32>
    %205 = vector.broadcast %204 : vector<128x1xf32> to vector<128x32xf32>
    %206 = arith.subf %198, %205 : vector<128x32xf32>
    %207 = arith.mulf %206, %206 : vector<128x32xf32>
    %cst_106 = arith.constant dense<0.000000e+00> : vector<128xf32>
    %208 = vector.multi_reduction <add>, %207, %cst_106 [1] : vector<128x32xf32> to vector<128xf32>
    %209 = vector.shape_cast %208 : vector<128xf32> to vector<128x1xf32>
    %cst_107 = arith.constant 3.200000e+01 : f32
    %210 = vector.broadcast %cst_107 : f32 to vector<128x1xf32>
    %211 = arith.divf %209, %210 : vector<128x1xf32>
    %212 = vector.broadcast %204 : vector<128x1xf32> to vector<128x32xf32>
    %213 = arith.subf %198, %212 : vector<128x32xf32>
    %cst_108 = arith.constant 9.99999974E-6 : f32
    %214 = vector.broadcast %cst_108 : f32 to vector<128x1xf32>
    %215 = arith.addf %211, %214 : vector<128x1xf32>
    %216 = math.rsqrt %215 : vector<128x1xf32>
    %217 = vector.broadcast %216 : vector<128x1xf32> to vector<128x32xf32>
    %218 = arith.mulf %213, %217 : vector<128x32xf32>
    %219 = vector.broadcast %199 : vector<1x32xf32> to vector<128x32xf32>
    %220 = arith.mulf %218, %219 : vector<128x32xf32>
    %221 = vector.broadcast %200 : vector<1x32xf32> to vector<128x32xf32>
    %222 = arith.addf %220, %221 : vector<128x32xf32>
    %c0_109 = arith.constant 0 : index
    %c0_110 = arith.constant 0 : index
    %223 = vector.load %arg6[%c0_109, %c0_110] : memref<128x32xf32, #tpu.memory_space<vmem>>, vector<128x32xf32>
    tpu.vector_store %arg6[%c0_109, %c0_110], %222 {strides = array<i32>} : memref<128x32xf32, #tpu.memory_space<vmem>>, vector<128x32xf32>,
    return
  }
  func.func @transform_0(%arg0: i32) -> (i32, i32) {
    %c0_i32 = arith.constant 0 : i32
    %c0_i32_0 = arith.constant 0 : i32
    return %arg0, %c0_i32 : i32, i32
  }
  func.func @transform_1(%arg0: i32) -> (i32, i32) {
    %c0_i32 = arith.constant 0 : i32
    %c0_i32_0 = arith.constant 0 : i32
    %c0_i32_1 = arith.constant 0 : i32
    return %c0_i32, %c0_i32_0 : i32, i32
  }
  func.func @transform_2(%arg0: i32) -> (i32, i32) {
    %c0_i32 = arith.constant 0 : i32
    %c0_i32_0 = arith.constant 0 : i32
    %c0_i32_1 = arith.constant 0 : i32
    return %c0_i32, %c0_i32_0 : i32, i32
  }
  func.func @transform_3(%arg0: i32) -> (i32, i32) {
    %c0_i32 = arith.constant 0 : i32
    %c0_i32_0 = arith.constant 0 : i32
    %c0_i32_1 = arith.constant 0 : i32
    return %c0_i32, %c0_i32_0 : i32, i32
  }
  func.func @transform_4(%arg0: i32) -> (i32, i32) {
    %c0_i32 = arith.constant 0 : i32
    %c0_i32_0 = arith.constant 0 : i32
    %c0_i32_1 = arith.constant 0 : i32
    return %c0_i32, %c0_i32_0 : i32, i32
  }
  func.func @transform_5(%arg0: i32) -> (i32, i32) {
    %c0_i32 = arith.constant 0 : i32
    %c0_i32_0 = arith.constant 0 : i32
    return %arg0, %c0_i32 : i32, i32
  }
}

</mosaic_0001>

<llo_original>
// kernel: gnn_hypernetwork4_forward.1
$region0: #{gnn_hypernetwork4_forward.1}
  #allocation0 [shape = 'u32[]', space=smem, size = 0x4, offset = 0x4, fixed_abs, tag = 'smem constant byte address 0x4 - core index']
  #allocation1 [shape = 'u32[144,128]{1,0:T(1,128)}', space=vmem, size = 0x12000, scoped, tag = 'internal scratch']
  %s0 = inlined_call_operand.vmem [shape: f32[256,4], index: 0, kind: input, shape index: {}]
  %s1 = inlined_call_operand.vmem [shape: f32[256,128], index: 1, kind: input, shape index: {}]
  %s2 = inlined_call_operand.vmem [shape: f32[256,128], index: 2, kind: input, shape index: {}]
  %s3 = inlined_call_operand.vmem [shape: f32[128,256], index: 3, kind: input, shape index: {}]
  %s4 = inlined_call_operand.vmem [shape: f32[504,128], index: 4, kind: input, shape index: {}]
  %s5 = inlined_call_operand.vmem [shape: f32[256,32], index: 5, kind: output, shape index: {}]
  %s6 = sld [smem:[#allocation0]]
  $region53: #{gnn_hypernetwork4_forward.1} parent=0
    _
  %s8 = ssub.s32 1, %s6
  %s9 = scalar_select 0, %s8, %s6
  loop: start=0, step=1, limit=4
  $region2: #{gnn_hypernetwork4_forward.1} parent=0 // loop_pre_header
    _
  $region3: #{gnn_hypernetwork4_forward.1} parent=0 // loop_header
    %s11 = sphi 0, %s15
    %p12 = scmp.ge.s32.totalorder %s11, 4
    %s21 = sphi 0, %s23
    %s24 = sphi 0, %s21
    %s25 = sphi 0, %s24
    %s41 = sphi 0, %s25
    %s45 = sphi 0, %s45
    %s47 = sphi 0, %s45
    %s48 = sphi 0, %s47
    %s62 = sphi 0, %s48
    %s66 = sphi 0, %s66
    %s68 = sphi 0, %s66
    %s69 = sphi 0, %s68
    %s83 = sphi 0, %s69
    %s87 = sphi 0, %s87
    %s89 = sphi 0, %s87
    %s90 = sphi 0, %s89
    %s104 = sphi 0, %s90
    %s108 = sphi 0, %s108
    %s110 = sphi 0, %s108
    %s111 = sphi 0, %s110
    %s125 = sphi 0, %s111
    %s131 = sphi 0, %s133
    %s134 = sphi 0, %s131
    %s135 = sphi 0, %s134
    %s151 = sphi 0, %s135
  $region4: #{gnn_hypernetwork4_forward.1} parent=0 // loop_header_branch
    %14 = sbr.rel (%p12) target = $region8
  $region5: #{gnn_hypernetwork4_forward.1} parent=0 // loop_body
    %s16 = ssub.s32 %s11, 1
    %s17 = ssub.s32 %s11, 2
    %s18 = sadd.s32 %s11, 1
    %s19 = ssub.s32 %s11, %s18
    %p20 = scmp.eq.s32.totalorder %s19, 0
    %s22 = sadd.s32 %s21, 1
    %s23 = scalar_select %p20, %s21, %s22
    %p26 = pneg %p20
    %p27 = scmp.eq.s32.totalorder %s11, 1
    %p28 = por %p26, %p27
    %p29 = scmp.ne.s32.totalorder %s21, %s24
    %p30 = scmp.eq.s32.totalorder %s11, 0
    %p31 = por %p29, %p30
    %p32 = scmp.ne.s32.totalorder %s21, %s24
    %p33 = scmp.eq.s32.totalorder %s16, 1
    %p34 = por %p32, %p33
    %p35 = scmp.ne.s32.totalorder %s24, %s25
    %p36 = scmp.eq.s32.totalorder %s16, 0
    %p37 = por %p35, %p36
    %p38 = scmp.ne.s32.totalorder %s24, %s25
    %p39 = scmp.eq.s32.totalorder %s17, 1
    %p40 = por %p38, %p39
    %p42 = scmp.ne.s32.totalorder %s25, %s41
    %p43 = scmp.eq.s32.totalorder %s17, 0
    %p44 = por %p42, %p43
    %s46 = sadd.s32 %s45, 1
    %p49 = scmp.eq.s32.totalorder %s11, 1
    %p50 = scmp.ne.s32.totalorder %s45, %s47
    %p51 = scmp.eq.s32.totalorder %s11, 0
    %p52 = por %p50, %p51
    %p53 = scmp.ne.s32.totalorder %s45, %s47
    %p54 = scmp.eq.s32.totalorder %s16, 1
    %p55 = por %p53, %p54
    %p56 = scmp.ne.s32.totalorder %s47, %s48
    %p57 = scmp.eq.s32.totalorder %s16, 0
    %p58 = por %p56, %p57
    %p59 = scmp.ne.s32.totalorder %s47, %s48
    %p60 = scmp.eq.s32.totalorder %s17, 1
    %p61 = por %p59, %p60
    %p63 = scmp.ne.s32.totalorder %s48, %s62
    %p64 = scmp.eq.s32.totalorder %s17, 0
    %p65 = por %p63, %p64
    %s67 = sadd.s32 %s66, 1
    %p70 = scmp.eq.s32.totalorder %s11, 1
    %p71 = scmp.ne.s32.totalorder %s66, %s68
    %p72 = scmp.eq.s32.totalorder %s11, 0
    %p73 = por %p71, %p72
    %p74 = scmp.ne.s32.totalorder %s66, %s68
    %p75 = scmp.eq.s32.totalorder %s16, 1
    %p76 = por %p74, %p75
    %p77 = scmp.ne.s32.totalorder %s68, %s69
    %p78 = scmp.eq.s32.totalorder %s16, 0
    %p79 = por %p77, %p78
    %p80 = scmp.ne.s32.totalorder %s68, %s69
    %p81 = scmp.eq.s32.totalorder %s17, 1
    %p82 = por %p80, %p81
    %p84 = scmp.ne.s32.totalorder %s69, %s83
    %p85 = scmp.eq.s32.totalorder %s17, 0
    %p86 = por %p84, %p85
    %s88 = sadd.s32 %s87, 1
    %p91 = scmp.eq.s32.totalorder %s11, 1
    %p92 = scmp.ne.s32.totalorder %s87, %s89
    %p93 = scmp.eq.s32.totalorder %s11, 0
    %p94 = por %p92, %p93
    %p95 = scmp.ne.s32.totalorder %s87, %s89
    %p96 = scmp.eq.s32.totalorder %s16, 1
    %p97 = por %p95, %p96
    %p98 = scmp.ne.s32.totalorder %s89, %s90
    %p99 = scmp.eq.s32.totalorder %s16, 0
    %p100 = por %p98, %p99
    %p101 = scmp.ne.s32.totalorder %s89, %s90
    %p102 = scmp.eq.s32.totalorder %s17, 1
    %p103 = por %p101, %p102
    %p105 = scmp.ne.s32.totalorder %s90, %s104
    %p106 = scmp.eq.s32.totalorder %s17, 0
    %p107 = por %p105, %p106
    %s109 = sadd.s32 %s108, 1
    %p112 = scmp.eq.s32.totalorder %s11, 1
    %p113 = scmp.ne.s32.totalorder %s108, %s110
    %p114 = scmp.eq.s32.totalorder %s11, 0
    %p115 = por %p113, %p114
    %p116 = scmp.ne.s32.totalorder %s108, %s110
    %p117 = scmp.eq.s32.totalorder %s16, 1
    %p118 = por %p116, %p117
    %p119 = scmp.ne.s32.totalorder %s110, %s111
    %p120 = scmp.eq.s32.totalorder %s16, 0
    %p121 = por %p119, %p120
    %p122 = scmp.ne.s32.totalorder %s110, %s111
    %p123 = scmp.eq.s32.totalorder %s17, 1
    %p124 = por %p122, %p123
    %p126 = scmp.ne.s32.totalorder %s111, %s125
    %p127 = scmp.eq.s32.totalorder %s17, 0
    %p128 = por %p126, %p127
    %s129 = ssub.s32 %s11, %s18
    %p130 = scmp.eq.s32.totalorder %s129, 0
    %s132 = sadd.s32 %s131, 1
    %s133 = scalar_select %p130, %s131, %s132
    %p136 = pneg %p130
    %p137 = scmp.eq.s32.totalorder %s11, 1
    %p138 = por %p136, %p137
    %p139 = scmp.ne.s32.totalorder %s131, %s134
    %p140 = scmp.eq.s32.totalorder %s11, 0
    %p141 = por %p139, %p140
    %p142 = scmp.ne.s32.totalorder %s131, %s134
    %p143 = scmp.eq.s32.totalorder %s16, 1
    %p144 = por %p142, %p143
    %p145 = scmp.ne.s32.totalorder %s134, %s135
    %p146 = scmp.eq.s32.totalorder %s16, 0
    %p147 = por %p145, %p146
    %p148 = scmp.ne.s32.totalorder %s134, %s135
    %p149 = scmp.eq.s32.totalorder %s17, 1
    %p150 = por %p148, %p149
    %p152 = scmp.ne.s32.totalorder %s135, %s151
    %p153 = scmp.eq.s32.totalorder %s17, 0
    %p154 = por %p152, %p153
    %p155 = scmp.le.s32.totalorder 1, %s11
    %p156 = scmp.lt.s32.totalorder %s11, 3
    %p157 = pnand %p155, %p156
    %p158 = pneg %p157
    // Predicated region
    $region9: #{gnn_hypernetwork4_forward.1} parent=5 // pred_check
      _
    $region10: #{gnn_hypernetwork4_forward.1} parent=5 // pred_check_branch
      %160 = sbr.rel (%p157) target = $region12
    $region11: #{gnn_hypernetwork4_forward.1} parent=5 // pred_region
      %s161 = ssub.s32 %s11, 1
      // Predicated region
      $region13: #{gnn_hypernetwork4_forward.1} parent=11 // pred_check
        %p162 = pneg %p58
      $region14: #{gnn_hypernetwork4_forward.1} parent=11 // pred_check_branch
        %164 = sbr.rel (%p162) target = $region16
      $region15: #{gnn_hypernetwork4_forward.1} parent=11 // pred_region
        _
      $region16: #{gnn_hypernetwork4_forward.1} parent=11 // pred_fallthru
        _
      // Predicated region
      $region17: #{gnn_hypernetwork4_forward.1} parent=11 // pred_check
        %p165 = pneg %p79
      $region18: #{gnn_hypernetwork4_forward.1} parent=11 // pred_check_branch
        %167 = sbr.rel (%p165) target = $region20
      $region19: #{gnn_hypernetwork4_forward.1} parent=11 // pred_region
        _
      $region20: #{gnn_hypernetwork4_forward.1} parent=11 // pred_fallthru
        _
      // Predicated region
      $region21: #{gnn_hypernetwork4_forward.1} parent=11 // pred_check
        %p168 = pneg %p100
      $region22: #{gnn_hypernetwork4_forward.1} parent=11 // pred_check_branch
        %170 = sbr.rel (%p168) target = $region24
      $region23: #{gnn_hypernetwork4_forward.1} parent=11 // pred_region
        _
      $region24: #{gnn_hypernetwork4_forward.1} parent=11 // pred_fallthru
        _
      // Predicated region
      $region25: #{gnn_hypernetwork4_forward.1} parent=11 // pred_check
        %p171 = pneg %p121
      $region26: #{gnn_hypernetwork4_forward.1} parent=11 // pred_check_branch
        %173 = sbr.rel (%p171) target = $region28
      $region27: #{gnn_hypernetwork4_forward.1} parent=11 // pred_region
        _
      $region28: #{gnn_hypernetwork4_forward.1} parent=11 // pred_fallthru
        _
    $region12: #{gnn_hypernetwork4_forward.1} parent=5 // pred_fallthru
      _
    %p174 = scmp.lt.s32.totalorder %s11, 2
    // Predicated region
    $region29: #{gnn_hypernetwork4_forward.1} parent=5 // pred_check
      %p175 = pneg %p174
    $region30: #{gnn_hypernetwork4_forward.1} parent=5 // pred_check_branch
      %177 = sbr.rel (%p175) target = $region32
    $region31: #{gnn_hypernetwork4_forward.1} parent=5 // pred_region
      // Predicated region
      $region33: #{gnn_hypernetwork4_forward.1} parent=31 // pred_check
        %p178 = pneg %p31
      $region34: #{gnn_hypernetwork4_forward.1} parent=31 // pred_check_branch
        %180 = sbr.rel (%p178) target = $region36
      $region35: #{gnn_hypernetwork4_forward.1} parent=31 // pred_region
        %s181 = smul.u32 16, %s11
        %p182 = scmp.lt.s32.totalorder %s181, 31
        %s183 = scalar_select %p182, %s181, 31
        %s184 = smul.addr %s183, 8
        %s185 = scalar_lea.vmem %s0, %s184
        %s186 = smul.u32 16, %s11
      $region36: #{gnn_hypernetwork4_forward.1} parent=31 // pred_fallthru
        _
    $region32: #{gnn_hypernetwork4_forward.1} parent=5 // pred_fallthru
      _
    %p187 = scmp.le.s32.totalorder 1, %s11
    %p188 = scmp.lt.s32.totalorder %s11, 3
    %p189 = pnand %p187, %p188
    %p190 = pneg %p189
    // Predicated region
    $region37: #{gnn_hypernetwork4_forward.1} parent=5 // pred_check
      _
    $region38: #{gnn_hypernetwork4_forward.1} parent=5 // pred_check_branch
      %192 = sbr.rel (%p189) target = $region40
    $region39: #{gnn_hypernetwork4_forward.1} parent=5 // pred_region
      %s193 = ssub.s32 %s11, 1
      %s194 = smul.u32 16, %s16
      %p195 = scmp.lt.s32.totalorder %s194, 31
      %s196 = scalar_select %p195, %s194, 31
      %s197 = smul.addr %s196, 8
      %s198 = scalar_lea.vmem %s0, %s197
      %p199 = pneg %p37
      %p200 = pneg %p34
      %p201 = pneg %p58
      %p202 = pneg %p55
      %p203 = pneg %p79
      %p204 = pneg %p76
      %p205 = pneg %p100
      %p206 = pneg %p97
      %p207 = pneg %p121
      %p208 = pneg %p118
      %p209 = pneg %p147
      %p210 = pneg %p144
      %s211 = smul.u32 16, %s16
      %p212 = scmp.lt.s32.totalorder %s211, 31
      %s213 = scalar_select %p212, %s211, 31
      %s214 = smul.addr %s213, 8
      %s215 = scalar_lea.vmem %s5, %s214
      %s216 = smul.u32 16, %s16
      %p217 = scmp.lt.s32.totalorder %s216, 31
      %s218 = scalar_select %p217, %s216, 31
      %s219 = smul.addr %s218, 8
      %s220 = scalar_lea.vmem %s0, %s219
      %s221 = smul.u32 16, %s16
      %s222 = smul.u32 16, %s16
      %p223 = scmp.lt.s32.totalorder %s222, 31
      %s224 = scalar_select %p223, %s222, 31
      %s225 = smul.addr %s224, 8
      %s226 = scalar_lea.vmem %s5, %s225
      %s227 = smul.u32 16, %s16
      %v228 = vld [vmem:[%s1] sm:$0xff]
      %v229 = vld [vmem:[%s1 + $0x8] sm:$0xff]
      %v230 = vld [vmem:[%s1 + $0x10] sm:$0xff]
      %v231 = vld [vmem:[%s1 + $0x18] sm:$0xff]
      %v232 = vld [vmem:[%s1 + $0x20] sm:$0xff]
      %v233 = vld [vmem:[%s1 + $0x28] sm:$0xff]
      %v234 = vld [vmem:[%s1 + $0x30] sm:$0xff]
      %v235 = vld [vmem:[%s1 + $0x38] sm:$0xff]
      %v236 = vld [vmem:[%s1 + $0x40] sm:$0xff]
      %v237 = vld [vmem:[%s1 + $0x48] sm:$0xff]
      %v238 = vld [vmem:[%s1 + $0x50] sm:$0xff]
      %v239 = vld [vmem:[%s1 + $0x58] sm:$0xff]
      %v240 = vld [vmem:[%s1 + $0x60] sm:$0xff]
      %v241 = vld [vmem:[%s1 + $0x68] sm:$0xff]
      %v242 = vld [vmem:[%s1 + $0x70] sm:$0xff]
      %v243 = vld [vmem:[%s1 + $0x78] sm:$0xff]
      %v244 = vld [vmem:[%s1 + $0x80] sm:$0xff]
      %v245 = vld [vmem:[%s1 + $0x88] sm:$0xff]
      %v246 = vld [vmem:[%s1 + $0x90] sm:$0xff]
      %v247 = vld [vmem:[%s1 + $0x98] sm:$0xff]
      %v248 = vld [vmem:[%s1 + $0xa0] sm:$0xff]
      %v249 = vld [vmem:[%s1 + $0xa8] sm:$0xff]
      %v250 = vld [vmem:[%s1 + $0xb0] sm:$0xff]
      %v251 = vld [vmem:[%s1 + $0xb8] sm:$0xff]
      %v252 = vld [vmem:[%s1 + $0xc0] sm:$0xff]
      %v253 = vld [vmem:[%s1 + $0xc8] sm:$0xff]
      %v254 = vld [vmem:[%s1 + $0xd0] sm:$0xff]
      %v255 = vld [vmem:[%s1 + $0xd8] sm:$0xff]
      %v256 = vld [vmem:[%s1 + $0xe0] sm:$0xff]
      %v257 = vld [vmem:[%s1 + $0xe8] sm:$0xff]
      %v258 = vld [vmem:[%s1 + $0xf0] sm:$0xff]
      %v259 = vld [vmem:[%s1 + $0xf8] sm:$0xff]
      %v260 = vld [vmem:[%s2] sm:$0xff]
      %v261 = vld [vmem:[%s2 + $0x8] sm:$0xff]
      %v262 = vld [vmem:[%s2 + $0x10] sm:$0xff]
      %v263 = vld [vmem:[%s2 + $0x18] sm:$0xff]
      %v264 = vld [vmem:[%s2 + $0x20] sm:$0xff]
      %v265 = vld [vmem:[%s2 + $0x28] sm:$0xff]
      %v266 = vld [vmem:[%s2 + $0x30] sm:$0xff]
      %v267 = vld [vmem:[%s2 + $0x38] sm:$0xff]
      %v268 = vld [vmem:[%s2 + $0x40] sm:$0xff]
      %v269 = vld [vmem:[%s2 + $0x48] sm:$0xff]
      %v270 = vld [vmem:[%s2 + $0x50] sm:$0xff]
      %v271 = vld [vmem:[%s2 + $0x58] sm:$0xff]
      %v272 = vld [vmem:[%s2 + $0x60] sm:$0xff]
      %v273 = vld [vmem:[%s2 + $0x68] sm:$0xff]
      %v274 = vld [vmem:[%s2 + $0x70] sm:$0xff]
      %v275 = vld [vmem:[%s2 + $0x78] sm:$0xff]
      %v276 = vld [vmem:[%s2 + $0x80] sm:$0xff]
      %v277 = vld [vmem:[%s2 + $0x88] sm:$0xff]
      %v278 = vld [vmem:[%s2 + $0x90] sm:$0xff]
      %v279 = vld [vmem:[%s2 + $0x98] sm:$0xff]
      %v280 = vld [vmem:[%s2 + $0xa0] sm:$0xff]
      %v281 = vld [vmem:[%s2 + $0xa8] sm:$0xff]
      %v282 = vld [vmem:[%s2 + $0xb0] sm:$0xff]
      %v283 = vld [vmem:[%s2 + $0xb8] sm:$0xff]
      %v284 = vld [vmem:[%s2 + $0xc0] sm:$0xff]
      %v285 = vld [vmem:[%s2 + $0xc8] sm:$0xff]
      %v286 = vld [vmem:[%s2 + $0xd0] sm:$0xff]
      %v287 = vld [vmem:[%s2 + $0xd8] sm:$0xff]
      %v288 = vld [vmem:[%s2 + $0xe0] sm:$0xff]
      %v289 = vld [vmem:[%s2 + $0xe8] sm:$0xff]
      %v290 = vld [vmem:[%s2 + $0xf0] sm:$0xff]
      %v291 = vld [vmem:[%s2 + $0xf8] sm:$0xff]
      %v292 = vld [vmem:[%s3] sm:$0xff]
      %v293 = vld [vmem:[%s3 + $0x8] sm:$0xff]
      %v294 = vld [vmem:[%s3 + $0x10] sm:$0xff]
      %v295 = vld [vmem:[%s3 + $0x18] sm:$0xff]
      %v296 = vld [vmem:[%s3 + $0x20] sm:$0xff]
      %v297 = vld [vmem:[%s3 + $0x28] sm:$0xff]
      %v298 = vld [vmem:[%s3 + $0x30] sm:$0xff]
      %v299 = vld [vmem:[%s3 + $0x38] sm:$0xff]
      %v300 = vld [vmem:[%s3 + $0x40] sm:$0xff]
      %v301 = vld [vmem:[%s3 + $0x48] sm:$0xff]
      %v302 = vld [vmem:[%s3 + $0x50] sm:$0xff]
      %v303 = vld [vmem:[%s3 + $0x58] sm:$0xff]
      %v304 = vld [vmem:[%s3 + $0x60] sm:$0xff]
      %v305 = vld [vmem:[%s3 + $0x68] sm:$0xff]
      %v306 = vld [vmem:[%s3 + $0x70] sm:$0xff]
      %v307 = vld [vmem:[%s3 + $0x78] sm:$0xff]
      %v308 = vld [vmem:[%s3 + $0x80] sm:$0xff]
      %v309 = vld [vmem:[%s3 + $0x88] sm:$0xff]
      %v310 = vld [vmem:[%s3 + $0x90] sm:$0xff]
      %v311 = vld [vmem:[%s3 + $0x98] sm:$0xff]
      %v312 = vld [vmem:[%s3 + $0xa0] sm:$0xff]
      %v313 = vld [vmem:[%s3 + $0xa8] sm:$0xff]
      %v314 = vld [vmem:[%s3 + $0xb0] sm:$0xff]
      %v315 = vld [vmem:[%s3 + $0xb8] sm:$0xff]
      %v316 = vld [vmem:[%s3 + $0xc0] sm:$0xff]
      %v317 = vld [vmem:[%s3 + $0xc8] sm:$0xff]
      %v318 = vld [vmem:[%s3 + $0xd0] sm:$0xff]
      %v319 = vld [vmem:[%s3 + $0xd8] sm:$0xff]
      %v320 = vld [vmem:[%s3 + $0xe0] sm:$0xff]
      %v321 = vld [vmem:[%s3 + $0xe8] sm:$0xff]
      %v322 = vld [vmem:[%s3 + $0xf0] sm:$0xff]
      %v323 = vld [vmem:[%s3 + $0xf8] sm:$0xff]
      %v324 = vld [vmem:[%s220] sm:$0xff]
      %v325 = vld [vmem:[%s220 + $0x8] sm:$0xff]
      %v326 = vld [vmem:[%s220 + $0x10] sm:$0xff]
      %v327 = vld [vmem:[%s220 + $0x18] sm:$0xff]
      %v328 = vld [vmem:[%s220 + $0x20] sm:$0xff]
      %v329 = vld [vmem:[%s220 + $0x28] sm:$0xff]
      %v330 = vld [vmem:[%s220 + $0x30] sm:$0xff]
      %v331 = vld [vmem:[%s220 + $0x38] sm:$0xff]
      %v332 = vld [vmem:[%s220 + $0x40] sm:$0xff]
      %v333 = vld [vmem:[%s220 + $0x48] sm:$0xff]
      %v334 = vld [vmem:[%s220 + $0x50] sm:$0xff]
      %v335 = vld [vmem:[%s220 + $0x58] sm:$0xff]
      %v336 = vld [vmem:[%s220 + $0x60] sm:$0xff]
      %v337 = vld [vmem:[%s220 + $0x68] sm:$0xff]
      %v338 = vld [vmem:[%s220 + $0x70] sm:$0xff]
      %v339 = vld [vmem:[%s220 + $0x78] sm:$0xff]
      %v340 = vld [vmem:[%s4] sm:$0xf]
      %v341 = vld [vmem:[%s4 + $0x8] sm:$0xff]
      %v342 = vld [vmem:[%s4 + $0x10] sm:$0xff]
      %v343 = vld [vmem:[%s4 + $0x18] sm:$0xff]
      %v344 = vld [vmem:[%s4 + $0x20] sm:$0x1]
      %v345 = vld [vmem:[%s4 + $0x21] sm:$0x1]
      %v346 = vld [vmem:[%s4 + $0x22] sm:$0x1]
      %v347 = vld [vmem:[%s4 + $0x23] sm:$0x1]
      %vm348 = vcmask 31744
      %v350 = vsel %vm348, %v324, 0
      %v353 = vsel %vm348, %v325, 0
      %v356 = vsel %vm348, %v326, 0
      %v359 = vsel %vm348, %v327, 0
      %v362 = vsel %vm348, %v328, 0
      %v365 = vsel %vm348, %v329, 0
      %v368 = vsel %vm348, %v330, 0
      %v371 = vsel %vm348, %v331, 0
      %v374 = vsel %vm348, %v332, 0
      %v377 = vsel %vm348, %v333, 0
      %v380 = vsel %vm348, %v334, 0
      %v383 = vsel %vm348, %v335, 0
      %v386 = vsel %vm348, %v336, 0
      %v389 = vsel %vm348, %v337, 0
      %v392 = vsel %vm348, %v338, 0
      %v395 = vsel %vm348, %v339, 0
      %vm397 = vcmask 1043456
      %v399 = vsel %vm397, %v340, 0
      %401 = vmatprep.subr.mxu0 0.0
      %402 = vmatpush1.msra.mxu0 0.0
      %403 = vmatprep.subr.mxu0 0.0
      %404 = vmatpush1.msra.mxu0 0.0
      %405 = vmatprep.subr.mxu0 0.0
      %406 = vmatpush1.msra.mxu0 0.0
      %407 = vmatprep.subr.mxu0 0.0
      %408 = vmatpush1.msra.mxu0 0.0
      %409 = vmatprep.subr.mxu0 0.0
      %410 = vmatpush1.msra.mxu0 0.0
      %411 = vmatprep.subr.mxu0 0.0
      %412 = vmatpush1.msra.mxu0 0.0
      %413 = vmatprep.subr.mxu0 0.0
      %414 = vmatpush1.msra.mxu0 0.0
      %415 = vmatprep.subr.mxu0 0.0
      %416 = vmatpush1.msra.mxu0 0.0
      %417 = vmatprep.subr.mxu0 0.0
      %418 = vmatpush1.msra.mxu0 0.0
      %419 = vmatprep.subr.mxu0 0.0
      %420 = vmatpush1.msra.mxu0 0.0
      %421 = vmatprep.subr.mxu0 0.0
      %422 = vmatpush1.msra.mxu0 0.0
      %423 = vmatprep.subr.mxu0 0.0
      %424 = vmatpush1.msra.mxu0 0.0
      %425 = vmatprep.subr.mxu0 0.0
      %426 = vmatpush1.msra.mxu0 0.0
      %427 = vmatprep.subr.mxu0 0.0
      %428 = vmatpush1.msra.mxu0 0.0
      %429 = vmatprep.subr.mxu0 0.0
      %430 = vmatpush1.msra.mxu0 0.0
      %431 = vmatprep.subr.mxu0 0.0
      %432 = vmatpush1.msra.mxu0 %v399
      %433 = vmatprep.subr.mxu0 0.0
      %434 = vmatpush2.msra.mxu0 0.0
      %435 = vmatprep.subr.mxu0 0.0
      %436 = vmatpush2.msra.mxu0 0.0
      %437 = vmatprep.subr.mxu0 0.0
      %438 = vmatpush2.msra.mxu0 0.0
      %439 = vmatprep.subr.mxu0 0.0
      %440 = vmatpush2.msra.mxu0 0.0
      %441 = vmatprep.subr.mxu0 0.0
      %442 = vmatpush2.msra.mxu0 0.0
      %443 = vmatprep.subr.mxu0 0.0
      %444 = vmatpush2.msra.mxu0 0.0
      %445 = vmatprep.subr.mxu0 0.0
      %446 = vmatpush2.msra.mxu0 0.0
      %447 = vmatprep.subr.mxu0 0.0
      %448 = vmatpush2.msra.mxu0 0.0
      %449 = vmatprep.subr.mxu0 0.0
      %450 = vmatpush2.msra.mxu0 0.0
      %451 = vmatprep.subr.mxu0 0.0
      %452 = vmatpush2.msra.mxu0 0.0
      %453 = vmatprep.subr.mxu0 0.0
      %454 = vmatpush2.msra.mxu0 0.0
      %455 = vmatprep.subr.mxu0 0.0
      %456 = vmatpush2.msra.mxu0 0.0
      %457 = vmatprep.subr.mxu0 0.0
      %458 = vmatpush2.msra.mxu0 0.0
      %459 = vmatprep.subr.mxu0 0.0
      %460 = vmatpush2.msra.mxu0 0.0
      %461 = vmatprep.subr.mxu0 0.0
      %462 = vmatpush2.msra.mxu0 0.0
      %463 = vmatprep.subr.mxu0 0.0
      %464 = vmatpush2.msra.mxu0 0.0
      %465 = vmatprep.mubr.f32.mxu0 0.0
      %466 = vmatmul.mubr.f32.gmra.mxu0 %v350
      %v467 = vpop.f32.mrf.mxu0
      %v468 = vadd.f32 0.0, %v467
      %v469 = vpop.f32.mrf.mxu0
      %470 = vmatprep.mubr.f32.mxu0 0.0
      %471 = vmatmul.mubr.f32.gmra.mxu0 %v353
      %v472 = vpop.f32.mrf.mxu0
      %v473 = vadd.f32 0.0, %v472
      %v474 = vpop.f32.mrf.mxu0
      %475 = vmatprep.mubr.f32.mxu0 0.0
      %476 = vmatmul.mubr.f32.gmra.mxu0 %v356
      %v477 = vpop.f32.mrf.mxu0
      %v478 = vadd.f32 0.0, %v477
      %v479 = vpop.f32.mrf.mxu0
      %480 = vmatprep.mubr.f32.mxu0 0.0
      %481 = vmatmul.mubr.f32.gmra.mxu0 %v359
      %v482 = vpop.f32.mrf.mxu0
      %v483 = vadd.f32 0.0, %v482
      %v484 = vpop.f32.mrf.mxu0
      %485 = vmatprep.mubr.f32.mxu0 0.0
      %486 = vmatmul.mubr.f32.gmra.mxu0 %v362
      %v487 = vpop.f32.mrf.mxu0
      %v488 = vadd.f32 0.0, %v487
      %v489 = vpop.f32.mrf.mxu0
      %490 = vmatprep.mubr.f32.mxu0 0.0
      %491 = vmatmul.mubr.f32.gmra.mxu0 %v365
      %v492 = vpop.f32.mrf.mxu0
      %v493 = vadd.f32 0.0, %v492
      %v494 = vpop.f32.mrf.mxu0
      %495 = vmatprep.mubr.f32.mxu0 0.0
      %496 = vmatmul.mubr.f32.gmra.mxu0 %v368
      %v497 = vpop.f32.mrf.mxu0
      %v498 = vadd.f32 0.0, %v497
      %v499 = vpop.f32.mrf.mxu0
      %500 = vmatprep.mubr.f32.mxu0 0.0
      %501 = vmatmul.mubr.f32.gmra.mxu0 %v371
      %v502 = vpop.f32.mrf.mxu0
      %v503 = vadd.f32 0.0, %v502
      %v504 = vpop.f32.mrf.mxu0
      %505 = vmatprep.mubr.f32.mxu0 0.0
      %506 = vmatmul.mubr.f32.gmra.mxu0 %v374
      %v507 = vpop.f32.mrf.mxu0
      %v508 = vadd.f32 0.0, %v507
      %v509 = vpop.f32.mrf.mxu0
      %510 = vmatprep.mubr.f32.mxu0 0.0
      %511 = vmatmul.mubr.f32.gmra.mxu0 %v377
      %v512 = vpop.f32.mrf.mxu0
      %v513 = vadd.f32 0.0, %v512
      %v514 = vpop.f32.mrf.mxu0
      %515 = vmatprep.mubr.f32.mxu0 0.0
      %516 = vmatmul.mubr.f32.gmra.mxu0 %v380
      %v517 = vpop.f32.mrf.mxu0
      %v518 = vadd.f32 0.0, %v517
      %v519 = vpop.f32.mrf.mxu0
      %520 = vmatprep.mubr.f32.mxu0 0.0
      %521 = vmatmul.mubr.f32.gmra.mxu0 %v383
      %v522 = vpop.f32.mrf.mxu0
      %v523 = vadd.f32 0.0, %v522
      %v524 = vpop.f32.mrf.mxu0
      %525 = vmatprep.mubr.f32.mxu0 0.0
      %526 = vmatmul.mubr.f32.gmra.mxu0 %v386
      %v527 = vpop.f32.mrf.mxu0
      %v528 = vadd.f32 0.0, %v527
      %v529 = vpop.f32.mrf.mxu0
      %530 = vmatprep.mubr.f32.mxu0 0.0
      %531 = vmatmul.mubr.f32.gmra.mxu0 %v389
      %v532 = vpop.f32.mrf.mxu0
      %v533 = vadd.f32 0.0, %v532
      %v534 = vpop.f32.mrf.mxu0
      %535 = vmatprep.mubr.f32.mxu0 0.0
      %536 = vmatmul.mubr.f32.gmra.mxu0 %v392
      %v537 = vpop.f32.mrf.mxu0
      %v538 = vadd.f32 0.0, %v537
      %v539 = vpop.f32.mrf.mxu0
      %540 = vmatprep.mubr.f32.mxu0 0.0
      %541 = vmatmul.mubr.f32.gmra.mxu0 %v395
      %v542 = vpop.f32.mrf.mxu0
      %v543 = vadd.f32 0.0, %v542
      %v544 = vpop.f32.mrf.mxu0
      %545 = vdwg.mxu0
      %v546 = vld [vmem:[%s4 + $0x24] sm:$0x1]
      %v547 = vlaneseq
      %v548 = vshrl.u32 %v547, 7
      %v549 = vsub.s32 0, %v548
      %v550 = vrot.slane %v546, %v549
      %552 = vrot.lane.b32.xlu0 %v550, 24
      %v553 = vpop.permute.xlu0 %552
      %v555 = vadd.f32 %v468, %v553
      %v556 = vadd.f32 %v473, %v553
      %v557 = vadd.f32 %v478, %v553
      %v558 = vadd.f32 %v483, %v553
      %v559 = vadd.f32 %v488, %v553
      %v560 = vadd.f32 %v493, %v553
      %v561 = vadd.f32 %v498, %v553
      %v562 = vadd.f32 %v503, %v553
      %v563 = vadd.f32 %v508, %v553
      %v564 = vadd.f32 %v513, %v553
      %v565 = vadd.f32 %v518, %v553
      %v566 = vadd.f32 %v523, %v553
      %v567 = vadd.f32 %v528, %v553
      %v568 = vadd.f32 %v533, %v553
      %v569 = vadd.f32 %v538, %v553
      %v570 = vadd.f32 %v543, %v553
      %587 = vrot.lane.b32.xlu0 %v468, 120
      %v588 = vpop.permute.xlu0 %587
      %589 = vrot.lane.b32.xlu0 %v473, 120
      %v590 = vpop.permute.xlu0 %589
      %591 = vrot.lane.b32.xlu0 %v478, 120
      %v592 = vpop.permute.xlu0 %591
      %593 = vrot.lane.b32.xlu0 %v483, 120
      %v594 = vpop.permute.xlu0 %593
      %595 = vrot.lane.b32.xlu0 %v488, 120
      %v596 = vpop.permute.xlu0 %595
      %597 = vrot.lane.b32.xlu0 %v493, 120
      %v598 = vpop.permute.xlu0 %597
      %599 = vrot.lane.b32.xlu0 %v498, 120
      %v600 = vpop.permute.xlu0 %599
      %601 = vrot.lane.b32.xlu0 %v503, 120
      %v602 = vpop.permute.xlu0 %601
      %603 = vrot.lane.b32.xlu0 %v508, 120
      %v604 = vpop.permute.xlu0 %603
      %605 = vrot.lane.b32.xlu0 %v513, 120
      %v606 = vpop.permute.xlu0 %605
      %607 = vrot.lane.b32.xlu0 %v518, 120
      %v608 = vpop.permute.xlu0 %607
      %609 = vrot.lane.b32.xlu0 %v523, 120
      %v610 = vpop.permute.xlu0 %609
      %611 = vrot.lane.b32.xlu0 %v528, 120
      %v612 = vpop.permute.xlu0 %611
      %613 = vrot.lane.b32.xlu0 %v533, 120
      %v614 = vpop.permute.xlu0 %613
      %615 = vrot.lane.b32.xlu0 %v538, 120
      %v616 = vpop.permute.xlu0 %615
      %617 = vrot.lane.b32.xlu0 %v543, 120
      %v618 = vpop.permute.xlu0 %617
      %635 = vmatprep.subr.mxu0 0.0
      %636 = vmatpush1.msra.mxu0 %v618
      %637 = vmatprep.subr.mxu0 0.0
      %638 = vmatpush1.msra.mxu0 %v616
      %639 = vmatprep.subr.mxu0 0.0
      %640 = vmatpush1.msra.mxu0 %v614
      %641 = vmatprep.subr.mxu0 0.0
      %642 = vmatpush1.msra.mxu0 %v612
      %643 = vmatprep.subr.mxu0 0.0
      %644 = vmatpush1.msra.mxu0 %v610
      %645 = vmatprep.subr.mxu0 0.0
      %646 = vmatpush1.msra.mxu0 %v608
      %647 = vmatprep.subr.mxu0 0.0
      %648 = vmatpush1.msra.mxu0 %v606
      %649 = vmatprep.subr.mxu0 0.0
      %650 = vmatpush1.msra.mxu0 %v604
      %651 = vmatprep.subr.mxu0 0.0
      %652 = vmatpush1.msra.mxu0 %v602
      %653 = vmatprep.subr.mxu0 0.0
      %654 = vmatpush1.msra.mxu0 %v600
      %655 = vmatprep.subr.mxu0 0.0
      %656 = vmatpush1.msra.mxu0 %v598
      %657 = vmatprep.subr.mxu0 0.0
      %658 = vmatpush1.msra.mxu0 %v596
      %659 = vmatprep.subr.mxu0 0.0
      %660 = vmatpush1.msra.mxu0 %v594
      %661 = vmatprep.subr.mxu0 0.0
      %662 = vmatpush1.msra.mxu0 %v592
      %663 = vmatprep.subr.mxu0 0.0
      %664 = vmatpush1.msra.mxu0 %v590
      %665 = vmatprep.subr.mxu0 0.0
      %666 = vmatpush1.msra.mxu0 %v588
      %667 = vmatprep.subr.mxu0 0.0
      %668 = vmatpush2.msra.mxu0 0.0
      %669 = vmatprep.subr.mxu0 0.0
      %670 = vmatpush2.msra.mxu0 0.0
      %671 = vmatprep.subr.mxu0 0.0
      %672 = vmatpush2.msra.mxu0 0.0
      %673 = vmatprep.subr.mxu0 0.0
      %674 = vmatpush2.msra.mxu0 0.0
      %675 = vmatprep.subr.mxu0 0.0
      %676 = vmatpush2.msra.mxu0 0.0
      %677 = vmatprep.subr.mxu0 0.0
      %678 = vmatpush2.msra.mxu0 0.0
      %679 = vmatprep.subr.mxu0 0.0
      %680 = vmatpush2.msra.mxu0 0.0
      %681 = vmatprep.subr.mxu0 0.0
      %682 = vmatpush2.msra.mxu0 0.0
      %683 = vmatprep.subr.mxu0 0.0
      %684 = vmatpush2.msra.mxu0 0.0
      %685 = vmatprep.subr.mxu0 0.0
      %686 = vmatpush2.msra.mxu0 0.0
      %687 = vmatprep.subr.mxu0 0.0
      %688 = vmatpush2.msra.mxu0 0.0
      %689 = vmatprep.subr.mxu0 0.0
      %690 = vmatpush2.msra.mxu0 0.0
      %691 = vmatprep.subr.mxu0 0.0
      %692 = vmatpush2.msra.mxu0 0.0
      %693 = vmatprep.subr.mxu0 0.0
      %694 = vmatpush2.msra.mxu0 0.0
      %695 = vmatprep.subr.mxu0 0.0
      %696 = vmatpush2.msra.mxu0 0.0
      %697 = vmatprep.subr.mxu0 0.0
      %698 = vmatpush2.msra.mxu0 0.0
      %699 = vmatprep.mubr.f32.mxu0 0.0
      %700 = vmatmul.mubr.f32.gmra.mxu0 %v260
      %v701 = vpop.f32.mrf.mxu0
      %v702 = vadd.f32 0.0, %v701
      %v703 = vpop.f32.mrf.mxu0
      %704 = vmatprep.mubr.f32.mxu0 0.0
      %705 = vmatmul.mubr.f32.gmra.mxu0 %v261
      %v706 = vpop.f32.mrf.mxu0
      %v707 = vadd.f32 0.0, %v706
      %v708 = vpop.f32.mrf.mxu0
      %709 = vmatprep.mubr.f32.mxu0 0.0
      %710 = vmatmul.mubr.f32.gmra.mxu0 %v262
      %v711 = vpop.f32.mrf.mxu0
      %v712 = vadd.f32 0.0, %v711
      %v713 = vpop.f32.mrf.mxu0
      %714 = vmatprep.mubr.f32.mxu0 0.0
      %715 = vmatmul.mubr.f32.gmra.mxu0 %v263
      %v716 = vpop.f32.mrf.mxu0
      %v717 = vadd.f32 0.0, %v716
      %v718 = vpop.f32.mrf.mxu0
      %719 = vmatprep.mubr.f32.mxu0 0.0
      %720 = vmatmul.mubr.f32.gmra.mxu0 %v264
      %v721 = vpop.f32.mrf.mxu0
      %v722 = vadd.f32 0.0, %v721
      %v723 = vpop.f32.mrf.mxu0
      %724 = vmatprep.mubr.f32.mxu0 0.0
      %725 = vmatmul.mubr.f32.gmra.mxu0 %v265
      %v726 = vpop.f32.mrf.mxu0
      %v727 = vadd.f32 0.0, %v726
      %v728 = vpop.f32.mrf.mxu0
      %729 = vmatprep.mubr.f32.mxu0 0.0
      %730 = vmatmul.mubr.f32.gmra.mxu0 %v266
      %v731 = vpop.f32.mrf.mxu0
      %v732 = vadd.f32 0.0, %v731
      %v733 = vpop.f32.mrf.mxu0
      %734 = vmatprep.mubr.f32.mxu0 0.0
      %735 = vmatmul.mubr.f32.gmra.mxu0 %v267
      %v736 = vpop.f32.mrf.mxu0
      %v737 = vadd.f32 0.0, %v736
      %v738 = vpop.f32.mrf.mxu0
      %739 = vmatprep.mubr.f32.mxu0 0.0
      %740 = vmatmul.mubr.f32.gmra.mxu0 %v268
      %v741 = vpop.f32.mrf.mxu0
      %v742 = vadd.f32 0.0, %v741
      %v743 = vpop.f32.mrf.mxu0
      %744 = vmatprep.mubr.f32.mxu0 0.0
      %745 = vmatmul.mubr.f32.gmra.mxu0 %v269
      %v746 = vpop.f32.mrf.mxu0
      %v747 = vadd.f32 0.0, %v746
      %v748 = vpop.f32.mrf.mxu0
      %749 = vmatprep.mubr.f32.mxu0 0.0
      %750 = vmatmul.mubr.f32.gmra.mxu0 %v270
      %v751 = vpop.f32.mrf.mxu0
      %v752 = vadd.f32 0.0, %v751
      %v753 = vpop.f32.mrf.mxu0
      %754 = vmatprep.mubr.f32.mxu0 0.0
      %755 = vmatmul.mubr.f32.gmra.mxu0 %v271
      %v756 = vpop.f32.mrf.mxu0
      %v757 = vadd.f32 0.0, %v756
      %v758 = vpop.f32.mrf.mxu0
      %759 = vmatprep.mubr.f32.mxu0 0.0
      %760 = vmatmul.mubr.f32.gmra.mxu0 %v272
      %v761 = vpop.f32.mrf.mxu0
      %v762 = vadd.f32 0.0, %v761
      %v763 = vpop.f32.mrf.mxu0
      %764 = vmatprep.mubr.f32.mxu0 0.0
      %765 = vmatmul.mubr.f32.gmra.mxu0 %v273
      %v766 = vpop.f32.mrf.mxu0
      %v767 = vadd.f32 0.0, %v766
      %v768 = vpop.f32.mrf.mxu0
      %769 = vmatprep.mubr.f32.mxu0 0.0
      %770 = vmatmul.mubr.f32.gmra.mxu0 %v274
      %v771 = vpop.f32.mrf.mxu0
      %v772 = vadd.f32 0.0, %v771
      %v773 = vpop.f32.mrf.mxu0
      %774 = vmatprep.mubr.f32.mxu0 0.0
      %775 = vmatmul.mubr.f32.gmra.mxu0 %v275
      %v776 = vpop.f32.mrf.mxu0
      %v777 = vadd.f32 0.0, %v776
      %v778 = vpop.f32.mrf.mxu0
      %779 = vmatprep.mubr.f32.mxu0 0.0
      %780 = vmatmul.mubr.f32.gmra.mxu0 %v276
      %v781 = vpop.f32.mrf.mxu0
      %v782 = vadd.f32 0.0, %v781
      %v783 = vpop.f32.mrf.mxu0
      %784 = vmatprep.mubr.f32.mxu0 0.0
      %785 = vmatmul.mubr.f32.gmra.mxu0 %v277
      %v786 = vpop.f32.mrf.mxu0
      %v787 = vadd.f32 0.0, %v786
      %v788 = vpop.f32.mrf.mxu0
      %789 = vmatprep.mubr.f32.mxu0 0.0
      %790 = vmatmul.mubr.f32.gmra.mxu0 %v278
      %v791 = vpop.f32.mrf.mxu0
      %v792 = vadd.f32 0.0, %v791
      %v793 = vpop.f32.mrf.mxu0
      %794 = vmatprep.mubr.f32.mxu0 0.0
      %795 = vmatmul.mubr.f32.gmra.mxu0 %v279
      %v796 = vpop.f32.mrf.mxu0
      %v797 = vadd.f32 0.0, %v796
      %v798 = vpop.f32.mrf.mxu0
      %799 = vmatprep.mubr.f32.mxu0 0.0
      %800 = vmatmul.mubr.f32.gmra.mxu0 %v280
      %v801 = vpop.f32.mrf.mxu0
      %v802 = vadd.f32 0.0, %v801
      %v803 = vpop.f32.mrf.mxu0
      %804 = vmatprep.mubr.f32.mxu0 0.0
      %805 = vmatmul.mubr.f32.gmra.mxu0 %v281
      %v806 = vpop.f32.mrf.mxu0
      %v807 = vadd.f32 0.0, %v806
      %v808 = vpop.f32.mrf.mxu0
      %809 = vmatprep.mubr.f32.mxu0 0.0
      %810 = vmatmul.mubr.f32.gmra.mxu0 %v282
      %v811 = vpop.f32.mrf.mxu0
      %v812 = vadd.f32 0.0, %v811
      %v813 = vpop.f32.mrf.mxu0
      %814 = vmatprep.mubr.f32.mxu0 0.0
      %815 = vmatmul.mubr.f32.gmra.mxu0 %v283
      %v816 = vpop.f32.mrf.mxu0
      %v817 = vadd.f32 0.0, %v816
      %v818 = vpop.f32.mrf.mxu0
      %819 = vmatprep.mubr.f32.mxu0 0.0
      %820 = vmatmul.mubr.f32.gmra.mxu0 %v284
      %v821 = vpop.f32.mrf.mxu0
      %v822 = vadd.f32 0.0, %v821
      %v823 = vpop.f32.mrf.mxu0
      %824 = vmatprep.mubr.f32.mxu0 0.0
      %825 = vmatmul.mubr.f32.gmra.mxu0 %v285
      %v826 = vpop.f32.mrf.mxu0
      %v827 = vadd.f32 0.0, %v826
      %v828 = vpop.f32.mrf.mxu0
      %829 = vmatprep.mubr.f32.mxu0 0.0
      %830 = vmatmul.mubr.f32.gmra.mxu0 %v286
      %v831 = vpop.f32.mrf.mxu0
      %v832 = vadd.f32 0.0, %v831
      %v833 = vpop.f32.mrf.mxu0
      %834 = vmatprep.mubr.f32.mxu0 0.0
      %835 = vmatmul.mubr.f32.gmra.mxu0 %v287
      %v836 = vpop.f32.mrf.mxu0
      %v837 = vadd.f32 0.0, %v836
      %v838 = vpop.f32.mrf.mxu0
      %839 = vmatprep.mubr.f32.mxu0 0.0
      %840 = vmatmul.mubr.f32.gmra.mxu0 %v288
      %v841 = vpop.f32.mrf.mxu0
      %v842 = vadd.f32 0.0, %v841
      %v843 = vpop.f32.mrf.mxu0
      %844 = vmatprep.mubr.f32.mxu0 0.0
      %845 = vmatmul.mubr.f32.gmra.mxu0 %v289
      %v846 = vpop.f32.mrf.mxu0
      %v847 = vadd.f32 0.0, %v846
      %v848 = vpop.f32.mrf.mxu0
      %849 = vmatprep.mubr.f32.mxu0 0.0
      %850 = vmatmul.mubr.f32.gmra.mxu0 %v290
      %v851 = vpop.f32.mrf.mxu0
      %v852 = vadd.f32 0.0, %v851
      %v853 = vpop.f32.mrf.mxu0
      %854 = vmatprep.mubr.f32.mxu0 0.0
      %855 = vmatmul.mubr.f32.gmra.mxu0 %v291
      %v856 = vpop.f32.mrf.mxu0
      %v857 = vadd.f32 0.0, %v856
      %v858 = vpop.f32.mrf.mxu0
      %859 = vdwg.mxu0
      %860 = vmatprep.subr.mxu0 0.0
      %861 = vmatpush1.msra.mxu0 %v543
      %862 = vmatprep.subr.mxu0 0.0
      %863 = vmatpush1.msra.mxu0 %v538
      %864 = vmatprep.subr.mxu0 0.0
      %865 = vmatpush1.msra.mxu0 %v533
      %866 = vmatprep.subr.mxu0 0.0
      %867 = vmatpush1.msra.mxu0 %v528
      %868 = vmatprep.subr.mxu0 0.0
      %869 = vmatpush1.msra.mxu0 %v523
      %870 = vmatprep.subr.mxu0 0.0
      %871 = vmatpush1.msra.mxu0 %v518
      %872 = vmatprep.subr.mxu0 0.0
      %873 = vmatpush1.msra.mxu0 %v513
      %874 = vmatprep.subr.mxu0 0.0
      %875 = vmatpush1.msra.mxu0 %v508
      %876 = vmatprep.subr.mxu0 0.0
      %877 = vmatpush1.msra.mxu0 %v503
      %878 = vmatprep.subr.mxu0 0.0
      %879 = vmatpush1.msra.mxu0 %v498
      %880 = vmatprep.subr.mxu0 0.0
      %881 = vmatpush1.msra.mxu0 %v493
      %882 = vmatprep.subr.mxu0 0.0
      %883 = vmatpush1.msra.mxu0 %v488
      %884 = vmatprep.subr.mxu0 0.0
      %885 = vmatpush1.msra.mxu0 %v483
      %886 = vmatprep.subr.mxu0 0.0
      %887 = vmatpush1.msra.mxu0 %v478
      %888 = vmatprep.subr.mxu0 0.0
      %889 = vmatpush1.msra.mxu0 %v473
      %890 = vmatprep.subr.mxu0 0.0
      %891 = vmatpush1.msra.mxu0 %v468
      %892 = vmatprep.subr.mxu0 0.0
      %893 = vmatpush2.msra.mxu0 0.0
      %894 = vmatprep.subr.mxu0 0.0
      %895 = vmatpush2.msra.mxu0 0.0
      %896 = vmatprep.subr.mxu0 0.0
      %897 = vmatpush2.msra.mxu0 0.0
      %898 = vmatprep.subr.mxu0 0.0
      %899 = vmatpush2.msra.mxu0 0.0
      %900 = vmatprep.subr.mxu0 0.0
      %901 = vmatpush2.msra.mxu0 0.0
      %902 = vmatprep.subr.mxu0 0.0
      %903 = vmatpush2.msra.mxu0 0.0
      %904 = vmatprep.subr.mxu0 0.0
      %905 = vmatpush2.msra.mxu0 0.0
      %906 = vmatprep.subr.mxu0 0.0
      %907 = vmatpush2.msra.mxu0 0.0
      %908 = vmatprep.subr.mxu0 0.0
      %909 = vmatpush2.msra.mxu0 0.0
      %910 = vmatprep.subr.mxu0 0.0
      %911 = vmatpush2.msra.mxu0 0.0
      %912 = vmatprep.subr.mxu0 0.0
      %913 = vmatpush2.msra.mxu0 0.0
      %914 = vmatprep.subr.mxu0 0.0
      %915 = vmatpush2.msra.mxu0 0.0
      %916 = vmatprep.subr.mxu0 0.0
      %917 = vmatpush2.msra.mxu0 0.0
      %918 = vmatprep.subr.mxu0 0.0
      %919 = vmatpush2.msra.mxu0 0.0
      %920 = vmatprep.subr.mxu0 0.0
      %921 = vmatpush2.msra.mxu0 0.0
      %922 = vmatprep.subr.mxu0 0.0
      %923 = vmatpush2.msra.mxu0 0.0
      %924 = vmatprep.mubr.f32.mxu0 0.0
      %925 = vmatmul.mubr.f32.gmra.mxu0 %v228
      %v926 = vpop.f32.mrf.mxu0
      %v927 = vadd.f32 %v702, %v926
      %v928 = vpop.f32.mrf.mxu0
      %929 = vmatprep.mubr.f32.mxu0 0.0
      %930 = vmatmul.mubr.f32.gmra.mxu0 %v229
      %v931 = vpop.f32.mrf.mxu0
      %v932 = vadd.f32 %v707, %v931
      %v933 = vpop.f32.mrf.mxu0
      %934 = vmatprep.mubr.f32.mxu0 0.0
      %935 = vmatmul.mubr.f32.gmra.mxu0 %v230
      %v936 = vpop.f32.mrf.mxu0
      %v937 = vadd.f32 %v712, %v936
      %v938 = vpop.f32.mrf.mxu0
      %939 = vmatprep.mubr.f32.mxu0 0.0
      %940 = vmatmul.mubr.f32.gmra.mxu0 %v231
      %v941 = vpop.f32.mrf.mxu0
      %v942 = vadd.f32 %v717, %v941
      %v943 = vpop.f32.mrf.mxu0
      %944 = vmatprep.mubr.f32.mxu0 0.0
      %945 = vmatmul.mubr.f32.gmra.mxu0 %v232
      %v946 = vpop.f32.mrf.mxu0
      %v947 = vadd.f32 %v722, %v946
      %v948 = vpop.f32.mrf.mxu0
      %949 = vmatprep.mubr.f32.mxu0 0.0
      %950 = vmatmul.mubr.f32.gmra.mxu0 %v233
      %v951 = vpop.f32.mrf.mxu0
      %v952 = vadd.f32 %v727, %v951
      %v953 = vpop.f32.mrf.mxu0
      %954 = vmatprep.mubr.f32.mxu0 0.0
      %955 = vmatmul.mubr.f32.gmra.mxu0 %v234
      %v956 = vpop.f32.mrf.mxu0
      %v957 = vadd.f32 %v732, %v956
      %v958 = vpop.f32.mrf.mxu0
      %959 = vmatprep.mubr.f32.mxu0 0.0
      %960 = vmatmul.mubr.f32.gmra.mxu0 %v235
      %v961 = vpop.f32.mrf.mxu0
      %v962 = vadd.f32 %v737, %v961
      %v963 = vpop.f32.mrf.mxu0
      %964 = vmatprep.mubr.f32.mxu0 0.0
      %965 = vmatmul.mubr.f32.gmra.mxu0 %v236
      %v966 = vpop.f32.mrf.mxu0
      %v967 = vadd.f32 %v742, %v966
      %v968 = vpop.f32.mrf.mxu0
      %969 = vmatprep.mubr.f32.mxu0 0.0
      %970 = vmatmul.mubr.f32.gmra.mxu0 %v237
      %v971 = vpop.f32.mrf.mxu0
      %v972 = vadd.f32 %v747, %v971
      %v973 = vpop.f32.mrf.mxu0
      %974 = vmatprep.mubr.f32.mxu0 0.0
      %975 = vmatmul.mubr.f32.gmra.mxu0 %v238
      %v976 = vpop.f32.mrf.mxu0
      %v977 = vadd.f32 %v752, %v976
      %v978 = vpop.f32.mrf.mxu0
      %979 = vmatprep.mubr.f32.mxu0 0.0
      %980 = vmatmul.mubr.f32.gmra.mxu0 %v239
      %v981 = vpop.f32.mrf.mxu0
      %v982 = vadd.f32 %v757, %v981
      %v983 = vpop.f32.mrf.mxu0
      %984 = vmatprep.mubr.f32.mxu0 0.0
      %985 = vmatmul.mubr.f32.gmra.mxu0 %v240
      %v986 = vpop.f32.mrf.mxu0
      %v987 = vadd.f32 %v762, %v986
      %v988 = vpop.f32.mrf.mxu0
      %989 = vmatprep.mubr.f32.mxu0 0.0
      %990 = vmatmul.mubr.f32.gmra.mxu0 %v241
      %v991 = vpop.f32.mrf.mxu0
      %v992 = vadd.f32 %v767, %v991
      %v993 = vpop.f32.mrf.mxu0
      %994 = vmatprep.mubr.f32.mxu0 0.0
      %995 = vmatmul.mubr.f32.gmra.mxu0 %v242
      %v996 = vpop.f32.mrf.mxu0
      %v997 = vadd.f32 %v772, %v996
      %v998 = vpop.f32.mrf.mxu0
      %999 = vmatprep.mubr.f32.mxu0 0.0
      %1000 = vmatmul.mubr.f32.gmra.mxu0 %v243
      %v1001 = vpop.f32.mrf.mxu0
      %v1002 = vadd.f32 %v777, %v1001
      %v1003 = vpop.f32.mrf.mxu0
      %1004 = vmatprep.mubr.f32.mxu0 0.0
      %1005 = vmatmul.mubr.f32.gmra.mxu0 %v244
      %v1006 = vpop.f32.mrf.mxu0
      %v1007 = vadd.f32 %v782, %v1006
      %v1008 = vpop.f32.mrf.mxu0
      %1009 = vmatprep.mubr.f32.mxu0 0.0
      %1010 = vmatmul.mubr.f32.gmra.mxu0 %v245
      %v1011 = vpop.f32.mrf.mxu0
      %v1012 = vadd.f32 %v787, %v1011
      %v1013 = vpop.f32.mrf.mxu0
      %1014 = vmatprep.mubr.f32.mxu0 0.0
      %1015 = vmatmul.mubr.f32.gmra.mxu0 %v246
      %v1016 = vpop.f32.mrf.mxu0
      %v1017 = vadd.f32 %v792, %v1016
      %v1018 = vpop.f32.mrf.mxu0
      %1019 = vmatprep.mubr.f32.mxu0 0.0
      %1020 = vmatmul.mubr.f32.gmra.mxu0 %v247
      %v1021 = vpop.f32.mrf.mxu0
      %v1022 = vadd.f32 %v797, %v1021
      %v1023 = vpop.f32.mrf.mxu0
      %1024 = vmatprep.mubr.f32.mxu0 0.0
      %1025 = vmatmul.mubr.f32.gmra.mxu0 %v248
      %v1026 = vpop.f32.mrf.mxu0
      %v1027 = vadd.f32 %v802, %v1026
      %v1028 = vpop.f32.mrf.mxu0
      %1029 = vmatprep.mubr.f32.mxu0 0.0
      %1030 = vmatmul.mubr.f32.gmra.mxu0 %v249
      %v1031 = vpop.f32.mrf.mxu0
      %v1032 = vadd.f32 %v807, %v1031
      %v1033 = vpop.f32.mrf.mxu0
      %1034 = vmatprep.mubr.f32.mxu0 0.0
      %1035 = vmatmul.mubr.f32.gmra.mxu0 %v250
      %v1036 = vpop.f32.mrf.mxu0
      %v1037 = vadd.f32 %v812, %v1036
      %v1038 = vpop.f32.mrf.mxu0
      %1039 = vmatprep.mubr.f32.mxu0 0.0
      %1040 = vmatmul.mubr.f32.gmra.mxu0 %v251
      %v1041 = vpop.f32.mrf.mxu0
      %v1042 = vadd.f32 %v817, %v1041
      %v1043 = vpop.f32.mrf.mxu0
      %1044 = vmatprep.mubr.f32.mxu0 0.0
      %1045 = vmatmul.mubr.f32.gmra.mxu0 %v252
      %v1046 = vpop.f32.mrf.mxu0
      %v1047 = vadd.f32 %v822, %v1046
      %v1048 = vpop.f32.mrf.mxu0
      %1049 = vmatprep.mubr.f32.mxu0 0.0
      %1050 = vmatmul.mubr.f32.gmra.mxu0 %v253
      %v1051 = vpop.f32.mrf.mxu0
      %v1052 = vadd.f32 %v827, %v1051
      %v1053 = vpop.f32.mrf.mxu0
      %1054 = vmatprep.mubr.f32.mxu0 0.0
      %1055 = vmatmul.mubr.f32.gmra.mxu0 %v254
      %v1056 = vpop.f32.mrf.mxu0
      %v1057 = vadd.f32 %v832, %v1056
      %v1058 = vpop.f32.mrf.mxu0
      %1059 = vmatprep.mubr.f32.mxu0 0.0
      %1060 = vmatmul.mubr.f32.gmra.mxu0 %v255
      %v1061 = vpop.f32.mrf.mxu0
      %v1062 = vadd.f32 %v837, %v1061
      %v1063 = vpop.f32.mrf.mxu0
      %1064 = vmatprep.mubr.f32.mxu0 0.0
      %1065 = vmatmul.mubr.f32.gmra.mxu0 %v256
      %v1066 = vpop.f32.mrf.mxu0
      %v1067 = vadd.f32 %v842, %v1066
      %v1068 = vpop.f32.mrf.mxu0
      %1069 = vmatprep.mubr.f32.mxu0 0.0
      %1070 = vmatmul.mubr.f32.gmra.mxu0 %v257
      %v1071 = vpop.f32.mrf.mxu0
      %v1072 = vadd.f32 %v847, %v1071
      %v1073 = vpop.f32.mrf.mxu0
      %1074 = vmatprep.mubr.f32.mxu0 0.0
      %1075 = vmatmul.mubr.f32.gmra.mxu0 %v258
      %v1076 = vpop.f32.mrf.mxu0
      %v1077 = vadd.f32 %v852, %v1076
      %v1078 = vpop.f32.mrf.mxu0
      %1079 = vmatprep.mubr.f32.mxu0 0.0
      %1080 = vmatmul.mubr.f32.gmra.mxu0 %v259
      %v1081 = vpop.f32.mrf.mxu0
      %v1082 = vadd.f32 %v857, %v1081
      %v1083 = vpop.f32.mrf.mxu0
      %1084 = vdwg.mxu0
      %v1085 = vlaneseq
      %v1086 = vshrl.u32 %v1085, 7
      %v1087 = vsub.s32 0, %v1086
      %v1088 = vrot.slane %v344, %v1087
      %v1089 = vadd.f32 %v927, %v1088
      %v1090 = vadd.f32 %v932, %v1088
      %v1091 = vadd.f32 %v937, %v1088
      %v1092 = vadd.f32 %v942, %v1088
      %v1093 = vadd.f32 %v947, %v1088
      %v1094 = vadd.f32 %v952, %v1088
      %v1095 = vadd.f32 %v957, %v1088
      %v1096 = vadd.f32 %v962, %v1088
      %v1097 = vadd.f32 %v967, %v1088
      %v1098 = vadd.f32 %v972, %v1088
      %v1099 = vadd.f32 %v977, %v1088
      %v1100 = vadd.f32 %v982, %v1088
      %v1101 = vadd.f32 %v987, %v1088
      %v1102 = vadd.f32 %v992, %v1088
      %v1103 = vadd.f32 %v997, %v1088
      %v1104 = vadd.f32 %v1002, %v1088
      %v1105 = vadd.f32 %v1007, %v1088
      %v1106 = vadd.f32 %v1012, %v1088
      %v1107 = vadd.f32 %v1017, %v1088
      %v1108 = vadd.f32 %v1022, %v1088
      %v1109 = vadd.f32 %v1027, %v1088
      %v1110 = vadd.f32 %v1032, %v1088
      %v1111 = vadd.f32 %v1037, %v1088
      %v1112 = vadd.f32 %v1042, %v1088
      %v1113 = vadd.f32 %v1047, %v1088
      %v1114 = vadd.f32 %v1052, %v1088
      %v1115 = vadd.f32 %v1057, %v1088
      %v1116 = vadd.f32 %v1062, %v1088
      %v1117 = vadd.f32 %v1067, %v1088
      %v1118 = vadd.f32 %v1072, %v1088
      %v1119 = vadd.f32 %v1077, %v1088
      %v1120 = vadd.f32 %v1082, %v1088
      %v1121 = vmax.f32 %v1089, 0.0
      %v1122 = vmax.f32 %v1090, 0.0
      %v1123 = vmax.f32 %v1091, 0.0
      %v1124 = vmax.f32 %v1092, 0.0
      %v1125 = vmax.f32 %v1093, 0.0
      %v1126 = vmax.f32 %v1094, 0.0
      %v1127 = vmax.f32 %v1095, 0.0
      %v1128 = vmax.f32 %v1096, 0.0
      %v1129 = vmax.f32 %v1097, 0.0
      %v1130 = vmax.f32 %v1098, 0.0
      %v1131 = vmax.f32 %v1099, 0.0
      %v1132 = vmax.f32 %v1100, 0.0
      %v1133 = vmax.f32 %v1101, 0.0
      %v1134 = vmax.f32 %v1102, 0.0
      %v1135 = vmax.f32 %v1103, 0.0
      %v1136 = vmax.f32 %v1104, 0.0
      %v1137 = vmax.f32 %v1105, 0.0
      %v1138 = vmax.f32 %v1106, 0.0
      %v1139 = vmax.f32 %v1107, 0.0
      %v1140 = vmax.f32 %v1108, 0.0
      %v1141 = vmax.f32 %v1109, 0.0
      %v1142 = vmax.f32 %v1110, 0.0
      %v1143 = vmax.f32 %v1111, 0.0
      %v1144 = vmax.f32 %v1112, 0.0
      %v1145 = vmax.f32 %v1113, 0.0
      %v1146 = vmax.f32 %v1114, 0.0
      %v1147 = vmax.f32 %v1115, 0.0
      %v1148 = vmax.f32 %v1116, 0.0
      %v1149 = vmax.f32 %v1117, 0.0
      %v1150 = vmax.f32 %v1118, 0.0
      %v1151 = vmax.f32 %v1119, 0.0
      %v1152 = vmax.f32 %v1120, 0.0
      %v1153 = vlaneseq
      %v1154 = vshrl.u32 %v1153, 7
      %v1155 = vsub.s32 0, %v1154
      %v1156 = vrot.slane %v345, %v1155
      %vm1157 = vcmask 64512
      %v1159 = vsel %vm1157, %v1121, 0
      %v1162 = vsel %vm1157, %v1122, 0
      %v1165 = vsel %vm1157, %v1123, 0
      %v1168 = vsel %vm1157, %v1124, 0
      %v1171 = vsel %vm1157, %v1125, 0
      %v1174 = vsel %vm1157, %v1126, 0
      %v1177 = vsel %vm1157, %v1127, 0
      %v1180 = vsel %vm1157, %v1128, 0
      %v1183 = vsel %vm1157, %v1129, 0
      %v1186 = vsel %vm1157, %v1130, 0
      %v1189 = vsel %vm1157, %v1131, 0
      %v1192 = vsel %vm1157, %v1132, 0
      %v1195 = vsel %vm1157, %v1133, 0
      %v1198 = vsel %vm1157, %v1134, 0
      %v1201 = vsel %vm1157, %v1135, 0
      %v1204 = vsel %vm1157, %v1136, 0
      %v1207 = vsel %vm1157, %v1137, 0
      %v1210 = vsel %vm1157, %v1138, 0
      %v1213 = vsel %vm1157, %v1139, 0
      %v1216 = vsel %vm1157, %v1140, 0
      %v1219 = vsel %vm1157, %v1141, 0
      %v1222 = vsel %vm1157, %v1142, 0
      %v1225 = vsel %vm1157, %v1143, 0
      %v1228 = vsel %vm1157, %v1144, 0
      %v1231 = vsel %vm1157, %v1145, 0
      %v1234 = vsel %vm1157, %v1146, 0
      %v1237 = vsel %vm1157, %v1147, 0
      %v1240 = vsel %vm1157, %v1148, 0
      %v1243 = vsel %vm1157, %v1149, 0
      %v1246 = vsel %vm1157, %v1150, 0
      %v1249 = vsel %vm1157, %v1151, 0
      %v1252 = vsel %vm1157, %v1152, 0
      %1254 = vmatprep.subr.mxu0 0.0
      %1255 = vmatpush1.msra.mxu0 0.0
      %1256 = vmatprep.subr.mxu0 0.0
      %1257 = vmatpush1.msra.mxu0 0.0
      %1258 = vmatprep.subr.mxu0 0.0
      %1259 = vmatpush1.msra.mxu0 0.0
      %1260 = vmatprep.subr.mxu0 0.0
      %1261 = vmatpush1.msra.mxu0 0.0
      %1262 = vmatprep.subr.mxu0 0.0
      %1263 = vmatpush1.msra.mxu0 0.0
      %1264 = vmatprep.subr.mxu0 0.0
      %1265 = vmatpush1.msra.mxu0 0.0
      %1266 = vmatprep.subr.mxu0 0.0
      %1267 = vmatpush1.msra.mxu0 0.0
      %1268 = vmatprep.subr.mxu0 0.0
      %1269 = vmatpush1.msra.mxu0 0.0
      %1270 = vmatprep.subr.mxu0 0.0
      %1271 = vmatpush1.msra.mxu0 0.0
      %1272 = vmatprep.subr.mxu0 0.0
      %1273 = vmatpush1.msra.mxu0 0.0
      %1274 = vmatprep.subr.mxu0 0.0
      %1275 = vmatpush1.msra.mxu0 0.0
      %1276 = vmatprep.subr.mxu0 0.0
      %1277 = vmatpush1.msra.mxu0 0.0
      %1278 = vmatprep.subr.mxu0 0.0
      %1279 = vmatpush1.msra.mxu0 0.0
      %1280 = vmatprep.subr.mxu0 0.0
      %1281 = vmatpush1.msra.mxu0 0.0
      %1282 = vmatprep.subr.mxu0 0.0
      %1283 = vmatpush1.msra.mxu0 0.0
      %1284 = vmatprep.subr.mxu0 0.0
      %1285 = vmatpush1.msra.mxu0 %v341
      %1286 = vmatprep.subr.mxu0 0.0
      %1287 = vmatpush2.msra.mxu0 0.0
      %1288 = vmatprep.subr.mxu0 0.0
      %1289 = vmatpush2.msra.mxu0 0.0
      %1290 = vmatprep.subr.mxu0 0.0
      %1291 = vmatpush2.msra.mxu0 0.0
      %1292 = vmatprep.subr.mxu0 0.0
      %1293 = vmatpush2.msra.mxu0 0.0
      %1294 = vmatprep.subr.mxu0 0.0
      %1295 = vmatpush2.msra.mxu0 0.0
      %1296 = vmatprep.subr.mxu0 0.0
      %1297 = vmatpush2.msra.mxu0 0.0
      %1298 = vmatprep.subr.mxu0 0.0
      %1299 = vmatpush2.msra.mxu0 0.0
      %1300 = vmatprep.subr.mxu0 0.0
      %1301 = vmatpush2.msra.mxu0 0.0
      %1302 = vmatprep.subr.mxu0 0.0
      %1303 = vmatpush2.msra.mxu0 0.0
      %1304 = vmatprep.subr.mxu0 0.0
      %1305 = vmatpush2.msra.mxu0 0.0
      %1306 = vmatprep.subr.mxu0 0.0
      %1307 = vmatpush2.msra.mxu0 0.0
      %1308 = vmatprep.subr.mxu0 0.0
      %1309 = vmatpush2.msra.mxu0 0.0
      %1310 = vmatprep.subr.mxu0 0.0
      %1311 = vmatpush2.msra.mxu0 0.0
      %1312 = vmatprep.subr.mxu0 0.0
      %1313 = vmatpush2.msra.mxu0 0.0
      %1314 = vmatprep.subr.mxu0 0.0
      %1315 = vmatpush2.msra.mxu0 0.0
      %1316 = vmatprep.subr.mxu0 0.0
      %1317 = vmatpush2.msra.mxu0 0.0
      %1318 = vmatprep.mubr.f32.mxu0 0.0
      %1319 = vmatmul.mubr.f32.gmra.mxu0 %v1159
      %v1320 = vpop.f32.mrf.mxu0
      %v1321 = vadd.f32 %v1156, %v1320
      %v1322 = vpop.f32.mrf.mxu0
      %1323 = vmatprep.mubr.f32.mxu0 0.0
      %1324 = vmatmul.mubr.f32.gmra.mxu0 %v1162
      %v1325 = vpop.f32.mrf.mxu0
      %v1326 = vadd.f32 %v1156, %v1325
      %v1327 = vpop.f32.mrf.mxu0
      %1328 = vmatprep.mubr.f32.mxu0 0.0
      %1329 = vmatmul.mubr.f32.gmra.mxu0 %v1165
      %v1330 = vpop.f32.mrf.mxu0
      %v1331 = vadd.f32 %v1156, %v1330
      %v1332 = vpop.f32.mrf.mxu0
      %1333 = vmatprep.mubr.f32.mxu0 0.0
      %1334 = vmatmul.mubr.f32.gmra.mxu0 %v1168
      %v1335 = vpop.f32.mrf.mxu0
      %v1336 = vadd.f32 %v1156, %v1335
      %v1337 = vpop.f32.mrf.mxu0
      %1338 = vmatprep.mubr.f32.mxu0 0.0
      %1339 = vmatmul.mubr.f32.gmra.mxu0 %v1171
      %v1340 = vpop.f32.mrf.mxu0
      %v1341 = vadd.f32 %v1156, %v1340
      %v1342 = vpop.f32.mrf.mxu0
      %1343 = vmatprep.mubr.f32.mxu0 0.0
      %1344 = vmatmul.mubr.f32.gmra.mxu0 %v1174
      %v1345 = vpop.f32.mrf.mxu0
      %v1346 = vadd.f32 %v1156, %v1345
      %v1347 = vpop.f32.mrf.mxu0
      %1348 = vmatprep.mubr.f32.mxu0 0.0
      %1349 = vmatmul.mubr.f32.gmra.mxu0 %v1177
      %v1350 = vpop.f32.mrf.mxu0
      %v1351 = vadd.f32 %v1156, %v1350
      %v1352 = vpop.f32.mrf.mxu0
      %1353 = vmatprep.mubr.f32.mxu0 0.0
      %1354 = vmatmul.mubr.f32.gmra.mxu0 %v1180
      %v1355 = vpop.f32.mrf.mxu0
      %v1356 = vadd.f32 %v1156, %v1355
      %v1357 = vpop.f32.mrf.mxu0
      %1358 = vmatprep.mubr.f32.mxu0 0.0
      %1359 = vmatmul.mubr.f32.gmra.mxu0 %v1183
      %v1360 = vpop.f32.mrf.mxu0
      %v1361 = vadd.f32 %v1156, %v1360
      %v1362 = vpop.f32.mrf.mxu0
      %1363 = vmatprep.mubr.f32.mxu0 0.0
      %1364 = vmatmul.mubr.f32.gmra.mxu0 %v1186
      %v1365 = vpop.f32.mrf.mxu0
      %v1366 = vadd.f32 %v1156, %v1365
      %v1367 = vpop.f32.mrf.mxu0
      %1368 = vmatprep.mubr.f32.mxu0 0.0
      %1369 = vmatmul.mubr.f32.gmra.mxu0 %v1189
      %v1370 = vpop.f32.mrf.mxu0
      %v1371 = vadd.f32 %v1156, %v1370
      %v1372 = vpop.f32.mrf.mxu0
      %1373 = vmatprep.mubr.f32.mxu0 0.0
      %1374 = vmatmul.mubr.f32.gmra.mxu0 %v1192
      %v1375 = vpop.f32.mrf.mxu0
      %v1376 = vadd.f32 %v1156, %v1375
      %v1377 = vpop.f32.mrf.mxu0
      %1378 = vmatprep.mubr.f32.mxu0 0.0
      %1379 = vmatmul.mubr.f32.gmra.mxu0 %v1195
      %v1380 = vpop.f32.mrf.mxu0
      %v1381 = vadd.f32 %v1156, %v1380
      %v1382 = vpop.f32.mrf.mxu0
      %1383 = vmatprep.mubr.f32.mxu0 0.0
      %1384 = vmatmul.mubr.f32.gmra.mxu0 %v1198
      %v1385 = vpop.f32.mrf.mxu0
      %v1386 = vadd.f32 %v1156, %v1385
      %v1387 = vpop.f32.mrf.mxu0
      %1388 = vmatprep.mubr.f32.mxu0 0.0
      %1389 = vmatmul.mubr.f32.gmra.mxu0 %v1201
      %v1390 = vpop.f32.mrf.mxu0
      %v1391 = vadd.f32 %v1156, %v1390
      %v1392 = vpop.f32.mrf.mxu0
      %1393 = vmatprep.mubr.f32.mxu0 0.0
      %1394 = vmatmul.mubr.f32.gmra.mxu0 %v1204
      %v1395 = vpop.f32.mrf.mxu0
      %v1396 = vadd.f32 %v1156, %v1395
      %v1397 = vpop.f32.mrf.mxu0
      %1398 = vmatprep.mubr.f32.mxu0 0.0
      %1399 = vmatmul.mubr.f32.gmra.mxu0 %v1207
      %v1400 = vpop.f32.mrf.mxu0
      %v1401 = vadd.f32 %v1156, %v1400
      %v1402 = vpop.f32.mrf.mxu0
      %1403 = vmatprep.mubr.f32.mxu0 0.0
      %1404 = vmatmul.mubr.f32.gmra.mxu0 %v1210
      %v1405 = vpop.f32.mrf.mxu0
      %v1406 = vadd.f32 %v1156, %v1405
      %v1407 = vpop.f32.mrf.mxu0
      %1408 = vmatprep.mubr.f32.mxu0 0.0
      %1409 = vmatmul.mubr.f32.gmra.mxu0 %v1213
      %v1410 = vpop.f32.mrf.mxu0
      %v1411 = vadd.f32 %v1156, %v1410
      %v1412 = vpop.f32.mrf.mxu0
      %1413 = vmatprep.mubr.f32.mxu0 0.0
      %1414 = vmatmul.mubr.f32.gmra.mxu0 %v1216
      %v1415 = vpop.f32.mrf.mxu0
      %v1416 = vadd.f32 %v1156, %v1415
      %v1417 = vpop.f32.mrf.mxu0
      %1418 = vmatprep.mubr.f32.mxu0 0.0
      %1419 = vmatmul.mubr.f32.gmra.mxu0 %v1219
      %v1420 = vpop.f32.mrf.mxu0
      %v1421 = vadd.f32 %v1156, %v1420
      %v1422 = vpop.f32.mrf.mxu0
      %1423 = vmatprep.mubr.f32.mxu0 0.0
      %1424 = vmatmul.mubr.f32.gmra.mxu0 %v1222
      %v1425 = vpop.f32.mrf.mxu0
      %v1426 = vadd.f32 %v1156, %v1425
      %v1427 = vpop.f32.mrf.mxu0
      %1428 = vmatprep.mubr.f32.mxu0 0.0
      %1429 = vmatmul.mubr.f32.gmra.mxu0 %v1225
      %v1430 = vpop.f32.mrf.mxu0
      %v1431 = vadd.f32 %v1156, %v1430
      %v1432 = vpop.f32.mrf.mxu0
      %1433 = vmatprep.mubr.f32.mxu0 0.0
      %1434 = vmatmul.mubr.f32.gmra.mxu0 %v1228
      %v1435 = vpop.f32.mrf.mxu0
      %v1436 = vadd.f32 %v1156, %v1435
      %v1437 = vpop.f32.mrf.mxu0
      %1438 = vmatprep.mubr.f32.mxu0 0.0
      %1439 = vmatmul.mubr.f32.gmra.mxu0 %v1231
      %v1440 = vpop.f32.mrf.mxu0
      %v1441 = vadd.f32 %v1156, %v1440
      %v1442 = vpop.f32.mrf.mxu0
      %1443 = vmatprep.mubr.f32.mxu0 0.0
      %1444 = vmatmul.mubr.f32.gmra.mxu0 %v1234
      %v1445 = vpop.f32.mrf.mxu0
      %v1446 = vadd.f32 %v1156, %v1445
      %v1447 = vpop.f32.mrf.mxu0
      %1448 = vmatprep.mubr.f32.mxu0 0.0
      %1449 = vmatmul.mubr.f32.gmra.mxu0 %v1237
      %v1450 = vpop.f32.mrf.mxu0
      %v1451 = vadd.f32 %v1156, %v1450
      %v1452 = vpop.f32.mrf.mxu0
      %1453 = vmatprep.mubr.f32.mxu0 0.0
      %1454 = vmatmul.mubr.f32.gmra.mxu0 %v1240
      %v1455 = vpop.f32.mrf.mxu0
      %v1456 = vadd.f32 %v1156, %v1455
      %v1457 = vpop.f32.mrf.mxu0
      %1458 = vmatprep.mubr.f32.mxu0 0.0
      %1459 = vmatmul.mubr.f32.gmra.mxu0 %v1243
      %v1460 = vpop.f32.mrf.mxu0
      %v1461 = vadd.f32 %v1156, %v1460
      %v1462 = vpop.f32.mrf.mxu0
      %1463 = vmatprep.mubr.f32.mxu0 0.0
      %1464 = vmatmul.mubr.f32.gmra.mxu0 %v1246
      %v1465 = vpop.f32.mrf.mxu0
      %v1466 = vadd.f32 %v1156, %v1465
      %v1467 = vpop.f32.mrf.mxu0
      %1468 = vmatprep.mubr.f32.mxu0 0.0
      %1469 = vmatmul.mubr.f32.gmra.mxu0 %v1249
      %v1470 = vpop.f32.mrf.mxu0
      %v1471 = vadd.f32 %v1156, %v1470
      %v1472 = vpop.f32.mrf.mxu0
      %1473 = vmatprep.mubr.f32.mxu0 0.0
      %1474 = vmatmul.mubr.f32.gmra.mxu0 %v1252
      %v1475 = vpop.f32.mrf.mxu0
      %v1476 = vadd.f32 %v1156, %v1475
      %v1477 = vpop.f32.mrf.mxu0
      %1478 = vdwg.mxu0
      %1479 = vmatprep.subr.mxu0 0.0
      %1480 = vmatpush1.msra.mxu0 %v1396
      %1481 = vmatprep.subr.mxu0 0.0
      %1482 = vmatpush1.msra.mxu0 %v1391
      %1483 = vmatprep.subr.mxu0 0.0
      %1484 = vmatpush1.msra.mxu0 %v1386
      %1485 = vmatprep.subr.mxu0 0.0
      %1486 = vmatpush1.msra.mxu0 %v1381
      %1487 = vmatprep.subr.mxu0 0.0
      %1488 = vmatpush1.msra.mxu0 %v1376
      %1489 = vmatprep.subr.mxu0 0.0
      %1490 = vmatpush1.msra.mxu0 %v1371
      %1491 = vmatprep.subr.mxu0 0.0
      %1492 = vmatpush1.msra.mxu0 %v1366
      %1493 = vmatprep.subr.mxu0 0.0
      %1494 = vmatpush1.msra.mxu0 %v1361
      %1495 = vmatprep.subr.mxu0 0.0
      %1496 = vmatpush1.msra.mxu0 %v1356
      %1497 = vmatprep.subr.mxu0 0.0
      %1498 = vmatpush1.msra.mxu0 %v1351
      %1499 = vmatprep.subr.mxu0 0.0
      %1500 = vmatpush1.msra.mxu0 %v1346
      %1501 = vmatprep.subr.mxu0 0.0
      %1502 = vmatpush1.msra.mxu0 %v1341
      %1503 = vmatprep.subr.mxu0 0.0
      %1504 = vmatpush1.msra.mxu0 %v1336
      %1505 = vmatprep.subr.mxu0 0.0
      %1506 = vmatpush1.msra.mxu0 %v1331
      %1507 = vmatprep.subr.mxu0 0.0
      %1508 = vmatpush1.msra.mxu0 %v1326
      %1509 = vmatprep.subr.mxu0 0.0
      %1510 = vmatpush1.msra.mxu0 %v1321
      %1511 = vmatprep.subr.mxu0 0.0
      %1512 = vmatpush2.msra.mxu0 %v1476
      %1513 = vmatprep.subr.mxu0 0.0
      %1514 = vmatpush2.msra.mxu0 %v1471
      %1515 = vmatprep.subr.mxu0 0.0
      %1516 = vmatpush2.msra.mxu0 %v1466
      %1517 = vmatprep.subr.mxu0 0.0
      %1518 = vmatpush2.msra.mxu0 %v1461
      %1519 = vmatprep.subr.mxu0 0.0
      %1520 = vmatpush2.msra.mxu0 %v1456
      %1521 = vmatprep.subr.mxu0 0.0
      %1522 = vmatpush2.msra.mxu0 %v1451
      %1523 = vmatprep.subr.mxu0 0.0
      %1524 = vmatpush2.msra.mxu0 %v1446
      %1525 = vmatprep.subr.mxu0 0.0
      %1526 = vmatpush2.msra.mxu0 %v1441
      %1527 = vmatprep.subr.mxu0 0.0
      %1528 = vmatpush2.msra.mxu0 %v1436
      %1529 = vmatprep.subr.mxu0 0.0
      %1530 = vmatpush2.msra.mxu0 %v1431
      %1531 = vmatprep.subr.mxu0 0.0
      %1532 = vmatpush2.msra.mxu0 %v1426
      %1533 = vmatprep.subr.mxu0 0.0
      %1534 = vmatpush2.msra.mxu0 %v1421
      %1535 = vmatprep.subr.mxu0 0.0
      %1536 = vmatpush2.msra.mxu0 %v1416
      %1537 = vmatprep.subr.mxu0 0.0
      %1538 = vmatpush2.msra.mxu0 %v1411
      %1539 = vmatprep.subr.mxu0 0.0
      %1540 = vmatpush2.msra.mxu0 %v1406
      %1541 = vmatprep.subr.mxu0 0.0
      %1542 = vmatpush2.msra.mxu0 %v1401
      %1543 = vmatprep.mubr.f32.mxu0 %v293
      %1544 = vmatmul.mubr.f32.gmra.mxu0 %v292
      %v1545 = vpop.f32.mrf.mxu0
      %v1546 = vadd.f32 0.0, %v1545
      %v1547 = vpop.f32.mrf.mxu0
      %1548 = vmatprep.mubr.f32.mxu0 %v295
      %1549 = vmatmul.mubr.f32.gmra.mxu0 %v294
      %v1550 = vpop.f32.mrf.mxu0
      %v1551 = vadd.f32 0.0, %v1550
      %v1552 = vpop.f32.mrf.mxu0
      %1553 = vmatprep.mubr.f32.mxu0 %v297
      %1554 = vmatmul.mubr.f32.gmra.mxu0 %v296
      %v1555 = vpop.f32.mrf.mxu0
      %v1556 = vadd.f32 0.0, %v1555
      %v1557 = vpop.f32.mrf.mxu0
      %1558 = vmatprep.mubr.f32.mxu0 %v299
      %1559 = vmatmul.mubr.f32.gmra.mxu0 %v298
      %v1560 = vpop.f32.mrf.mxu0
      %v1561 = vadd.f32 0.0, %v1560
      %v1562 = vpop.f32.mrf.mxu0
      %1563 = vmatprep.mubr.f32.mxu0 %v301
      %1564 = vmatmul.mubr.f32.gmra.mxu0 %v300
      %v1565 = vpop.f32.mrf.mxu0
      %v1566 = vadd.f32 0.0, %v1565
      %v1567 = vpop.f32.mrf.mxu0
      %1568 = vmatprep.mubr.f32.mxu0 %v303
      %1569 = vmatmul.mubr.f32.gmra.mxu0 %v302
      %v1570 = vpop.f32.mrf.mxu0
      %v1571 = vadd.f32 0.0, %v1570
      %v1572 = vpop.f32.mrf.mxu0
      %1573 = vmatprep.mubr.f32.mxu0 %v305
      %1574 = vmatmul.mubr.f32.gmra.mxu0 %v304
      %v1575 = vpop.f32.mrf.mxu0
      %v1576 = vadd.f32 0.0, %v1575
      %v1577 = vpop.f32.mrf.mxu0
      %1578 = vmatprep.mubr.f32.mxu0 %v307
      %1579 = vmatmul.mubr.f32.gmra.mxu0 %v306
      %v1580 = vpop.f32.mrf.mxu0
      %v1581 = vadd.f32 0.0, %v1580
      %v1582 = vpop.f32.mrf.mxu0
      %1583 = vmatprep.mubr.f32.mxu0 %v309
      %1584 = vmatmul.mubr.f32.gmra.mxu0 %v308
      %v1585 = vpop.f32.mrf.mxu0
      %v1586 = vadd.f32 0.0, %v1585
      %v1587 = vpop.f32.mrf.mxu0
      %1588 = vmatprep.mubr.f32.mxu0 %v311
      %1589 = vmatmul.mubr.f32.gmra.mxu0 %v310
      %v1590 = vpop.f32.mrf.mxu0
      %v1591 = vadd.f32 0.0, %v1590
      %v1592 = vpop.f32.mrf.mxu0
      %1593 = vmatprep.mubr.f32.mxu0 %v313
      %1594 = vmatmul.mubr.f32.gmra.mxu0 %v312
      %v1595 = vpop.f32.mrf.mxu0
      %v1596 = vadd.f32 0.0, %v1595
      %v1597 = vpop.f32.mrf.mxu0
      %1598 = vmatprep.mubr.f32.mxu0 %v315
      %1599 = vmatmul.mubr.f32.gmra.mxu0 %v314
      %v1600 = vpop.f32.mrf.mxu0
      %v1601 = vadd.f32 0.0, %v1600
      %v1602 = vpop.f32.mrf.mxu0
      %1603 = vmatprep.mubr.f32.mxu0 %v317
      %1604 = vmatmul.mubr.f32.gmra.mxu0 %v316
      %v1605 = vpop.f32.mrf.mxu0
      %v1606 = vadd.f32 0.0, %v1605
      %v1607 = vpop.f32.mrf.mxu0
      %1608 = vmatprep.mubr.f32.mxu0 %v319
      %1609 = vmatmul.mubr.f32.gmra.mxu0 %v318
      %v1610 = vpop.f32.mrf.mxu0
      %v1611 = vadd.f32 0.0, %v1610
      %v1612 = vpop.f32.mrf.mxu0
      %1613 = vmatprep.mubr.f32.mxu0 %v321
      %1614 = vmatmul.mubr.f32.gmra.mxu0 %v320
      %v1615 = vpop.f32.mrf.mxu0
      %v1616 = vadd.f32 0.0, %v1615
      %v1617 = vpop.f32.mrf.mxu0
      %1618 = vmatprep.mubr.f32.mxu0 %v323
      %1619 = vmatmul.mubr.f32.gmra.mxu0 %v322
      %v1620 = vpop.f32.mrf.mxu0
      %v1621 = vadd.f32 0.0, %v1620
      %v1622 = vpop.f32.mrf.mxu0
      %1623 = vdwg.mxu0
      %v1625 = vsel %vm1157, %v1546, 0
      %v1628 = vsel %vm1157, %v1551, 0
      %v1631 = vsel %vm1157, %v1556, 0
      %v1634 = vsel %vm1157, %v1561, 0
      %v1637 = vsel %vm1157, %v1566, 0
      %v1640 = vsel %vm1157, %v1571, 0
      %v1643 = vsel %vm1157, %v1576, 0
      %v1646 = vsel %vm1157, %v1581, 0
      %v1649 = vsel %vm1157, %v1586, 0
      %v1652 = vsel %vm1157, %v1591, 0
      %v1655 = vsel %vm1157, %v1596, 0
      %v1658 = vsel %vm1157, %v1601, 0
      %v1661 = vsel %vm1157, %v1606, 0
      %v1664 = vsel %vm1157, %v1611, 0
      %v1667 = vsel %vm1157, %v1616, 0
      %v1670 = vsel %vm1157, %v1621, 0
      %1672 = vmatprep.subr.mxu0 0.0
      %1673 = vmatpush1.msra.mxu0 0.0
      %1674 = vmatprep.subr.mxu0 0.0
      %1675 = vmatpush1.msra.mxu0 0.0
      %1676 = vmatprep.subr.mxu0 0.0
      %1677 = vmatpush1.msra.mxu0 0.0
      %1678 = vmatprep.subr.mxu0 0.0
      %1679 = vmatpush1.msra.mxu0 0.0
      %1680 = vmatprep.subr.mxu0 0.0
      %1681 = vmatpush1.msra.mxu0 0.0
      %1682 = vmatprep.subr.mxu0 0.0
      %1683 = vmatpush1.msra.mxu0 0.0
      %1684 = vmatprep.subr.mxu0 0.0
      %1685 = vmatpush1.msra.mxu0 0.0
      %1686 = vmatprep.subr.mxu0 0.0
      %1687 = vmatpush1.msra.mxu0 0.0
      %1688 = vmatprep.subr.mxu0 0.0
      %1689 = vmatpush1.msra.mxu0 0.0
      %1690 = vmatprep.subr.mxu0 0.0
      %1691 = vmatpush1.msra.mxu0 0.0
      %1692 = vmatprep.subr.mxu0 0.0
      %1693 = vmatpush1.msra.mxu0 0.0
      %1694 = vmatprep.subr.mxu0 0.0
      %1695 = vmatpush1.msra.mxu0 0.0
      %1696 = vmatprep.subr.mxu0 0.0
      %1697 = vmatpush1.msra.mxu0 0.0
      %1698 = vmatprep.subr.mxu0 0.0
      %1699 = vmatpush1.msra.mxu0 0.0
      %1700 = vmatprep.subr.mxu0 0.0
      %1701 = vmatpush1.msra.mxu0 0.0
      %1702 = vmatprep.subr.mxu0 0.0
      %1703 = vmatpush1.msra.mxu0 %v342
      %1704 = vmatprep.subr.mxu0 0.0
      %1705 = vmatpush2.msra.mxu0 0.0
      %1706 = vmatprep.subr.mxu0 0.0
      %1707 = vmatpush2.msra.mxu0 0.0
      %1708 = vmatprep.subr.mxu0 0.0
      %1709 = vmatpush2.msra.mxu0 0.0
      %1710 = vmatprep.subr.mxu0 0.0
      %1711 = vmatpush2.msra.mxu0 0.0
      %1712 = vmatprep.subr.mxu0 0.0
      %1713 = vmatpush2.msra.mxu0 0.0
      %1714 = vmatprep.subr.mxu0 0.0
      %1715 = vmatpush2.msra.mxu0 0.0
      %1716 = vmatprep.subr.mxu0 0.0
      %1717 = vmatpush2.msra.mxu0 0.0
      %1718 = vmatprep.subr.mxu0 0.0
      %1719 = vmatpush2.msra.mxu0 0.0
      %1720 = vmatprep.subr.mxu0 0.0
      %1721 = vmatpush2.msra.mxu0 0.0
      %1722 = vmatprep.subr.mxu0 0.0
      %1723 = vmatpush2.msra.mxu0 0.0
      %1724 = vmatprep.subr.mxu0 0.0
      %1725 = vmatpush2.msra.mxu0 0.0
      %1726 = vmatprep.subr.mxu0 0.0
      %1727 = vmatpush2.msra.mxu0 0.0
      %1728 = vmatprep.subr.mxu0 0.0
      %1729 = vmatpush2.msra.mxu0 0.0
      %1730 = vmatprep.subr.mxu0 0.0
      %1731 = vmatpush2.msra.mxu0 0.0
      %1732 = vmatprep.subr.mxu0 0.0
      %1733 = vmatpush2.msra.mxu0 0.0
      %1734 = vmatprep.subr.mxu0 0.0
      %1735 = vmatpush2.msra.mxu0 0.0
      %1736 = vmatprep.mubr.f32.mxu0 0.0
      %1737 = vmatmul.mubr.f32.gmra.mxu0 %v1625
      %v1738 = vpop.f32.mrf.mxu0
      %v1739 = vadd.f32 0.0, %v1738
      %v1740 = vpop.f32.mrf.mxu0
      %1741 = vmatprep.mubr.f32.mxu0 0.0
      %1742 = vmatmul.mubr.f32.gmra.mxu0 %v1628
      %v1743 = vpop.f32.mrf.mxu0
      %v1744 = vadd.f32 0.0, %v1743
      %v1745 = vpop.f32.mrf.mxu0
      %1746 = vmatprep.mubr.f32.mxu0 0.0
      %1747 = vmatmul.mubr.f32.gmra.mxu0 %v1631
      %v1748 = vpop.f32.mrf.mxu0
      %v1749 = vadd.f32 0.0, %v1748
      %v1750 = vpop.f32.mrf.mxu0
      %1751 = vmatprep.mubr.f32.mxu0 0.0
      %1752 = vmatmul.mubr.f32.gmra.mxu0 %v1634
      %v1753 = vpop.f32.mrf.mxu0
      %v1754 = vadd.f32 0.0, %v1753
      %v1755 = vpop.f32.mrf.mxu0
      %1756 = vmatprep.mubr.f32.mxu0 0.0
      %1757 = vmatmul.mubr.f32.gmra.mxu0 %v1637
      %v1758 = vpop.f32.mrf.mxu0
      %v1759 = vadd.f32 0.0, %v1758
      %v1760 = vpop.f32.mrf.mxu0
      %1761 = vmatprep.mubr.f32.mxu0 0.0
      %1762 = vmatmul.mubr.f32.gmra.mxu0 %v1640
      %v1763 = vpop.f32.mrf.mxu0
      %v1764 = vadd.f32 0.0, %v1763
      %v1765 = vpop.f32.mrf.mxu0
      %1766 = vmatprep.mubr.f32.mxu0 0.0
      %1767 = vmatmul.mubr.f32.gmra.mxu0 %v1643
      %v1768 = vpop.f32.mrf.mxu0
      %v1769 = vadd.f32 0.0, %v1768
      %v1770 = vpop.f32.mrf.mxu0
      %1771 = vmatprep.mubr.f32.mxu0 0.0
      %1772 = vmatmul.mubr.f32.gmra.mxu0 %v1646
      %v1773 = vpop.f32.mrf.mxu0
      %v1774 = vadd.f32 0.0, %v1773
      %v1775 = vpop.f32.mrf.mxu0
      %1776 = vmatprep.mubr.f32.mxu0 0.0
      %1777 = vmatmul.mubr.f32.gmra.mxu0 %v1649
      %v1778 = vpop.f32.mrf.mxu0
      %v1779 = vadd.f32 0.0, %v1778
      %v1780 = vpop.f32.mrf.mxu0
      %1781 = vmatprep.mubr.f32.mxu0 0.0
      %1782 = vmatmul.mubr.f32.gmra.mxu0 %v1652
      %v1783 = vpop.f32.mrf.mxu0
      %v1784 = vadd.f32 0.0, %v1783
      %v1785 = vpop.f32.mrf.mxu0
      %1786 = vmatprep.mubr.f32.mxu0 0.0
      %1787 = vmatmul.mubr.f32.gmra.mxu0 %v1655
      %v1788 = vpop.f32.mrf.mxu0
      %v1789 = vadd.f32 0.0, %v1788
      %v1790 = vpop.f32.mrf.mxu0
      %1791 = vmatprep.mubr.f32.mxu0 0.0
      %1792 = vmatmul.mubr.f32.gmra.mxu0 %v1658
      %v1793 = vpop.f32.mrf.mxu0
      %v1794 = vadd.f32 0.0, %v1793
      %v1795 = vpop.f32.mrf.mxu0
      %1796 = vmatprep.mubr.f32.mxu0 0.0
      %1797 = vmatmul.mubr.f32.gmra.mxu0 %v1661
      %v1798 = vpop.f32.mrf.mxu0
      %v1799 = vadd.f32 0.0, %v1798
      %v1800 = vpop.f32.mrf.mxu0
      %1801 = vmatprep.mubr.f32.mxu0 0.0
      %1802 = vmatmul.mubr.f32.gmra.mxu0 %v1664
      %v1803 = vpop.f32.mrf.mxu0
      %v1804 = vadd.f32 0.0, %v1803
      %v1805 = vpop.f32.mrf.mxu0
      %1806 = vmatprep.mubr.f32.mxu0 0.0
      %1807 = vmatmul.mubr.f32.gmra.mxu0 %v1667
      %v1808 = vpop.f32.mrf.mxu0
      %v1809 = vadd.f32 0.0, %v1808
      %v1810 = vpop.f32.mrf.mxu0
      %1811 = vmatprep.mubr.f32.mxu0 0.0
      %1812 = vmatmul.mubr.f32.gmra.mxu0 %v1670
      %v1813 = vpop.f32.mrf.mxu0
      %v1814 = vadd.f32 0.0, %v1813
      %v1815 = vpop.f32.mrf.mxu0
      %1816 = vdwg.mxu0
      %1833 = vrot.lane.b32.xlu0 %v1739, 16
      %v1834 = vpop.permute.xlu0 %1833
      %1835 = vrot.lane.b32.xlu0 %v1744, 16
      %v1836 = vpop.permute.xlu0 %1835
      %1837 = vrot.lane.b32.xlu0 %v1749, 16
      %v1838 = vpop.permute.xlu0 %1837
      %1839 = vrot.lane.b32.xlu0 %v1754, 16
      %v1840 = vpop.permute.xlu0 %1839
      %1841 = vrot.lane.b32.xlu0 %v1759, 16
      %v1842 = vpop.permute.xlu0 %1841
      %1843 = vrot.lane.b32.xlu0 %v1764, 16
      %v1844 = vpop.permute.xlu0 %1843
      %1845 = vrot.lane.b32.xlu0 %v1769, 16
      %v1846 = vpop.permute.xlu0 %1845
      %1847 = vrot.lane.b32.xlu0 %v1774, 16
      %v1848 = vpop.permute.xlu0 %1847
      %1849 = vrot.lane.b32.xlu0 %v1779, 16
      %v1850 = vpop.permute.xlu0 %1849
      %1851 = vrot.lane.b32.xlu0 %v1784, 16
      %v1852 = vpop.permute.xlu0 %1851
      %1853 = vrot.lane.b32.xlu0 %v1789, 16
      %v1854 = vpop.permute.xlu0 %1853
      %1855 = vrot.lane.b32.xlu0 %v1794, 16
      %v1856 = vpop.permute.xlu0 %1855
      %1857 = vrot.lane.b32.xlu0 %v1799, 16
      %v1858 = vpop.permute.xlu0 %1857
      %1859 = vrot.lane.b32.xlu0 %v1804, 16
      %v1860 = vpop.permute.xlu0 %1859
      %1861 = vrot.lane.b32.xlu0 %v1809, 16
      %v1862 = vpop.permute.xlu0 %1861
      %1863 = vrot.lane.b32.xlu0 %v1814, 16
      %v1864 = vpop.permute.xlu0 %1863
      %v1881 = vadd.f32 %v468, %v1834
      %v1882 = vadd.f32 %v473, %v1836
      %v1883 = vadd.f32 %v478, %v1838
      %v1884 = vadd.f32 %v483, %v1840
      %v1885 = vadd.f32 %v488, %v1842
      %v1886 = vadd.f32 %v493, %v1844
      %v1887 = vadd.f32 %v498, %v1846
      %v1888 = vadd.f32 %v503, %v1848
      %v1889 = vadd.f32 %v508, %v1850
      %v1890 = vadd.f32 %v513, %v1852
      %v1891 = vadd.f32 %v518, %v1854
      %v1892 = vadd.f32 %v523, %v1856
      %v1893 = vadd.f32 %v528, %v1858
      %v1894 = vadd.f32 %v533, %v1860
      %v1895 = vadd.f32 %v538, %v1862
      %v1896 = vadd.f32 %v543, %v1864
      %v1897 = vlaneseq
      %v1898 = vshrl.u32 %v1897, 7
      %v1899 = vsub.s32 0, %v1898
      %v1900 = vrot.slane %v346, %v1899
      %1902 = vrot.lane.b32.xlu0 %v1900, 16
      %v1903 = vpop.permute.xlu0 %1902
      %v1905 = vadd.f32 %v1881, %v1903
      %v1906 = vadd.f32 %v1882, %v1903
      %v1907 = vadd.f32 %v1883, %v1903
      %v1908 = vadd.f32 %v1884, %v1903
      %v1909 = vadd.f32 %v1885, %v1903
      %v1910 = vadd.f32 %v1886, %v1903
      %v1911 = vadd.f32 %v1887, %v1903
      %v1912 = vadd.f32 %v1888, %v1903
      %v1913 = vadd.f32 %v1889, %v1903
      %v1914 = vadd.f32 %v1890, %v1903
      %v1915 = vadd.f32 %v1891, %v1903
      %v1916 = vadd.f32 %v1892, %v1903
      %v1917 = vadd.f32 %v1893, %v1903
      %v1918 = vadd.f32 %v1894, %v1903
      %v1919 = vadd.f32 %v1895, %v1903
      %v1920 = vadd.f32 %v1896, %v1903
      %v1921 = vmax.f32 %v1905, 0.0
      %v1922 = vmax.f32 %v1906, 0.0
      %v1923 = vmax.f32 %v1907, 0.0
      %v1924 = vmax.f32 %v1908, 0.0
      %v1925 = vmax.f32 %v1909, 0.0
      %v1926 = vmax.f32 %v1910, 0.0
      %v1927 = vmax.f32 %v1911, 0.0
      %v1928 = vmax.f32 %v1912, 0.0
      %v1929 = vmax.f32 %v1913, 0.0
      %v1930 = vmax.f32 %v1914, 0.0
      %v1931 = vmax.f32 %v1915, 0.0
      %v1932 = vmax.f32 %v1916, 0.0
      %v1933 = vmax.f32 %v1917, 0.0
      %v1934 = vmax.f32 %v1918, 0.0
      %v1935 = vmax.f32 %v1919, 0.0
      %v1936 = vmax.f32 %v1920, 0.0
      %v1937 = vlaneseq
      %v1938 = vshrl.u32 %v1937, 7
      %v1939 = vsub.s32 0, %v1938
      %v1940 = vrot.slane %v347, %v1939
      %1957 = vrot.lane.b32.xlu0 %v1921, 112
      %v1958 = vpop.permute.xlu0 %1957
      %1959 = vrot.lane.b32.xlu0 %v1922, 112
      %v1960 = vpop.permute.xlu0 %1959
      %1961 = vrot.lane.b32.xlu0 %v1923, 112
      %v1962 = vpop.permute.xlu0 %1961
      %1963 = vrot.lane.b32.xlu0 %v1924, 112
      %v1964 = vpop.permute.xlu0 %1963
      %1965 = vrot.lane.b32.xlu0 %v1925, 112
      %v1966 = vpop.permute.xlu0 %1965
      %1967 = vrot.lane.b32.xlu0 %v1926, 112
      %v1968 = vpop.permute.xlu0 %1967
      %1969 = vrot.lane.b32.xlu0 %v1927, 112
      %v1970 = vpop.permute.xlu0 %1969
      %1971 = vrot.lane.b32.xlu0 %v1928, 112
      %v1972 = vpop.permute.xlu0 %1971
      %1973 = vrot.lane.b32.xlu0 %v1929, 112
      %v1974 = vpop.permute.xlu0 %1973
      %1975 = vrot.lane.b32.xlu0 %v1930, 112
      %v1976 = vpop.permute.xlu0 %1975
      %1977 = vrot.lane.b32.xlu0 %v1931, 112
      %v1978 = vpop.permute.xlu0 %1977
      %1979 = vrot.lane.b32.xlu0 %v1932, 112
      %v1980 = vpop.permute.xlu0 %1979
      %1981 = vrot.lane.b32.xlu0 %v1933, 112
      %v1982 = vpop.permute.xlu0 %1981
      %1983 = vrot.lane.b32.xlu0 %v1934, 112
      %v1984 = vpop.permute.xlu0 %1983
      %1985 = vrot.lane.b32.xlu0 %v1935, 112
      %v1986 = vpop.permute.xlu0 %1985
      %1987 = vrot.lane.b32.xlu0 %v1936, 112
      %v1988 = vpop.permute.xlu0 %1987
      %v1989 = vsel %vm1157, %v1958, 0
      %v1991 = vsel %vm1157, %v1960, 0
      %v1993 = vsel %vm1157, %v1962, 0
      %v1995 = vsel %vm1157, %v1964, 0
      %v1997 = vsel %vm1157, %v1966, 0
      %v1999 = vsel %vm1157, %v1968, 0
      %v2001 = vsel %vm1157, %v1970, 0
      %v2003 = vsel %vm1157, %v1972, 0
      %v2005 = vsel %vm1157, %v1974, 0
      %v2007 = vsel %vm1157, %v1976, 0
      %v2009 = vsel %vm1157, %v1978, 0
      %v2011 = vsel %vm1157, %v1980, 0
      %v2013 = vsel %vm1157, %v1982, 0
      %v2015 = vsel %vm1157, %v1984, 0
      %v2017 = vsel %vm1157, %v1986, 0
      %v2019 = vsel %vm1157, %v1988, 0
      %2021 = vmatprep.subr.mxu0 0.0
      %2022 = vmatpush1.msra.mxu0 0.0
      %2023 = vmatprep.subr.mxu0 0.0
      %2024 = vmatpush1.msra.mxu0 0.0
      %2025 = vmatprep.subr.mxu0 0.0
      %2026 = vmatpush1.msra.mxu0 0.0
      %2027 = vmatprep.subr.mxu0 0.0
      %2028 = vmatpush1.msra.mxu0 0.0
      %2029 = vmatprep.subr.mxu0 0.0
      %2030 = vmatpush1.msra.mxu0 0.0
      %2031 = vmatprep.subr.mxu0 0.0
      %2032 = vmatpush1.msra.mxu0 0.0
      %2033 = vmatprep.subr.mxu0 0.0
      %2034 = vmatpush1.msra.mxu0 0.0
      %2035 = vmatprep.subr.mxu0 0.0
      %2036 = vmatpush1.msra.mxu0 0.0
      %2037 = vmatprep.subr.mxu0 0.0
      %2038 = vmatpush1.msra.mxu0 0.0
      %2039 = vmatprep.subr.mxu0 0.0
      %2040 = vmatpush1.msra.mxu0 0.0
      %2041 = vmatprep.subr.mxu0 0.0
      %2042 = vmatpush1.msra.mxu0 0.0
      %2043 = vmatprep.subr.mxu0 0.0
      %2044 = vmatpush1.msra.mxu0 0.0
      %2045 = vmatprep.subr.mxu0 0.0
      %2046 = vmatpush1.msra.mxu0 0.0
      %2047 = vmatprep.subr.mxu0 0.0
      %2048 = vmatpush1.msra.mxu0 0.0
      %2049 = vmatprep.subr.mxu0 0.0
      %2050 = vmatpush1.msra.mxu0 0.0
      %2051 = vmatprep.subr.mxu0 0.0
      %2052 = vmatpush1.msra.mxu0 %v343
      %2053 = vmatprep.subr.mxu0 0.0
      %2054 = vmatpush2.msra.mxu0 0.0
      %2055 = vmatprep.subr.mxu0 0.0
      %2056 = vmatpush2.msra.mxu0 0.0
      %2057 = vmatprep.subr.mxu0 0.0
      %2058 = vmatpush2.msra.mxu0 0.0
      %2059 = vmatprep.subr.mxu0 0.0
      %2060 = vmatpush2.msra.mxu0 0.0
      %2061 = vmatprep.subr.mxu0 0.0
      %2062 = vmatpush2.msra.mxu0 0.0
      %2063 = vmatprep.subr.mxu0 0.0
      %2064 = vmatpush2.msra.mxu0 0.0
      %2065 = vmatprep.subr.mxu0 0.0
      %2066 = vmatpush2.msra.mxu0 0.0
      %2067 = vmatprep.subr.mxu0 0.0
      %2068 = vmatpush2.msra.mxu0 0.0
      %2069 = vmatprep.subr.mxu0 0.0
      %2070 = vmatpush2.msra.mxu0 0.0
      %2071 = vmatprep.subr.mxu0 0.0
      %2072 = vmatpush2.msra.mxu0 0.0
      %2073 = vmatprep.subr.mxu0 0.0
      %2074 = vmatpush2.msra.mxu0 0.0
      %2075 = vmatprep.subr.mxu0 0.0
      %2076 = vmatpush2.msra.mxu0 0.0
      %2077 = vmatprep.subr.mxu0 0.0
      %2078 = vmatpush2.msra.mxu0 0.0
      %2079 = vmatprep.subr.mxu0 0.0
      %2080 = vmatpush2.msra.mxu0 0.0
      %2081 = vmatprep.subr.mxu0 0.0
      %2082 = vmatpush2.msra.mxu0 0.0
      %2083 = vmatprep.subr.mxu0 0.0
      %2084 = vmatpush2.msra.mxu0 0.0
      %2085 = vmatprep.mubr.f32.mxu0 0.0
      %2086 = vmatmul.mubr.f32.gmra.mxu0 %v1989
      %v2087 = vpop.f32.mrf.mxu0
      %v2088 = vadd.f32 %v1940, %v2087
      %v2089 = vpop.f32.mrf.mxu0
      %2090 = vmatprep.mubr.f32.mxu0 0.0
      %2091 = vmatmul.mubr.f32.gmra.mxu0 %v1991
      %v2092 = vpop.f32.mrf.mxu0
      %v2093 = vadd.f32 %v1940, %v2092
      %v2094 = vpop.f32.mrf.mxu0
      %2095 = vmatprep.mubr.f32.mxu0 0.0
      %2096 = vmatmul.mubr.f32.gmra.mxu0 %v1993
      %v2097 = vpop.f32.mrf.mxu0
      %v2098 = vadd.f32 %v1940, %v2097
      %v2099 = vpop.f32.mrf.mxu0
      %2100 = vmatprep.mubr.f32.mxu0 0.0
      %2101 = vmatmul.mubr.f32.gmra.mxu0 %v1995
      %v2102 = vpop.f32.mrf.mxu0
      %v2103 = vadd.f32 %v1940, %v2102
      %v2104 = vpop.f32.mrf.mxu0
      %2105 = vmatprep.mubr.f32.mxu0 0.0
      %2106 = vmatmul.mubr.f32.gmra.mxu0 %v1997
      %v2107 = vpop.f32.mrf.mxu0
      %v2108 = vadd.f32 %v1940, %v2107
      %v2109 = vpop.f32.mrf.mxu0
      %2110 = vmatprep.mubr.f32.mxu0 0.0
      %2111 = vmatmul.mubr.f32.gmra.mxu0 %v1999
      %v2112 = vpop.f32.mrf.mxu0
      %v2113 = vadd.f32 %v1940, %v2112
      %v2114 = vpop.f32.mrf.mxu0
      %2115 = vmatprep.mubr.f32.mxu0 0.0
      %2116 = vmatmul.mubr.f32.gmra.mxu0 %v2001
      %v2117 = vpop.f32.mrf.mxu0
      %v2118 = vadd.f32 %v1940, %v2117
      %v2119 = vpop.f32.mrf.mxu0
      %2120 = vmatprep.mubr.f32.mxu0 0.0
      %2121 = vmatmul.mubr.f32.gmra.mxu0 %v2003
      %v2122 = vpop.f32.mrf.mxu0
      %v2123 = vadd.f32 %v1940, %v2122
      %v2124 = vpop.f32.mrf.mxu0
      %2125 = vmatprep.mubr.f32.mxu0 0.0
      %2126 = vmatmul.mubr.f32.gmra.mxu0 %v2005
      %v2127 = vpop.f32.mrf.mxu0
      %v2128 = vadd.f32 %v1940, %v2127
      %v2129 = vpop.f32.mrf.mxu0
      %2130 = vmatprep.mubr.f32.mxu0 0.0
      %2131 = vmatmul.mubr.f32.gmra.mxu0 %v2007
      %v2132 = vpop.f32.mrf.mxu0
      %v2133 = vadd.f32 %v1940, %v2132
      %v2134 = vpop.f32.mrf.mxu0
      %2135 = vmatprep.mubr.f32.mxu0 0.0
      %2136 = vmatmul.mubr.f32.gmra.mxu0 %v2009
      %v2137 = vpop.f32.mrf.mxu0
      %v2138 = vadd.f32 %v1940, %v2137
      %v2139 = vpop.f32.mrf.mxu0
      %2140 = vmatprep.mubr.f32.mxu0 0.0
      %2141 = vmatmul.mubr.f32.gmra.mxu0 %v2011
      %v2142 = vpop.f32.mrf.mxu0
      %v2143 = vadd.f32 %v1940, %v2142
      %v2144 = vpop.f32.mrf.mxu0
      %2145 = vmatprep.mubr.f32.mxu0 0.0
      %2146 = vmatmul.mubr.f32.gmra.mxu0 %v2013
      %v2147 = vpop.f32.mrf.mxu0
      %v2148 = vadd.f32 %v1940, %v2147
      %v2149 = vpop.f32.mrf.mxu0
      %2150 = vmatprep.mubr.f32.mxu0 0.0
      %2151 = vmatmul.mubr.f32.gmra.mxu0 %v2015
      %v2152 = vpop.f32.mrf.mxu0
      %v2153 = vadd.f32 %v1940, %v2152
      %v2154 = vpop.f32.mrf.mxu0
      %2155 = vmatprep.mubr.f32.mxu0 0.0
      %2156 = vmatmul.mubr.f32.gmra.mxu0 %v2017
      %v2157 = vpop.f32.mrf.mxu0
      %v2158 = vadd.f32 %v1940, %v2157
      %v2159 = vpop.f32.mrf.mxu0
      %2160 = vmatprep.mubr.f32.mxu0 0.0
      %2161 = vmatmul.mubr.f32.gmra.mxu0 %v2019
      %v2162 = vpop.f32.mrf.mxu0
      %v2163 = vadd.f32 %v1940, %v2162
      %v2164 = vpop.f32.mrf.mxu0
      %2165 = vdwg.mxu0
      %2182 = vrot.lane.b32.xlu0 %v555, 104
      %v2183 = vpop.permute.xlu0 %2182
      %2184 = vrot.lane.b32.xlu0 %v556, 104
      %v2185 = vpop.permute.xlu0 %2184
      %2186 = vrot.lane.b32.xlu0 %v557, 104
      %v2187 = vpop.permute.xlu0 %2186
      %2188 = vrot.lane.b32.xlu0 %v558, 104
      %v2189 = vpop.permute.xlu0 %2188
      %2190 = vrot.lane.b32.xlu0 %v559, 104
      %v2191 = vpop.permute.xlu0 %2190
      %2192 = vrot.lane.b32.xlu0 %v560, 104
      %v2193 = vpop.permute.xlu0 %2192
      %2194 = vrot.lane.b32.xlu0 %v561, 104
      %v2195 = vpop.permute.xlu0 %2194
      %2196 = vrot.lane.b32.xlu0 %v562, 104
      %v2197 = vpop.permute.xlu0 %2196
      %2198 = vrot.lane.b32.xlu0 %v563, 104
      %v2199 = vpop.permute.xlu0 %2198
      %2200 = vrot.lane.b32.xlu0 %v564, 104
      %v2201 = vpop.permute.xlu0 %2200
      %2202 = vrot.lane.b32.xlu0 %v565, 104
      %v2203 = vpop.permute.xlu0 %2202
      %2204 = vrot.lane.b32.xlu0 %v566, 104
      %v2205 = vpop.permute.xlu0 %2204
      %2206 = vrot.lane.b32.xlu0 %v567, 104
      %v2207 = vpop.permute.xlu0 %2206
      %2208 = vrot.lane.b32.xlu0 %v568, 104
      %v2209 = vpop.permute.xlu0 %2208
      %2210 = vrot.lane.b32.xlu0 %v569, 104
      %v2211 = vpop.permute.xlu0 %2210
      %2212 = vrot.lane.b32.xlu0 %v570, 104
      %v2213 = vpop.permute.xlu0 %2212
      %v2230 = vadd.f32 %v2088, %v2183
      %v2231 = vadd.f32 %v2093, %v2185
      %v2232 = vadd.f32 %v2098, %v2187
      %v2233 = vadd.f32 %v2103, %v2189
      %v2234 = vadd.f32 %v2108, %v2191
      %v2235 = vadd.f32 %v2113, %v2193
      %v2236 = vadd.f32 %v2118, %v2195
      %v2237 = vadd.f32 %v2123, %v2197
      %v2238 = vadd.f32 %v2128, %v2199
      %v2239 = vadd.f32 %v2133, %v2201
      %v2240 = vadd.f32 %v2138, %v2203
      %v2241 = vadd.f32 %v2143, %v2205
      %v2242 = vadd.f32 %v2148, %v2207
      %v2243 = vadd.f32 %v2153, %v2209
      %v2244 = vadd.f32 %v2158, %v2211
      %v2245 = vadd.f32 %v2163, %v2213
      %v2246 = vmax.f32 %v2230, 0.0
      %v2247 = vmax.f32 %v2231, 0.0
      %v2248 = vmax.f32 %v2232, 0.0
      %v2249 = vmax.f32 %v2233, 0.0
      %v2250 = vmax.f32 %v2234, 0.0
      %v2251 = vmax.f32 %v2235, 0.0
      %v2252 = vmax.f32 %v2236, 0.0
      %v2253 = vmax.f32 %v2237, 0.0
      %v2254 = vmax.f32 %v2238, 0.0
      %v2255 = vmax.f32 %v2239, 0.0
      %v2256 = vmax.f32 %v2240, 0.0
      %v2257 = vmax.f32 %v2241, 0.0
      %v2258 = vmax.f32 %v2242, 0.0
      %v2259 = vmax.f32 %v2243, 0.0
      %v2260 = vmax.f32 %v2244, 0.0
      %v2261 = vmax.f32 %v2245, 0.0
      %v2262 = vld [vmem:[%s4 + $0x28] sm:$0xff]
      %v2263 = vld [vmem:[%s4 + $0x30] sm:$0xff]
      %v2264 = vld [vmem:[%s4 + $0x38] sm:$0xff]
      %v2265 = vld [vmem:[%s4 + $0x40] sm:$0xff]
      %v2266 = vld [vmem:[%s4 + $0x48] sm:$0xff]
      %v2267 = vld [vmem:[%s4 + $0x50] sm:$0xff]
      %v2268 = vld [vmem:[%s4 + $0x58] sm:$0xff]
      %v2269 = vld [vmem:[%s4 + $0x60] sm:$0x1]
      %v2270 = vld [vmem:[%s4 + $0x61] sm:$0x1]
      %v2271 = vld [vmem:[%s4 + $0x62] sm:$0x1]
      %v2272 = vld [vmem:[%s4 + $0x63] sm:$0x1]
      %v2274 = vsel %vm1157, %v2246, 0
      %v2277 = vsel %vm1157, %v2247, 0
      %v2280 = vsel %vm1157, %v2248, 0
      %v2283 = vsel %vm1157, %v2249, 0
      %v2286 = vsel %vm1157, %v2250, 0
      %v2289 = vsel %vm1157, %v2251, 0
      %v2292 = vsel %vm1157, %v2252, 0
      %v2295 = vsel %vm1157, %v2253, 0
      %v2298 = vsel %vm1157, %v2254, 0
      %v2301 = vsel %vm1157, %v2255, 0
      %v2304 = vsel %vm1157, %v2256, 0
      %v2307 = vsel %vm1157, %v2257, 0
      %v2310 = vsel %vm1157, %v2258, 0
      %v2313 = vsel %vm1157, %v2259, 0
      %v2316 = vsel %vm1157, %v2260, 0
      %v2319 = vsel %vm1157, %v2261, 0
      %2321 = vmatprep.subr.mxu0 0.0
      %2322 = vmatpush1.msra.mxu0 0.0
      %2323 = vmatprep.subr.mxu0 0.0
      %2324 = vmatpush1.msra.mxu0 0.0
      %2325 = vmatprep.subr.mxu0 0.0
      %2326 = vmatpush1.msra.mxu0 0.0
      %2327 = vmatprep.subr.mxu0 0.0
      %2328 = vmatpush1.msra.mxu0 0.0
      %2329 = vmatprep.subr.mxu0 0.0
      %2330 = vmatpush1.msra.mxu0 0.0
      %2331 = vmatprep.subr.mxu0 0.0
      %2332 = vmatpush1.msra.mxu0 0.0
      %2333 = vmatprep.subr.mxu0 0.0
      %2334 = vmatpush1.msra.mxu0 0.0
      %2335 = vmatprep.subr.mxu0 0.0
      %2336 = vmatpush1.msra.mxu0 0.0
      %2337 = vmatprep.subr.mxu0 0.0
      %2338 = vmatpush1.msra.mxu0 0.0
      %2339 = vmatprep.subr.mxu0 0.0
      %2340 = vmatpush1.msra.mxu0 0.0
      %2341 = vmatprep.subr.mxu0 0.0
      %2342 = vmatpush1.msra.mxu0 0.0
      %2343 = vmatprep.subr.mxu0 0.0
      %2344 = vmatpush1.msra.mxu0 0.0
      %2345 = vmatprep.subr.mxu0 0.0
      %2346 = vmatpush1.msra.mxu0 0.0
      %2347 = vmatprep.subr.mxu0 0.0
      %2348 = vmatpush1.msra.mxu0 0.0
      %2349 = vmatprep.subr.mxu0 0.0
      %2350 = vmatpush1.msra.mxu0 0.0
      %2351 = vmatprep.subr.mxu0 0.0
      %2352 = vmatpush1.msra.mxu0 %v2262
      %2353 = vmatprep.subr.mxu0 0.0
      %2354 = vmatpush2.msra.mxu0 0.0
      %2355 = vmatprep.subr.mxu0 0.0
      %2356 = vmatpush2.msra.mxu0 0.0
      %2357 = vmatprep.subr.mxu0 0.0
      %2358 = vmatpush2.msra.mxu0 0.0
      %2359 = vmatprep.subr.mxu0 0.0
      %2360 = vmatpush2.msra.mxu0 0.0
      %2361 = vmatprep.subr.mxu0 0.0
      %2362 = vmatpush2.msra.mxu0 0.0
      %2363 = vmatprep.subr.mxu0 0.0
      %2364 = vmatpush2.msra.mxu0 0.0
      %2365 = vmatprep.subr.mxu0 0.0
      %2366 = vmatpush2.msra.mxu0 0.0
      %2367 = vmatprep.subr.mxu0 0.0
      %2368 = vmatpush2.msra.mxu0 0.0
      %2369 = vmatprep.subr.mxu0 0.0
      %2370 = vmatpush2.msra.mxu0 0.0
      %2371 = vmatprep.subr.mxu0 0.0
      %2372 = vmatpush2.msra.mxu0 0.0
      %2373 = vmatprep.subr.mxu0 0.0
      %2374 = vmatpush2.msra.mxu0 0.0
      %2375 = vmatprep.subr.mxu0 0.0
      %2376 = vmatpush2.msra.mxu0 0.0
      %2377 = vmatprep.subr.mxu0 0.0
      %2378 = vmatpush2.msra.mxu0 0.0
      %2379 = vmatprep.subr.mxu0 0.0
      %2380 = vmatpush2.msra.mxu0 0.0
      %2381 = vmatprep.subr.mxu0 0.0
      %2382 = vmatpush2.msra.mxu0 0.0
      %2383 = vmatprep.subr.mxu0 0.0
      %2384 = vmatpush2.msra.mxu0 0.0
      %2385 = vmatprep.mubr.f32.mxu0 0.0
      %2386 = vmatmul.mubr.f32.gmra.mxu0 %v2274
      %v2387 = vpop.f32.mrf.mxu0
      %v2388 = vadd.f32 0.0, %v2387
      %v2389 = vpop.f32.mrf.mxu0
      %2390 = vmatprep.mubr.f32.mxu0 0.0
      %2391 = vmatmul.mubr.f32.gmra.mxu0 %v2277
      %v2392 = vpop.f32.mrf.mxu0
      %v2393 = vadd.f32 0.0, %v2392
      %v2394 = vpop.f32.mrf.mxu0
      %2395 = vmatprep.mubr.f32.mxu0 0.0
      %2396 = vmatmul.mubr.f32.gmra.mxu0 %v2280
      %v2397 = vpop.f32.mrf.mxu0
      %v2398 = vadd.f32 0.0, %v2397
      %v2399 = vpop.f32.mrf.mxu0
      %2400 = vmatprep.mubr.f32.mxu0 0.0
      %2401 = vmatmul.mubr.f32.gmra.mxu0 %v2283
      %v2402 = vpop.f32.mrf.mxu0
      %v2403 = vadd.f32 0.0, %v2402
      %v2404 = vpop.f32.mrf.mxu0
      %2405 = vmatprep.mubr.f32.mxu0 0.0
      %2406 = vmatmul.mubr.f32.gmra.mxu0 %v2286
      %v2407 = vpop.f32.mrf.mxu0
      %v2408 = vadd.f32 0.0, %v2407
      %v2409 = vpop.f32.mrf.mxu0
      %2410 = vmatprep.mubr.f32.mxu0 0.0
      %2411 = vmatmul.mubr.f32.gmra.mxu0 %v2289
      %v2412 = vpop.f32.mrf.mxu0
      %v2413 = vadd.f32 0.0, %v2412
      %v2414 = vpop.f32.mrf.mxu0
      %2415 = vmatprep.mubr.f32.mxu0 0.0
      %2416 = vmatmul.mubr.f32.gmra.mxu0 %v2292
      %v2417 = vpop.f32.mrf.mxu0
      %v2418 = vadd.f32 0.0, %v2417
      %v2419 = vpop.f32.mrf.mxu0
      %2420 = vmatprep.mubr.f32.mxu0 0.0
      %2421 = vmatmul.mubr.f32.gmra.mxu0 %v2295
      %v2422 = vpop.f32.mrf.mxu0
      %v2423 = vadd.f32 0.0, %v2422
      %v2424 = vpop.f32.mrf.mxu0
      %2425 = vmatprep.mubr.f32.mxu0 0.0
      %2426 = vmatmul.mubr.f32.gmra.mxu0 %v2298
      %v2427 = vpop.f32.mrf.mxu0
      %v2428 = vadd.f32 0.0, %v2427
      %v2429 = vpop.f32.mrf.mxu0
      %2430 = vmatprep.mubr.f32.mxu0 0.0
      %2431 = vmatmul.mubr.f32.gmra.mxu0 %v2301
      %v2432 = vpop.f32.mrf.mxu0
      %v2433 = vadd.f32 0.0, %v2432
      %v2434 = vpop.f32.mrf.mxu0
      %2435 = vmatprep.mubr.f32.mxu0 0.0
      %2436 = vmatmul.mubr.f32.gmra.mxu0 %v2304
      %v2437 = vpop.f32.mrf.mxu0
      %v2438 = vadd.f32 0.0, %v2437
      %v2439 = vpop.f32.mrf.mxu0
      %2440 = vmatprep.mubr.f32.mxu0 0.0
      %2441 = vmatmul.mubr.f32.gmra.mxu0 %v2307
      %v2442 = vpop.f32.mrf.mxu0
      %v2443 = vadd.f32 0.0, %v2442
      %v2444 = vpop.f32.mrf.mxu0
      %2445 = vmatprep.mubr.f32.mxu0 0.0
      %2446 = vmatmul.mubr.f32.gmra.mxu0 %v2310
      %v2447 = vpop.f32.mrf.mxu0
      %v2448 = vadd.f32 0.0, %v2447
      %v2449 = vpop.f32.mrf.mxu0
      %2450 = vmatprep.mubr.f32.mxu0 0.0
      %2451 = vmatmul.mubr.f32.gmra.mxu0 %v2313
      %v2452 = vpop.f32.mrf.mxu0
      %v2453 = vadd.f32 0.0, %v2452
      %v2454 = vpop.f32.mrf.mxu0
      %2455 = vmatprep.mubr.f32.mxu0 0.0
      %2456 = vmatmul.mubr.f32.gmra.mxu0 %v2316
      %v2457 = vpop.f32.mrf.mxu0
      %v2458 = vadd.f32 0.0, %v2457
      %v2459 = vpop.f32.mrf.mxu0
      %2460 = vmatprep.mubr.f32.mxu0 0.0
      %2461 = vmatmul.mubr.f32.gmra.mxu0 %v2319
      %v2462 = vpop.f32.mrf.mxu0
      %v2463 = vadd.f32 0.0, %v2462
      %v2464 = vpop.f32.mrf.mxu0
      %2465 = vdwg.mxu0
      %v2466 = vld [vmem:[%s4 + $0x64] sm:$0x1]
      %v2467 = vlaneseq
      %v2468 = vshrl.u32 %v2467, 7
      %v2469 = vsub.s32 0, %v2468
      %v2470 = vrot.slane %v2466, %v2469
      %2472 = vrot.lane.b32.xlu0 %v2470, 48
      %v2473 = vpop.permute.xlu0 %2472
      %v2475 = vadd.f32 %v2388, %v2473
      %v2476 = vadd.f32 %v2393, %v2473
      %v2477 = vadd.f32 %v2398, %v2473
      %v2478 = vadd.f32 %v2403, %v2473
      %v2479 = vadd.f32 %v2408, %v2473
      %v2480 = vadd.f32 %v2413, %v2473
      %v2481 = vadd.f32 %v2418, %v2473
      %v2482 = vadd.f32 %v2423, %v2473
      %v2483 = vadd.f32 %v2428, %v2473
      %v2484 = vadd.f32 %v2433, %v2473
      %v2485 = vadd.f32 %v2438, %v2473
      %v2486 = vadd.f32 %v2443, %v2473
      %v2487 = vadd.f32 %v2448, %v2473
      %v2488 = vadd.f32 %v2453, %v2473
      %v2489 = vadd.f32 %v2458, %v2473
      %v2490 = vadd.f32 %v2463, %v2473
      %2507 = vrot.lane.b32.xlu0 %v2388, 112
      %v2508 = vpop.permute.xlu0 %2507
      %2509 = vrot.lane.b32.xlu0 %v2393, 112
      %v2510 = vpop.permute.xlu0 %2509
      %2511 = vrot.lane.b32.xlu0 %v2398, 112
      %v2512 = vpop.permute.xlu0 %2511
      %2513 = vrot.lane.b32.xlu0 %v2403, 112
      %v2514 = vpop.permute.xlu0 %2513
      %2515 = vrot.lane.b32.xlu0 %v2408, 112
      %v2516 = vpop.permute.xlu0 %2515
      %2517 = vrot.lane.b32.xlu0 %v2413, 112
      %v2518 = vpop.permute.xlu0 %2517
      %2519 = vrot.lane.b32.xlu0 %v2418, 112
      %v2520 = vpop.permute.xlu0 %2519
      %2521 = vrot.lane.b32.xlu0 %v2423, 112
      %v2522 = vpop.permute.xlu0 %2521
      %2523 = vrot.lane.b32.xlu0 %v2428, 112
      %v2524 = vpop.permute.xlu0 %2523
      %2525 = vrot.lane.b32.xlu0 %v2433, 112
      %v2526 = vpop.permute.xlu0 %2525
      %2527 = vrot.lane.b32.xlu0 %v2438, 112
      %v2528 = vpop.permute.xlu0 %2527
      %2529 = vrot.lane.b32.xlu0 %v2443, 112
      %v2530 = vpop.permute.xlu0 %2529
      %2531 = vrot.lane.b32.xlu0 %v2448, 112
      %v2532 = vpop.permute.xlu0 %2531
      %2533 = vrot.lane.b32.xlu0 %v2453, 112
      %v2534 = vpop.permute.xlu0 %2533
      %2535 = vrot.lane.b32.xlu0 %v2458, 112
      %v2536 = vpop.permute.xlu0 %2535
      %2537 = vrot.lane.b32.xlu0 %v2463, 112
      %v2538 = vpop.permute.xlu0 %2537
      %2555 = vmatprep.subr.mxu0 0.0
      %2556 = vmatpush1.msra.mxu0 %v2538
      %2557 = vmatprep.subr.mxu0 0.0
      %2558 = vmatpush1.msra.mxu0 %v2536
      %2559 = vmatprep.subr.mxu0 0.0
      %2560 = vmatpush1.msra.mxu0 %v2534
      %2561 = vmatprep.subr.mxu0 0.0
      %2562 = vmatpush1.msra.mxu0 %v2532
      %2563 = vmatprep.subr.mxu0 0.0
      %2564 = vmatpush1.msra.mxu0 %v2530
      %2565 = vmatprep.subr.mxu0 0.0
      %2566 = vmatpush1.msra.mxu0 %v2528
      %2567 = vmatprep.subr.mxu0 0.0
      %2568 = vmatpush1.msra.mxu0 %v2526
      %2569 = vmatprep.subr.mxu0 0.0
      %2570 = vmatpush1.msra.mxu0 %v2524
      %2571 = vmatprep.subr.mxu0 0.0
      %2572 = vmatpush1.msra.mxu0 %v2522
      %2573 = vmatprep.subr.mxu0 0.0
      %2574 = vmatpush1.msra.mxu0 %v2520
      %2575 = vmatprep.subr.mxu0 0.0
      %2576 = vmatpush1.msra.mxu0 %v2518
      %2577 = vmatprep.subr.mxu0 0.0
      %2578 = vmatpush1.msra.mxu0 %v2516
      %2579 = vmatprep.subr.mxu0 0.0
      %2580 = vmatpush1.msra.mxu0 %v2514
      %2581 = vmatprep.subr.mxu0 0.0
      %2582 = vmatpush1.msra.mxu0 %v2512
      %2583 = vmatprep.subr.mxu0 0.0
      %2584 = vmatpush1.msra.mxu0 %v2510
      %2585 = vmatprep.subr.mxu0 0.0
      %2586 = vmatpush1.msra.mxu0 %v2508
      %2587 = vmatprep.subr.mxu0 0.0
      %2588 = vmatpush2.msra.mxu0 0.0
      %2589 = vmatprep.subr.mxu0 0.0
      %2590 = vmatpush2.msra.mxu0 0.0
      %2591 = vmatprep.subr.mxu0 0.0
      %2592 = vmatpush2.msra.mxu0 0.0
      %2593 = vmatprep.subr.mxu0 0.0
      %2594 = vmatpush2.msra.mxu0 0.0
      %2595 = vmatprep.subr.mxu0 0.0
      %2596 = vmatpush2.msra.mxu0 0.0
      %2597 = vmatprep.subr.mxu0 0.0
      %2598 = vmatpush2.msra.mxu0 0.0
      %2599 = vmatprep.subr.mxu0 0.0
      %2600 = vmatpush2.msra.mxu0 0.0
      %2601 = vmatprep.subr.mxu0 0.0
      %2602 = vmatpush2.msra.mxu0 0.0
      %2603 = vmatprep.subr.mxu0 0.0
      %2604 = vmatpush2.msra.mxu0 0.0
      %2605 = vmatprep.subr.mxu0 0.0
      %2606 = vmatpush2.msra.mxu0 0.0
      %2607 = vmatprep.subr.mxu0 0.0
      %2608 = vmatpush2.msra.mxu0 0.0
      %2609 = vmatprep.subr.mxu0 0.0
      %2610 = vmatpush2.msra.mxu0 0.0
      %2611 = vmatprep.subr.mxu0 0.0
      %2612 = vmatpush2.msra.mxu0 0.0
      %2613 = vmatprep.subr.mxu0 0.0
      %2614 = vmatpush2.msra.mxu0 0.0
      %2615 = vmatprep.subr.mxu0 0.0
      %2616 = vmatpush2.msra.mxu0 0.0
      %2617 = vmatprep.subr.mxu0 0.0
      %2618 = vmatpush2.msra.mxu0 0.0
      %2619 = vmatprep.mubr.f32.mxu0 0.0
      %2620 = vmatmul.mubr.f32.gmra.mxu0 %v260
      %v2621 = vpop.f32.mrf.mxu0
      %v2622 = vadd.f32 0.0, %v2621
      %v2623 = vpop.f32.mrf.mxu0
      %2624 = vmatprep.mubr.f32.mxu0 0.0
      %2625 = vmatmul.mubr.f32.gmra.mxu0 %v261
      %v2626 = vpop.f32.mrf.mxu0
      %v2627 = vadd.f32 0.0, %v2626
      %v2628 = vpop.f32.mrf.mxu0
      %2629 = vmatprep.mubr.f32.mxu0 0.0
      %2630 = vmatmul.mubr.f32.gmra.mxu0 %v262
      %v2631 = vpop.f32.mrf.mxu0
      %v2632 = vadd.f32 0.0, %v2631
      %v2633 = vpop.f32.mrf.mxu0
      %2634 = vmatprep.mubr.f32.mxu0 0.0
      %2635 = vmatmul.mubr.f32.gmra.mxu0 %v263
      %v2636 = vpop.f32.mrf.mxu0
      %v2637 = vadd.f32 0.0, %v2636
      %v2638 = vpop.f32.mrf.mxu0
      %2639 = vmatprep.mubr.f32.mxu0 0.0
      %2640 = vmatmul.mubr.f32.gmra.mxu0 %v264
      %v2641 = vpop.f32.mrf.mxu0
      %v2642 = vadd.f32 0.0, %v2641
      %v2643 = vpop.f32.mrf.mxu0
      %2644 = vmatprep.mubr.f32.mxu0 0.0
      %2645 = vmatmul.mubr.f32.gmra.mxu0 %v265
      %v2646 = vpop.f32.mrf.mxu0
      %v2647 = vadd.f32 0.0, %v2646
      %v2648 = vpop.f32.mrf.mxu0
      %2649 = vmatprep.mubr.f32.mxu0 0.0
      %2650 = vmatmul.mubr.f32.gmra.mxu0 %v266
      %v2651 = vpop.f32.mrf.mxu0
      %v2652 = vadd.f32 0.0, %v2651
      %v2653 = vpop.f32.mrf.mxu0
      %2654 = vmatprep.mubr.f32.mxu0 0.0
      %2655 = vmatmul.mubr.f32.gmra.mxu0 %v267
      %v2656 = vpop.f32.mrf.mxu0
      %v2657 = vadd.f32 0.0, %v2656
      %v2658 = vpop.f32.mrf.mxu0
      %2659 = vmatprep.mubr.f32.mxu0 0.0
      %2660 = vmatmul.mubr.f32.gmra.mxu0 %v268
      %v2661 = vpop.f32.mrf.mxu0
      %v2662 = vadd.f32 0.0, %v2661
      %v2663 = vpop.f32.mrf.mxu0
      %2664 = vmatprep.mubr.f32.mxu0 0.0
      %2665 = vmatmul.mubr.f32.gmra.mxu0 %v269
      %v2666 = vpop.f32.mrf.mxu0
      %v2667 = vadd.f32 0.0, %v2666
      %v2668 = vpop.f32.mrf.mxu0
      %2669 = vmatprep.mubr.f32.mxu0 0.0
      %2670 = vmatmul.mubr.f32.gmra.mxu0 %v270
      %v2671 = vpop.f32.mrf.mxu0
      %v2672 = vadd.f32 0.0, %v2671
      %v2673 = vpop.f32.mrf.mxu0
      %2674 = vmatprep.mubr.f32.mxu0 0.0
      %2675 = vmatmul.mubr.f32.gmra.mxu0 %v271
      %v2676 = vpop.f32.mrf.mxu0
      %v2677 = vadd.f32 0.0, %v2676
      %v2678 = vpop.f32.mrf.mxu0
      %2679 = vmatprep.mubr.f32.mxu0 0.0
      %2680 = vmatmul.mubr.f32.gmra.mxu0 %v272
      %v2681 = vpop.f32.mrf.mxu0
      %v2682 = vadd.f32 0.0, %v2681
      %v2683 = vpop.f32.mrf.mxu0
      %2684 = vmatprep.mubr.f32.mxu0 0.0
      %2685 = vmatmul.mubr.f32.gmra.mxu0 %v273
      %v2686 = vpop.f32.mrf.mxu0
      %v2687 = vadd.f32 0.0, %v2686
      %v2688 = vpop.f32.mrf.mxu0
      %2689 = vmatprep.mubr.f32.mxu0 0.0
      %2690 = vmatmul.mubr.f32.gmra.mxu0 %v274
      %v2691 = vpop.f32.mrf.mxu0
      %v2692 = vadd.f32 0.0, %v2691
      %v2693 = vpop.f32.mrf.mxu0
      %2694 = vmatprep.mubr.f32.mxu0 0.0
      %2695 = vmatmul.mubr.f32.gmra.mxu0 %v275
      %v2696 = vpop.f32.mrf.mxu0
      %v2697 = vadd.f32 0.0, %v2696
      %v2698 = vpop.f32.mrf.mxu0
      %2699 = vmatprep.mubr.f32.mxu0 0.0
      %2700 = vmatmul.mubr.f32.gmra.mxu0 %v276
      %v2701 = vpop.f32.mrf.mxu0
      %v2702 = vadd.f32 0.0, %v2701
      %v2703 = vpop.f32.mrf.mxu0
      %2704 = vmatprep.mubr.f32.mxu0 0.0
      %2705 = vmatmul.mubr.f32.gmra.mxu0 %v277
      %v2706 = vpop.f32.mrf.mxu0
      %v2707 = vadd.f32 0.0, %v2706
      %v2708 = vpop.f32.mrf.mxu0
      %2709 = vmatprep.mubr.f32.mxu0 0.0
      %2710 = vmatmul.mubr.f32.gmra.mxu0 %v278
      %v2711 = vpop.f32.mrf.mxu0
      %v2712 = vadd.f32 0.0, %v2711
      %v2713 = vpop.f32.mrf.mxu0
      %2714 = vmatprep.mubr.f32.mxu0 0.0
      %2715 = vmatmul.mubr.f32.gmra.mxu0 %v279
      %v2716 = vpop.f32.mrf.mxu0
      %v2717 = vadd.f32 0.0, %v2716
      %v2718 = vpop.f32.mrf.mxu0
      %2719 = vmatprep.mubr.f32.mxu0 0.0
      %2720 = vmatmul.mubr.f32.gmra.mxu0 %v280
      %v2721 = vpop.f32.mrf.mxu0
      %v2722 = vadd.f32 0.0, %v2721
      %v2723 = vpop.f32.mrf.mxu0
      %2724 = vmatprep.mubr.f32.mxu0 0.0
      %2725 = vmatmul.mubr.f32.gmra.mxu0 %v281
      %v2726 = vpop.f32.mrf.mxu0
      %v2727 = vadd.f32 0.0, %v2726
      %v2728 = vpop.f32.mrf.mxu0
      %2729 = vmatprep.mubr.f32.mxu0 0.0
      %2730 = vmatmul.mubr.f32.gmra.mxu0 %v282
      %v2731 = vpop.f32.mrf.mxu0
      %v2732 = vadd.f32 0.0, %v2731
      %v2733 = vpop.f32.mrf.mxu0
      %2734 = vmatprep.mubr.f32.mxu0 0.0
      %2735 = vmatmul.mubr.f32.gmra.mxu0 %v283
      %v2736 = vpop.f32.mrf.mxu0
      %v2737 = vadd.f32 0.0, %v2736
      %v2738 = vpop.f32.mrf.mxu0
      %2739 = vmatprep.mubr.f32.mxu0 0.0
      %2740 = vmatmul.mubr.f32.gmra.mxu0 %v284
      %v2741 = vpop.f32.mrf.mxu0
      %v2742 = vadd.f32 0.0, %v2741
      %v2743 = vpop.f32.mrf.mxu0
      %2744 = vmatprep.mubr.f32.mxu0 0.0
      %2745 = vmatmul.mubr.f32.gmra.mxu0 %v285
      %v2746 = vpop.f32.mrf.mxu0
      %v2747 = vadd.f32 0.0, %v2746
      %v2748 = vpop.f32.mrf.mxu0
      %2749 = vmatprep.mubr.f32.mxu0 0.0
      %2750 = vmatmul.mubr.f32.gmra.mxu0 %v286
      %v2751 = vpop.f32.mrf.mxu0
      %v2752 = vadd.f32 0.0, %v2751
      %v2753 = vpop.f32.mrf.mxu0
      %2754 = vmatprep.mubr.f32.mxu0 0.0
      %2755 = vmatmul.mubr.f32.gmra.mxu0 %v287
      %v2756 = vpop.f32.mrf.mxu0
      %v2757 = vadd.f32 0.0, %v2756
      %v2758 = vpop.f32.mrf.mxu0
      %2759 = vmatprep.mubr.f32.mxu0 0.0
      %2760 = vmatmul.mubr.f32.gmra.mxu0 %v288
      %v2761 = vpop.f32.mrf.mxu0
      %v2762 = vadd.f32 0.0, %v2761
      %v2763 = vpop.f32.mrf.mxu0
      %2764 = vmatprep.mubr.f32.mxu0 0.0
      %2765 = vmatmul.mubr.f32.gmra.mxu0 %v289
      %v2766 = vpop.f32.mrf.mxu0
      %v2767 = vadd.f32 0.0, %v2766
      %v2768 = vpop.f32.mrf.mxu0
      %2769 = vmatprep.mubr.f32.mxu0 0.0
      %2770 = vmatmul.mubr.f32.gmra.mxu0 %v290
      %v2771 = vpop.f32.mrf.mxu0
      %v2772 = vadd.f32 0.0, %v2771
      %v2773 = vpop.f32.mrf.mxu0
      %2774 = vmatprep.mubr.f32.mxu0 0.0
      %2775 = vmatmul.mubr.f32.gmra.mxu0 %v291
      %v2776 = vpop.f32.mrf.mxu0
      %v2777 = vadd.f32 0.0, %v2776
      %v2778 = vpop.f32.mrf.mxu0
      %2779 = vdwg.mxu0
      %2780 = vmatprep.subr.mxu0 0.0
      %2781 = vmatpush1.msra.mxu0 %v2463
      %2782 = vmatprep.subr.mxu0 0.0
      %2783 = vmatpush1.msra.mxu0 %v2458
      %2784 = vmatprep.subr.mxu0 0.0
      %2785 = vmatpush1.msra.mxu0 %v2453
      %2786 = vmatprep.subr.mxu0 0.0
      %2787 = vmatpush1.msra.mxu0 %v2448
      %2788 = vmatprep.subr.mxu0 0.0
      %2789 = vmatpush1.msra.mxu0 %v2443
      %2790 = vmatprep.subr.mxu0 0.0
      %2791 = vmatpush1.msra.mxu0 %v2438
      %2792 = vmatprep.subr.mxu0 0.0
      %2793 = vmatpush1.msra.mxu0 %v2433
      %2794 = vmatprep.subr.mxu0 0.0
      %2795 = vmatpush1.msra.mxu0 %v2428
      %2796 = vmatprep.subr.mxu0 0.0
      %2797 = vmatpush1.msra.mxu0 %v2423
      %2798 = vmatprep.subr.mxu0 0.0
      %2799 = vmatpush1.msra.mxu0 %v2418
      %2800 = vmatprep.subr.mxu0 0.0
      %2801 = vmatpush1.msra.mxu0 %v2413
      %2802 = vmatprep.subr.mxu0 0.0
      %2803 = vmatpush1.msra.mxu0 %v2408
      %2804 = vmatprep.subr.mxu0 0.0
      %2805 = vmatpush1.msra.mxu0 %v2403
      %2806 = vmatprep.subr.mxu0 0.0
      %2807 = vmatpush1.msra.mxu0 %v2398
      %2808 = vmatprep.subr.mxu0 0.0
      %2809 = vmatpush1.msra.mxu0 %v2393
      %2810 = vmatprep.subr.mxu0 0.0
      %2811 = vmatpush1.msra.mxu0 %v2388
      %2812 = vmatprep.subr.mxu0 0.0
      %2813 = vmatpush2.msra.mxu0 0.0
      %2814 = vmatprep.subr.mxu0 0.0
      %2815 = vmatpush2.msra.mxu0 0.0
      %2816 = vmatprep.subr.mxu0 0.0
      %2817 = vmatpush2.msra.mxu0 0.0
      %2818 = vmatprep.subr.mxu0 0.0
      %2819 = vmatpush2.msra.mxu0 0.0
      %2820 = vmatprep.subr.mxu0 0.0
      %2821 = vmatpush2.msra.mxu0 0.0
      %2822 = vmatprep.subr.mxu0 0.0
      %2823 = vmatpush2.msra.mxu0 0.0
      %2824 = vmatprep.subr.mxu0 0.0
      %2825 = vmatpush2.msra.mxu0 0.0
      %2826 = vmatprep.subr.mxu0 0.0
      %2827 = vmatpush2.msra.mxu0 0.0
      %2828 = vmatprep.subr.mxu0 0.0
      %2829 = vmatpush2.msra.mxu0 0.0
      %2830 = vmatprep.subr.mxu0 0.0
      %2831 = vmatpush2.msra.mxu0 0.0
      %2832 = vmatprep.subr.mxu0 0.0
      %2833 = vmatpush2.msra.mxu0 0.0
      %2834 = vmatprep.subr.mxu0 0.0
      %2835 = vmatpush2.msra.mxu0 0.0
      %2836 = vmatprep.subr.mxu0 0.0
      %2837 = vmatpush2.msra.mxu0 0.0
      %2838 = vmatprep.subr.mxu0 0.0
      %2839 = vmatpush2.msra.mxu0 0.0
      %2840 = vmatprep.subr.mxu0 0.0
      %2841 = vmatpush2.msra.mxu0 0.0
      %2842 = vmatprep.subr.mxu0 0.0
      %2843 = vmatpush2.msra.mxu0 0.0
      %2844 = vmatprep.mubr.f32.mxu0 0.0
      %2845 = vmatmul.mubr.f32.gmra.mxu0 %v228
      %v2846 = vpop.f32.mrf.mxu0
      %v2847 = vadd.f32 %v2622, %v2846
      %v2848 = vpop.f32.mrf.mxu0
      %2849 = vmatprep.mubr.f32.mxu0 0.0
      %2850 = vmatmul.mubr.f32.gmra.mxu0 %v229
      %v2851 = vpop.f32.mrf.mxu0
      %v2852 = vadd.f32 %v2627, %v2851
      %v2853 = vpop.f32.mrf.mxu0
      %2854 = vmatprep.mubr.f32.mxu0 0.0
      %2855 = vmatmul.mubr.f32.gmra.mxu0 %v230
      %v2856 = vpop.f32.mrf.mxu0
      %v2857 = vadd.f32 %v2632, %v2856
      %v2858 = vpop.f32.mrf.mxu0
      %2859 = vmatprep.mubr.f32.mxu0 0.0
      %2860 = vmatmul.mubr.f32.gmra.mxu0 %v231
      %v2861 = vpop.f32.mrf.mxu0
      %v2862 = vadd.f32 %v2637, %v2861
      %v2863 = vpop.f32.mrf.mxu0
      %2864 = vmatprep.mubr.f32.mxu0 0.0
      %2865 = vmatmul.mubr.f32.gmra.mxu0 %v232
      %v2866 = vpop.f32.mrf.mxu0
      %v2867 = vadd.f32 %v2642, %v2866
      %v2868 = vpop.f32.mrf.mxu0
      %2869 = vmatprep.mubr.f32.mxu0 0.0
      %2870 = vmatmul.mubr.f32.gmra.mxu0 %v233
      %v2871 = vpop.f32.mrf.mxu0
      %v2872 = vadd.f32 %v2647, %v2871
      %v2873 = vpop.f32.mrf.mxu0
      %2874 = vmatprep.mubr.f32.mxu0 0.0
      %2875 = vmatmul.mubr.f32.gmra.mxu0 %v234
      %v2876 = vpop.f32.mrf.mxu0
      %v2877 = vadd.f32 %v2652, %v2876
      %v2878 = vpop.f32.mrf.mxu0
      %2879 = vmatprep.mubr.f32.mxu0 0.0
      %2880 = vmatmul.mubr.f32.gmra.mxu0 %v235
      %v2881 = vpop.f32.mrf.mxu0
      %v2882 = vadd.f32 %v2657, %v2881
      %v2883 = vpop.f32.mrf.mxu0
      %2884 = vmatprep.mubr.f32.mxu0 0.0
      %2885 = vmatmul.mubr.f32.gmra.mxu0 %v236
      %v2886 = vpop.f32.mrf.mxu0
      %v2887 = vadd.f32 %v2662, %v2886
      %v2888 = vpop.f32.mrf.mxu0
      %2889 = vmatprep.mubr.f32.mxu0 0.0
      %2890 = vmatmul.mubr.f32.gmra.mxu0 %v237
      %v2891 = vpop.f32.mrf.mxu0
      %v2892 = vadd.f32 %v2667, %v2891
      %v2893 = vpop.f32.mrf.mxu0
      %2894 = vmatprep.mubr.f32.mxu0 0.0
      %2895 = vmatmul.mubr.f32.gmra.mxu0 %v238
      %v2896 = vpop.f32.mrf.mxu0
      %v2897 = vadd.f32 %v2672, %v2896
      %v2898 = vpop.f32.mrf.mxu0
      %2899 = vmatprep.mubr.f32.mxu0 0.0
      %2900 = vmatmul.mubr.f32.gmra.mxu0 %v239
      %v2901 = vpop.f32.mrf.mxu0
      %v2902 = vadd.f32 %v2677, %v2901
      %v2903 = vpop.f32.mrf.mxu0
      %2904 = vmatprep.mubr.f32.mxu0 0.0
      %2905 = vmatmul.mubr.f32.gmra.mxu0 %v240
      %v2906 = vpop.f32.mrf.mxu0
      %v2907 = vadd.f32 %v2682, %v2906
      %v2908 = vpop.f32.mrf.mxu0
      %2909 = vmatprep.mubr.f32.mxu0 0.0
      %2910 = vmatmul.mubr.f32.gmra.mxu0 %v241
      %v2911 = vpop.f32.mrf.mxu0
      %v2912 = vadd.f32 %v2687, %v2911
      %v2913 = vpop.f32.mrf.mxu0
      %2914 = vmatprep.mubr.f32.mxu0 0.0
      %2915 = vmatmul.mubr.f32.gmra.mxu0 %v242
      %v2916 = vpop.f32.mrf.mxu0
      %v2917 = vadd.f32 %v2692, %v2916
      %v2918 = vpop.f32.mrf.mxu0
      %2919 = vmatprep.mubr.f32.mxu0 0.0
      %2920 = vmatmul.mubr.f32.gmra.mxu0 %v243
      %v2921 = vpop.f32.mrf.mxu0
      %v2922 = vadd.f32 %v2697, %v2921
      %v2923 = vpop.f32.mrf.mxu0
      %2924 = vmatprep.mubr.f32.mxu0 0.0
      %2925 = vmatmul.mubr.f32.gmra.mxu0 %v244
      %v2926 = vpop.f32.mrf.mxu0
      %v2927 = vadd.f32 %v2702, %v2926
      %v2928 = vpop.f32.mrf.mxu0
      %2929 = vmatprep.mubr.f32.mxu0 0.0
      %2930 = vmatmul.mubr.f32.gmra.mxu0 %v245
      %v2931 = vpop.f32.mrf.mxu0
      %v2932 = vadd.f32 %v2707, %v2931
      %v2933 = vpop.f32.mrf.mxu0
      %2934 = vmatprep.mubr.f32.mxu0 0.0
      %2935 = vmatmul.mubr.f32.gmra.mxu0 %v246
      %v2936 = vpop.f32.mrf.mxu0
      %v2937 = vadd.f32 %v2712, %v2936
      %v2938 = vpop.f32.mrf.mxu0
      %2939 = vmatprep.mubr.f32.mxu0 0.0
      %2940 = vmatmul.mubr.f32.gmra.mxu0 %v247
      %v2941 = vpop.f32.mrf.mxu0
      %v2942 = vadd.f32 %v2717, %v2941
      %v2943 = vpop.f32.mrf.mxu0
      %2944 = vmatprep.mubr.f32.mxu0 0.0
      %2945 = vmatmul.mubr.f32.gmra.mxu0 %v248
      %v2946 = vpop.f32.mrf.mxu0
      %v2947 = vadd.f32 %v2722, %v2946
      %v2948 = vpop.f32.mrf.mxu0
      %2949 = vmatprep.mubr.f32.mxu0 0.0
      %2950 = vmatmul.mubr.f32.gmra.mxu0 %v249
      %v2951 = vpop.f32.mrf.mxu0
      %v2952 = vadd.f32 %v2727, %v2951
      %v2953 = vpop.f32.mrf.mxu0
      %2954 = vmatprep.mubr.f32.mxu0 0.0
      %2955 = vmatmul.mubr.f32.gmra.mxu0 %v250
      %v2956 = vpop.f32.mrf.mxu0
      %v2957 = vadd.f32 %v2732, %v2956
      %v2958 = vpop.f32.mrf.mxu0
      %2959 = vmatprep.mubr.f32.mxu0 0.0
      %2960 = vmatmul.mubr.f32.gmra.mxu0 %v251
      %v2961 = vpop.f32.mrf.mxu0
      %v2962 = vadd.f32 %v2737, %v2961
      %v2963 = vpop.f32.mrf.mxu0
      %2964 = vmatprep.mubr.f32.mxu0 0.0
      %2965 = vmatmul.mubr.f32.gmra.mxu0 %v252
      %v2966 = vpop.f32.mrf.mxu0
      %v2967 = vadd.f32 %v2742, %v2966
      %v2968 = vpop.f32.mrf.mxu0
      %2969 = vmatprep.mubr.f32.mxu0 0.0
      %2970 = vmatmul.mubr.f32.gmra.mxu0 %v253
      %v2971 = vpop.f32.mrf.mxu0
      %v2972 = vadd.f32 %v2747, %v2971
      %v2973 = vpop.f32.mrf.mxu0
      %2974 = vmatprep.mubr.f32.mxu0 0.0
      %2975 = vmatmul.mubr.f32.gmra.mxu0 %v254
      %v2976 = vpop.f32.mrf.mxu0
      %v2977 = vadd.f32 %v2752, %v2976
      %v2978 = vpop.f32.mrf.mxu0
      %2979 = vmatprep.mubr.f32.mxu0 0.0
      %2980 = vmatmul.mubr.f32.gmra.mxu0 %v255
      %v2981 = vpop.f32.mrf.mxu0
      %v2982 = vadd.f32 %v2757, %v2981
      %v2983 = vpop.f32.mrf.mxu0
      %2984 = vmatprep.mubr.f32.mxu0 0.0
      %2985 = vmatmul.mubr.f32.gmra.mxu0 %v256
      %v2986 = vpop.f32.mrf.mxu0
      %v2987 = vadd.f32 %v2762, %v2986
      %v2988 = vpop.f32.mrf.mxu0
      %2989 = vmatprep.mubr.f32.mxu0 0.0
      %2990 = vmatmul.mubr.f32.gmra.mxu0 %v257
      %v2991 = vpop.f32.mrf.mxu0
      %v2992 = vadd.f32 %v2767, %v2991
      %v2993 = vpop.f32.mrf.mxu0
      %2994 = vmatprep.mubr.f32.mxu0 0.0
      %2995 = vmatmul.mubr.f32.gmra.mxu0 %v258
      %v2996 = vpop.f32.mrf.mxu0
      %v2997 = vadd.f32 %v2772, %v2996
      %v2998 = vpop.f32.mrf.mxu0
      %2999 = vmatprep.mubr.f32.mxu0 0.0
      %3000 = vmatmul.mubr.f32.gmra.mxu0 %v259
      %v3001 = vpop.f32.mrf.mxu0
      %v3002 = vadd.f32 %v2777, %v3001
      %v3003 = vpop.f32.mrf.mxu0
      %3004 = vdwg.mxu0
      %v3005 = vlaneseq
      %v3006 = vshrl.u32 %v3005, 7
      %v3007 = vsub.s32 0, %v3006
      %v3008 = vrot.slane %v2269, %v3007
      %v3009 = vadd.f32 %v2847, %v3008
      %v3010 = vadd.f32 %v2852, %v3008
      %v3011 = vadd.f32 %v2857, %v3008
      %v3012 = vadd.f32 %v2862, %v3008
      %v3013 = vadd.f32 %v2867, %v3008
      %v3014 = vadd.f32 %v2872, %v3008
      %v3015 = vadd.f32 %v2877, %v3008
      %v3016 = vadd.f32 %v2882, %v3008
      %v3017 = vadd.f32 %v2887, %v3008
      %v3018 = vadd.f32 %v2892, %v3008
      %v3019 = vadd.f32 %v2897, %v3008
      %v3020 = vadd.f32 %v2902, %v3008
      %v3021 = vadd.f32 %v2907, %v3008
      %v3022 = vadd.f32 %v2912, %v3008
      %v3023 = vadd.f32 %v2917, %v3008
      %v3024 = vadd.f32 %v2922, %v3008
      %v3025 = vadd.f32 %v2927, %v3008
      %v3026 = vadd.f32 %v2932, %v3008
      %v3027 = vadd.f32 %v2937, %v3008
      %v3028 = vadd.f32 %v2942, %v3008
      %v3029 = vadd.f32 %v2947, %v3008
      %v3030 = vadd.f32 %v2952, %v3008
      %v3031 = vadd.f32 %v2957, %v3008
      %v3032 = vadd.f32 %v2962, %v3008
      %v3033 = vadd.f32 %v2967, %v3008
      %v3034 = vadd.f32 %v2972, %v3008
      %v3035 = vadd.f32 %v2977, %v3008
      %v3036 = vadd.f32 %v2982, %v3008
      %v3037 = vadd.f32 %v2987, %v3008
      %v3038 = vadd.f32 %v2992, %v3008
      %v3039 = vadd.f32 %v2997, %v3008
      %v3040 = vadd.f32 %v3002, %v3008
      %v3041 = vmax.f32 %v3009, 0.0
      %v3042 = vmax.f32 %v3010, 0.0
      %v3043 = vmax.f32 %v3011, 0.0
      %v3044 = vmax.f32 %v3012, 0.0
      %v3045 = vmax.f32 %v3013, 0.0
      %v3046 = vmax.f32 %v3014, 0.0
      %v3047 = vmax.f32 %v3015, 0.0
      %v3048 = vmax.f32 %v3016, 0.0
      %v3049 = vmax.f32 %v3017, 0.0
      %v3050 = vmax.f32 %v3018, 0.0
      %v3051 = vmax.f32 %v3019, 0.0
      %v3052 = vmax.f32 %v3020, 0.0
      %v3053 = vmax.f32 %v3021, 0.0
      %v3054 = vmax.f32 %v3022, 0.0
      %v3055 = vmax.f32 %v3023, 0.0
      %v3056 = vmax.f32 %v3024, 0.0
      %v3057 = vmax.f32 %v3025, 0.0
      %v3058 = vmax.f32 %v3026, 0.0
      %v3059 = vmax.f32 %v3027, 0.0
      %v3060 = vmax.f32 %v3028, 0.0
      %v3061 = vmax.f32 %v3029, 0.0
      %v3062 = vmax.f32 %v3030, 0.0
      %v3063 = vmax.f32 %v3031, 0.0
      %v3064 = vmax.f32 %v3032, 0.0
      %v3065 = vmax.f32 %v3033, 0.0
      %v3066 = vmax.f32 %v3034, 0.0
      %v3067 = vmax.f32 %v3035, 0.0
      %v3068 = vmax.f32 %v3036, 0.0
      %v3069 = vmax.f32 %v3037, 0.0
      %v3070 = vmax.f32 %v3038, 0.0
      %v3071 = vmax.f32 %v3039, 0.0
      %v3072 = vmax.f32 %v3040, 0.0
      %v3073 = vlaneseq
      %v3074 = vshrl.u32 %v3073, 7
      %v3075 = vsub.s32 0, %v3074
      %v3076 = vrot.slane %v2270, %v3075
      %vm3077 = vcmask 130048
      %v3079 = vsel %vm3077, %v3041, 0
      %v3082 = vsel %vm3077, %v3042, 0
      %v3085 = vsel %vm3077, %v3043, 0
      %v3088 = vsel %vm3077, %v3044, 0
      %v3091 = vsel %vm3077, %v3045, 0
      %v3094 = vsel %vm3077, %v3046, 0
      %v3097 = vsel %vm3077, %v3047, 0
      %v3100 = vsel %vm3077, %v3048, 0
      %v3103 = vsel %vm3077, %v3049, 0
      %v3106 = vsel %vm3077, %v3050, 0
      %v3109 = vsel %vm3077, %v3051, 0
      %v3112 = vsel %vm3077, %v3052, 0
      %v3115 = vsel %vm3077, %v3053, 0
      %v3118 = vsel %vm3077, %v3054, 0
      %v3121 = vsel %vm3077, %v3055, 0
      %v3124 = vsel %vm3077, %v3056, 0
      %v3127 = vsel %vm3077, %v3057, 0
      %v3130 = vsel %vm3077, %v3058, 0
      %v3133 = vsel %vm3077, %v3059, 0
      %v3136 = vsel %vm3077, %v3060, 0
      %v3139 = vsel %vm3077, %v3061, 0
      %v3142 = vsel %vm3077, %v3062, 0
      %v3145 = vsel %vm3077, %v3063, 0
      %v3148 = vsel %vm3077, %v3064, 0
      %v3151 = vsel %vm3077, %v3065, 0
      %v3154 = vsel %vm3077, %v3066, 0
      %v3157 = vsel %vm3077, %v3067, 0
      %v3160 = vsel %vm3077, %v3068, 0
      %v3163 = vsel %vm3077, %v3069, 0
      %v3166 = vsel %vm3077, %v3070, 0
      %v3169 = vsel %vm3077, %v3071, 0
      %v3172 = vsel %vm3077, %v3072, 0
      %3174 = vmatprep.subr.mxu0 0.0
      %3175 = vmatpush1.msra.mxu0 0.0
      %3176 = vmatprep.subr.mxu0 0.0
      %3177 = vmatpush1.msra.mxu0 0.0
      %3178 = vmatprep.subr.mxu0 0.0
      %3179 = vmatpush1.msra.mxu0 0.0
      %3180 = vmatprep.subr.mxu0 0.0
      %3181 = vmatpush1.msra.mxu0 0.0
      %3182 = vmatprep.subr.mxu0 0.0
      %3183 = vmatpush1.msra.mxu0 0.0
      %3184 = vmatprep.subr.mxu0 0.0
      %3185 = vmatpush1.msra.mxu0 0.0
      %3186 = vmatprep.subr.mxu0 0.0
      %3187 = vmatpush1.msra.mxu0 0.0
      %3188 = vmatprep.subr.mxu0 0.0
      %3189 = vmatpush1.msra.mxu0 0.0
      %3190 = vmatprep.subr.mxu0 0.0
      %3191 = vmatpush1.msra.mxu0 0.0
      %3192 = vmatprep.subr.mxu0 0.0
      %3193 = vmatpush1.msra.mxu0 0.0
      %3194 = vmatprep.subr.mxu0 0.0
      %3195 = vmatpush1.msra.mxu0 0.0
      %3196 = vmatprep.subr.mxu0 0.0
      %3197 = vmatpush1.msra.mxu0 0.0
      %3198 = vmatprep.subr.mxu0 0.0
      %3199 = vmatpush1.msra.mxu0 0.0
      %3200 = vmatprep.subr.mxu0 0.0
      %3201 = vmatpush1.msra.mxu0 0.0
      %3202 = vmatprep.subr.mxu0 0.0
      %3203 = vmatpush1.msra.mxu0 %v2264
      %3204 = vmatprep.subr.mxu0 0.0
      %3205 = vmatpush1.msra.mxu0 %v2263
      %3206 = vmatprep.subr.mxu0 0.0
      %3207 = vmatpush2.msra.mxu0 0.0
      %3208 = vmatprep.subr.mxu0 0.0
      %3209 = vmatpush2.msra.mxu0 0.0
      %3210 = vmatprep.subr.mxu0 0.0
      %3211 = vmatpush2.msra.mxu0 0.0
      %3212 = vmatprep.subr.mxu0 0.0
      %3213 = vmatpush2.msra.mxu0 0.0
      %3214 = vmatprep.subr.mxu0 0.0
      %3215 = vmatpush2.msra.mxu0 0.0
      %3216 = vmatprep.subr.mxu0 0.0
      %3217 = vmatpush2.msra.mxu0 0.0
      %3218 = vmatprep.subr.mxu0 0.0
      %3219 = vmatpush2.msra.mxu0 0.0
      %3220 = vmatprep.subr.mxu0 0.0
      %3221 = vmatpush2.msra.mxu0 0.0
      %3222 = vmatprep.subr.mxu0 0.0
      %3223 = vmatpush2.msra.mxu0 0.0
      %3224 = vmatprep.subr.mxu0 0.0
      %3225 = vmatpush2.msra.mxu0 0.0
      %3226 = vmatprep.subr.mxu0 0.0
      %3227 = vmatpush2.msra.mxu0 0.0
      %3228 = vmatprep.subr.mxu0 0.0
      %3229 = vmatpush2.msra.mxu0 0.0
      %3230 = vmatprep.subr.mxu0 0.0
      %3231 = vmatpush2.msra.mxu0 0.0
      %3232 = vmatprep.subr.mxu0 0.0
      %3233 = vmatpush2.msra.mxu0 0.0
      %3234 = vmatprep.subr.mxu0 0.0
      %3235 = vmatpush2.msra.mxu0 0.0
      %3236 = vmatprep.subr.mxu0 0.0
      %3237 = vmatpush2.msra.mxu0 0.0
      %3238 = vmatprep.mubr.f32.mxu0 0.0
      %3239 = vmatmul.mubr.f32.gmra.mxu0 %v3079
      %v3240 = vpop.f32.mrf.mxu0
      %v3241 = vadd.f32 %v3076, %v3240
      %v3242 = vpop.f32.mrf.mxu0
      %3243 = vmatprep.mubr.f32.mxu0 0.0
      %3244 = vmatmul.mubr.f32.gmra.mxu0 %v3082
      %v3245 = vpop.f32.mrf.mxu0
      %v3246 = vadd.f32 %v3076, %v3245
      %v3247 = vpop.f32.mrf.mxu0
      %3248 = vmatprep.mubr.f32.mxu0 0.0
      %3249 = vmatmul.mubr.f32.gmra.mxu0 %v3085
      %v3250 = vpop.f32.mrf.mxu0
      %v3251 = vadd.f32 %v3076, %v3250
      %v3252 = vpop.f32.mrf.mxu0
      %3253 = vmatprep.mubr.f32.mxu0 0.0
      %3254 = vmatmul.mubr.f32.gmra.mxu0 %v3088
      %v3255 = vpop.f32.mrf.mxu0
      %v3256 = vadd.f32 %v3076, %v3255
      %v3257 = vpop.f32.mrf.mxu0
      %3258 = vmatprep.mubr.f32.mxu0 0.0
      %3259 = vmatmul.mubr.f32.gmra.mxu0 %v3091
      %v3260 = vpop.f32.mrf.mxu0
      %v3261 = vadd.f32 %v3076, %v3260
      %v3262 = vpop.f32.mrf.mxu0
      %3263 = vmatprep.mubr.f32.mxu0 0.0
      %3264 = vmatmul.mubr.f32.gmra.mxu0 %v3094
      %v3265 = vpop.f32.mrf.mxu0
      %v3266 = vadd.f32 %v3076, %v3265
      %v3267 = vpop.f32.mrf.mxu0
      %3268 = vmatprep.mubr.f32.mxu0 0.0
      %3269 = vmatmul.mubr.f32.gmra.mxu0 %v3097
      %v3270 = vpop.f32.mrf.mxu0
      %v3271 = vadd.f32 %v3076, %v3270
      %v3272 = vpop.f32.mrf.mxu0
      %3273 = vmatprep.mubr.f32.mxu0 0.0
      %3274 = vmatmul.mubr.f32.gmra.mxu0 %v3100
      %v3275 = vpop.f32.mrf.mxu0
      %v3276 = vadd.f32 %v3076, %v3275
      %v3277 = vpop.f32.mrf.mxu0
      %3278 = vmatprep.mubr.f32.mxu0 0.0
      %3279 = vmatmul.mubr.f32.gmra.mxu0 %v3103
      %v3280 = vpop.f32.mrf.mxu0
      %v3281 = vadd.f32 %v3076, %v3280
      %v3282 = vpop.f32.mrf.mxu0
      %3283 = vmatprep.mubr.f32.mxu0 0.0
      %3284 = vmatmul.mubr.f32.gmra.mxu0 %v3106
      %v3285 = vpop.f32.mrf.mxu0
      %v3286 = vadd.f32 %v3076, %v3285
      %v3287 = vpop.f32.mrf.mxu0
      %3288 = vmatprep.mubr.f32.mxu0 0.0
      %3289 = vmatmul.mubr.f32.gmra.mxu0 %v3109
      %v3290 = vpop.f32.mrf.mxu0
      %v3291 = vadd.f32 %v3076, %v3290
      %v3292 = vpop.f32.mrf.mxu0
      %3293 = vmatprep.mubr.f32.mxu0 0.0
      %3294 = vmatmul.mubr.f32.gmra.mxu0 %v3112
      %v3295 = vpop.f32.mrf.mxu0
      %v3296 = vadd.f32 %v3076, %v3295
      %v3297 = vpop.f32.mrf.mxu0
      %3298 = vmatprep.mubr.f32.mxu0 0.0
      %3299 = vmatmul.mubr.f32.gmra.mxu0 %v3115
      %v3300 = vpop.f32.mrf.mxu0
      %v3301 = vadd.f32 %v3076, %v3300
      %v3302 = vpop.f32.mrf.mxu0
      %3303 = vmatprep.mubr.f32.mxu0 0.0
      %3304 = vmatmul.mubr.f32.gmra.mxu0 %v3118
      %v3305 = vpop.f32.mrf.mxu0
      %v3306 = vadd.f32 %v3076, %v3305
      %v3307 = vpop.f32.mrf.mxu0
      %3308 = vmatprep.mubr.f32.mxu0 0.0
      %3309 = vmatmul.mubr.f32.gmra.mxu0 %v3121
      %v3310 = vpop.f32.mrf.mxu0
      %v3311 = vadd.f32 %v3076, %v3310
      %v3312 = vpop.f32.mrf.mxu0
      %3313 = vmatprep.mubr.f32.mxu0 0.0
      %3314 = vmatmul.mubr.f32.gmra.mxu0 %v3124
      %v3315 = vpop.f32.mrf.mxu0
      %v3316 = vadd.f32 %v3076, %v3315
      %v3317 = vpop.f32.mrf.mxu0
      %3318 = vmatprep.mubr.f32.mxu0 0.0
      %3319 = vmatmul.mubr.f32.gmra.mxu0 %v3127
      %v3320 = vpop.f32.mrf.mxu0
      %v3321 = vadd.f32 %v3076, %v3320
      %v3322 = vpop.f32.mrf.mxu0
      %3323 = vmatprep.mubr.f32.mxu0 0.0
      %3324 = vmatmul.mubr.f32.gmra.mxu0 %v3130
      %v3325 = vpop.f32.mrf.mxu0
      %v3326 = vadd.f32 %v3076, %v3325
      %v3327 = vpop.f32.mrf.mxu0
      %3328 = vmatprep.mubr.f32.mxu0 0.0
      %3329 = vmatmul.mubr.f32.gmra.mxu0 %v3133
      %v3330 = vpop.f32.mrf.mxu0
      %v3331 = vadd.f32 %v3076, %v3330
      %v3332 = vpop.f32.mrf.mxu0
      %3333 = vmatprep.mubr.f32.mxu0 0.0
      %3334 = vmatmul.mubr.f32.gmra.mxu0 %v3136
      %v3335 = vpop.f32.mrf.mxu0
      %v3336 = vadd.f32 %v3076, %v3335
      %v3337 = vpop.f32.mrf.mxu0
      %3338 = vmatprep.mubr.f32.mxu0 0.0
      %3339 = vmatmul.mubr.f32.gmra.mxu0 %v3139
      %v3340 = vpop.f32.mrf.mxu0
      %v3341 = vadd.f32 %v3076, %v3340
      %v3342 = vpop.f32.mrf.mxu0
      %3343 = vmatprep.mubr.f32.mxu0 0.0
      %3344 = vmatmul.mubr.f32.gmra.mxu0 %v3142
      %v3345 = vpop.f32.mrf.mxu0
      %v3346 = vadd.f32 %v3076, %v3345
      %v3347 = vpop.f32.mrf.mxu0
      %3348 = vmatprep.mubr.f32.mxu0 0.0
      %3349 = vmatmul.mubr.f32.gmra.mxu0 %v3145
      %v3350 = vpop.f32.mrf.mxu0
      %v3351 = vadd.f32 %v3076, %v3350
      %v3352 = vpop.f32.mrf.mxu0
      %3353 = vmatprep.mubr.f32.mxu0 0.0
      %3354 = vmatmul.mubr.f32.gmra.mxu0 %v3148
      %v3355 = vpop.f32.mrf.mxu0
      %v3356 = vadd.f32 %v3076, %v3355
      %v3357 = vpop.f32.mrf.mxu0
      %3358 = vmatprep.mubr.f32.mxu0 0.0
      %3359 = vmatmul.mubr.f32.gmra.mxu0 %v3151
      %v3360 = vpop.f32.mrf.mxu0
      %v3361 = vadd.f32 %v3076, %v3360
      %v3362 = vpop.f32.mrf.mxu0
      %3363 = vmatprep.mubr.f32.mxu0 0.0
      %3364 = vmatmul.mubr.f32.gmra.mxu0 %v3154
      %v3365 = vpop.f32.mrf.mxu0
      %v3366 = vadd.f32 %v3076, %v3365
      %v3367 = vpop.f32.mrf.mxu0
      %3368 = vmatprep.mubr.f32.mxu0 0.0
      %3369 = vmatmul.mubr.f32.gmra.mxu0 %v3157
      %v3370 = vpop.f32.mrf.mxu0
      %v3371 = vadd.f32 %v3076, %v3370
      %v3372 = vpop.f32.mrf.mxu0
      %3373 = vmatprep.mubr.f32.mxu0 0.0
      %3374 = vmatmul.mubr.f32.gmra.mxu0 %v3160
      %v3375 = vpop.f32.mrf.mxu0
      %v3376 = vadd.f32 %v3076, %v3375
      %v3377 = vpop.f32.mrf.mxu0
      %3378 = vmatprep.mubr.f32.mxu0 0.0
      %3379 = vmatmul.mubr.f32.gmra.mxu0 %v3163
      %v3380 = vpop.f32.mrf.mxu0
      %v3381 = vadd.f32 %v3076, %v3380
      %v3382 = vpop.f32.mrf.mxu0
      %3383 = vmatprep.mubr.f32.mxu0 0.0
      %3384 = vmatmul.mubr.f32.gmra.mxu0 %v3166
      %v3385 = vpop.f32.mrf.mxu0
      %v3386 = vadd.f32 %v3076, %v3385
      %v3387 = vpop.f32.mrf.mxu0
      %3388 = vmatprep.mubr.f32.mxu0 0.0
      %3389 = vmatmul.mubr.f32.gmra.mxu0 %v3169
      %v3390 = vpop.f32.mrf.mxu0
      %v3391 = vadd.f32 %v3076, %v3390
      %v3392 = vpop.f32.mrf.mxu0
      %3393 = vmatprep.mubr.f32.mxu0 0.0
      %3394 = vmatmul.mubr.f32.gmra.mxu0 %v3172
      %v3395 = vpop.f32.mrf.mxu0
      %v3396 = vadd.f32 %v3076, %v3395
      %v3397 = vpop.f32.mrf.mxu0
      %3398 = vdwg.mxu0
      %3399 = vmatprep.subr.mxu0 0.0
      %3400 = vmatpush1.msra.mxu0 %v3316
      %3401 = vmatprep.subr.mxu0 0.0
      %3402 = vmatpush1.msra.mxu0 %v3311
      %3403 = vmatprep.subr.mxu0 0.0
      %3404 = vmatpush1.msra.mxu0 %v3306
      %3405 = vmatprep.subr.mxu0 0.0
      %3406 = vmatpush1.msra.mxu0 %v3301
      %3407 = vmatprep.subr.mxu0 0.0
      %3408 = vmatpush1.msra.mxu0 %v3296
      %3409 = vmatprep.subr.mxu0 0.0
      %3410 = vmatpush1.msra.mxu0 %v3291
      %3411 = vmatprep.subr.mxu0 0.0
      %3412 = vmatpush1.msra.mxu0 %v3286
      %3413 = vmatprep.subr.mxu0 0.0
      %3414 = vmatpush1.msra.mxu0 %v3281
      %3415 = vmatprep.subr.mxu0 0.0
      %3416 = vmatpush1.msra.mxu0 %v3276
      %3417 = vmatprep.subr.mxu0 0.0
      %3418 = vmatpush1.msra.mxu0 %v3271
      %3419 = vmatprep.subr.mxu0 0.0
      %3420 = vmatpush1.msra.mxu0 %v3266
      %3421 = vmatprep.subr.mxu0 0.0
      %3422 = vmatpush1.msra.mxu0 %v3261
      %3423 = vmatprep.subr.mxu0 0.0
      %3424 = vmatpush1.msra.mxu0 %v3256
      %3425 = vmatprep.subr.mxu0 0.0
      %3426 = vmatpush1.msra.mxu0 %v3251
      %3427 = vmatprep.subr.mxu0 0.0
      %3428 = vmatpush1.msra.mxu0 %v3246
      %3429 = vmatprep.subr.mxu0 0.0
      %3430 = vmatpush1.msra.mxu0 %v3241
      %3431 = vmatprep.subr.mxu0 0.0
      %3432 = vmatpush2.msra.mxu0 %v3396
      %3433 = vmatprep.subr.mxu0 0.0
      %3434 = vmatpush2.msra.mxu0 %v3391
      %3435 = vmatprep.subr.mxu0 0.0
      %3436 = vmatpush2.msra.mxu0 %v3386
      %3437 = vmatprep.subr.mxu0 0.0
      %3438 = vmatpush2.msra.mxu0 %v3381
      %3439 = vmatprep.subr.mxu0 0.0
      %3440 = vmatpush2.msra.mxu0 %v3376
      %3441 = vmatprep.subr.mxu0 0.0
      %3442 = vmatpush2.msra.mxu0 %v3371
      %3443 = vmatprep.subr.mxu0 0.0
      %3444 = vmatpush2.msra.mxu0 %v3366
      %3445 = vmatprep.subr.mxu0 0.0
      %3446 = vmatpush2.msra.mxu0 %v3361
      %3447 = vmatprep.subr.mxu0 0.0
      %3448 = vmatpush2.msra.mxu0 %v3356
      %3449 = vmatprep.subr.mxu0 0.0
      %3450 = vmatpush2.msra.mxu0 %v3351
      %3451 = vmatprep.subr.mxu0 0.0
      %3452 = vmatpush2.msra.mxu0 %v3346
      %3453 = vmatprep.subr.mxu0 0.0
      %3454 = vmatpush2.msra.mxu0 %v3341
      %3455 = vmatprep.subr.mxu0 0.0
      %3456 = vmatpush2.msra.mxu0 %v3336
      %3457 = vmatprep.subr.mxu0 0.0
      %3458 = vmatpush2.msra.mxu0 %v3331
      %3459 = vmatprep.subr.mxu0 0.0
      %3460 = vmatpush2.msra.mxu0 %v3326
      %3461 = vmatprep.subr.mxu0 0.0
      %3462 = vmatpush2.msra.mxu0 %v3321
      %3463 = vmatprep.mubr.f32.mxu0 %v293
      %3464 = vmatmul.mubr.f32.gmra.mxu0 %v292
      %v3465 = vpop.f32.mrf.mxu0
      %v3466 = vadd.f32 0.0, %v3465
      %v3467 = vpop.f32.mrf.mxu0
      %3468 = vmatprep.mubr.f32.mxu0 %v295
      %3469 = vmatmul.mubr.f32.gmra.mxu0 %v294
      %v3470 = vpop.f32.mrf.mxu0
      %v3471 = vadd.f32 0.0, %v3470
      %v3472 = vpop.f32.mrf.mxu0
      %3473 = vmatprep.mubr.f32.mxu0 %v297
      %3474 = vmatmul.mubr.f32.gmra.mxu0 %v296
      %v3475 = vpop.f32.mrf.mxu0
      %v3476 = vadd.f32 0.0, %v3475
      %v3477 = vpop.f32.mrf.mxu0
      %3478 = vmatprep.mubr.f32.mxu0 %v299
      %3479 = vmatmul.mubr.f32.gmra.mxu0 %v298
      %v3480 = vpop.f32.mrf.mxu0
      %v3481 = vadd.f32 0.0, %v3480
      %v3482 = vpop.f32.mrf.mxu0
      %3483 = vmatprep.mubr.f32.mxu0 %v301
      %3484 = vmatmul.mubr.f32.gmra.mxu0 %v300
      %v3485 = vpop.f32.mrf.mxu0
      %v3486 = vadd.f32 0.0, %v3485
      %v3487 = vpop.f32.mrf.mxu0
      %3488 = vmatprep.mubr.f32.mxu0 %v303
      %3489 = vmatmul.mubr.f32.gmra.mxu0 %v302
      %v3490 = vpop.f32.mrf.mxu0
      %v3491 = vadd.f32 0.0, %v3490
      %v3492 = vpop.f32.mrf.mxu0
      %3493 = vmatprep.mubr.f32.mxu0 %v305
      %3494 = vmatmul.mubr.f32.gmra.mxu0 %v304
      %v3495 = vpop.f32.mrf.mxu0
      %v3496 = vadd.f32 0.0, %v3495
      %v3497 = vpop.f32.mrf.mxu0
      %3498 = vmatprep.mubr.f32.mxu0 %v307
      %3499 = vmatmul.mubr.f32.gmra.mxu0 %v306
      %v3500 = vpop.f32.mrf.mxu0
      %v3501 = vadd.f32 0.0, %v3500
      %v3502 = vpop.f32.mrf.mxu0
      %3503 = vmatprep.mubr.f32.mxu0 %v309
      %3504 = vmatmul.mubr.f32.gmra.mxu0 %v308
      %v3505 = vpop.f32.mrf.mxu0
      %v3506 = vadd.f32 0.0, %v3505
      %v3507 = vpop.f32.mrf.mxu0
      %3508 = vmatprep.mubr.f32.mxu0 %v311
      %3509 = vmatmul.mubr.f32.gmra.mxu0 %v310
      %v3510 = vpop.f32.mrf.mxu0
      %v3511 = vadd.f32 0.0, %v3510
      %v3512 = vpop.f32.mrf.mxu0
      %3513 = vmatprep.mubr.f32.mxu0 %v313
      %3514 = vmatmul.mubr.f32.gmra.mxu0 %v312
      %v3515 = vpop.f32.mrf.mxu0
      %v3516 = vadd.f32 0.0, %v3515
      %v3517 = vpop.f32.mrf.mxu0
      %3518 = vmatprep.mubr.f32.mxu0 %v315
      %3519 = vmatmul.mubr.f32.gmra.mxu0 %v314
      %v3520 = vpop.f32.mrf.mxu0
      %v3521 = vadd.f32 0.0, %v3520
      %v3522 = vpop.f32.mrf.mxu0
      %3523 = vmatprep.mubr.f32.mxu0 %v317
      %3524 = vmatmul.mubr.f32.gmra.mxu0 %v316
      %v3525 = vpop.f32.mrf.mxu0
      %v3526 = vadd.f32 0.0, %v3525
      %v3527 = vpop.f32.mrf.mxu0
      %3528 = vmatprep.mubr.f32.mxu0 %v319
      %3529 = vmatmul.mubr.f32.gmra.mxu0 %v318
      %v3530 = vpop.f32.mrf.mxu0
      %v3531 = vadd.f32 0.0, %v3530
      %v3532 = vpop.f32.mrf.mxu0
      %3533 = vmatprep.mubr.f32.mxu0 %v321
      %3534 = vmatmul.mubr.f32.gmra.mxu0 %v320
      %v3535 = vpop.f32.mrf.mxu0
      %v3536 = vadd.f32 0.0, %v3535
      %v3537 = vpop.f32.mrf.mxu0
      %3538 = vmatprep.mubr.f32.mxu0 %v323
      %3539 = vmatmul.mubr.f32.gmra.mxu0 %v322
      %v3540 = vpop.f32.mrf.mxu0
      %v3541 = vadd.f32 0.0, %v3540
      %v3542 = vpop.f32.mrf.mxu0
      %3543 = vdwg.mxu0
      %v3545 = vsel %vm3077, %v3466, 0
      %v3548 = vsel %vm3077, %v3471, 0
      %v3551 = vsel %vm3077, %v3476, 0
      %v3554 = vsel %vm3077, %v3481, 0
      %v3557 = vsel %vm3077, %v3486, 0
      %v3560 = vsel %vm3077, %v3491, 0
      %v3563 = vsel %vm3077, %v3496, 0
      %v3566 = vsel %vm3077, %v3501, 0
      %v3569 = vsel %vm3077, %v3506, 0
      %v3572 = vsel %vm3077, %v3511, 0
      %v3575 = vsel %vm3077, %v3516, 0
      %v3578 = vsel %vm3077, %v3521, 0
      %v3581 = vsel %vm3077, %v3526, 0
      %v3584 = vsel %vm3077, %v3531, 0
      %v3587 = vsel %vm3077, %v3536, 0
      %v3590 = vsel %vm3077, %v3541, 0
      %3592 = vmatprep.subr.mxu0 0.0
      %3593 = vmatpush1.msra.mxu0 0.0
      %3594 = vmatprep.subr.mxu0 0.0
      %3595 = vmatpush1.msra.mxu0 0.0
      %3596 = vmatprep.subr.mxu0 0.0
      %3597 = vmatpush1.msra.mxu0 0.0
      %3598 = vmatprep.subr.mxu0 0.0
      %3599 = vmatpush1.msra.mxu0 0.0
      %3600 = vmatprep.subr.mxu0 0.0
      %3601 = vmatpush1.msra.mxu0 0.0
      %3602 = vmatprep.subr.mxu0 0.0
      %3603 = vmatpush1.msra.mxu0 0.0
      %3604 = vmatprep.subr.mxu0 0.0
      %3605 = vmatpush1.msra.mxu0 0.0
      %3606 = vmatprep.subr.mxu0 0.0
      %3607 = vmatpush1.msra.mxu0 0.0
      %3608 = vmatprep.subr.mxu0 0.0
      %3609 = vmatpush1.msra.mxu0 0.0
      %3610 = vmatprep.subr.mxu0 0.0
      %3611 = vmatpush1.msra.mxu0 0.0
      %3612 = vmatprep.subr.mxu0 0.0
      %3613 = vmatpush1.msra.mxu0 0.0
      %3614 = vmatprep.subr.mxu0 0.0
      %3615 = vmatpush1.msra.mxu0 0.0
      %3616 = vmatprep.subr.mxu0 0.0
      %3617 = vmatpush1.msra.mxu0 0.0
      %3618 = vmatprep.subr.mxu0 0.0
      %3619 = vmatpush1.msra.mxu0 0.0
      %3620 = vmatprep.subr.mxu0 0.0
      %3621 = vmatpush1.msra.mxu0 %v2266
      %3622 = vmatprep.subr.mxu0 0.0
      %3623 = vmatpush1.msra.mxu0 %v2265
      %3624 = vmatprep.subr.mxu0 0.0
      %3625 = vmatpush2.msra.mxu0 0.0
      %3626 = vmatprep.subr.mxu0 0.0
      %3627 = vmatpush2.msra.mxu0 0.0
      %3628 = vmatprep.subr.mxu0 0.0
      %3629 = vmatpush2.msra.mxu0 0.0
      %3630 = vmatprep.subr.mxu0 0.0
      %3631 = vmatpush2.msra.mxu0 0.0
      %3632 = vmatprep.subr.mxu0 0.0
      %3633 = vmatpush2.msra.mxu0 0.0
      %3634 = vmatprep.subr.mxu0 0.0
      %3635 = vmatpush2.msra.mxu0 0.0
      %3636 = vmatprep.subr.mxu0 0.0
      %3637 = vmatpush2.msra.mxu0 0.0
      %3638 = vmatprep.subr.mxu0 0.0
      %3639 = vmatpush2.msra.mxu0 0.0
      %3640 = vmatprep.subr.mxu0 0.0
      %3641 = vmatpush2.msra.mxu0 0.0
      %3642 = vmatprep.subr.mxu0 0.0
      %3643 = vmatpush2.msra.mxu0 0.0
      %3644 = vmatprep.subr.mxu0 0.0
      %3645 = vmatpush2.msra.mxu0 0.0
      %3646 = vmatprep.subr.mxu0 0.0
      %3647 = vmatpush2.msra.mxu0 0.0
      %3648 = vmatprep.subr.mxu0 0.0
      %3649 = vmatpush2.msra.mxu0 0.0
      %3650 = vmatprep.subr.mxu0 0.0
      %3651 = vmatpush2.msra.mxu0 0.0
      %3652 = vmatprep.subr.mxu0 0.0
      %3653 = vmatpush2.msra.mxu0 0.0
      %3654 = vmatprep.subr.mxu0 0.0
      %3655 = vmatpush2.msra.mxu0 0.0
      %3656 = vmatprep.mubr.f32.mxu0 0.0
      %3657 = vmatmul.mubr.f32.gmra.mxu0 %v3545
      %v3658 = vpop.f32.mrf.mxu0
      %v3659 = vadd.f32 0.0, %v3658
      %v3660 = vpop.f32.mrf.mxu0
      %3661 = vmatprep.mubr.f32.mxu0 0.0
      %3662 = vmatmul.mubr.f32.gmra.mxu0 %v3548
      %v3663 = vpop.f32.mrf.mxu0
      %v3664 = vadd.f32 0.0, %v3663
      %v3665 = vpop.f32.mrf.mxu0
      %3666 = vmatprep.mubr.f32.mxu0 0.0
      %3667 = vmatmul.mubr.f32.gmra.mxu0 %v3551
      %v3668 = vpop.f32.mrf.mxu0
      %v3669 = vadd.f32 0.0, %v3668
      %v3670 = vpop.f32.mrf.mxu0
      %3671 = vmatprep.mubr.f32.mxu0 0.0
      %3672 = vmatmul.mubr.f32.gmra.mxu0 %v3554
      %v3673 = vpop.f32.mrf.mxu0
      %v3674 = vadd.f32 0.0, %v3673
      %v3675 = vpop.f32.mrf.mxu0
      %3676 = vmatprep.mubr.f32.mxu0 0.0
      %3677 = vmatmul.mubr.f32.gmra.mxu0 %v3557
      %v3678 = vpop.f32.mrf.mxu0
      %v3679 = vadd.f32 0.0, %v3678
      %v3680 = vpop.f32.mrf.mxu0
      %3681 = vmatprep.mubr.f32.mxu0 0.0
      %3682 = vmatmul.mubr.f32.gmra.mxu0 %v3560
      %v3683 = vpop.f32.mrf.mxu0
      %v3684 = vadd.f32 0.0, %v3683
      %v3685 = vpop.f32.mrf.mxu0
      %3686 = vmatprep.mubr.f32.mxu0 0.0
      %3687 = vmatmul.mubr.f32.gmra.mxu0 %v3563
      %v3688 = vpop.f32.mrf.mxu0
      %v3689 = vadd.f32 0.0, %v3688
      %v3690 = vpop.f32.mrf.mxu0
      %3691 = vmatprep.mubr.f32.mxu0 0.0
      %3692 = vmatmul.mubr.f32.gmra.mxu0 %v3566
      %v3693 = vpop.f32.mrf.mxu0
      %v3694 = vadd.f32 0.0, %v3693
      %v3695 = vpop.f32.mrf.mxu0
      %3696 = vmatprep.mubr.f32.mxu0 0.0
      %3697 = vmatmul.mubr.f32.gmra.mxu0 %v3569
      %v3698 = vpop.f32.mrf.mxu0
      %v3699 = vadd.f32 0.0, %v3698
      %v3700 = vpop.f32.mrf.mxu0
      %3701 = vmatprep.mubr.f32.mxu0 0.0
      %3702 = vmatmul.mubr.f32.gmra.mxu0 %v3572
      %v3703 = vpop.f32.mrf.mxu0
      %v3704 = vadd.f32 0.0, %v3703
      %v3705 = vpop.f32.mrf.mxu0
      %3706 = vmatprep.mubr.f32.mxu0 0.0
      %3707 = vmatmul.mubr.f32.gmra.mxu0 %v3575
      %v3708 = vpop.f32.mrf.mxu0
      %v3709 = vadd.f32 0.0, %v3708
      %v3710 = vpop.f32.mrf.mxu0
      %3711 = vmatprep.mubr.f32.mxu0 0.0
      %3712 = vmatmul.mubr.f32.gmra.mxu0 %v3578
      %v3713 = vpop.f32.mrf.mxu0
      %v3714 = vadd.f32 0.0, %v3713
      %v3715 = vpop.f32.mrf.mxu0
      %3716 = vmatprep.mubr.f32.mxu0 0.0
      %3717 = vmatmul.mubr.f32.gmra.mxu0 %v3581
      %v3718 = vpop.f32.mrf.mxu0
      %v3719 = vadd.f32 0.0, %v3718
      %v3720 = vpop.f32.mrf.mxu0
      %3721 = vmatprep.mubr.f32.mxu0 0.0
      %3722 = vmatmul.mubr.f32.gmra.mxu0 %v3584
      %v3723 = vpop.f32.mrf.mxu0
      %v3724 = vadd.f32 0.0, %v3723
      %v3725 = vpop.f32.mrf.mxu0
      %3726 = vmatprep.mubr.f32.mxu0 0.0
      %3727 = vmatmul.mubr.f32.gmra.mxu0 %v3587
      %v3728 = vpop.f32.mrf.mxu0
      %v3729 = vadd.f32 0.0, %v3728
      %v3730 = vpop.f32.mrf.mxu0
      %3731 = vmatprep.mubr.f32.mxu0 0.0
      %3732 = vmatmul.mubr.f32.gmra.mxu0 %v3590
      %v3733 = vpop.f32.mrf.mxu0
      %v3734 = vadd.f32 0.0, %v3733
      %v3735 = vpop.f32.mrf.mxu0
      %3736 = vdwg.mxu0
      %3753 = vrot.lane.b32.xlu0 %v3659, 32
      %v3754 = vpop.permute.xlu0 %3753
      %3755 = vrot.lane.b32.xlu0 %v3664, 32
      %v3756 = vpop.permute.xlu0 %3755
      %3757 = vrot.lane.b32.xlu0 %v3669, 32
      %v3758 = vpop.permute.xlu0 %3757
      %3759 = vrot.lane.b32.xlu0 %v3674, 32
      %v3760 = vpop.permute.xlu0 %3759
      %3761 = vrot.lane.b32.xlu0 %v3679, 32
      %v3762 = vpop.permute.xlu0 %3761
      %3763 = vrot.lane.b32.xlu0 %v3684, 32
      %v3764 = vpop.permute.xlu0 %3763
      %3765 = vrot.lane.b32.xlu0 %v3689, 32
      %v3766 = vpop.permute.xlu0 %3765
      %3767 = vrot.lane.b32.xlu0 %v3694, 32
      %v3768 = vpop.permute.xlu0 %3767
      %3769 = vrot.lane.b32.xlu0 %v3699, 32
      %v3770 = vpop.permute.xlu0 %3769
      %3771 = vrot.lane.b32.xlu0 %v3704, 32
      %v3772 = vpop.permute.xlu0 %3771
      %3773 = vrot.lane.b32.xlu0 %v3709, 32
      %v3774 = vpop.permute.xlu0 %3773
      %3775 = vrot.lane.b32.xlu0 %v3714, 32
      %v3776 = vpop.permute.xlu0 %3775
      %3777 = vrot.lane.b32.xlu0 %v3719, 32
      %v3778 = vpop.permute.xlu0 %3777
      %3779 = vrot.lane.b32.xlu0 %v3724, 32
      %v3780 = vpop.permute.xlu0 %3779
      %3781 = vrot.lane.b32.xlu0 %v3729, 32
      %v3782 = vpop.permute.xlu0 %3781
      %3783 = vrot.lane.b32.xlu0 %v3734, 32
      %v3784 = vpop.permute.xlu0 %3783
      %v3801 = vadd.f32 %v2388, %v3754
      %v3802 = vadd.f32 %v2393, %v3756
      %v3803 = vadd.f32 %v2398, %v3758
      %v3804 = vadd.f32 %v2403, %v3760
      %v3805 = vadd.f32 %v2408, %v3762
      %v3806 = vadd.f32 %v2413, %v3764
      %v3807 = vadd.f32 %v2418, %v3766
      %v3808 = vadd.f32 %v2423, %v3768
      %v3809 = vadd.f32 %v2428, %v3770
      %v3810 = vadd.f32 %v2433, %v3772
      %v3811 = vadd.f32 %v2438, %v3774
      %v3812 = vadd.f32 %v2443, %v3776
      %v3813 = vadd.f32 %v2448, %v3778
      %v3814 = vadd.f32 %v2453, %v3780
      %v3815 = vadd.f32 %v2458, %v3782
      %v3816 = vadd.f32 %v2463, %v3784
      %v3817 = vlaneseq
      %v3818 = vshrl.u32 %v3817, 7
      %v3819 = vsub.s32 0, %v3818
      %v3820 = vrot.slane %v2271, %v3819
      %3822 = vrot.lane.b32.xlu0 %v3820, 32
      %v3823 = vpop.permute.xlu0 %3822
      %v3825 = vadd.f32 %v3801, %v3823
      %v3826 = vadd.f32 %v3802, %v3823
      %v3827 = vadd.f32 %v3803, %v3823
      %v3828 = vadd.f32 %v3804, %v3823
      %v3829 = vadd.f32 %v3805, %v3823
      %v3830 = vadd.f32 %v3806, %v3823
      %v3831 = vadd.f32 %v3807, %v3823
      %v3832 = vadd.f32 %v3808, %v3823
      %v3833 = vadd.f32 %v3809, %v3823
      %v3834 = vadd.f32 %v3810, %v3823
      %v3835 = vadd.f32 %v3811, %v3823
      %v3836 = vadd.f32 %v3812, %v3823
      %v3837 = vadd.f32 %v3813, %v3823
      %v3838 = vadd.f32 %v3814, %v3823
      %v3839 = vadd.f32 %v3815, %v3823
      %v3840 = vadd.f32 %v3816, %v3823
      %v3841 = vmax.f32 %v3825, 0.0
      %v3842 = vmax.f32 %v3826, 0.0
      %v3843 = vmax.f32 %v3827, 0.0
      %v3844 = vmax.f32 %v3828, 0.0
      %v3845 = vmax.f32 %v3829, 0.0
      %v3846 = vmax.f32 %v3830, 0.0
      %v3847 = vmax.f32 %v3831, 0.0
      %v3848 = vmax.f32 %v3832, 0.0
      %v3849 = vmax.f32 %v3833, 0.0
      %v3850 = vmax.f32 %v3834, 0.0
      %v3851 = vmax.f32 %v3835, 0.0
      %v3852 = vmax.f32 %v3836, 0.0
      %v3853 = vmax.f32 %v3837, 0.0
      %v3854 = vmax.f32 %v3838, 0.0
      %v3855 = vmax.f32 %v3839, 0.0
      %v3856 = vmax.f32 %v3840, 0.0
      %v3857 = vlaneseq
      %v3858 = vshrl.u32 %v3857, 7
      %v3859 = vsub.s32 0, %v3858
      %v3860 = vrot.slane %v2272, %v3859
      %3877 = vrot.lane.b32.xlu0 %v3841, 96
      %v3878 = vpop.permute.xlu0 %3877
      %3879 = vrot.lane.b32.xlu0 %v3842, 96
      %v3880 = vpop.permute.xlu0 %3879
      %3881 = vrot.lane.b32.xlu0 %v3843, 96
      %v3882 = vpop.permute.xlu0 %3881
      %3883 = vrot.lane.b32.xlu0 %v3844, 96
      %v3884 = vpop.permute.xlu0 %3883
      %3885 = vrot.lane.b32.xlu0 %v3845, 96
      %v3886 = vpop.permute.xlu0 %3885
      %3887 = vrot.lane.b32.xlu0 %v3846, 96
      %v3888 = vpop.permute.xlu0 %3887
      %3889 = vrot.lane.b32.xlu0 %v3847, 96
      %v3890 = vpop.permute.xlu0 %3889
      %3891 = vrot.lane.b32.xlu0 %v3848, 96
      %v3892 = vpop.permute.xlu0 %3891
      %3893 = vrot.lane.b32.xlu0 %v3849, 96
      %v3894 = vpop.permute.xlu0 %3893
      %3895 = vrot.lane.b32.xlu0 %v3850, 96
      %v3896 = vpop.permute.xlu0 %3895
      %3897 = vrot.lane.b32.xlu0 %v3851, 96
      %v3898 = vpop.permute.xlu0 %3897
      %3899 = vrot.lane.b32.xlu0 %v3852, 96
      %v3900 = vpop.permute.xlu0 %3899
      %3901 = vrot.lane.b32.xlu0 %v3853, 96
      %v3902 = vpop.permute.xlu0 %3901
      %3903 = vrot.lane.b32.xlu0 %v3854, 96
      %v3904 = vpop.permute.xlu0 %3903
      %3905 = vrot.lane.b32.xlu0 %v3855, 96
      %v3906 = vpop.permute.xlu0 %3905
      %3907 = vrot.lane.b32.xlu0 %v3856, 96
      %v3908 = vpop.permute.xlu0 %3907
      %v3909 = vsel %vm3077, %v3878, 0
      %v3911 = vsel %vm3077, %v3880, 0
      %v3913 = vsel %vm3077, %v3882, 0
      %v3915 = vsel %vm3077, %v3884, 0
      %v3917 = vsel %vm3077, %v3886, 0
      %v3919 = vsel %vm3077, %v3888, 0
      %v3921 = vsel %vm3077, %v3890, 0
      %v3923 = vsel %vm3077, %v3892, 0
      %v3925 = vsel %vm3077, %v3894, 0
      %v3927 = vsel %vm3077, %v3896, 0
      %v3929 = vsel %vm3077, %v3898, 0
      %v3931 = vsel %vm3077, %v3900, 0
      %v3933 = vsel %vm3077, %v3902, 0
      %v3935 = vsel %vm3077, %v3904, 0
      %v3937 = vsel %vm3077, %v3906, 0
      %v3939 = vsel %vm3077, %v3908, 0
      %3941 = vmatprep.subr.mxu0 0.0
      %3942 = vmatpush1.msra.mxu0 0.0
      %3943 = vmatprep.subr.mxu0 0.0
      %3944 = vmatpush1.msra.mxu0 0.0
      %3945 = vmatprep.subr.mxu0 0.0
      %3946 = vmatpush1.msra.mxu0 0.0
      %3947 = vmatprep.subr.mxu0 0.0
      %3948 = vmatpush1.msra.mxu0 0.0
      %3949 = vmatprep.subr.mxu0 0.0
      %3950 = vmatpush1.msra.mxu0 0.0
      %3951 = vmatprep.subr.mxu0 0.0
      %3952 = vmatpush1.msra.mxu0 0.0
      %3953 = vmatprep.subr.mxu0 0.0
      %3954 = vmatpush1.msra.mxu0 0.0
      %3955 = vmatprep.subr.mxu0 0.0
      %3956 = vmatpush1.msra.mxu0 0.0
      %3957 = vmatprep.subr.mxu0 0.0
      %3958 = vmatpush1.msra.mxu0 0.0
      %3959 = vmatprep.subr.mxu0 0.0
      %3960 = vmatpush1.msra.mxu0 0.0
      %3961 = vmatprep.subr.mxu0 0.0
      %3962 = vmatpush1.msra.mxu0 0.0
      %3963 = vmatprep.subr.mxu0 0.0
      %3964 = vmatpush1.msra.mxu0 0.0
      %3965 = vmatprep.subr.mxu0 0.0
      %3966 = vmatpush1.msra.mxu0 0.0
      %3967 = vmatprep.subr.mxu0 0.0
      %3968 = vmatpush1.msra.mxu0 0.0
      %3969 = vmatprep.subr.mxu0 0.0
      %3970 = vmatpush1.msra.mxu0 %v2268
      %3971 = vmatprep.subr.mxu0 0.0
      %3972 = vmatpush1.msra.mxu0 %v2267
      %3973 = vmatprep.subr.mxu0 0.0
      %3974 = vmatpush2.msra.mxu0 0.0
      %3975 = vmatprep.subr.mxu0 0.0
      %3976 = vmatpush2.msra.mxu0 0.0
      %3977 = vmatprep.subr.mxu0 0.0
      %3978 = vmatpush2.msra.mxu0 0.0
      %3979 = vmatprep.subr.mxu0 0.0
      %3980 = vmatpush2.msra.mxu0 0.0
      %3981 = vmatprep.subr.mxu0 0.0
      %3982 = vmatpush2.msra.mxu0 0.0
      %3983 = vmatprep.subr.mxu0 0.0
      %3984 = vmatpush2.msra.mxu0 0.0
      %3985 = vmatprep.subr.mxu0 0.0
      %3986 = vmatpush2.msra.mxu0 0.0
      %3987 = vmatprep.subr.mxu0 0.0
      %3988 = vmatpush2.msra.mxu0 0.0
      %3989 = vmatprep.subr.mxu0 0.0
      %3990 = vmatpush2.msra.mxu0 0.0
      %3991 = vmatprep.subr.mxu0 0.0
      %3992 = vmatpush2.msra.mxu0 0.0
      %3993 = vmatprep.subr.mxu0 0.0
      %3994 = vmatpush2.msra.mxu0 0.0
      %3995 = vmatprep.subr.mxu0 0.0
      %3996 = vmatpush2.msra.mxu0 0.0
      %3997 = vmatprep.subr.mxu0 0.0
      %3998 = vmatpush2.msra.mxu0 0.0
      %3999 = vmatprep.subr.mxu0 0.0
      %4000 = vmatpush2.msra.mxu0 0.0
      %4001 = vmatprep.subr.mxu0 0.0
      %4002 = vmatpush2.msra.mxu0 0.0
      %4003 = vmatprep.subr.mxu0 0.0
      %4004 = vmatpush2.msra.mxu0 0.0
      %4005 = vmatprep.mubr.f32.mxu0 0.0
      %4006 = vmatmul.mubr.f32.gmra.mxu0 %v3909
      %v4007 = vpop.f32.mrf.mxu0
      %v4008 = vadd.f32 %v3860, %v4007
      %v4009 = vpop.f32.mrf.mxu0
      %4010 = vmatprep.mubr.f32.mxu0 0.0
      %4011 = vmatmul.mubr.f32.gmra.mxu0 %v3911
      %v4012 = vpop.f32.mrf.mxu0
      %v4013 = vadd.f32 %v3860, %v4012
      %v4014 = vpop.f32.mrf.mxu0
      %4015 = vmatprep.mubr.f32.mxu0 0.0
      %4016 = vmatmul.mubr.f32.gmra.mxu0 %v3913
      %v4017 = vpop.f32.mrf.mxu0
      %v4018 = vadd.f32 %v3860, %v4017
      %v4019 = vpop.f32.mrf.mxu0
      %4020 = vmatprep.mubr.f32.mxu0 0.0
      %4021 = vmatmul.mubr.f32.gmra.mxu0 %v3915
      %v4022 = vpop.f32.mrf.mxu0
      %v4023 = vadd.f32 %v3860, %v4022
      %v4024 = vpop.f32.mrf.mxu0
      %4025 = vmatprep.mubr.f32.mxu0 0.0
      %4026 = vmatmul.mubr.f32.gmra.mxu0 %v3917
      %v4027 = vpop.f32.mrf.mxu0
      %v4028 = vadd.f32 %v3860, %v4027
      %v4029 = vpop.f32.mrf.mxu0
      %4030 = vmatprep.mubr.f32.mxu0 0.0
      %4031 = vmatmul.mubr.f32.gmra.mxu0 %v3919
      %v4032 = vpop.f32.mrf.mxu0
      %v4033 = vadd.f32 %v3860, %v4032
      %v4034 = vpop.f32.mrf.mxu0
      %4035 = vmatprep.mubr.f32.mxu0 0.0
      %4036 = vmatmul.mubr.f32.gmra.mxu0 %v3921
      %v4037 = vpop.f32.mrf.mxu0
      %v4038 = vadd.f32 %v3860, %v4037
      %v4039 = vpop.f32.mrf.mxu0
      %4040 = vmatprep.mubr.f32.mxu0 0.0
      %4041 = vmatmul.mubr.f32.gmra.mxu0 %v3923
      %v4042 = vpop.f32.mrf.mxu0
      %v4043 = vadd.f32 %v3860, %v4042
      %v4044 = vpop.f32.mrf.mxu0
      %4045 = vmatprep.mubr.f32.mxu0 0.0
      %4046 = vmatmul.mubr.f32.gmra.mxu0 %v3925
      %v4047 = vpop.f32.mrf.mxu0
      %v4048 = vadd.f32 %v3860, %v4047
      %v4049 = vpop.f32.mrf.mxu0
      %4050 = vmatprep.mubr.f32.mxu0 0.0
      %4051 = vmatmul.mubr.f32.gmra.mxu0 %v3927
      %v4052 = vpop.f32.mrf.mxu0
      %v4053 = vadd.f32 %v3860, %v4052
      %v4054 = vpop.f32.mrf.mxu0
      %4055 = vmatprep.mubr.f32.mxu0 0.0
      %4056 = vmatmul.mubr.f32.gmra.mxu0 %v3929
      %v4057 = vpop.f32.mrf.mxu0
      %v4058 = vadd.f32 %v3860, %v4057
      %v4059 = vpop.f32.mrf.mxu0
      %4060 = vmatprep.mubr.f32.mxu0 0.0
      %4061 = vmatmul.mubr.f32.gmra.mxu0 %v3931
      %v4062 = vpop.f32.mrf.mxu0
      %v4063 = vadd.f32 %v3860, %v4062
      %v4064 = vpop.f32.mrf.mxu0
      %4065 = vmatprep.mubr.f32.mxu0 0.0
      %4066 = vmatmul.mubr.f32.gmra.mxu0 %v3933
      %v4067 = vpop.f32.mrf.mxu0
      %v4068 = vadd.f32 %v3860, %v4067
      %v4069 = vpop.f32.mrf.mxu0
      %4070 = vmatprep.mubr.f32.mxu0 0.0
      %4071 = vmatmul.mubr.f32.gmra.mxu0 %v3935
      %v4072 = vpop.f32.mrf.mxu0
      %v4073 = vadd.f32 %v3860, %v4072
      %v4074 = vpop.f32.mrf.mxu0
      %4075 = vmatprep.mubr.f32.mxu0 0.0
      %4076 = vmatmul.mubr.f32.gmra.mxu0 %v3937
      %v4077 = vpop.f32.mrf.mxu0
      %v4078 = vadd.f32 %v3860, %v4077
      %v4079 = vpop.f32.mrf.mxu0
      %4080 = vmatprep.mubr.f32.mxu0 0.0
      %4081 = vmatmul.mubr.f32.gmra.mxu0 %v3939
      %v4082 = vpop.f32.mrf.mxu0
      %v4083 = vadd.f32 %v3860, %v4082
      %v4084 = vpop.f32.mrf.mxu0
      %4085 = vdwg.mxu0
      %4102 = vrot.lane.b32.xlu0 %v2475, 80
      %v4103 = vpop.permute.xlu0 %4102
      %4104 = vrot.lane.b32.xlu0 %v2476, 80
      %v4105 = vpop.permute.xlu0 %4104
      %4106 = vrot.lane.b32.xlu0 %v2477, 80
      %v4107 = vpop.permute.xlu0 %4106
      %4108 = vrot.lane.b32.xlu0 %v2478, 80
      %v4109 = vpop.permute.xlu0 %4108
      %4110 = vrot.lane.b32.xlu0 %v2479, 80
      %v4111 = vpop.permute.xlu0 %4110
      %4112 = vrot.lane.b32.xlu0 %v2480, 80
      %v4113 = vpop.permute.xlu0 %4112
      %4114 = vrot.lane.b32.xlu0 %v2481, 80
      %v4115 = vpop.permute.xlu0 %4114
      %4116 = vrot.lane.b32.xlu0 %v2482, 80
      %v4117 = vpop.permute.xlu0 %4116
      %4118 = vrot.lane.b32.xlu0 %v2483, 80
      %v4119 = vpop.permute.xlu0 %4118
      %4120 = vrot.lane.b32.xlu0 %v2484, 80
      %v4121 = vpop.permute.xlu0 %4120
      %4122 = vrot.lane.b32.xlu0 %v2485, 80
      %v4123 = vpop.permute.xlu0 %4122
      %4124 = vrot.lane.b32.xlu0 %v2486, 80
      %v4125 = vpop.permute.xlu0 %4124
      %4126 = vrot.lane.b32.xlu0 %v2487, 80
      %v4127 = vpop.permute.xlu0 %4126
      %4128 = vrot.lane.b32.xlu0 %v2488, 80
      %v4129 = vpop.permute.xlu0 %4128
      %4130 = vrot.lane.b32.xlu0 %v2489, 80
      %v4131 = vpop.permute.xlu0 %4130
      %4132 = vrot.lane.b32.xlu0 %v2490, 80
      %v4133 = vpop.permute.xlu0 %4132
      %v4150 = vadd.f32 %v4008, %v4103
      %v4151 = vadd.f32 %v4013, %v4105
      %v4152 = vadd.f32 %v4018, %v4107
      %v4153 = vadd.f32 %v4023, %v4109
      %v4154 = vadd.f32 %v4028, %v4111
      %v4155 = vadd.f32 %v4033, %v4113
      %v4156 = vadd.f32 %v4038, %v4115
      %v4157 = vadd.f32 %v4043, %v4117
      %v4158 = vadd.f32 %v4048, %v4119
      %v4159 = vadd.f32 %v4053, %v4121
      %v4160 = vadd.f32 %v4058, %v4123
      %v4161 = vadd.f32 %v4063, %v4125
      %v4162 = vadd.f32 %v4068, %v4127
      %v4163 = vadd.f32 %v4073, %v4129
      %v4164 = vadd.f32 %v4078, %v4131
      %v4165 = vadd.f32 %v4083, %v4133
      %v4166 = vmax.f32 %v4150, 0.0
      %v4167 = vmax.f32 %v4151, 0.0
      %v4168 = vmax.f32 %v4152, 0.0
      %v4169 = vmax.f32 %v4153, 0.0
      %v4170 = vmax.f32 %v4154, 0.0
      %v4171 = vmax.f32 %v4155, 0.0
      %v4172 = vmax.f32 %v4156, 0.0
      %v4173 = vmax.f32 %v4157, 0.0
      %v4174 = vmax.f32 %v4158, 0.0
      %v4175 = vmax.f32 %v4159, 0.0
      %v4176 = vmax.f32 %v4160, 0.0
      %v4177 = vmax.f32 %v4161, 0.0
      %v4178 = vmax.f32 %v4162, 0.0
      %v4179 = vmax.f32 %v4163, 0.0
      %v4180 = vmax.f32 %v4164, 0.0
      %v4181 = vmax.f32 %v4165, 0.0
      %v4182 = vld [vmem:[%s4 + $0x68] sm:$0xff]
      %v4183 = vld [vmem:[%s4 + $0x70] sm:$0xff]
      %v4184 = vld [vmem:[%s4 + $0x78] sm:$0xff]
      %v4185 = vld [vmem:[%s4 + $0x80] sm:$0xff]
      %v4186 = vld [vmem:[%s4 + $0x88] sm:$0xff]
      %v4187 = vld [vmem:[%s4 + $0x90] sm:$0xff]
      %v4188 = vld [vmem:[%s4 + $0x98] sm:$0xff]
      %v4189 = vld [vmem:[%s4 + $0xa0] sm:$0xff]
      %v4190 = vld [vmem:[%s4 + $0xa8] sm:$0xff]
      %v4191 = vld [vmem:[%s4 + $0xb0] sm:$0xff]
      %v4192 = vld [vmem:[%s4 + $0xb8] sm:$0xff]
      %v4193 = vld [vmem:[%s4 + $0xc0] sm:$0xff]
      %v4194 = vld [vmem:[%s4 + $0xc8] sm:$0xff]
      %v4195 = vld [vmem:[%s4 + $0xd0] sm:$0xff]
      %v4196 = vld [vmem:[%s4 + $0xd8] sm:$0x1]
      %v4197 = vld [vmem:[%s4 + $0xd9] sm:$0x1]
      %v4198 = vld [vmem:[%s4 + $0xda] sm:$0x1]
      %v4199 = vld [vmem:[%s4 + $0xdb] sm:$0x1]
      %v4201 = vsel %vm3077, %v4166, 0
      %v4204 = vsel %vm3077, %v4167, 0
      %v4207 = vsel %vm3077, %v4168, 0
      %v4210 = vsel %vm3077, %v4169, 0
      %v4213 = vsel %vm3077, %v4170, 0
      %v4216 = vsel %vm3077, %v4171, 0
      %v4219 = vsel %vm3077, %v4172, 0
      %v4222 = vsel %vm3077, %v4173, 0
      %v4225 = vsel %vm3077, %v4174, 0
      %v4228 = vsel %vm3077, %v4175, 0
      %v4231 = vsel %vm3077, %v4176, 0
      %v4234 = vsel %vm3077, %v4177, 0
      %v4237 = vsel %vm3077, %v4178, 0
      %v4240 = vsel %vm3077, %v4179, 0
      %v4243 = vsel %vm3077, %v4180, 0
      %v4246 = vsel %vm3077, %v4181, 0
      %4248 = vmatprep.subr.mxu0 0.0
      %4249 = vmatpush1.msra.mxu0 0.0
      %4250 = vmatprep.subr.mxu0 0.0
      %4251 = vmatpush1.msra.mxu0 0.0
      %4252 = vmatprep.subr.mxu0 0.0
      %4253 = vmatpush1.msra.mxu0 0.0
      %4254 = vmatprep.subr.mxu0 0.0
      %4255 = vmatpush1.msra.mxu0 0.0
      %4256 = vmatprep.subr.mxu0 0.0
      %4257 = vmatpush1.msra.mxu0 0.0
      %4258 = vmatprep.subr.mxu0 0.0
      %4259 = vmatpush1.msra.mxu0 0.0
      %4260 = vmatprep.subr.mxu0 0.0
      %4261 = vmatpush1.msra.mxu0 0.0
      %4262 = vmatprep.subr.mxu0 0.0
      %4263 = vmatpush1.msra.mxu0 0.0
      %4264 = vmatprep.subr.mxu0 0.0
      %4265 = vmatpush1.msra.mxu0 0.0
      %4266 = vmatprep.subr.mxu0 0.0
      %4267 = vmatpush1.msra.mxu0 0.0
      %4268 = vmatprep.subr.mxu0 0.0
      %4269 = vmatpush1.msra.mxu0 0.0
      %4270 = vmatprep.subr.mxu0 0.0
      %4271 = vmatpush1.msra.mxu0 0.0
      %4272 = vmatprep.subr.mxu0 0.0
      %4273 = vmatpush1.msra.mxu0 0.0
      %4274 = vmatprep.subr.mxu0 0.0
      %4275 = vmatpush1.msra.mxu0 0.0
      %4276 = vmatprep.subr.mxu0 0.0
      %4277 = vmatpush1.msra.mxu0 %v4183
      %4278 = vmatprep.subr.mxu0 0.0
      %4279 = vmatpush1.msra.mxu0 %v4182
      %4280 = vmatprep.subr.mxu0 0.0
      %4281 = vmatpush2.msra.mxu0 0.0
      %4282 = vmatprep.subr.mxu0 0.0
      %4283 = vmatpush2.msra.mxu0 0.0
      %4284 = vmatprep.subr.mxu0 0.0
      %4285 = vmatpush2.msra.mxu0 0.0
      %4286 = vmatprep.subr.mxu0 0.0
      %4287 = vmatpush2.msra.mxu0 0.0
      %4288 = vmatprep.subr.mxu0 0.0
      %4289 = vmatpush2.msra.mxu0 0.0
      %4290 = vmatprep.subr.mxu0 0.0
      %4291 = vmatpush2.msra.mxu0 0.0
      %4292 = vmatprep.subr.mxu0 0.0
      %4293 = vmatpush2.msra.mxu0 0.0
      %4294 = vmatprep.subr.mxu0 0.0
      %4295 = vmatpush2.msra.mxu0 0.0
      %4296 = vmatprep.subr.mxu0 0.0
      %4297 = vmatpush2.msra.mxu0 0.0
      %4298 = vmatprep.subr.mxu0 0.0
      %4299 = vmatpush2.msra.mxu0 0.0
      %4300 = vmatprep.subr.mxu0 0.0
      %4301 = vmatpush2.msra.mxu0 0.0
      %4302 = vmatprep.subr.mxu0 0.0
      %4303 = vmatpush2.msra.mxu0 0.0
      %4304 = vmatprep.subr.mxu0 0.0
      %4305 = vmatpush2.msra.mxu0 0.0
      %4306 = vmatprep.subr.mxu0 0.0
      %4307 = vmatpush2.msra.mxu0 0.0
      %4308 = vmatprep.subr.mxu0 0.0
      %4309 = vmatpush2.msra.mxu0 0.0
      %4310 = vmatprep.subr.mxu0 0.0
      %4311 = vmatpush2.msra.mxu0 0.0
      %4312 = vmatprep.mubr.f32.mxu0 0.0
      %4313 = vmatmul.mubr.f32.gmra.mxu0 %v4201
      %v4314 = vpop.f32.mrf.mxu0
      %v4315 = vadd.f32 0.0, %v4314
      %v4316 = vpop.f32.mrf.mxu0
      %4317 = vmatprep.mubr.f32.mxu0 0.0
      %4318 = vmatmul.mubr.f32.gmra.mxu0 %v4204
      %v4319 = vpop.f32.mrf.mxu0
      %v4320 = vadd.f32 0.0, %v4319
      %v4321 = vpop.f32.mrf.mxu0
      %4322 = vmatprep.mubr.f32.mxu0 0.0
      %4323 = vmatmul.mubr.f32.gmra.mxu0 %v4207
      %v4324 = vpop.f32.mrf.mxu0
      %v4325 = vadd.f32 0.0, %v4324
      %v4326 = vpop.f32.mrf.mxu0
      %4327 = vmatprep.mubr.f32.mxu0 0.0
      %4328 = vmatmul.mubr.f32.gmra.mxu0 %v4210
      %v4329 = vpop.f32.mrf.mxu0
      %v4330 = vadd.f32 0.0, %v4329
      %v4331 = vpop.f32.mrf.mxu0
      %4332 = vmatprep.mubr.f32.mxu0 0.0
      %4333 = vmatmul.mubr.f32.gmra.mxu0 %v4213
      %v4334 = vpop.f32.mrf.mxu0
      %v4335 = vadd.f32 0.0, %v4334
      %v4336 = vpop.f32.mrf.mxu0
      %4337 = vmatprep.mubr.f32.mxu0 0.0
      %4338 = vmatmul.mubr.f32.gmra.mxu0 %v4216
      %v4339 = vpop.f32.mrf.mxu0
      %v4340 = vadd.f32 0.0, %v4339
      %v4341 = vpop.f32.mrf.mxu0
      %4342 = vmatprep.mubr.f32.mxu0 0.0
      %4343 = vmatmul.mubr.f32.gmra.mxu0 %v4219
      %v4344 = vpop.f32.mrf.mxu0
      %v4345 = vadd.f32 0.0, %v4344
      %v4346 = vpop.f32.mrf.mxu0
      %4347 = vmatprep.mubr.f32.mxu0 0.0
      %4348 = vmatmul.mubr.f32.gmra.mxu0 %v4222
      %v4349 = vpop.f32.mrf.mxu0
      %v4350 = vadd.f32 0.0, %v4349
      %v4351 = vpop.f32.mrf.mxu0
      %4352 = vmatprep.mubr.f32.mxu0 0.0
      %4353 = vmatmul.mubr.f32.gmra.mxu0 %v4225
      %v4354 = vpop.f32.mrf.mxu0
      %v4355 = vadd.f32 0.0, %v4354
      %v4356 = vpop.f32.mrf.mxu0
      %4357 = vmatprep.mubr.f32.mxu0 0.0
      %4358 = vmatmul.mubr.f32.gmra.mxu0 %v4228
      %v4359 = vpop.f32.mrf.mxu0
      %v4360 = vadd.f32 0.0, %v4359
      %v4361 = vpop.f32.mrf.mxu0
      %4362 = vmatprep.mubr.f32.mxu0 0.0
      %4363 = vmatmul.mubr.f32.gmra.mxu0 %v4231
      %v4364 = vpop.f32.mrf.mxu0
      %v4365 = vadd.f32 0.0, %v4364
      %v4366 = vpop.f32.mrf.mxu0
      %4367 = vmatprep.mubr.f32.mxu0 0.0
      %4368 = vmatmul.mubr.f32.gmra.mxu0 %v4234
      %v4369 = vpop.f32.mrf.mxu0
      %v4370 = vadd.f32 0.0, %v4369
      %v4371 = vpop.f32.mrf.mxu0
      %4372 = vmatprep.mubr.f32.mxu0 0.0
      %4373 = vmatmul.mubr.f32.gmra.mxu0 %v4237
      %v4374 = vpop.f32.mrf.mxu0
      %v4375 = vadd.f32 0.0, %v4374
      %v4376 = vpop.f32.mrf.mxu0
      %4377 = vmatprep.mubr.f32.mxu0 0.0
      %4378 = vmatmul.mubr.f32.gmra.mxu0 %v4240
      %v4379 = vpop.f32.mrf.mxu0
      %v4380 = vadd.f32 0.0, %v4379
      %v4381 = vpop.f32.mrf.mxu0
      %4382 = vmatprep.mubr.f32.mxu0 0.0
      %4383 = vmatmul.mubr.f32.gmra.mxu0 %v4243
      %v4384 = vpop.f32.mrf.mxu0
      %v4385 = vadd.f32 0.0, %v4384
      %v4386 = vpop.f32.mrf.mxu0
      %4387 = vmatprep.mubr.f32.mxu0 0.0
      %4388 = vmatmul.mubr.f32.gmra.mxu0 %v4246
      %v4389 = vpop.f32.mrf.mxu0
      %v4390 = vadd.f32 0.0, %v4389
      %v4391 = vpop.f32.mrf.mxu0
      %4392 = vdwg.mxu0
      %v4393 = vld [vmem:[%s4 + $0xdc] sm:$0x1]
      %v4394 = vlaneseq
      %v4395 = vshrl.u32 %v4394, 7
      %v4396 = vsub.s32 0, %v4395
      %v4397 = vrot.slane %v4393, %v4396
      %4399 = vrot.lane.b32.xlu0 %v4397, 96
      %v4400 = vpop.permute.xlu0 %4399
      %v4402 = vadd.f32 %v4315, %v4400
      %v4403 = vadd.f32 %v4320, %v4400
      %v4404 = vadd.f32 %v4325, %v4400
      %v4405 = vadd.f32 %v4330, %v4400
      %v4406 = vadd.f32 %v4335, %v4400
      %v4407 = vadd.f32 %v4340, %v4400
      %v4408 = vadd.f32 %v4345, %v4400
      %v4409 = vadd.f32 %v4350, %v4400
      %v4410 = vadd.f32 %v4355, %v4400
      %v4411 = vadd.f32 %v4360, %v4400
      %v4412 = vadd.f32 %v4365, %v4400
      %v4413 = vadd.f32 %v4370, %v4400
      %v4414 = vadd.f32 %v4375, %v4400
      %v4415 = vadd.f32 %v4380, %v4400
      %v4416 = vadd.f32 %v4385, %v4400
      %v4417 = vadd.f32 %v4390, %v4400
      %4434 = vrot.lane.b32.xlu0 %v4315, 96
      %v4435 = vpop.permute.xlu0 %4434
      %4436 = vrot.lane.b32.xlu0 %v4320, 96
      %v4437 = vpop.permute.xlu0 %4436
      %4438 = vrot.lane.b32.xlu0 %v4325, 96
      %v4439 = vpop.permute.xlu0 %4438
      %4440 = vrot.lane.b32.xlu0 %v4330, 96
      %v4441 = vpop.permute.xlu0 %4440
      %4442 = vrot.lane.b32.xlu0 %v4335, 96
      %v4443 = vpop.permute.xlu0 %4442
      %4444 = vrot.lane.b32.xlu0 %v4340, 96
      %v4445 = vpop.permute.xlu0 %4444
      %4446 = vrot.lane.b32.xlu0 %v4345, 96
      %v4447 = vpop.permute.xlu0 %4446
      %4448 = vrot.lane.b32.xlu0 %v4350, 96
      %v4449 = vpop.permute.xlu0 %4448
      %4450 = vrot.lane.b32.xlu0 %v4355, 96
      %v4451 = vpop.permute.xlu0 %4450
      %4452 = vrot.lane.b32.xlu0 %v4360, 96
      %v4453 = vpop.permute.xlu0 %4452
      %4454 = vrot.lane.b32.xlu0 %v4365, 96
      %v4455 = vpop.permute.xlu0 %4454
      %4456 = vrot.lane.b32.xlu0 %v4370, 96
      %v4457 = vpop.permute.xlu0 %4456
      %4458 = vrot.lane.b32.xlu0 %v4375, 96
      %v4459 = vpop.permute.xlu0 %4458
      %4460 = vrot.lane.b32.xlu0 %v4380, 96
      %v4461 = vpop.permute.xlu0 %4460
      %4462 = vrot.lane.b32.xlu0 %v4385, 96
      %v4463 = vpop.permute.xlu0 %4462
      %4464 = vrot.lane.b32.xlu0 %v4390, 96
      %v4465 = vpop.permute.xlu0 %4464
      %4482 = vmatprep.subr.mxu0 0.0
      %4483 = vmatpush1.msra.mxu0 %v4465
      %4484 = vmatprep.subr.mxu0 0.0
      %4485 = vmatpush1.msra.mxu0 %v4463
      %4486 = vmatprep.subr.mxu0 0.0
      %4487 = vmatpush1.msra.mxu0 %v4461
      %4488 = vmatprep.subr.mxu0 0.0
      %4489 = vmatpush1.msra.mxu0 %v4459
      %4490 = vmatprep.subr.mxu0 0.0
      %4491 = vmatpush1.msra.mxu0 %v4457
      %4492 = vmatprep.subr.mxu0 0.0
      %4493 = vmatpush1.msra.mxu0 %v4455
      %4494 = vmatprep.subr.mxu0 0.0
      %4495 = vmatpush1.msra.mxu0 %v4453
      %4496 = vmatprep.subr.mxu0 0.0
      %4497 = vmatpush1.msra.mxu0 %v4451
      %4498 = vmatprep.subr.mxu0 0.0
      %4499 = vmatpush1.msra.mxu0 %v4449
      %4500 = vmatprep.subr.mxu0 0.0
      %4501 = vmatpush1.msra.mxu0 %v4447
      %4502 = vmatprep.subr.mxu0 0.0
      %4503 = vmatpush1.msra.mxu0 %v4445
      %4504 = vmatprep.subr.mxu0 0.0
      %4505 = vmatpush1.msra.mxu0 %v4443
      %4506 = vmatprep.subr.mxu0 0.0
      %4507 = vmatpush1.msra.mxu0 %v4441
      %4508 = vmatprep.subr.mxu0 0.0
      %4509 = vmatpush1.msra.mxu0 %v4439
      %4510 = vmatprep.subr.mxu0 0.0
      %4511 = vmatpush1.msra.mxu0 %v4437
      %4512 = vmatprep.subr.mxu0 0.0
      %4513 = vmatpush1.msra.mxu0 %v4435
      %4514 = vmatprep.subr.mxu0 0.0
      %4515 = vmatpush2.msra.mxu0 0.0
      %4516 = vmatprep.subr.mxu0 0.0
      %4517 = vmatpush2.msra.mxu0 0.0
      %4518 = vmatprep.subr.mxu0 0.0
      %4519 = vmatpush2.msra.mxu0 0.0
      %4520 = vmatprep.subr.mxu0 0.0
      %4521 = vmatpush2.msra.mxu0 0.0
      %4522 = vmatprep.subr.mxu0 0.0
      %4523 = vmatpush2.msra.mxu0 0.0
      %4524 = vmatprep.subr.mxu0 0.0
      %4525 = vmatpush2.msra.mxu0 0.0
      %4526 = vmatprep.subr.mxu0 0.0
      %4527 = vmatpush2.msra.mxu0 0.0
      %4528 = vmatprep.subr.mxu0 0.0
      %4529 = vmatpush2.msra.mxu0 0.0
      %4530 = vmatprep.subr.mxu0 0.0
      %4531 = vmatpush2.msra.mxu0 0.0
      %4532 = vmatprep.subr.mxu0 0.0
      %4533 = vmatpush2.msra.mxu0 0.0
      %4534 = vmatprep.subr.mxu0 0.0
      %4535 = vmatpush2.msra.mxu0 0.0
      %4536 = vmatprep.subr.mxu0 0.0
      %4537 = vmatpush2.msra.mxu0 0.0
      %4538 = vmatprep.subr.mxu0 0.0
      %4539 = vmatpush2.msra.mxu0 0.0
      %4540 = vmatprep.subr.mxu0 0.0
      %4541 = vmatpush2.msra.mxu0 0.0
      %4542 = vmatprep.subr.mxu0 0.0
      %4543 = vmatpush2.msra.mxu0 0.0
      %4544 = vmatprep.subr.mxu0 0.0
      %4545 = vmatpush2.msra.mxu0 0.0
      %4546 = vmatprep.mubr.f32.mxu0 0.0
      %4547 = vmatmul.mubr.f32.gmra.mxu0 %v260
      %v4548 = vpop.f32.mrf.mxu0
      %v4549 = vadd.f32 0.0, %v4548
      %v4550 = vpop.f32.mrf.mxu0
      %4551 = vmatprep.mubr.f32.mxu0 0.0
      %4552 = vmatmul.mubr.f32.gmra.mxu0 %v261
      %v4553 = vpop.f32.mrf.mxu0
      %v4554 = vadd.f32 0.0, %v4553
      %v4555 = vpop.f32.mrf.mxu0
      %4556 = vmatprep.mubr.f32.mxu0 0.0
      %4557 = vmatmul.mubr.f32.gmra.mxu0 %v262
      %v4558 = vpop.f32.mrf.mxu0
      %v4559 = vadd.f32 0.0, %v4558
      %v4560 = vpop.f32.mrf.mxu0
      %4561 = vmatprep.mubr.f32.mxu0 0.0
      %4562 = vmatmul.mubr.f32.gmra.mxu0 %v263
      %v4563 = vpop.f32.mrf.mxu0
      %v4564 = vadd.f32 0.0, %v4563
      %v4565 = vpop.f32.mrf.mxu0
      %4566 = vmatprep.mubr.f32.mxu0 0.0
      %4567 = vmatmul.mubr.f32.gmra.mxu0 %v264
      %v4568 = vpop.f32.mrf.mxu0
      %v4569 = vadd.f32 0.0, %v4568
      %v4570 = vpop.f32.mrf.mxu0
      %4571 = vmatprep.mubr.f32.mxu0 0.0
      %4572 = vmatmul.mubr.f32.gmra.mxu0 %v265
      %v4573 = vpop.f32.mrf.mxu0
      %v4574 = vadd.f32 0.0, %v4573
      %v4575 = vpop.f32.mrf.mxu0
      %4576 = vmatprep.mubr.f32.mxu0 0.0
      %4577 = vmatmul.mubr.f32.gmra.mxu0 %v266
      %v4578 = vpop.f32.mrf.mxu0
      %v4579 = vadd.f32 0.0, %v4578
      %v4580 = vpop.f32.mrf.mxu0
      %4581 = vmatprep.mubr.f32.mxu0 0.0
      %4582 = vmatmul.mubr.f32.gmra.mxu0 %v267
      %v4583 = vpop.f32.mrf.mxu0
      %v4584 = vadd.f32 0.0, %v4583
      %v4585 = vpop.f32.mrf.mxu0
      %4586 = vmatprep.mubr.f32.mxu0 0.0
      %4587 = vmatmul.mubr.f32.gmra.mxu0 %v268
      %v4588 = vpop.f32.mrf.mxu0
      %v4589 = vadd.f32 0.0, %v4588
      %v4590 = vpop.f32.mrf.mxu0
      %4591 = vmatprep.mubr.f32.mxu0 0.0
      %4592 = vmatmul.mubr.f32.gmra.mxu0 %v269
      %v4593 = vpop.f32.mrf.mxu0
      %v4594 = vadd.f32 0.0, %v4593
      %v4595 = vpop.f32.mrf.mxu0
      %4596 = vmatprep.mubr.f32.mxu0 0.0
      %4597 = vmatmul.mubr.f32.gmra.mxu0 %v270
      %v4598 = vpop.f32.mrf.mxu0
      %v4599 = vadd.f32 0.0, %v4598
      %v4600 = vpop.f32.mrf.mxu0
      %4601 = vmatprep.mubr.f32.mxu0 0.0
      %4602 = vmatmul.mubr.f32.gmra.mxu0 %v271
      %v4603 = vpop.f32.mrf.mxu0
      %v4604 = vadd.f32 0.0, %v4603
      %v4605 = vpop.f32.mrf.mxu0
      %4606 = vmatprep.mubr.f32.mxu0 0.0
      %4607 = vmatmul.mubr.f32.gmra.mxu0 %v272
      %v4608 = vpop.f32.mrf.mxu0
      %v4609 = vadd.f32 0.0, %v4608
      %v4610 = vpop.f32.mrf.mxu0
      %4611 = vmatprep.mubr.f32.mxu0 0.0
      %4612 = vmatmul.mubr.f32.gmra.mxu0 %v273
      %v4613 = vpop.f32.mrf.mxu0
      %v4614 = vadd.f32 0.0, %v4613
      %v4615 = vpop.f32.mrf.mxu0
      %4616 = vmatprep.mubr.f32.mxu0 0.0
      %4617 = vmatmul.mubr.f32.gmra.mxu0 %v274
      %v4618 = vpop.f32.mrf.mxu0
      %v4619 = vadd.f32 0.0, %v4618
      %v4620 = vpop.f32.mrf.mxu0
      %4621 = vmatprep.mubr.f32.mxu0 0.0
      %4622 = vmatmul.mubr.f32.gmra.mxu0 %v275
      %v4623 = vpop.f32.mrf.mxu0
      %v4624 = vadd.f32 0.0, %v4623
      %v4625 = vpop.f32.mrf.mxu0
      %4626 = vmatprep.mubr.f32.mxu0 0.0
      %4627 = vmatmul.mubr.f32.gmra.mxu0 %v276
      %v4628 = vpop.f32.mrf.mxu0
      %v4629 = vadd.f32 0.0, %v4628
      %v4630 = vpop.f32.mrf.mxu0
      %4631 = vmatprep.mubr.f32.mxu0 0.0
      %4632 = vmatmul.mubr.f32.gmra.mxu0 %v277
      %v4633 = vpop.f32.mrf.mxu0
      %v4634 = vadd.f32 0.0, %v4633
      %v4635 = vpop.f32.mrf.mxu0
      %4636 = vmatprep.mubr.f32.mxu0 0.0
      %4637 = vmatmul.mubr.f32.gmra.mxu0 %v278
      %v4638 = vpop.f32.mrf.mxu0
      %v4639 = vadd.f32 0.0, %v4638
      %v4640 = vpop.f32.mrf.mxu0
      %4641 = vmatprep.mubr.f32.mxu0 0.0
      %4642 = vmatmul.mubr.f32.gmra.mxu0 %v279
      %v4643 = vpop.f32.mrf.mxu0
      %v4644 = vadd.f32 0.0, %v4643
      %v4645 = vpop.f32.mrf.mxu0
      %4646 = vmatprep.mubr.f32.mxu0 0.0
      %4647 = vmatmul.mubr.f32.gmra.mxu0 %v280
      %v4648 = vpop.f32.mrf.mxu0
      %v4649 = vadd.f32 0.0, %v4648
      %v4650 = vpop.f32.mrf.mxu0
      %4651 = vmatprep.mubr.f32.mxu0 0.0
      %4652 = vmatmul.mubr.f32.gmra.mxu0 %v281
      %v4653 = vpop.f32.mrf.mxu0
      %v4654 = vadd.f32 0.0, %v4653
      %v4655 = vpop.f32.mrf.mxu0
      %4656 = vmatprep.mubr.f32.mxu0 0.0
      %4657 = vmatmul.mubr.f32.gmra.mxu0 %v282
      %v4658 = vpop.f32.mrf.mxu0
      %v4659 = vadd.f32 0.0, %v4658
      %v4660 = vpop.f32.mrf.mxu0
      %4661 = vmatprep.mubr.f32.mxu0 0.0
      %4662 = vmatmul.mubr.f32.gmra.mxu0 %v283
      %v4663 = vpop.f32.mrf.mxu0
      %v4664 = vadd.f32 0.0, %v4663
      %v4665 = vpop.f32.mrf.mxu0
      %4666 = vmatprep.mubr.f32.mxu0 0.0
      %4667 = vmatmul.mubr.f32.gmra.mxu0 %v284
      %v4668 = vpop.f32.mrf.mxu0
      %v4669 = vadd.f32 0.0, %v4668
      %v4670 = vpop.f32.mrf.mxu0
      %4671 = vmatprep.mubr.f32.mxu0 0.0
      %4672 = vmatmul.mubr.f32.gmra.mxu0 %v285
      %v4673 = vpop.f32.mrf.mxu0
      %v4674 = vadd.f32 0.0, %v4673
      %v4675 = vpop.f32.mrf.mxu0
      %4676 = vmatprep.mubr.f32.mxu0 0.0
      %4677 = vmatmul.mubr.f32.gmra.mxu0 %v286
      %v4678 = vpop.f32.mrf.mxu0
      %v4679 = vadd.f32 0.0, %v4678
      %v4680 = vpop.f32.mrf.mxu0
      %4681 = vmatprep.mubr.f32.mxu0 0.0
      %4682 = vmatmul.mubr.f32.gmra.mxu0 %v287
      %v4683 = vpop.f32.mrf.mxu0
      %v4684 = vadd.f32 0.0, %v4683
      %v4685 = vpop.f32.mrf.mxu0
      %4686 = vmatprep.mubr.f32.mxu0 0.0
      %4687 = vmatmul.mubr.f32.gmra.mxu0 %v288
      %v4688 = vpop.f32.mrf.mxu0
      %v4689 = vadd.f32 0.0, %v4688
      %v4690 = vpop.f32.mrf.mxu0
      %4691 = vmatprep.mubr.f32.mxu0 0.0
      %4692 = vmatmul.mubr.f32.gmra.mxu0 %v289
      %v4693 = vpop.f32.mrf.mxu0
      %v4694 = vadd.f32 0.0, %v4693
      %v4695 = vpop.f32.mrf.mxu0
      %4696 = vmatprep.mubr.f32.mxu0 0.0
      %4697 = vmatmul.mubr.f32.gmra.mxu0 %v290
      %v4698 = vpop.f32.mrf.mxu0
      %v4699 = vadd.f32 0.0, %v4698
      %v4700 = vpop.f32.mrf.mxu0
      %4701 = vmatprep.mubr.f32.mxu0 0.0
      %4702 = vmatmul.mubr.f32.gmra.mxu0 %v291
      %v4703 = vpop.f32.mrf.mxu0
      %v4704 = vadd.f32 0.0, %v4703
      %v4705 = vpop.f32.mrf.mxu0
      %4706 = vdwg.mxu0
      %4707 = vmatprep.subr.mxu0 0.0
      %4708 = vmatpush1.msra.mxu0 %v4390
      %4709 = vmatprep.subr.mxu0 0.0
      %4710 = vmatpush1.msra.mxu0 %v4385
      %4711 = vmatprep.subr.mxu0 0.0
      %4712 = vmatpush1.msra.mxu0 %v4380
      %4713 = vmatprep.subr.mxu0 0.0
      %4714 = vmatpush1.msra.mxu0 %v4375
      %4715 = vmatprep.subr.mxu0 0.0
      %4716 = vmatpush1.msra.mxu0 %v4370
      %4717 = vmatprep.subr.mxu0 0.0
      %4718 = vmatpush1.msra.mxu0 %v4365
      %4719 = vmatprep.subr.mxu0 0.0
      %4720 = vmatpush1.msra.mxu0 %v4360
      %4721 = vmatprep.subr.mxu0 0.0
      %4722 = vmatpush1.msra.mxu0 %v4355
      %4723 = vmatprep.subr.mxu0 0.0
      %4724 = vmatpush1.msra.mxu0 %v4350
      %4725 = vmatprep.subr.mxu0 0.0
      %4726 = vmatpush1.msra.mxu0 %v4345
      %4727 = vmatprep.subr.mxu0 0.0
      %4728 = vmatpush1.msra.mxu0 %v4340
      %4729 = vmatprep.subr.mxu0 0.0
      %4730 = vmatpush1.msra.mxu0 %v4335
      %4731 = vmatprep.subr.mxu0 0.0
      %4732 = vmatpush1.msra.mxu0 %v4330
      %4733 = vmatprep.subr.mxu0 0.0
      %4734 = vmatpush1.msra.mxu0 %v4325
      %4735 = vmatprep.subr.mxu0 0.0
      %4736 = vmatpush1.msra.mxu0 %v4320
      %4737 = vmatprep.subr.mxu0 0.0
      %4738 = vmatpush1.msra.mxu0 %v4315
      %4739 = vmatprep.subr.mxu0 0.0
      %4740 = vmatpush2.msra.mxu0 0.0
      %4741 = vmatprep.subr.mxu0 0.0
      %4742 = vmatpush2.msra.mxu0 0.0
      %4743 = vmatprep.subr.mxu0 0.0
      %4744 = vmatpush2.msra.mxu0 0.0
      %4745 = vmatprep.subr.mxu0 0.0
      %4746 = vmatpush2.msra.mxu0 0.0
      %4747 = vmatprep.subr.mxu0 0.0
      %4748 = vmatpush2.msra.mxu0 0.0
      %4749 = vmatprep.subr.mxu0 0.0
      %4750 = vmatpush2.msra.mxu0 0.0
      %4751 = vmatprep.subr.mxu0 0.0
      %4752 = vmatpush2.msra.mxu0 0.0
      %4753 = vmatprep.subr.mxu0 0.0
      %4754 = vmatpush2.msra.mxu0 0.0
      %4755 = vmatprep.subr.mxu0 0.0
      %4756 = vmatpush2.msra.mxu0 0.0
      %4757 = vmatprep.subr.mxu0 0.0
      %4758 = vmatpush2.msra.mxu0 0.0
      %4759 = vmatprep.subr.mxu0 0.0
      %4760 = vmatpush2.msra.mxu0 0.0
      %4761 = vmatprep.subr.mxu0 0.0
      %4762 = vmatpush2.msra.mxu0 0.0
      %4763 = vmatprep.subr.mxu0 0.0
      %4764 = vmatpush2.msra.mxu0 0.0
      %4765 = vmatprep.subr.mxu0 0.0
      %4766 = vmatpush2.msra.mxu0 0.0
      %4767 = vmatprep.subr.mxu0 0.0
      %4768 = vmatpush2.msra.mxu0 0.0
      %4769 = vmatprep.subr.mxu0 0.0
      %4770 = vmatpush2.msra.mxu0 0.0
      %4771 = vmatprep.mubr.f32.mxu0 0.0
      %4772 = vmatmul.mubr.f32.gmra.mxu0 %v228
      %v4773 = vpop.f32.mrf.mxu0
      %v4774 = vadd.f32 %v4549, %v4773
      %v4775 = vpop.f32.mrf.mxu0
      %4776 = vmatprep.mubr.f32.mxu0 0.0
      %4777 = vmatmul.mubr.f32.gmra.mxu0 %v229
      %v4778 = vpop.f32.mrf.mxu0
      %v4779 = vadd.f32 %v4554, %v4778
      %v4780 = vpop.f32.mrf.mxu0
      %4781 = vmatprep.mubr.f32.mxu0 0.0
      %4782 = vmatmul.mubr.f32.gmra.mxu0 %v230
      %v4783 = vpop.f32.mrf.mxu0
      %v4784 = vadd.f32 %v4559, %v4783
      %v4785 = vpop.f32.mrf.mxu0
      %4786 = vmatprep.mubr.f32.mxu0 0.0
      %4787 = vmatmul.mubr.f32.gmra.mxu0 %v231
      %v4788 = vpop.f32.mrf.mxu0
      %v4789 = vadd.f32 %v4564, %v4788
      %v4790 = vpop.f32.mrf.mxu0
      %4791 = vmatprep.mubr.f32.mxu0 0.0
      %4792 = vmatmul.mubr.f32.gmra.mxu0 %v232
      %v4793 = vpop.f32.mrf.mxu0
      %v4794 = vadd.f32 %v4569, %v4793
      %v4795 = vpop.f32.mrf.mxu0
      %4796 = vmatprep.mubr.f32.mxu0 0.0
      %4797 = vmatmul.mubr.f32.gmra.mxu0 %v233
      %v4798 = vpop.f32.mrf.mxu0
      %v4799 = vadd.f32 %v4574, %v4798
      %v4800 = vpop.f32.mrf.mxu0
      %4801 = vmatprep.mubr.f32.mxu0 0.0
      %4802 = vmatmul.mubr.f32.gmra.mxu0 %v234
      %v4803 = vpop.f32.mrf.mxu0
      %v4804 = vadd.f32 %v4579, %v4803
      %v4805 = vpop.f32.mrf.mxu0
      %4806 = vmatprep.mubr.f32.mxu0 0.0
      %4807 = vmatmul.mubr.f32.gmra.mxu0 %v235
      %v4808 = vpop.f32.mrf.mxu0
      %v4809 = vadd.f32 %v4584, %v4808
      %v4810 = vpop.f32.mrf.mxu0
      %4811 = vmatprep.mubr.f32.mxu0 0.0
      %4812 = vmatmul.mubr.f32.gmra.mxu0 %v236
      %v4813 = vpop.f32.mrf.mxu0
      %v4814 = vadd.f32 %v4589, %v4813
      %v4815 = vpop.f32.mrf.mxu0
      %4816 = vmatprep.mubr.f32.mxu0 0.0
      %4817 = vmatmul.mubr.f32.gmra.mxu0 %v237
      %v4818 = vpop.f32.mrf.mxu0
      %v4819 = vadd.f32 %v4594, %v4818
      %v4820 = vpop.f32.mrf.mxu0
      %4821 = vmatprep.mubr.f32.mxu0 0.0
      %4822 = vmatmul.mubr.f32.gmra.mxu0 %v238
      %v4823 = vpop.f32.mrf.mxu0
      %v4824 = vadd.f32 %v4599, %v4823
      %v4825 = vpop.f32.mrf.mxu0
      %4826 = vmatprep.mubr.f32.mxu0 0.0
      %4827 = vmatmul.mubr.f32.gmra.mxu0 %v239
      %v4828 = vpop.f32.mrf.mxu0
      %v4829 = vadd.f32 %v4604, %v4828
      %v4830 = vpop.f32.mrf.mxu0
      %4831 = vmatprep.mubr.f32.mxu0 0.0
      %4832 = vmatmul.mubr.f32.gmra.mxu0 %v240
      %v4833 = vpop.f32.mrf.mxu0
      %v4834 = vadd.f32 %v4609, %v4833
      %v4835 = vpop.f32.mrf.mxu0
      %4836 = vmatprep.mubr.f32.mxu0 0.0
      %4837 = vmatmul.mubr.f32.gmra.mxu0 %v241
      %v4838 = vpop.f32.mrf.mxu0
      %v4839 = vadd.f32 %v4614, %v4838
      %v4840 = vpop.f32.mrf.mxu0
      %4841 = vmatprep.mubr.f32.mxu0 0.0
      %4842 = vmatmul.mubr.f32.gmra.mxu0 %v242
      %v4843 = vpop.f32.mrf.mxu0
      %v4844 = vadd.f32 %v4619, %v4843
      %v4845 = vpop.f32.mrf.mxu0
      %4846 = vmatprep.mubr.f32.mxu0 0.0
      %4847 = vmatmul.mubr.f32.gmra.mxu0 %v243
      %v4848 = vpop.f32.mrf.mxu0
      %v4849 = vadd.f32 %v4624, %v4848
      %v4850 = vpop.f32.mrf.mxu0
      %4851 = vmatprep.mubr.f32.mxu0 0.0
      %4852 = vmatmul.mubr.f32.gmra.mxu0 %v244
      %v4853 = vpop.f32.mrf.mxu0
      %v4854 = vadd.f32 %v4629, %v4853
      %v4855 = vpop.f32.mrf.mxu0
      %4856 = vmatprep.mubr.f32.mxu0 0.0
      %4857 = vmatmul.mubr.f32.gmra.mxu0 %v245
      %v4858 = vpop.f32.mrf.mxu0
      %v4859 = vadd.f32 %v4634, %v4858
      %v4860 = vpop.f32.mrf.mxu0
      %4861 = vmatprep.mubr.f32.mxu0 0.0
      %4862 = vmatmul.mubr.f32.gmra.mxu0 %v246
      %v4863 = vpop.f32.mrf.mxu0
      %v4864 = vadd.f32 %v4639, %v4863
      %v4865 = vpop.f32.mrf.mxu0
      %4866 = vmatprep.mubr.f32.mxu0 0.0
      %4867 = vmatmul.mubr.f32.gmra.mxu0 %v247
      %v4868 = vpop.f32.mrf.mxu0
      %v4869 = vadd.f32 %v4644, %v4868
      %v4870 = vpop.f32.mrf.mxu0
      %4871 = vmatprep.mubr.f32.mxu0 0.0
      %4872 = vmatmul.mubr.f32.gmra.mxu0 %v248
      %v4873 = vpop.f32.mrf.mxu0
      %v4874 = vadd.f32 %v4649, %v4873
      %v4875 = vpop.f32.mrf.mxu0
      %4876 = vmatprep.mubr.f32.mxu0 0.0
      %4877 = vmatmul.mubr.f32.gmra.mxu0 %v249
      %v4878 = vpop.f32.mrf.mxu0
      %v4879 = vadd.f32 %v4654, %v4878
      %v4880 = vpop.f32.mrf.mxu0
      %4881 = vmatprep.mubr.f32.mxu0 0.0
      %4882 = vmatmul.mubr.f32.gmra.mxu0 %v250
      %v4883 = vpop.f32.mrf.mxu0
      %v4884 = vadd.f32 %v4659, %v4883
      %v4885 = vpop.f32.mrf.mxu0
      %4886 = vmatprep.mubr.f32.mxu0 0.0
      %4887 = vmatmul.mubr.f32.gmra.mxu0 %v251
      %v4888 = vpop.f32.mrf.mxu0
      %v4889 = vadd.f32 %v4664, %v4888
      %v4890 = vpop.f32.mrf.mxu0
      %4891 = vmatprep.mubr.f32.mxu0 0.0
      %4892 = vmatmul.mubr.f32.gmra.mxu0 %v252
      %v4893 = vpop.f32.mrf.mxu0
      %v4894 = vadd.f32 %v4669, %v4893
      %v4895 = vpop.f32.mrf.mxu0
      %4896 = vmatprep.mubr.f32.mxu0 0.0
      %4897 = vmatmul.mubr.f32.gmra.mxu0 %v253
      %v4898 = vpop.f32.mrf.mxu0
      %v4899 = vadd.f32 %v4674, %v4898
      %v4900 = vpop.f32.mrf.mxu0
      %4901 = vmatprep.mubr.f32.mxu0 0.0
      %4902 = vmatmul.mubr.f32.gmra.mxu0 %v254
      %v4903 = vpop.f32.mrf.mxu0
      %v4904 = vadd.f32 %v4679, %v4903
      %v4905 = vpop.f32.mrf.mxu0
      %4906 = vmatprep.mubr.f32.mxu0 0.0
      %4907 = vmatmul.mubr.f32.gmra.mxu0 %v255
      %v4908 = vpop.f32.mrf.mxu0
      %v4909 = vadd.f32 %v4684, %v4908
      %v4910 = vpop.f32.mrf.mxu0
      %4911 = vmatprep.mubr.f32.mxu0 0.0
      %4912 = vmatmul.mubr.f32.gmra.mxu0 %v256
      %v4913 = vpop.f32.mrf.mxu0
      %v4914 = vadd.f32 %v4689, %v4913
      %v4915 = vpop.f32.mrf.mxu0
      %4916 = vmatprep.mubr.f32.mxu0 0.0
      %4917 = vmatmul.mubr.f32.gmra.mxu0 %v257
      %v4918 = vpop.f32.mrf.mxu0
      %v4919 = vadd.f32 %v4694, %v4918
      %v4920 = vpop.f32.mrf.mxu0
      %4921 = vmatprep.mubr.f32.mxu0 0.0
      %4922 = vmatmul.mubr.f32.gmra.mxu0 %v258
      %v4923 = vpop.f32.mrf.mxu0
      %v4924 = vadd.f32 %v4699, %v4923
      %v4925 = vpop.f32.mrf.mxu0
      %4926 = vmatprep.mubr.f32.mxu0 0.0
      %4927 = vmatmul.mubr.f32.gmra.mxu0 %v259
      %v4928 = vpop.f32.mrf.mxu0
      %v4929 = vadd.f32 %v4704, %v4928
      %v4930 = vpop.f32.mrf.mxu0
      %4931 = vdwg.mxu0
      %v4932 = vlaneseq
      %v4933 = vshrl.u32 %v4932, 7
      %v4934 = vsub.s32 0, %v4933
      %v4935 = vrot.slane %v4196, %v4934
      %v4936 = vadd.f32 %v4774, %v4935
      %v4937 = vadd.f32 %v4779, %v4935
      %v4938 = vadd.f32 %v4784, %v4935
      %v4939 = vadd.f32 %v4789, %v4935
      %v4940 = vadd.f32 %v4794, %v4935
      %v4941 = vadd.f32 %v4799, %v4935
      %v4942 = vadd.f32 %v4804, %v4935
      %v4943 = vadd.f32 %v4809, %v4935
      %v4944 = vadd.f32 %v4814, %v4935
      %v4945 = vadd.f32 %v4819, %v4935
      %v4946 = vadd.f32 %v4824, %v4935
      %v4947 = vadd.f32 %v4829, %v4935
      %v4948 = vadd.f32 %v4834, %v4935
      %v4949 = vadd.f32 %v4839, %v4935
      %v4950 = vadd.f32 %v4844, %v4935
      %v4951 = vadd.f32 %v4849, %v4935
      %v4952 = vadd.f32 %v4854, %v4935
      %v4953 = vadd.f32 %v4859, %v4935
      %v4954 = vadd.f32 %v4864, %v4935
      %v4955 = vadd.f32 %v4869, %v4935
      %v4956 = vadd.f32 %v4874, %v4935
      %v4957 = vadd.f32 %v4879, %v4935
      %v4958 = vadd.f32 %v4884, %v4935
      %v4959 = vadd.f32 %v4889, %v4935
      %v4960 = vadd.f32 %v4894, %v4935
      %v4961 = vadd.f32 %v4899, %v4935
      %v4962 = vadd.f32 %v4904, %v4935
      %v4963 = vadd.f32 %v4909, %v4935
      %v4964 = vadd.f32 %v4914, %v4935
      %v4965 = vadd.f32 %v4919, %v4935
      %v4966 = vadd.f32 %v4924, %v4935
      %v4967 = vadd.f32 %v4929, %v4935
      %v4968 = vmax.f32 %v4936, 0.0
      %v4969 = vmax.f32 %v4937, 0.0
      %v4970 = vmax.f32 %v4938, 0.0
      %v4971 = vmax.f32 %v4939, 0.0
      %v4972 = vmax.f32 %v4940, 0.0
      %v4973 = vmax.f32 %v4941, 0.0
      %v4974 = vmax.f32 %v4942, 0.0
      %v4975 = vmax.f32 %v4943, 0.0
      %v4976 = vmax.f32 %v4944, 0.0
      %v4977 = vmax.f32 %v4945, 0.0
      %v4978 = vmax.f32 %v4946, 0.0
      %v4979 = vmax.f32 %v4947, 0.0
      %v4980 = vmax.f32 %v4948, 0.0
      %v4981 = vmax.f32 %v4949, 0.0
      %v4982 = vmax.f32 %v4950, 0.0
      %v4983 = vmax.f32 %v4951, 0.0
      %v4984 = vmax.f32 %v4952, 0.0
      %v4985 = vmax.f32 %v4953, 0.0
      %v4986 = vmax.f32 %v4954, 0.0
      %v4987 = vmax.f32 %v4955, 0.0
      %v4988 = vmax.f32 %v4956, 0.0
      %v4989 = vmax.f32 %v4957, 0.0
      %v4990 = vmax.f32 %v4958, 0.0
      %v4991 = vmax.f32 %v4959, 0.0
      %v4992 = vmax.f32 %v4960, 0.0
      %v4993 = vmax.f32 %v4961, 0.0
      %v4994 = vmax.f32 %v4962, 0.0
      %v4995 = vmax.f32 %v4963, 0.0
      %v4996 = vmax.f32 %v4964, 0.0
      %v4997 = vmax.f32 %v4965, 0.0
      %v4998 = vmax.f32 %v4966, 0.0
      %v4999 = vmax.f32 %v4967, 0.0
      %v5000 = vlaneseq
      %v5001 = vshrl.u32 %v5000, 7
      %v5002 = vsub.s32 0, %v5001
      %v5003 = vrot.slane %v4197, %v5002
      %vm5004 = vcmask 261120
      %v5006 = vsel %vm5004, %v4968, 0
      %v5009 = vsel %vm5004, %v4969, 0
      %v5012 = vsel %vm5004, %v4970, 0
      %v5015 = vsel %vm5004, %v4971, 0
      %v5018 = vsel %vm5004, %v4972, 0
      %v5021 = vsel %vm5004, %v4973, 0
      %v5024 = vsel %vm5004, %v4974, 0
      %v5027 = vsel %vm5004, %v4975, 0
      %v5030 = vsel %vm5004, %v4976, 0
      %v5033 = vsel %vm5004, %v4977, 0
      %v5036 = vsel %vm5004, %v4978, 0
      %v5039 = vsel %vm5004, %v4979, 0
      %v5042 = vsel %vm5004, %v4980, 0
      %v5045 = vsel %vm5004, %v4981, 0
      %v5048 = vsel %vm5004, %v4982, 0
      %v5051 = vsel %vm5004, %v4983, 0
      %v5054 = vsel %vm5004, %v4984, 0
      %v5057 = vsel %vm5004, %v4985, 0
      %v5060 = vsel %vm5004, %v4986, 0
      %v5063 = vsel %vm5004, %v4987, 0
      %v5066 = vsel %vm5004, %v4988, 0
      %v5069 = vsel %vm5004, %v4989, 0
      %v5072 = vsel %vm5004, %v4990, 0
      %v5075 = vsel %vm5004, %v4991, 0
      %v5078 = vsel %vm5004, %v4992, 0
      %v5081 = vsel %vm5004, %v4993, 0
      %v5084 = vsel %vm5004, %v4994, 0
      %v5087 = vsel %vm5004, %v4995, 0
      %v5090 = vsel %vm5004, %v4996, 0
      %v5093 = vsel %vm5004, %v4997, 0
      %v5096 = vsel %vm5004, %v4998, 0
      %v5099 = vsel %vm5004, %v4999, 0
      %5101 = vmatprep.subr.mxu0 0.0
      %5102 = vmatpush1.msra.mxu0 0.0
      %5103 = vmatprep.subr.mxu0 0.0
      %5104 = vmatpush1.msra.mxu0 0.0
      %5105 = vmatprep.subr.mxu0 0.0
      %5106 = vmatpush1.msra.mxu0 0.0
      %5107 = vmatprep.subr.mxu0 0.0
      %5108 = vmatpush1.msra.mxu0 0.0
      %5109 = vmatprep.subr.mxu0 0.0
      %5110 = vmatpush1.msra.mxu0 0.0
      %5111 = vmatprep.subr.mxu0 0.0
      %5112 = vmatpush1.msra.mxu0 0.0
      %5113 = vmatprep.subr.mxu0 0.0
      %5114 = vmatpush1.msra.mxu0 0.0
      %5115 = vmatprep.subr.mxu0 0.0
      %5116 = vmatpush1.msra.mxu0 0.0
      %5117 = vmatprep.subr.mxu0 0.0
      %5118 = vmatpush1.msra.mxu0 0.0
      %5119 = vmatprep.subr.mxu0 0.0
      %5120 = vmatpush1.msra.mxu0 0.0
      %5121 = vmatprep.subr.mxu0 0.0
      %5122 = vmatpush1.msra.mxu0 0.0
      %5123 = vmatprep.subr.mxu0 0.0
      %5124 = vmatpush1.msra.mxu0 0.0
      %5125 = vmatprep.subr.mxu0 0.0
      %5126 = vmatpush1.msra.mxu0 %v4187
      %5127 = vmatprep.subr.mxu0 0.0
      %5128 = vmatpush1.msra.mxu0 %v4186
      %5129 = vmatprep.subr.mxu0 0.0
      %5130 = vmatpush1.msra.mxu0 %v4185
      %5131 = vmatprep.subr.mxu0 0.0
      %5132 = vmatpush1.msra.mxu0 %v4184
      %5133 = vmatprep.subr.mxu0 0.0
      %5134 = vmatpush2.msra.mxu0 0.0
      %5135 = vmatprep.subr.mxu0 0.0
      %5136 = vmatpush2.msra.mxu0 0.0
      %5137 = vmatprep.subr.mxu0 0.0
      %5138 = vmatpush2.msra.mxu0 0.0
      %5139 = vmatprep.subr.mxu0 0.0
      %5140 = vmatpush2.msra.mxu0 0.0
      %5141 = vmatprep.subr.mxu0 0.0
      %5142 = vmatpush2.msra.mxu0 0.0
      %5143 = vmatprep.subr.mxu0 0.0
      %5144 = vmatpush2.msra.mxu0 0.0
      %5145 = vmatprep.subr.mxu0 0.0
      %5146 = vmatpush2.msra.mxu0 0.0
      %5147 = vmatprep.subr.mxu0 0.0
      %5148 = vmatpush2.msra.mxu0 0.0
      %5149 = vmatprep.subr.mxu0 0.0
      %5150 = vmatpush2.msra.mxu0 0.0
      %5151 = vmatprep.subr.mxu0 0.0
      %5152 = vmatpush2.msra.mxu0 0.0
      %5153 = vmatprep.subr.mxu0 0.0
      %5154 = vmatpush2.msra.mxu0 0.0
      %5155 = vmatprep.subr.mxu0 0.0
      %5156 = vmatpush2.msra.mxu0 0.0
      %5157 = vmatprep.subr.mxu0 0.0
      %5158 = vmatpush2.msra.mxu0 0.0
      %5159 = vmatprep.subr.mxu0 0.0
      %5160 = vmatpush2.msra.mxu0 0.0
      %5161 = vmatprep.subr.mxu0 0.0
      %5162 = vmatpush2.msra.mxu0 0.0
      %5163 = vmatprep.subr.mxu0 0.0
      %5164 = vmatpush2.msra.mxu0 0.0
      %5165 = vmatprep.mubr.f32.mxu0 0.0
      %5166 = vmatmul.mubr.f32.gmra.mxu0 %v5006
      %v5167 = vpop.f32.mrf.mxu0
      %v5168 = vadd.f32 %v5003, %v5167
      %v5169 = vpop.f32.mrf.mxu0
      %5170 = vmatprep.mubr.f32.mxu0 0.0
      %5171 = vmatmul.mubr.f32.gmra.mxu0 %v5009
      %v5172 = vpop.f32.mrf.mxu0
      %v5173 = vadd.f32 %v5003, %v5172
      %v5174 = vpop.f32.mrf.mxu0
      %5175 = vmatprep.mubr.f32.mxu0 0.0
      %5176 = vmatmul.mubr.f32.gmra.mxu0 %v5012
      %v5177 = vpop.f32.mrf.mxu0
      %v5178 = vadd.f32 %v5003, %v5177
      %v5179 = vpop.f32.mrf.mxu0
      %5180 = vmatprep.mubr.f32.mxu0 0.0
      %5181 = vmatmul.mubr.f32.gmra.mxu0 %v5015
      %v5182 = vpop.f32.mrf.mxu0
      %v5183 = vadd.f32 %v5003, %v5182
      %v5184 = vpop.f32.mrf.mxu0
      %5185 = vmatprep.mubr.f32.mxu0 0.0
      %5186 = vmatmul.mubr.f32.gmra.mxu0 %v5018
      %v5187 = vpop.f32.mrf.mxu0
      %v5188 = vadd.f32 %v5003, %v5187
      %v5189 = vpop.f32.mrf.mxu0
      %5190 = vmatprep.mubr.f32.mxu0 0.0
      %5191 = vmatmul.mubr.f32.gmra.mxu0 %v5021
      %v5192 = vpop.f32.mrf.mxu0
      %v5193 = vadd.f32 %v5003, %v5192
      %v5194 = vpop.f32.mrf.mxu0
      %5195 = vmatprep.mubr.f32.mxu0 0.0
      %5196 = vmatmul.mubr.f32.gmra.mxu0 %v5024
      %v5197 = vpop.f32.mrf.mxu0
      %v5198 = vadd.f32 %v5003, %v5197
      %v5199 = vpop.f32.mrf.mxu0
      %5200 = vmatprep.mubr.f32.mxu0 0.0
      %5201 = vmatmul.mubr.f32.gmra.mxu0 %v5027
      %v5202 = vpop.f32.mrf.mxu0
      %v5203 = vadd.f32 %v5003, %v5202
      %v5204 = vpop.f32.mrf.mxu0
      %5205 = vmatprep.mubr.f32.mxu0 0.0
      %5206 = vmatmul.mubr.f32.gmra.mxu0 %v5030
      %v5207 = vpop.f32.mrf.mxu0
      %v5208 = vadd.f32 %v5003, %v5207
      %v5209 = vpop.f32.mrf.mxu0
      %5210 = vmatprep.mubr.f32.mxu0 0.0
      %5211 = vmatmul.mubr.f32.gmra.mxu0 %v5033
      %v5212 = vpop.f32.mrf.mxu0
      %v5213 = vadd.f32 %v5003, %v5212
      %v5214 = vpop.f32.mrf.mxu0
      %5215 = vmatprep.mubr.f32.mxu0 0.0
      %5216 = vmatmul.mubr.f32.gmra.mxu0 %v5036
      %v5217 = vpop.f32.mrf.mxu0
      %v5218 = vadd.f32 %v5003, %v5217
      %v5219 = vpop.f32.mrf.mxu0
      %5220 = vmatprep.mubr.f32.mxu0 0.0
      %5221 = vmatmul.mubr.f32.gmra.mxu0 %v5039
      %v5222 = vpop.f32.mrf.mxu0
      %v5223 = vadd.f32 %v5003, %v5222
      %v5224 = vpop.f32.mrf.mxu0
      %5225 = vmatprep.mubr.f32.mxu0 0.0
      %5226 = vmatmul.mubr.f32.gmra.mxu0 %v5042
      %v5227 = vpop.f32.mrf.mxu0
      %v5228 = vadd.f32 %v5003, %v5227
      %v5229 = vpop.f32.mrf.mxu0
      %5230 = vmatprep.mubr.f32.mxu0 0.0
      %5231 = vmatmul.mubr.f32.gmra.mxu0 %v5045
      %v5232 = vpop.f32.mrf.mxu0
      %v5233 = vadd.f32 %v5003, %v5232
      %v5234 = vpop.f32.mrf.mxu0
      %5235 = vmatprep.mubr.f32.mxu0 0.0
      %5236 = vmatmul.mubr.f32.gmra.mxu0 %v5048
      %v5237 = vpop.f32.mrf.mxu0
      %v5238 = vadd.f32 %v5003, %v5237
      %v5239 = vpop.f32.mrf.mxu0
      %5240 = vmatprep.mubr.f32.mxu0 0.0
      %5241 = vmatmul.mubr.f32.gmra.mxu0 %v5051
      %v5242 = vpop.f32.mrf.mxu0
      %v5243 = vadd.f32 %v5003, %v5242
      %v5244 = vpop.f32.mrf.mxu0
      %5245 = vmatprep.mubr.f32.mxu0 0.0
      %5246 = vmatmul.mubr.f32.gmra.mxu0 %v5054
      %v5247 = vpop.f32.mrf.mxu0
      %v5248 = vadd.f32 %v5003, %v5247
      %v5249 = vpop.f32.mrf.mxu0
      %5250 = vmatprep.mubr.f32.mxu0 0.0
      %5251 = vmatmul.mubr.f32.gmra.mxu0 %v5057
      %v5252 = vpop.f32.mrf.mxu0
      %v5253 = vadd.f32 %v5003, %v5252
      %v5254 = vpop.f32.mrf.mxu0
      %5255 = vmatprep.mubr.f32.mxu0 0.0
      %5256 = vmatmul.mubr.f32.gmra.mxu0 %v5060
      %v5257 = vpop.f32.mrf.mxu0
      %v5258 = vadd.f32 %v5003, %v5257
      %v5259 = vpop.f32.mrf.mxu0
      %5260 = vmatprep.mubr.f32.mxu0 0.0
      %5261 = vmatmul.mubr.f32.gmra.mxu0 %v5063
      %v5262 = vpop.f32.mrf.mxu0
      %v5263 = vadd.f32 %v5003, %v5262
      %v5264 = vpop.f32.mrf.mxu0
      %5265 = vmatprep.mubr.f32.mxu0 0.0
      %5266 = vmatmul.mubr.f32.gmra.mxu0 %v5066
      %v5267 = vpop.f32.mrf.mxu0
      %v5268 = vadd.f32 %v5003, %v5267
      %v5269 = vpop.f32.mrf.mxu0
      %5270 = vmatprep.mubr.f32.mxu0 0.0
      %5271 = vmatmul.mubr.f32.gmra.mxu0 %v5069
      %v5272 = vpop.f32.mrf.mxu0
      %v5273 = vadd.f32 %v5003, %v5272
      %v5274 = vpop.f32.mrf.mxu0
      %5275 = vmatprep.mubr.f32.mxu0 0.0
      %5276 = vmatmul.mubr.f32.gmra.mxu0 %v5072
      %v5277 = vpop.f32.mrf.mxu0
      %v5278 = vadd.f32 %v5003, %v5277
      %v5279 = vpop.f32.mrf.mxu0
      %5280 = vmatprep.mubr.f32.mxu0 0.0
      %5281 = vmatmul.mubr.f32.gmra.mxu0 %v5075
      %v5282 = vpop.f32.mrf.mxu0
      %v5283 = vadd.f32 %v5003, %v5282
      %v5284 = vpop.f32.mrf.mxu0
      %5285 = vmatprep.mubr.f32.mxu0 0.0
      %5286 = vmatmul.mubr.f32.gmra.mxu0 %v5078
      %v5287 = vpop.f32.mrf.mxu0
      %v5288 = vadd.f32 %v5003, %v5287
      %v5289 = vpop.f32.mrf.mxu0
      %5290 = vmatprep.mubr.f32.mxu0 0.0
      %5291 = vmatmul.mubr.f32.gmra.mxu0 %v5081
      %v5292 = vpop.f32.mrf.mxu0
      %v5293 = vadd.f32 %v5003, %v5292
      %v5294 = vpop.f32.mrf.mxu0
      %5295 = vmatprep.mubr.f32.mxu0 0.0
      %5296 = vmatmul.mubr.f32.gmra.mxu0 %v5084
      %v5297 = vpop.f32.mrf.mxu0
      %v5298 = vadd.f32 %v5003, %v5297
      %v5299 = vpop.f32.mrf.mxu0
      %5300 = vmatprep.mubr.f32.mxu0 0.0
      %5301 = vmatmul.mubr.f32.gmra.mxu0 %v5087
      %v5302 = vpop.f32.mrf.mxu0
      %v5303 = vadd.f32 %v5003, %v5302
      %v5304 = vpop.f32.mrf.mxu0
      %5305 = vmatprep.mubr.f32.mxu0 0.0
      %5306 = vmatmul.mubr.f32.gmra.mxu0 %v5090
      %v5307 = vpop.f32.mrf.mxu0
      %v5308 = vadd.f32 %v5003, %v5307
      %v5309 = vpop.f32.mrf.mxu0
      %5310 = vmatprep.mubr.f32.mxu0 0.0
      %5311 = vmatmul.mubr.f32.gmra.mxu0 %v5093
      %v5312 = vpop.f32.mrf.mxu0
      %v5313 = vadd.f32 %v5003, %v5312
      %v5314 = vpop.f32.mrf.mxu0
      %5315 = vmatprep.mubr.f32.mxu0 0.0
      %5316 = vmatmul.mubr.f32.gmra.mxu0 %v5096
      %v5317 = vpop.f32.mrf.mxu0
      %v5318 = vadd.f32 %v5003, %v5317
      %v5319 = vpop.f32.mrf.mxu0
      %5320 = vmatprep.mubr.f32.mxu0 0.0
      %5321 = vmatmul.mubr.f32.gmra.mxu0 %v5099
      %v5322 = vpop.f32.mrf.mxu0
      %v5323 = vadd.f32 %v5003, %v5322
      %v5324 = vpop.f32.mrf.mxu0
      %5325 = vdwg.mxu0
      %5326 = vmatprep.subr.mxu0 0.0
      %5327 = vmatpush1.msra.mxu0 %v5243
      %5328 = vmatprep.subr.mxu0 0.0
      %5329 = vmatpush1.msra.mxu0 %v5238
      %5330 = vmatprep.subr.mxu0 0.0
      %5331 = vmatpush1.msra.mxu0 %v5233
      %5332 = vmatprep.subr.mxu0 0.0
      %5333 = vmatpush1.msra.mxu0 %v5228
      %5334 = vmatprep.subr.mxu0 0.0
      %5335 = vmatpush1.msra.mxu0 %v5223
      %5336 = vmatprep.subr.mxu0 0.0
      %5337 = vmatpush1.msra.mxu0 %v5218
      %5338 = vmatprep.subr.mxu0 0.0
      %5339 = vmatpush1.msra.mxu0 %v5213
      %5340 = vmatprep.subr.mxu0 0.0
      %5341 = vmatpush1.msra.mxu0 %v5208
      %5342 = vmatprep.subr.mxu0 0.0
      %5343 = vmatpush1.msra.mxu0 %v5203
      %5344 = vmatprep.subr.mxu0 0.0
      %5345 = vmatpush1.msra.mxu0 %v5198
      %5346 = vmatprep.subr.mxu0 0.0
      %5347 = vmatpush1.msra.mxu0 %v5193
      %5348 = vmatprep.subr.mxu0 0.0
      %5349 = vmatpush1.msra.mxu0 %v5188
      %5350 = vmatprep.subr.mxu0 0.0
      %5351 = vmatpush1.msra.mxu0 %v5183
      %5352 = vmatprep.subr.mxu0 0.0
      %5353 = vmatpush1.msra.mxu0 %v5178
      %5354 = vmatprep.subr.mxu0 0.0
      %5355 = vmatpush1.msra.mxu0 %v5173
      %5356 = vmatprep.subr.mxu0 0.0
      %5357 = vmatpush1.msra.mxu0 %v5168
      %5358 = vmatprep.subr.mxu0 0.0
      %5359 = vmatpush2.msra.mxu0 %v5323
      %5360 = vmatprep.subr.mxu0 0.0
      %5361 = vmatpush2.msra.mxu0 %v5318
      %5362 = vmatprep.subr.mxu0 0.0
      %5363 = vmatpush2.msra.mxu0 %v5313
      %5364 = vmatprep.subr.mxu0 0.0
      %5365 = vmatpush2.msra.mxu0 %v5308
      %5366 = vmatprep.subr.mxu0 0.0
      %5367 = vmatpush2.msra.mxu0 %v5303
      %5368 = vmatprep.subr.mxu0 0.0
      %5369 = vmatpush2.msra.mxu0 %v5298
      %5370 = vmatprep.subr.mxu0 0.0
      %5371 = vmatpush2.msra.mxu0 %v5293
      %5372 = vmatprep.subr.mxu0 0.0
      %5373 = vmatpush2.msra.mxu0 %v5288
      %5374 = vmatprep.subr.mxu0 0.0
      %5375 = vmatpush2.msra.mxu0 %v5283
      %5376 = vmatprep.subr.mxu0 0.0
      %5377 = vmatpush2.msra.mxu0 %v5278
      %5378 = vmatprep.subr.mxu0 0.0
      %5379 = vmatpush2.msra.mxu0 %v5273
      %5380 = vmatprep.subr.mxu0 0.0
      %5381 = vmatpush2.msra.mxu0 %v5268
      %5382 = vmatprep.subr.mxu0 0.0
      %5383 = vmatpush2.msra.mxu0 %v5263
      %5384 = vmatprep.subr.mxu0 0.0
      %5385 = vmatpush2.msra.mxu0 %v5258
      %5386 = vmatprep.subr.mxu0 0.0
      %5387 = vmatpush2.msra.mxu0 %v5253
      %5388 = vmatprep.subr.mxu0 0.0
      %5389 = vmatpush2.msra.mxu0 %v5248
      %5390 = vmatprep.mubr.f32.mxu0 %v293
      %5391 = vmatmul.mubr.f32.gmra.mxu0 %v292
      %v5392 = vpop.f32.mrf.mxu0
      %v5393 = vadd.f32 0.0, %v5392
      %v5394 = vpop.f32.mrf.mxu0
      %5395 = vmatprep.mubr.f32.mxu0 %v295
      %5396 = vmatmul.mubr.f32.gmra.mxu0 %v294
      %v5397 = vpop.f32.mrf.mxu0
      %v5398 = vadd.f32 0.0, %v5397
      %v5399 = vpop.f32.mrf.mxu0
      %5400 = vmatprep.mubr.f32.mxu0 %v297
      %5401 = vmatmul.mubr.f32.gmra.mxu0 %v296
      %v5402 = vpop.f32.mrf.mxu0
      %v5403 = vadd.f32 0.0, %v5402
      %v5404 = vpop.f32.mrf.mxu0
      %5405 = vmatprep.mubr.f32.mxu0 %v299
      %5406 = vmatmul.mubr.f32.gmra.mxu0 %v298
      %v5407 = vpop.f32.mrf.mxu0
      %v5408 = vadd.f32 0.0, %v5407
      %v5409 = vpop.f32.mrf.mxu0
      %5410 = vmatprep.mubr.f32.mxu0 %v301
      %5411 = vmatmul.mubr.f32.gmra.mxu0 %v300
      %v5412 = vpop.f32.mrf.mxu0
      %v5413 = vadd.f32 0.0, %v5412
      %v5414 = vpop.f32.mrf.mxu0
      %5415 = vmatprep.mubr.f32.mxu0 %v303
      %5416 = vmatmul.mubr.f32.gmra.mxu0 %v302
      %v5417 = vpop.f32.mrf.mxu0
      %v5418 = vadd.f32 0.0, %v5417
      %v5419 = vpop.f32.mrf.mxu0
      %5420 = vmatprep.mubr.f32.mxu0 %v305
      %5421 = vmatmul.mubr.f32.gmra.mxu0 %v304
      %v5422 = vpop.f32.mrf.mxu0
      %v5423 = vadd.f32 0.0, %v5422
      %v5424 = vpop.f32.mrf.mxu0
      %5425 = vmatprep.mubr.f32.mxu0 %v307
      %5426 = vmatmul.mubr.f32.gmra.mxu0 %v306
      %v5427 = vpop.f32.mrf.mxu0
      %v5428 = vadd.f32 0.0, %v5427
      %v5429 = vpop.f32.mrf.mxu0
      %5430 = vmatprep.mubr.f32.mxu0 %v309
      %5431 = vmatmul.mubr.f32.gmra.mxu0 %v308
      %v5432 = vpop.f32.mrf.mxu0
      %v5433 = vadd.f32 0.0, %v5432
      %v5434 = vpop.f32.mrf.mxu0
      %5435 = vmatprep.mubr.f32.mxu0 %v311
      %5436 = vmatmul.mubr.f32.gmra.mxu0 %v310
      %v5437 = vpop.f32.mrf.mxu0
      %v5438 = vadd.f32 0.0, %v5437
      %v5439 = vpop.f32.mrf.mxu0
      %5440 = vmatprep.mubr.f32.mxu0 %v313
      %5441 = vmatmul.mubr.f32.gmra.mxu0 %v312
      %v5442 = vpop.f32.mrf.mxu0
      %v5443 = vadd.f32 0.0, %v5442
      %v5444 = vpop.f32.mrf.mxu0
      %5445 = vmatprep.mubr.f32.mxu0 %v315
      %5446 = vmatmul.mubr.f32.gmra.mxu0 %v314
      %v5447 = vpop.f32.mrf.mxu0
      %v5448 = vadd.f32 0.0, %v5447
      %v5449 = vpop.f32.mrf.mxu0
      %5450 = vmatprep.mubr.f32.mxu0 %v317
      %5451 = vmatmul.mubr.f32.gmra.mxu0 %v316
      %v5452 = vpop.f32.mrf.mxu0
      %v5453 = vadd.f32 0.0, %v5452
      %v5454 = vpop.f32.mrf.mxu0
      %5455 = vmatprep.mubr.f32.mxu0 %v319
      %5456 = vmatmul.mubr.f32.gmra.mxu0 %v318
      %v5457 = vpop.f32.mrf.mxu0
      %v5458 = vadd.f32 0.0, %v5457
      %v5459 = vpop.f32.mrf.mxu0
      %5460 = vmatprep.mubr.f32.mxu0 %v321
      %5461 = vmatmul.mubr.f32.gmra.mxu0 %v320
      %v5462 = vpop.f32.mrf.mxu0
      %v5463 = vadd.f32 0.0, %v5462
      %v5464 = vpop.f32.mrf.mxu0
      %5465 = vmatprep.mubr.f32.mxu0 %v323
      %5466 = vmatmul.mubr.f32.gmra.mxu0 %v322
      %v5467 = vpop.f32.mrf.mxu0
      %v5468 = vadd.f32 0.0, %v5467
      %v5469 = vpop.f32.mrf.mxu0
      %5470 = vdwg.mxu0
      %v5472 = vsel %vm5004, %v5393, 0
      %v5475 = vsel %vm5004, %v5398, 0
      %v5478 = vsel %vm5004, %v5403, 0
      %v5481 = vsel %vm5004, %v5408, 0
      %v5484 = vsel %vm5004, %v5413, 0
      %v5487 = vsel %vm5004, %v5418, 0
      %v5490 = vsel %vm5004, %v5423, 0
      %v5493 = vsel %vm5004, %v5428, 0
      %v5496 = vsel %vm5004, %v5433, 0
      %v5499 = vsel %vm5004, %v5438, 0
      %v5502 = vsel %vm5004, %v5443, 0
      %v5505 = vsel %vm5004, %v5448, 0
      %v5508 = vsel %vm5004, %v5453, 0
      %v5511 = vsel %vm5004, %v5458, 0
      %v5514 = vsel %vm5004, %v5463, 0
      %v5517 = vsel %vm5004, %v5468, 0
      %5519 = vmatprep.subr.mxu0 0.0
      %5520 = vmatpush1.msra.mxu0 0.0
      %5521 = vmatprep.subr.mxu0 0.0
      %5522 = vmatpush1.msra.mxu0 0.0
      %5523 = vmatprep.subr.mxu0 0.0
      %5524 = vmatpush1.msra.mxu0 0.0
      %5525 = vmatprep.subr.mxu0 0.0
      %5526 = vmatpush1.msra.mxu0 0.0
      %5527 = vmatprep.subr.mxu0 0.0
      %5528 = vmatpush1.msra.mxu0 0.0
      %5529 = vmatprep.subr.mxu0 0.0
      %5530 = vmatpush1.msra.mxu0 0.0
      %5531 = vmatprep.subr.mxu0 0.0
      %5532 = vmatpush1.msra.mxu0 0.0
      %5533 = vmatprep.subr.mxu0 0.0
      %5534 = vmatpush1.msra.mxu0 0.0
      %5535 = vmatprep.subr.mxu0 0.0
      %5536 = vmatpush1.msra.mxu0 0.0
      %5537 = vmatprep.subr.mxu0 0.0
      %5538 = vmatpush1.msra.mxu0 0.0
      %5539 = vmatprep.subr.mxu0 0.0
      %5540 = vmatpush1.msra.mxu0 0.0
      %5541 = vmatprep.subr.mxu0 0.0
      %5542 = vmatpush1.msra.mxu0 0.0
      %5543 = vmatprep.subr.mxu0 0.0
      %5544 = vmatpush1.msra.mxu0 %v4191
      %5545 = vmatprep.subr.mxu0 0.0
      %5546 = vmatpush1.msra.mxu0 %v4190
      %5547 = vmatprep.subr.mxu0 0.0
      %5548 = vmatpush1.msra.mxu0 %v4189
      %5549 = vmatprep.subr.mxu0 0.0
      %5550 = vmatpush1.msra.mxu0 %v4188
      %5551 = vmatprep.subr.mxu0 0.0
      %5552 = vmatpush2.msra.mxu0 0.0
      %5553 = vmatprep.subr.mxu0 0.0
      %5554 = vmatpush2.msra.mxu0 0.0
      %5555 = vmatprep.subr.mxu0 0.0
      %5556 = vmatpush2.msra.mxu0 0.0
      %5557 = vmatprep.subr.mxu0 0.0
      %5558 = vmatpush2.msra.mxu0 0.0
      %5559 = vmatprep.subr.mxu0 0.0
      %5560 = vmatpush2.msra.mxu0 0.0
      %5561 = vmatprep.subr.mxu0 0.0
      %5562 = vmatpush2.msra.mxu0 0.0
      %5563 = vmatprep.subr.mxu0 0.0
      %5564 = vmatpush2.msra.mxu0 0.0
      %5565 = vmatprep.subr.mxu0 0.0
      %5566 = vmatpush2.msra.mxu0 0.0
      %5567 = vmatprep.subr.mxu0 0.0
      %5568 = vmatpush2.msra.mxu0 0.0
      %5569 = vmatprep.subr.mxu0 0.0
      %5570 = vmatpush2.msra.mxu0 0.0
      %5571 = vmatprep.subr.mxu0 0.0
      %5572 = vmatpush2.msra.mxu0 0.0
      %5573 = vmatprep.subr.mxu0 0.0
      %5574 = vmatpush2.msra.mxu0 0.0
      %5575 = vmatprep.subr.mxu0 0.0
      %5576 = vmatpush2.msra.mxu0 0.0
      %5577 = vmatprep.subr.mxu0 0.0
      %5578 = vmatpush2.msra.mxu0 0.0
      %5579 = vmatprep.subr.mxu0 0.0
      %5580 = vmatpush2.msra.mxu0 0.0
      %5581 = vmatprep.subr.mxu0 0.0
      %5582 = vmatpush2.msra.mxu0 0.0
      %5583 = vmatprep.mubr.f32.mxu0 0.0
      %5584 = vmatmul.mubr.f32.gmra.mxu0 %v5472
      %v5585 = vpop.f32.mrf.mxu0
      %v5586 = vadd.f32 0.0, %v5585
      %v5587 = vpop.f32.mrf.mxu0
      %5588 = vmatprep.mubr.f32.mxu0 0.0
      %5589 = vmatmul.mubr.f32.gmra.mxu0 %v5475
      %v5590 = vpop.f32.mrf.mxu0
      %v5591 = vadd.f32 0.0, %v5590
      %v5592 = vpop.f32.mrf.mxu0
      %5593 = vmatprep.mubr.f32.mxu0 0.0
      %5594 = vmatmul.mubr.f32.gmra.mxu0 %v5478
      %v5595 = vpop.f32.mrf.mxu0
      %v5596 = vadd.f32 0.0, %v5595
      %v5597 = vpop.f32.mrf.mxu0
      %5598 = vmatprep.mubr.f32.mxu0 0.0
      %5599 = vmatmul.mubr.f32.gmra.mxu0 %v5481
      %v5600 = vpop.f32.mrf.mxu0
      %v5601 = vadd.f32 0.0, %v5600
      %v5602 = vpop.f32.mrf.mxu0
      %5603 = vmatprep.mubr.f32.mxu0 0.0
      %5604 = vmatmul.mubr.f32.gmra.mxu0 %v5484
      %v5605 = vpop.f32.mrf.mxu0
      %v5606 = vadd.f32 0.0, %v5605
      %v5607 = vpop.f32.mrf.mxu0
      %5608 = vmatprep.mubr.f32.mxu0 0.0
      %5609 = vmatmul.mubr.f32.gmra.mxu0 %v5487
      %v5610 = vpop.f32.mrf.mxu0
      %v5611 = vadd.f32 0.0, %v5610
      %v5612 = vpop.f32.mrf.mxu0
      %5613 = vmatprep.mubr.f32.mxu0 0.0
      %5614 = vmatmul.mubr.f32.gmra.mxu0 %v5490
      %v5615 = vpop.f32.mrf.mxu0
      %v5616 = vadd.f32 0.0, %v5615
      %v5617 = vpop.f32.mrf.mxu0
      %5618 = vmatprep.mubr.f32.mxu0 0.0
      %5619 = vmatmul.mubr.f32.gmra.mxu0 %v5493
      %v5620 = vpop.f32.mrf.mxu0
      %v5621 = vadd.f32 0.0, %v5620
      %v5622 = vpop.f32.mrf.mxu0
      %5623 = vmatprep.mubr.f32.mxu0 0.0
      %5624 = vmatmul.mubr.f32.gmra.mxu0 %v5496
      %v5625 = vpop.f32.mrf.mxu0
      %v5626 = vadd.f32 0.0, %v5625
      %v5627 = vpop.f32.mrf.mxu0
      %5628 = vmatprep.mubr.f32.mxu0 0.0
      %5629 = vmatmul.mubr.f32.gmra.mxu0 %v5499
      %v5630 = vpop.f32.mrf.mxu0
      %v5631 = vadd.f32 0.0, %v5630
      %v5632 = vpop.f32.mrf.mxu0
      %5633 = vmatprep.mubr.f32.mxu0 0.0
      %5634 = vmatmul.mubr.f32.gmra.mxu0 %v5502
      %v5635 = vpop.f32.mrf.mxu0
      %v5636 = vadd.f32 0.0, %v5635
      %v5637 = vpop.f32.mrf.mxu0
      %5638 = vmatprep.mubr.f32.mxu0 0.0
      %5639 = vmatmul.mubr.f32.gmra.mxu0 %v5505
      %v5640 = vpop.f32.mrf.mxu0
      %v5641 = vadd.f32 0.0, %v5640
      %v5642 = vpop.f32.mrf.mxu0
      %5643 = vmatprep.mubr.f32.mxu0 0.0
      %5644 = vmatmul.mubr.f32.gmra.mxu0 %v5508
      %v5645 = vpop.f32.mrf.mxu0
      %v5646 = vadd.f32 0.0, %v5645
      %v5647 = vpop.f32.mrf.mxu0
      %5648 = vmatprep.mubr.f32.mxu0 0.0
      %5649 = vmatmul.mubr.f32.gmra.mxu0 %v5511
      %v5650 = vpop.f32.mrf.mxu0
      %v5651 = vadd.f32 0.0, %v5650
      %v5652 = vpop.f32.mrf.mxu0
      %5653 = vmatprep.mubr.f32.mxu0 0.0
      %5654 = vmatmul.mubr.f32.gmra.mxu0 %v5514
      %v5655 = vpop.f32.mrf.mxu0
      %v5656 = vadd.f32 0.0, %v5655
      %v5657 = vpop.f32.mrf.mxu0
      %5658 = vmatprep.mubr.f32.mxu0 0.0
      %5659 = vmatmul.mubr.f32.gmra.mxu0 %v5517
      %v5660 = vpop.f32.mrf.mxu0
      %v5661 = vadd.f32 0.0, %v5660
      %v5662 = vpop.f32.mrf.mxu0
      %5663 = vdwg.mxu0
      %5680 = vrot.lane.b32.xlu0 %v5586, 64
      %v5681 = vpop.permute.xlu0 %5680
      %5682 = vrot.lane.b32.xlu0 %v5591, 64
      %v5683 = vpop.permute.xlu0 %5682
      %5684 = vrot.lane.b32.xlu0 %v5596, 64
      %v5685 = vpop.permute.xlu0 %5684
      %5686 = vrot.lane.b32.xlu0 %v5601, 64
      %v5687 = vpop.permute.xlu0 %5686
      %5688 = vrot.lane.b32.xlu0 %v5606, 64
      %v5689 = vpop.permute.xlu0 %5688
      %5690 = vrot.lane.b32.xlu0 %v5611, 64
      %v5691 = vpop.permute.xlu0 %5690
      %5692 = vrot.lane.b32.xlu0 %v5616, 64
      %v5693 = vpop.permute.xlu0 %5692
      %5694 = vrot.lane.b32.xlu0 %v5621, 64
      %v5695 = vpop.permute.xlu0 %5694
      %5696 = vrot.lane.b32.xlu0 %v5626, 64
      %v5697 = vpop.permute.xlu0 %5696
      %5698 = vrot.lane.b32.xlu0 %v5631, 64
      %v5699 = vpop.permute.xlu0 %5698
      %5700 = vrot.lane.b32.xlu0 %v5636, 64
      %v5701 = vpop.permute.xlu0 %5700
      %5702 = vrot.lane.b32.xlu0 %v5641, 64
      %v5703 = vpop.permute.xlu0 %5702
      %5704 = vrot.lane.b32.xlu0 %v5646, 64
      %v5705 = vpop.permute.xlu0 %5704
      %5706 = vrot.lane.b32.xlu0 %v5651, 64
      %v5707 = vpop.permute.xlu0 %5706
      %5708 = vrot.lane.b32.xlu0 %v5656, 64
      %v5709 = vpop.permute.xlu0 %5708
      %5710 = vrot.lane.b32.xlu0 %v5661, 64
      %v5711 = vpop.permute.xlu0 %5710
      %v5728 = vadd.f32 %v4315, %v5681
      %v5729 = vadd.f32 %v4320, %v5683
      %v5730 = vadd.f32 %v4325, %v5685
      %v5731 = vadd.f32 %v4330, %v5687
      %v5732 = vadd.f32 %v4335, %v5689
      %v5733 = vadd.f32 %v4340, %v5691
      %v5734 = vadd.f32 %v4345, %v5693
      %v5735 = vadd.f32 %v4350, %v5695
      %v5736 = vadd.f32 %v4355, %v5697
      %v5737 = vadd.f32 %v4360, %v5699
      %v5738 = vadd.f32 %v4365, %v5701
      %v5739 = vadd.f32 %v4370, %v5703
      %v5740 = vadd.f32 %v4375, %v5705
      %v5741 = vadd.f32 %v4380, %v5707
      %v5742 = vadd.f32 %v4385, %v5709
      %v5743 = vadd.f32 %v4390, %v5711
      %v5744 = vlaneseq
      %v5745 = vshrl.u32 %v5744, 7
      %v5746 = vsub.s32 0, %v5745
      %v5747 = vrot.slane %v4198, %v5746
      %5749 = vrot.lane.b32.xlu0 %v5747, 64
      %v5750 = vpop.permute.xlu0 %5749
      %v5752 = vadd.f32 %v5728, %v5750
      %v5753 = vadd.f32 %v5729, %v5750
      %v5754 = vadd.f32 %v5730, %v5750
      %v5755 = vadd.f32 %v5731, %v5750
      %v5756 = vadd.f32 %v5732, %v5750
      %v5757 = vadd.f32 %v5733, %v5750
      %v5758 = vadd.f32 %v5734, %v5750
      %v5759 = vadd.f32 %v5735, %v5750
      %v5760 = vadd.f32 %v5736, %v5750
      %v5761 = vadd.f32 %v5737, %v5750
      %v5762 = vadd.f32 %v5738, %v5750
      %v5763 = vadd.f32 %v5739, %v5750
      %v5764 = vadd.f32 %v5740, %v5750
      %v5765 = vadd.f32 %v5741, %v5750
      %v5766 = vadd.f32 %v5742, %v5750
      %v5767 = vadd.f32 %v5743, %v5750
      %v5768 = vmax.f32 %v5752, 0.0
      %v5769 = vmax.f32 %v5753, 0.0
      %v5770 = vmax.f32 %v5754, 0.0
      %v5771 = vmax.f32 %v5755, 0.0
      %v5772 = vmax.f32 %v5756, 0.0
      %v5773 = vmax.f32 %v5757, 0.0
      %v5774 = vmax.f32 %v5758, 0.0
      %v5775 = vmax.f32 %v5759, 0.0
      %v5776 = vmax.f32 %v5760, 0.0
      %v5777 = vmax.f32 %v5761, 0.0
      %v5778 = vmax.f32 %v5762, 0.0
      %v5779 = vmax.f32 %v5763, 0.0
      %v5780 = vmax.f32 %v5764, 0.0
      %v5781 = vmax.f32 %v5765, 0.0
      %v5782 = vmax.f32 %v5766, 0.0
      %v5783 = vmax.f32 %v5767, 0.0
      %v5784 = vlaneseq
      %v5785 = vshrl.u32 %v5784, 7
      %v5786 = vsub.s32 0, %v5785
      %v5787 = vrot.slane %v4199, %v5786
      %5804 = vrot.lane.b32.xlu0 %v5768, 64
      %v5805 = vpop.permute.xlu0 %5804
      %5806 = vrot.lane.b32.xlu0 %v5769, 64
      %v5807 = vpop.permute.xlu0 %5806
      %5808 = vrot.lane.b32.xlu0 %v5770, 64
      %v5809 = vpop.permute.xlu0 %5808
      %5810 = vrot.lane.b32.xlu0 %v5771, 64
      %v5811 = vpop.permute.xlu0 %5810
      %5812 = vrot.lane.b32.xlu0 %v5772, 64
      %v5813 = vpop.permute.xlu0 %5812
      %5814 = vrot.lane.b32.xlu0 %v5773, 64
      %v5815 = vpop.permute.xlu0 %5814
      %5816 = vrot.lane.b32.xlu0 %v5774, 64
      %v5817 = vpop.permute.xlu0 %5816
      %5818 = vrot.lane.b32.xlu0 %v5775, 64
      %v5819 = vpop.permute.xlu0 %5818
      %5820 = vrot.lane.b32.xlu0 %v5776, 64
      %v5821 = vpop.permute.xlu0 %5820
      %5822 = vrot.lane.b32.xlu0 %v5777, 64
      %v5823 = vpop.permute.xlu0 %5822
      %5824 = vrot.lane.b32.xlu0 %v5778, 64
      %v5825 = vpop.permute.xlu0 %5824
      %5826 = vrot.lane.b32.xlu0 %v5779, 64
      %v5827 = vpop.permute.xlu0 %5826
      %5828 = vrot.lane.b32.xlu0 %v5780, 64
      %v5829 = vpop.permute.xlu0 %5828
      %5830 = vrot.lane.b32.xlu0 %v5781, 64
      %v5831 = vpop.permute.xlu0 %5830
      %5832 = vrot.lane.b32.xlu0 %v5782, 64
      %v5833 = vpop.permute.xlu0 %5832
      %5834 = vrot.lane.b32.xlu0 %v5783, 64
      %v5835 = vpop.permute.xlu0 %5834
      %v5836 = vsel %vm5004, %v5805, 0
      %v5838 = vsel %vm5004, %v5807, 0
      %v5840 = vsel %vm5004, %v5809, 0
      %v5842 = vsel %vm5004, %v5811, 0
      %v5844 = vsel %vm5004, %v5813, 0
      %v5846 = vsel %vm5004, %v5815, 0
      %v5848 = vsel %vm5004, %v5817, 0
      %v5850 = vsel %vm5004, %v5819, 0
      %v5852 = vsel %vm5004, %v5821, 0
      %v5854 = vsel %vm5004, %v5823, 0
      %v5856 = vsel %vm5004, %v5825, 0
      %v5858 = vsel %vm5004, %v5827, 0
      %v5860 = vsel %vm5004, %v5829, 0
      %v5862 = vsel %vm5004, %v5831, 0
      %v5864 = vsel %vm5004, %v5833, 0
      %v5866 = vsel %vm5004, %v5835, 0
      %5868 = vmatprep.subr.mxu0 0.0
      %5869 = vmatpush1.msra.mxu0 0.0
      %5870 = vmatprep.subr.mxu0 0.0
      %5871 = vmatpush1.msra.mxu0 0.0
      %5872 = vmatprep.subr.mxu0 0.0
      %5873 = vmatpush1.msra.mxu0 0.0
      %5874 = vmatprep.subr.mxu0 0.0
      %5875 = vmatpush1.msra.mxu0 0.0
      %5876 = vmatprep.subr.mxu0 0.0
      %5877 = vmatpush1.msra.mxu0 0.0
      %5878 = vmatprep.subr.mxu0 0.0
      %5879 = vmatpush1.msra.mxu0 0.0
      %5880 = vmatprep.subr.mxu0 0.0
      %5881 = vmatpush1.msra.mxu0 0.0
      %5882 = vmatprep.subr.mxu0 0.0
      %5883 = vmatpush1.msra.mxu0 0.0
      %5884 = vmatprep.subr.mxu0 0.0
      %5885 = vmatpush1.msra.mxu0 0.0
      %5886 = vmatprep.subr.mxu0 0.0
      %5887 = vmatpush1.msra.mxu0 0.0
      %5888 = vmatprep.subr.mxu0 0.0
      %5889 = vmatpush1.msra.mxu0 0.0
      %5890 = vmatprep.subr.mxu0 0.0
      %5891 = vmatpush1.msra.mxu0 0.0
      %5892 = vmatprep.subr.mxu0 0.0
      %5893 = vmatpush1.msra.mxu0 %v4195
      %5894 = vmatprep.subr.mxu0 0.0
      %5895 = vmatpush1.msra.mxu0 %v4194
      %5896 = vmatprep.subr.mxu0 0.0
      %5897 = vmatpush1.msra.mxu0 %v4193
      %5898 = vmatprep.subr.mxu0 0.0
      %5899 = vmatpush1.msra.mxu0 %v4192
      %5900 = vmatprep.subr.mxu0 0.0
      %5901 = vmatpush2.msra.mxu0 0.0
      %5902 = vmatprep.subr.mxu0 0.0
      %5903 = vmatpush2.msra.mxu0 0.0
      %5904 = vmatprep.subr.mxu0 0.0
      %5905 = vmatpush2.msra.mxu0 0.0
      %5906 = vmatprep.subr.mxu0 0.0
      %5907 = vmatpush2.msra.mxu0 0.0
      %5908 = vmatprep.subr.mxu0 0.0
      %5909 = vmatpush2.msra.mxu0 0.0
      %5910 = vmatprep.subr.mxu0 0.0
      %5911 = vmatpush2.msra.mxu0 0.0
      %5912 = vmatprep.subr.mxu0 0.0
      %5913 = vmatpush2.msra.mxu0 0.0
      %5914 = vmatprep.subr.mxu0 0.0
      %5915 = vmatpush2.msra.mxu0 0.0
      %5916 = vmatprep.subr.mxu0 0.0
      %5917 = vmatpush2.msra.mxu0 0.0
      %5918 = vmatprep.subr.mxu0 0.0
      %5919 = vmatpush2.msra.mxu0 0.0
      %5920 = vmatprep.subr.mxu0 0.0
      %5921 = vmatpush2.msra.mxu0 0.0
      %5922 = vmatprep.subr.mxu0 0.0
      %5923 = vmatpush2.msra.mxu0 0.0
      %5924 = vmatprep.subr.mxu0 0.0
      %5925 = vmatpush2.msra.mxu0 0.0
      %5926 = vmatprep.subr.mxu0 0.0
      %5927 = vmatpush2.msra.mxu0 0.0
      %5928 = vmatprep.subr.mxu0 0.0
      %5929 = vmatpush2.msra.mxu0 0.0
      %5930 = vmatprep.subr.mxu0 0.0
      %5931 = vmatpush2.msra.mxu0 0.0
      %5932 = vmatprep.mubr.f32.mxu0 0.0
      %5933 = vmatmul.mubr.f32.gmra.mxu0 %v5836
      %v5934 = vpop.f32.mrf.mxu0
      %v5935 = vadd.f32 %v5787, %v5934
      %v5936 = vpop.f32.mrf.mxu0
      %5937 = vmatprep.mubr.f32.mxu0 0.0
      %5938 = vmatmul.mubr.f32.gmra.mxu0 %v5838
      %v5939 = vpop.f32.mrf.mxu0
      %v5940 = vadd.f32 %v5787, %v5939
      %v5941 = vpop.f32.mrf.mxu0
      %5942 = vmatprep.mubr.f32.mxu0 0.0
      %5943 = vmatmul.mubr.f32.gmra.mxu0 %v5840
      %v5944 = vpop.f32.mrf.mxu0
      %v5945 = vadd.f32 %v5787, %v5944
      %v5946 = vpop.f32.mrf.mxu0
      %5947 = vmatprep.mubr.f32.mxu0 0.0
      %5948 = vmatmul.mubr.f32.gmra.mxu0 %v5842
      %v5949 = vpop.f32.mrf.mxu0
      %v5950 = vadd.f32 %v5787, %v5949
      %v5951 = vpop.f32.mrf.mxu0
      %5952 = vmatprep.mubr.f32.mxu0 0.0
      %5953 = vmatmul.mubr.f32.gmra.mxu0 %v5844
      %v5954 = vpop.f32.mrf.mxu0
      %v5955 = vadd.f32 %v5787, %v5954
      %v5956 = vpop.f32.mrf.mxu0
      %5957 = vmatprep.mubr.f32.mxu0 0.0
      %5958 = vmatmul.mubr.f32.gmra.mxu0 %v5846
      %v5959 = vpop.f32.mrf.mxu0
      %v5960 = vadd.f32 %v5787, %v5959
      %v5961 = vpop.f32.mrf.mxu0
      %5962 = vmatprep.mubr.f32.mxu0 0.0
      %5963 = vmatmul.mubr.f32.gmra.mxu0 %v5848
      %v5964 = vpop.f32.mrf.mxu0
      %v5965 = vadd.f32 %v5787, %v5964
      %v5966 = vpop.f32.mrf.mxu0
      %5967 = vmatprep.mubr.f32.mxu0 0.0
      %5968 = vmatmul.mubr.f32.gmra.mxu0 %v5850
      %v5969 = vpop.f32.mrf.mxu0
      %v5970 = vadd.f32 %v5787, %v5969
      %v5971 = vpop.f32.mrf.mxu0
      %5972 = vmatprep.mubr.f32.mxu0 0.0
      %5973 = vmatmul.mubr.f32.gmra.mxu0 %v5852
      %v5974 = vpop.f32.mrf.mxu0
      %v5975 = vadd.f32 %v5787, %v5974
      %v5976 = vpop.f32.mrf.mxu0
      %5977 = vmatprep.mubr.f32.mxu0 0.0
      %5978 = vmatmul.mubr.f32.gmra.mxu0 %v5854
      %v5979 = vpop.f32.mrf.mxu0
      %v5980 = vadd.f32 %v5787, %v5979
      %v5981 = vpop.f32.mrf.mxu0
      %5982 = vmatprep.mubr.f32.mxu0 0.0
      %5983 = vmatmul.mubr.f32.gmra.mxu0 %v5856
      %v5984 = vpop.f32.mrf.mxu0
      %v5985 = vadd.f32 %v5787, %v5984
      %v5986 = vpop.f32.mrf.mxu0
      %5987 = vmatprep.mubr.f32.mxu0 0.0
      %5988 = vmatmul.mubr.f32.gmra.mxu0 %v5858
      %v5989 = vpop.f32.mrf.mxu0
      %v5990 = vadd.f32 %v5787, %v5989
      %v5991 = vpop.f32.mrf.mxu0
      %5992 = vmatprep.mubr.f32.mxu0 0.0
      %5993 = vmatmul.mubr.f32.gmra.mxu0 %v5860
      %v5994 = vpop.f32.mrf.mxu0
      %v5995 = vadd.f32 %v5787, %v5994
      %v5996 = vpop.f32.mrf.mxu0
      %5997 = vmatprep.mubr.f32.mxu0 0.0
      %5998 = vmatmul.mubr.f32.gmra.mxu0 %v5862
      %v5999 = vpop.f32.mrf.mxu0
      %v6000 = vadd.f32 %v5787, %v5999
      %v6001 = vpop.f32.mrf.mxu0
      %6002 = vmatprep.mubr.f32.mxu0 0.0
      %6003 = vmatmul.mubr.f32.gmra.mxu0 %v5864
      %v6004 = vpop.f32.mrf.mxu0
      %v6005 = vadd.f32 %v5787, %v6004
      %v6006 = vpop.f32.mrf.mxu0
      %6007 = vmatprep.mubr.f32.mxu0 0.0
      %6008 = vmatmul.mubr.f32.gmra.mxu0 %v5866
      %v6009 = vpop.f32.mrf.mxu0
      %v6010 = vadd.f32 %v5787, %v6009
      %v6011 = vpop.f32.mrf.mxu0
      %6012 = vdwg.mxu0
      %6029 = vrot.lane.b32.xlu0 %v4402, 32
      %v6030 = vpop.permute.xlu0 %6029
      %6031 = vrot.lane.b32.xlu0 %v4403, 32
      %v6032 = vpop.permute.xlu0 %6031
      %6033 = vrot.lane.b32.xlu0 %v4404, 32
      %v6034 = vpop.permute.xlu0 %6033
      %6035 = vrot.lane.b32.xlu0 %v4405, 32
      %v6036 = vpop.permute.xlu0 %6035
      %6037 = vrot.lane.b32.xlu0 %v4406, 32
      %v6038 = vpop.permute.xlu0 %6037
      %6039 = vrot.lane.b32.xlu0 %v4407, 32
      %v6040 = vpop.permute.xlu0 %6039
      %6041 = vrot.lane.b32.xlu0 %v4408, 32
      %v6042 = vpop.permute.xlu0 %6041
      %6043 = vrot.lane.b32.xlu0 %v4409, 32
      %v6044 = vpop.permute.xlu0 %6043
      %6045 = vrot.lane.b32.xlu0 %v4410, 32
      %v6046 = vpop.permute.xlu0 %6045
      %6047 = vrot.lane.b32.xlu0 %v4411, 32
      %v6048 = vpop.permute.xlu0 %6047
      %6049 = vrot.lane.b32.xlu0 %v4412, 32
      %v6050 = vpop.permute.xlu0 %6049
      %6051 = vrot.lane.b32.xlu0 %v4413, 32
      %v6052 = vpop.permute.xlu0 %6051
      %6053 = vrot.lane.b32.xlu0 %v4414, 32
      %v6054 = vpop.permute.xlu0 %6053
      %6055 = vrot.lane.b32.xlu0 %v4415, 32
      %v6056 = vpop.permute.xlu0 %6055
      %6057 = vrot.lane.b32.xlu0 %v4416, 32
      %v6058 = vpop.permute.xlu0 %6057
      %6059 = vrot.lane.b32.xlu0 %v4417, 32
      %v6060 = vpop.permute.xlu0 %6059
      %v6077 = vadd.f32 %v5935, %v6030
      %v6078 = vadd.f32 %v5940, %v6032
      %v6079 = vadd.f32 %v5945, %v6034
      %v6080 = vadd.f32 %v5950, %v6036
      %v6081 = vadd.f32 %v5955, %v6038
      %v6082 = vadd.f32 %v5960, %v6040
      %v6083 = vadd.f32 %v5965, %v6042
      %v6084 = vadd.f32 %v5970, %v6044
      %v6085 = vadd.f32 %v5975, %v6046
      %v6086 = vadd.f32 %v5980, %v6048
      %v6087 = vadd.f32 %v5985, %v6050
      %v6088 = vadd.f32 %v5990, %v6052
      %v6089 = vadd.f32 %v5995, %v6054
      %v6090 = vadd.f32 %v6000, %v6056
      %v6091 = vadd.f32 %v6005, %v6058
      %v6092 = vadd.f32 %v6010, %v6060
      %v6093 = vmax.f32 %v6077, 0.0
      %v6094 = vmax.f32 %v6078, 0.0
      %v6095 = vmax.f32 %v6079, 0.0
      %v6096 = vmax.f32 %v6080, 0.0
      %v6097 = vmax.f32 %v6081, 0.0
      %v6098 = vmax.f32 %v6082, 0.0
      %v6099 = vmax.f32 %v6083, 0.0
      %v6100 = vmax.f32 %v6084, 0.0
      %v6101 = vmax.f32 %v6085, 0.0
      %v6102 = vmax.f32 %v6086, 0.0
      %v6103 = vmax.f32 %v6087, 0.0
      %v6104 = vmax.f32 %v6088, 0.0
      %v6105 = vmax.f32 %v6089, 0.0
      %v6106 = vmax.f32 %v6090, 0.0
      %v6107 = vmax.f32 %v6091, 0.0
      %v6108 = vmax.f32 %v6092, 0.0
      %v6109 = vld [vmem:[%s4 + $0xe0] sm:$0xff]
      %v6110 = vld [vmem:[%s4 + $0xe8] sm:$0xff]
      %v6111 = vld [vmem:[%s4 + $0xf0] sm:$0xff]
      %v6112 = vld [vmem:[%s4 + $0xf8] sm:$0xff]
      %v6113 = vld [vmem:[%s4 + $0x100] sm:$0xff]
      %v6114 = vld [vmem:[%s4 + $0x108] sm:$0xff]
      %v6115 = vld [vmem:[%s4 + $0x110] sm:$0xff]
      %v6116 = vld [vmem:[%s4 + $0x118] sm:$0xff]
      %v6117 = vld [vmem:[%s4 + $0x120] sm:$0xff]
      %v6118 = vld [vmem:[%s4 + $0x128] sm:$0xff]
      %v6119 = vld [vmem:[%s4 + $0x130] sm:$0xff]
      %v6120 = vld [vmem:[%s4 + $0x138] sm:$0xff]
      %v6121 = vld [vmem:[%s4 + $0x140] sm:$0xff]
      %v6122 = vld [vmem:[%s4 + $0x148] sm:$0xff]
      %v6123 = vld [vmem:[%s4 + $0x150] sm:$0xff]
      %v6124 = vld [vmem:[%s4 + $0x158] sm:$0xff]
      %v6125 = vld [vmem:[%s4 + $0x160] sm:$0x1]
      %v6126 = vld [vmem:[%s4 + $0x161] sm:$0x1]
      %v6127 = vld [vmem:[%s4 + $0x162] sm:$0x1]
      %v6128 = vld [vmem:[%s4 + $0x163] sm:$0x1]
      %v6130 = vsel %vm5004, %v6093, 0
      %v6133 = vsel %vm5004, %v6094, 0
      %v6136 = vsel %vm5004, %v6095, 0
      %v6139 = vsel %vm5004, %v6096, 0
      %v6142 = vsel %vm5004, %v6097, 0
      %v6145 = vsel %vm5004, %v6098, 0
      %v6148 = vsel %vm5004, %v6099, 0
      %v6151 = vsel %vm5004, %v6100, 0
      %v6154 = vsel %vm5004, %v6101, 0
      %v6157 = vsel %vm5004, %v6102, 0
      %v6160 = vsel %vm5004, %v6103, 0
      %v6163 = vsel %vm5004, %v6104, 0
      %v6166 = vsel %vm5004, %v6105, 0
      %v6169 = vsel %vm5004, %v6106, 0
      %v6172 = vsel %vm5004, %v6107, 0
      %v6175 = vsel %vm5004, %v6108, 0
      %6177 = vmatprep.subr.mxu0 0.0
      %6178 = vmatpush1.msra.mxu0 0.0
      %6179 = vmatprep.subr.mxu0 0.0
      %6180 = vmatpush1.msra.mxu0 0.0
      %6181 = vmatprep.subr.mxu0 0.0
      %6182 = vmatpush1.msra.mxu0 0.0
      %6183 = vmatprep.subr.mxu0 0.0
      %6184 = vmatpush1.msra.mxu0 0.0
      %6185 = vmatprep.subr.mxu0 0.0
      %6186 = vmatpush1.msra.mxu0 0.0
      %6187 = vmatprep.subr.mxu0 0.0
      %6188 = vmatpush1.msra.mxu0 0.0
      %6189 = vmatprep.subr.mxu0 0.0
      %6190 = vmatpush1.msra.mxu0 0.0
      %6191 = vmatprep.subr.mxu0 0.0
      %6192 = vmatpush1.msra.mxu0 0.0
      %6193 = vmatprep.subr.mxu0 0.0
      %6194 = vmatpush1.msra.mxu0 0.0
      %6195 = vmatprep.subr.mxu0 0.0
      %6196 = vmatpush1.msra.mxu0 0.0
      %6197 = vmatprep.subr.mxu0 0.0
      %6198 = vmatpush1.msra.mxu0 0.0
      %6199 = vmatprep.subr.mxu0 0.0
      %6200 = vmatpush1.msra.mxu0 0.0
      %6201 = vmatprep.subr.mxu0 0.0
      %6202 = vmatpush1.msra.mxu0 %v6112
      %6203 = vmatprep.subr.mxu0 0.0
      %6204 = vmatpush1.msra.mxu0 %v6111
      %6205 = vmatprep.subr.mxu0 0.0
      %6206 = vmatpush1.msra.mxu0 %v6110
      %6207 = vmatprep.subr.mxu0 0.0
      %6208 = vmatpush1.msra.mxu0 %v6109
      %6209 = vmatprep.subr.mxu0 0.0
      %6210 = vmatpush2.msra.mxu0 0.0
      %6211 = vmatprep.subr.mxu0 0.0
      %6212 = vmatpush2.msra.mxu0 0.0
      %6213 = vmatprep.subr.mxu0 0.0
      %6214 = vmatpush2.msra.mxu0 0.0
      %6215 = vmatprep.subr.mxu0 0.0
      %6216 = vmatpush2.msra.mxu0 0.0
      %6217 = vmatprep.subr.mxu0 0.0
      %6218 = vmatpush2.msra.mxu0 0.0
      %6219 = vmatprep.subr.mxu0 0.0
      %6220 = vmatpush2.msra.mxu0 0.0
      %6221 = vmatprep.subr.mxu0 0.0
      %6222 = vmatpush2.msra.mxu0 0.0
      %6223 = vmatprep.subr.mxu0 0.0
      %6224 = vmatpush2.msra.mxu0 0.0
      %6225 = vmatprep.subr.mxu0 0.0
      %6226 = vmatpush2.msra.mxu0 0.0
      %6227 = vmatprep.subr.mxu0 0.0
      %6228 = vmatpush2.msra.mxu0 0.0
      %6229 = vmatprep.subr.mxu0 0.0
      %6230 = vmatpush2.msra.mxu0 0.0
      %6231 = vmatprep.subr.mxu0 0.0
      %6232 = vmatpush2.msra.mxu0 0.0
      %6233 = vmatprep.subr.mxu0 0.0
      %6234 = vmatpush2.msra.mxu0 0.0
      %6235 = vmatprep.subr.mxu0 0.0
      %6236 = vmatpush2.msra.mxu0 0.0
      %6237 = vmatprep.subr.mxu0 0.0
      %6238 = vmatpush2.msra.mxu0 0.0
      %6239 = vmatprep.subr.mxu0 0.0
      %6240 = vmatpush2.msra.mxu0 0.0
      %6241 = vmatprep.mubr.f32.mxu0 0.0
      %6242 = vmatmul.mubr.f32.gmra.mxu0 %v6130
      %v6243 = vpop.f32.mrf.mxu0
      %v6244 = vadd.f32 0.0, %v6243
      %v6245 = vpop.f32.mrf.mxu0
      %6246 = vmatprep.mubr.f32.mxu0 0.0
      %6247 = vmatmul.mubr.f32.gmra.mxu0 %v6133
      %v6248 = vpop.f32.mrf.mxu0
      %v6249 = vadd.f32 0.0, %v6248
      %v6250 = vpop.f32.mrf.mxu0
      %6251 = vmatprep.mubr.f32.mxu0 0.0
      %6252 = vmatmul.mubr.f32.gmra.mxu0 %v6136
      %v6253 = vpop.f32.mrf.mxu0
      %v6254 = vadd.f32 0.0, %v6253
      %v6255 = vpop.f32.mrf.mxu0
      %6256 = vmatprep.mubr.f32.mxu0 0.0
      %6257 = vmatmul.mubr.f32.gmra.mxu0 %v6139
      %v6258 = vpop.f32.mrf.mxu0
      %v6259 = vadd.f32 0.0, %v6258
      %v6260 = vpop.f32.mrf.mxu0
      %6261 = vmatprep.mubr.f32.mxu0 0.0
      %6262 = vmatmul.mubr.f32.gmra.mxu0 %v6142
      %v6263 = vpop.f32.mrf.mxu0
      %v6264 = vadd.f32 0.0, %v6263
      %v6265 = vpop.f32.mrf.mxu0
      %6266 = vmatprep.mubr.f32.mxu0 0.0
      %6267 = vmatmul.mubr.f32.gmra.mxu0 %v6145
      %v6268 = vpop.f32.mrf.mxu0
      %v6269 = vadd.f32 0.0, %v6268
      %v6270 = vpop.f32.mrf.mxu0
      %6271 = vmatprep.mubr.f32.mxu0 0.0
      %6272 = vmatmul.mubr.f32.gmra.mxu0 %v6148
      %v6273 = vpop.f32.mrf.mxu0
      %v6274 = vadd.f32 0.0, %v6273
      %v6275 = vpop.f32.mrf.mxu0
      %6276 = vmatprep.mubr.f32.mxu0 0.0
      %6277 = vmatmul.mubr.f32.gmra.mxu0 %v6151
      %v6278 = vpop.f32.mrf.mxu0
      %v6279 = vadd.f32 0.0, %v6278
      %v6280 = vpop.f32.mrf.mxu0
      %6281 = vmatprep.mubr.f32.mxu0 0.0
      %6282 = vmatmul.mubr.f32.gmra.mxu0 %v6154
      %v6283 = vpop.f32.mrf.mxu0
      %v6284 = vadd.f32 0.0, %v6283
      %v6285 = vpop.f32.mrf.mxu0
      %6286 = vmatprep.mubr.f32.mxu0 0.0
      %6287 = vmatmul.mubr.f32.gmra.mxu0 %v6157
      %v6288 = vpop.f32.mrf.mxu0
      %v6289 = vadd.f32 0.0, %v6288
      %v6290 = vpop.f32.mrf.mxu0
      %6291 = vmatprep.mubr.f32.mxu0 0.0
      %6292 = vmatmul.mubr.f32.gmra.mxu0 %v6160
      %v6293 = vpop.f32.mrf.mxu0
      %v6294 = vadd.f32 0.0, %v6293
      %v6295 = vpop.f32.mrf.mxu0
      %6296 = vmatprep.mubr.f32.mxu0 0.0
      %6297 = vmatmul.mubr.f32.gmra.mxu0 %v6163
      %v6298 = vpop.f32.mrf.mxu0
      %v6299 = vadd.f32 0.0, %v6298
      %v6300 = vpop.f32.mrf.mxu0
      %6301 = vmatprep.mubr.f32.mxu0 0.0
      %6302 = vmatmul.mubr.f32.gmra.mxu0 %v6166
      %v6303 = vpop.f32.mrf.mxu0
      %v6304 = vadd.f32 0.0, %v6303
      %v6305 = vpop.f32.mrf.mxu0
      %6306 = vmatprep.mubr.f32.mxu0 0.0
      %6307 = vmatmul.mubr.f32.gmra.mxu0 %v6169
      %v6308 = vpop.f32.mrf.mxu0
      %v6309 = vadd.f32 0.0, %v6308
      %v6310 = vpop.f32.mrf.mxu0
      %6311 = vmatprep.mubr.f32.mxu0 0.0
      %6312 = vmatmul.mubr.f32.gmra.mxu0 %v6172
      %v6313 = vpop.f32.mrf.mxu0
      %v6314 = vadd.f32 0.0, %v6313
      %v6315 = vpop.f32.mrf.mxu0
      %6316 = vmatprep.mubr.f32.mxu0 0.0
      %6317 = vmatmul.mubr.f32.gmra.mxu0 %v6175
      %v6318 = vpop.f32.mrf.mxu0
      %v6319 = vadd.f32 0.0, %v6318
      %v6320 = vpop.f32.mrf.mxu0
      %6321 = vdwg.mxu0
      %v6322 = vld [vmem:[%s4 + $0x164] sm:$0x1]
      %v6323 = vlaneseq
      %v6324 = vshrl.u32 %v6323, 7
      %v6325 = vsub.s32 0, %v6324
      %v6326 = vrot.slane %v6322, %v6325
      %6328 = vrot.lane.b32.xlu0 %v6326, 96
      %v6329 = vpop.permute.xlu0 %6328
      %v6331 = vadd.f32 %v6244, %v6329
      %v6332 = vadd.f32 %v6249, %v6329
      %v6333 = vadd.f32 %v6254, %v6329
      %v6334 = vadd.f32 %v6259, %v6329
      %v6335 = vadd.f32 %v6264, %v6329
      %v6336 = vadd.f32 %v6269, %v6329
      %v6337 = vadd.f32 %v6274, %v6329
      %v6338 = vadd.f32 %v6279, %v6329
      %v6339 = vadd.f32 %v6284, %v6329
      %v6340 = vadd.f32 %v6289, %v6329
      %v6341 = vadd.f32 %v6294, %v6329
      %v6342 = vadd.f32 %v6299, %v6329
      %v6343 = vadd.f32 %v6304, %v6329
      %v6344 = vadd.f32 %v6309, %v6329
      %v6345 = vadd.f32 %v6314, %v6329
      %v6346 = vadd.f32 %v6319, %v6329
      %6363 = vrot.lane.b32.xlu0 %v6244, 96
      %v6364 = vpop.permute.xlu0 %6363
      %6365 = vrot.lane.b32.xlu0 %v6249, 96
      %v6366 = vpop.permute.xlu0 %6365
      %6367 = vrot.lane.b32.xlu0 %v6254, 96
      %v6368 = vpop.permute.xlu0 %6367
      %6369 = vrot.lane.b32.xlu0 %v6259, 96
      %v6370 = vpop.permute.xlu0 %6369
      %6371 = vrot.lane.b32.xlu0 %v6264, 96
      %v6372 = vpop.permute.xlu0 %6371
      %6373 = vrot.lane.b32.xlu0 %v6269, 96
      %v6374 = vpop.permute.xlu0 %6373
      %6375 = vrot.lane.b32.xlu0 %v6274, 96
      %v6376 = vpop.permute.xlu0 %6375
      %6377 = vrot.lane.b32.xlu0 %v6279, 96
      %v6378 = vpop.permute.xlu0 %6377
      %6379 = vrot.lane.b32.xlu0 %v6284, 96
      %v6380 = vpop.permute.xlu0 %6379
      %6381 = vrot.lane.b32.xlu0 %v6289, 96
      %v6382 = vpop.permute.xlu0 %6381
      %6383 = vrot.lane.b32.xlu0 %v6294, 96
      %v6384 = vpop.permute.xlu0 %6383
      %6385 = vrot.lane.b32.xlu0 %v6299, 96
      %v6386 = vpop.permute.xlu0 %6385
      %6387 = vrot.lane.b32.xlu0 %v6304, 96
      %v6388 = vpop.permute.xlu0 %6387
      %6389 = vrot.lane.b32.xlu0 %v6309, 96
      %v6390 = vpop.permute.xlu0 %6389
      %6391 = vrot.lane.b32.xlu0 %v6314, 96
      %v6392 = vpop.permute.xlu0 %6391
      %6393 = vrot.lane.b32.xlu0 %v6319, 96
      %v6394 = vpop.permute.xlu0 %6393
      %6411 = vmatprep.subr.mxu0 0.0
      %6412 = vmatpush1.msra.mxu0 %v6394
      %6413 = vmatprep.subr.mxu0 0.0
      %6414 = vmatpush1.msra.mxu0 %v6392
      %6415 = vmatprep.subr.mxu0 0.0
      %6416 = vmatpush1.msra.mxu0 %v6390
      %6417 = vmatprep.subr.mxu0 0.0
      %6418 = vmatpush1.msra.mxu0 %v6388
      %6419 = vmatprep.subr.mxu0 0.0
      %6420 = vmatpush1.msra.mxu0 %v6386
      %6421 = vmatprep.subr.mxu0 0.0
      %6422 = vmatpush1.msra.mxu0 %v6384
      %6423 = vmatprep.subr.mxu0 0.0
      %6424 = vmatpush1.msra.mxu0 %v6382
      %6425 = vmatprep.subr.mxu0 0.0
      %6426 = vmatpush1.msra.mxu0 %v6380
      %6427 = vmatprep.subr.mxu0 0.0
      %6428 = vmatpush1.msra.mxu0 %v6378
      %6429 = vmatprep.subr.mxu0 0.0
      %6430 = vmatpush1.msra.mxu0 %v6376
      %6431 = vmatprep.subr.mxu0 0.0
      %6432 = vmatpush1.msra.mxu0 %v6374
      %6433 = vmatprep.subr.mxu0 0.0
      %6434 = vmatpush1.msra.mxu0 %v6372
      %6435 = vmatprep.subr.mxu0 0.0
      %6436 = vmatpush1.msra.mxu0 %v6370
      %6437 = vmatprep.subr.mxu0 0.0
      %6438 = vmatpush1.msra.mxu0 %v6368
      %6439 = vmatprep.subr.mxu0 0.0
      %6440 = vmatpush1.msra.mxu0 %v6366
      %6441 = vmatprep.subr.mxu0 0.0
      %6442 = vmatpush1.msra.mxu0 %v6364
      %6443 = vmatprep.subr.mxu0 0.0
      %6444 = vmatpush2.msra.mxu0 0.0
      %6445 = vmatprep.subr.mxu0 0.0
      %6446 = vmatpush2.msra.mxu0 0.0
      %6447 = vmatprep.subr.mxu0 0.0
      %6448 = vmatpush2.msra.mxu0 0.0
      %6449 = vmatprep.subr.mxu0 0.0
      %6450 = vmatpush2.msra.mxu0 0.0
      %6451 = vmatprep.subr.mxu0 0.0
      %6452 = vmatpush2.msra.mxu0 0.0
      %6453 = vmatprep.subr.mxu0 0.0
      %6454 = vmatpush2.msra.mxu0 0.0
      %6455 = vmatprep.subr.mxu0 0.0
      %6456 = vmatpush2.msra.mxu0 0.0
      %6457 = vmatprep.subr.mxu0 0.0
      %6458 = vmatpush2.msra.mxu0 0.0
      %6459 = vmatprep.subr.mxu0 0.0
      %6460 = vmatpush2.msra.mxu0 0.0
      %6461 = vmatprep.subr.mxu0 0.0
      %6462 = vmatpush2.msra.mxu0 0.0
      %6463 = vmatprep.subr.mxu0 0.0
      %6464 = vmatpush2.msra.mxu0 0.0
      %6465 = vmatprep.subr.mxu0 0.0
      %6466 = vmatpush2.msra.mxu0 0.0
      %6467 = vmatprep.subr.mxu0 0.0
      %6468 = vmatpush2.msra.mxu0 0.0
      %6469 = vmatprep.subr.mxu0 0.0
      %6470 = vmatpush2.msra.mxu0 0.0
      %6471 = vmatprep.subr.mxu0 0.0
      %6472 = vmatpush2.msra.mxu0 0.0
      %6473 = vmatprep.subr.mxu0 0.0
      %6474 = vmatpush2.msra.mxu0 0.0
      %6475 = vmatprep.mubr.f32.mxu0 0.0
      %6476 = vmatmul.mubr.f32.gmra.mxu0 %v260
      %v6477 = vpop.f32.mrf.mxu0
      %v6478 = vadd.f32 0.0, %v6477
      %v6479 = vpop.f32.mrf.mxu0
      %6480 = vmatprep.mubr.f32.mxu0 0.0
      %6481 = vmatmul.mubr.f32.gmra.mxu0 %v261
      %v6482 = vpop.f32.mrf.mxu0
      %v6483 = vadd.f32 0.0, %v6482
      %v6484 = vpop.f32.mrf.mxu0
      %6485 = vmatprep.mubr.f32.mxu0 0.0
      %6486 = vmatmul.mubr.f32.gmra.mxu0 %v262
      %v6487 = vpop.f32.mrf.mxu0
      %v6488 = vadd.f32 0.0, %v6487
      %v6489 = vpop.f32.mrf.mxu0
      %6490 = vmatprep.mubr.f32.mxu0 0.0
      %6491 = vmatmul.mubr.f32.gmra.mxu0 %v263
      %v6492 = vpop.f32.mrf.mxu0
      %v6493 = vadd.f32 0.0, %v6492
      %v6494 = vpop.f32.mrf.mxu0
      %6495 = vmatprep.mubr.f32.mxu0 0.0
      %6496 = vmatmul.mubr.f32.gmra.mxu0 %v264
      %v6497 = vpop.f32.mrf.mxu0
      %v6498 = vadd.f32 0.0, %v6497
      %v6499 = vpop.f32.mrf.mxu0
      %6500 = vmatprep.mubr.f32.mxu0 0.0
      %6501 = vmatmul.mubr.f32.gmra.mxu0 %v265
      %v6502 = vpop.f32.mrf.mxu0
      %v6503 = vadd.f32 0.0, %v6502
      %v6504 = vpop.f32.mrf.mxu0
      %6505 = vmatprep.mubr.f32.mxu0 0.0
      %6506 = vmatmul.mubr.f32.gmra.mxu0 %v266
      %v6507 = vpop.f32.mrf.mxu0
      %v6508 = vadd.f32 0.0, %v6507
      %v6509 = vpop.f32.mrf.mxu0
      %6510 = vmatprep.mubr.f32.mxu0 0.0
      %6511 = vmatmul.mubr.f32.gmra.mxu0 %v267
      %v6512 = vpop.f32.mrf.mxu0
      %v6513 = vadd.f32 0.0, %v6512
      %v6514 = vpop.f32.mrf.mxu0
      %6515 = vmatprep.mubr.f32.mxu0 0.0
      %6516 = vmatmul.mubr.f32.gmra.mxu0 %v268
      %v6517 = vpop.f32.mrf.mxu0
      %v6518 = vadd.f32 0.0, %v6517
      %v6519 = vpop.f32.mrf.mxu0
      %6520 = vmatprep.mubr.f32.mxu0 0.0
      %6521 = vmatmul.mubr.f32.gmra.mxu0 %v269
      %v6522 = vpop.f32.mrf.mxu0
      %v6523 = vadd.f32 0.0, %v6522
      %v6524 = vpop.f32.mrf.mxu0
      %6525 = vmatprep.mubr.f32.mxu0 0.0
      %6526 = vmatmul.mubr.f32.gmra.mxu0 %v270
      %v6527 = vpop.f32.mrf.mxu0
      %v6528 = vadd.f32 0.0, %v6527
      %v6529 = vpop.f32.mrf.mxu0
      %6530 = vmatprep.mubr.f32.mxu0 0.0
      %6531 = vmatmul.mubr.f32.gmra.mxu0 %v271
      %v6532 = vpop.f32.mrf.mxu0
      %v6533 = vadd.f32 0.0, %v6532
      %v6534 = vpop.f32.mrf.mxu0
      %6535 = vmatprep.mubr.f32.mxu0 0.0
      %6536 = vmatmul.mubr.f32.gmra.mxu0 %v272
      %v6537 = vpop.f32.mrf.mxu0
      %v6538 = vadd.f32 0.0, %v6537
      %v6539 = vpop.f32.mrf.mxu0
      %6540 = vmatprep.mubr.f32.mxu0 0.0
      %6541 = vmatmul.mubr.f32.gmra.mxu0 %v273
      %v6542 = vpop.f32.mrf.mxu0
      %v6543 = vadd.f32 0.0, %v6542
      %v6544 = vpop.f32.mrf.mxu0
      %6545 = vmatprep.mubr.f32.mxu0 0.0
      %6546 = vmatmul.mubr.f32.gmra.mxu0 %v274
      %v6547 = vpop.f32.mrf.mxu0
      %v6548 = vadd.f32 0.0, %v6547
      %v6549 = vpop.f32.mrf.mxu0
      %6550 = vmatprep.mubr.f32.mxu0 0.0
      %6551 = vmatmul.mubr.f32.gmra.mxu0 %v275
      %v6552 = vpop.f32.mrf.mxu0
      %v6553 = vadd.f32 0.0, %v6552
      %v6554 = vpop.f32.mrf.mxu0
      %6555 = vmatprep.mubr.f32.mxu0 0.0
      %6556 = vmatmul.mubr.f32.gmra.mxu0 %v276
      %v6557 = vpop.f32.mrf.mxu0
      %v6558 = vadd.f32 0.0, %v6557
      %v6559 = vpop.f32.mrf.mxu0
      %6560 = vmatprep.mubr.f32.mxu0 0.0
      %6561 = vmatmul.mubr.f32.gmra.mxu0 %v277
      %v6562 = vpop.f32.mrf.mxu0
      %v6563 = vadd.f32 0.0, %v6562
      %v6564 = vpop.f32.mrf.mxu0
      %6565 = vmatprep.mubr.f32.mxu0 0.0
      %6566 = vmatmul.mubr.f32.gmra.mxu0 %v278
      %v6567 = vpop.f32.mrf.mxu0
      %v6568 = vadd.f32 0.0, %v6567
      %v6569 = vpop.f32.mrf.mxu0
      %6570 = vmatprep.mubr.f32.mxu0 0.0
      %6571 = vmatmul.mubr.f32.gmra.mxu0 %v279
      %v6572 = vpop.f32.mrf.mxu0
      %v6573 = vadd.f32 0.0, %v6572
      %v6574 = vpop.f32.mrf.mxu0
      %6575 = vmatprep.mubr.f32.mxu0 0.0
      %6576 = vmatmul.mubr.f32.gmra.mxu0 %v280
      %v6577 = vpop.f32.mrf.mxu0
      %v6578 = vadd.f32 0.0, %v6577
      %v6579 = vpop.f32.mrf.mxu0
      %6580 = vmatprep.mubr.f32.mxu0 0.0
      %6581 = vmatmul.mubr.f32.gmra.mxu0 %v281
      %v6582 = vpop.f32.mrf.mxu0
      %v6583 = vadd.f32 0.0, %v6582
      %v6584 = vpop.f32.mrf.mxu0
      %6585 = vmatprep.mubr.f32.mxu0 0.0
      %6586 = vmatmul.mubr.f32.gmra.mxu0 %v282
      %v6587 = vpop.f32.mrf.mxu0
      %v6588 = vadd.f32 0.0, %v6587
      %v6589 = vpop.f32.mrf.mxu0
      %6590 = vmatprep.mubr.f32.mxu0 0.0
      %6591 = vmatmul.mubr.f32.gmra.mxu0 %v283
      %v6592 = vpop.f32.mrf.mxu0
      %v6593 = vadd.f32 0.0, %v6592
      %v6594 = vpop.f32.mrf.mxu0
      %6595 = vmatprep.mubr.f32.mxu0 0.0
      %6596 = vmatmul.mubr.f32.gmra.mxu0 %v284
      %v6597 = vpop.f32.mrf.mxu0
      %v6598 = vadd.f32 0.0, %v6597
      %v6599 = vpop.f32.mrf.mxu0
      %6600 = vmatprep.mubr.f32.mxu0 0.0
      %6601 = vmatmul.mubr.f32.gmra.mxu0 %v285
      %v6602 = vpop.f32.mrf.mxu0
      %v6603 = vadd.f32 0.0, %v6602
      %v6604 = vpop.f32.mrf.mxu0
      %6605 = vmatprep.mubr.f32.mxu0 0.0
      %6606 = vmatmul.mubr.f32.gmra.mxu0 %v286
      %v6607 = vpop.f32.mrf.mxu0
      %v6608 = vadd.f32 0.0, %v6607
      %v6609 = vpop.f32.mrf.mxu0
      %6610 = vmatprep.mubr.f32.mxu0 0.0
      %6611 = vmatmul.mubr.f32.gmra.mxu0 %v287
      %v6612 = vpop.f32.mrf.mxu0
      %v6613 = vadd.f32 0.0, %v6612
      %v6614 = vpop.f32.mrf.mxu0
      %6615 = vmatprep.mubr.f32.mxu0 0.0
      %6616 = vmatmul.mubr.f32.gmra.mxu0 %v288
      %v6617 = vpop.f32.mrf.mxu0
      %v6618 = vadd.f32 0.0, %v6617
      %v6619 = vpop.f32.mrf.mxu0
      %6620 = vmatprep.mubr.f32.mxu0 0.0
      %6621 = vmatmul.mubr.f32.gmra.mxu0 %v289
      %v6622 = vpop.f32.mrf.mxu0
      %v6623 = vadd.f32 0.0, %v6622
      %v6624 = vpop.f32.mrf.mxu0
      %6625 = vmatprep.mubr.f32.mxu0 0.0
      %6626 = vmatmul.mubr.f32.gmra.mxu0 %v290
      %v6627 = vpop.f32.mrf.mxu0
      %v6628 = vadd.f32 0.0, %v6627
      %v6629 = vpop.f32.mrf.mxu0
      %6630 = vmatprep.mubr.f32.mxu0 0.0
      %6631 = vmatmul.mubr.f32.gmra.mxu0 %v291
      %v6632 = vpop.f32.mrf.mxu0
      %v6633 = vadd.f32 0.0, %v6632
      %v6634 = vpop.f32.mrf.mxu0
      %6635 = vdwg.mxu0
      %6636 = vmatprep.subr.mxu0 0.0
      %6637 = vmatpush1.msra.mxu0 %v6319
      %6638 = vmatprep.subr.mxu0 0.0
      %6639 = vmatpush1.msra.mxu0 %v6314
      %6640 = vmatprep.subr.mxu0 0.0
      %6641 = vmatpush1.msra.mxu0 %v6309
      %6642 = vmatprep.subr.mxu0 0.0
      %6643 = vmatpush1.msra.mxu0 %v6304
      %6644 = vmatprep.subr.mxu0 0.0
      %6645 = vmatpush1.msra.mxu0 %v6299
      %6646 = vmatprep.subr.mxu0 0.0
      %6647 = vmatpush1.msra.mxu0 %v6294
      %6648 = vmatprep.subr.mxu0 0.0
      %6649 = vmatpush1.msra.mxu0 %v6289
      %6650 = vmatprep.subr.mxu0 0.0
      %6651 = vmatpush1.msra.mxu0 %v6284
      %6652 = vmatprep.subr.mxu0 0.0
      %6653 = vmatpush1.msra.mxu0 %v6279
      %6654 = vmatprep.subr.mxu0 0.0
      %6655 = vmatpush1.msra.mxu0 %v6274
      %6656 = vmatprep.subr.mxu0 0.0
      %6657 = vmatpush1.msra.mxu0 %v6269
      %6658 = vmatprep.subr.mxu0 0.0
      %6659 = vmatpush1.msra.mxu0 %v6264
      %6660 = vmatprep.subr.mxu0 0.0
      %6661 = vmatpush1.msra.mxu0 %v6259
      %6662 = vmatprep.subr.mxu0 0.0
      %6663 = vmatpush1.msra.mxu0 %v6254
      %6664 = vmatprep.subr.mxu0 0.0
      %6665 = vmatpush1.msra.mxu0 %v6249
      %6666 = vmatprep.subr.mxu0 0.0
      %6667 = vmatpush1.msra.mxu0 %v6244
      %6668 = vmatprep.subr.mxu0 0.0
      %6669 = vmatpush2.msra.mxu0 0.0
      %6670 = vmatprep.subr.mxu0 0.0
      %6671 = vmatpush2.msra.mxu0 0.0
      %6672 = vmatprep.subr.mxu0 0.0
      %6673 = vmatpush2.msra.mxu0 0.0
      %6674 = vmatprep.subr.mxu0 0.0
      %6675 = vmatpush2.msra.mxu0 0.0
      %6676 = vmatprep.subr.mxu0 0.0
      %6677 = vmatpush2.msra.mxu0 0.0
      %6678 = vmatprep.subr.mxu0 0.0
      %6679 = vmatpush2.msra.mxu0 0.0
      %6680 = vmatprep.subr.mxu0 0.0
      %6681 = vmatpush2.msra.mxu0 0.0
      %6682 = vmatprep.subr.mxu0 0.0
      %6683 = vmatpush2.msra.mxu0 0.0
      %6684 = vmatprep.subr.mxu0 0.0
      %6685 = vmatpush2.msra.mxu0 0.0
      %6686 = vmatprep.subr.mxu0 0.0
      %6687 = vmatpush2.msra.mxu0 0.0
      %6688 = vmatprep.subr.mxu0 0.0
      %6689 = vmatpush2.msra.mxu0 0.0
      %6690 = vmatprep.subr.mxu0 0.0
      %6691 = vmatpush2.msra.mxu0 0.0
      %6692 = vmatprep.subr.mxu0 0.0
      %6693 = vmatpush2.msra.mxu0 0.0
      %6694 = vmatprep.subr.mxu0 0.0
      %6695 = vmatpush2.msra.mxu0 0.0
      %6696 = vmatprep.subr.mxu0 0.0
      %6697 = vmatpush2.msra.mxu0 0.0
      %6698 = vmatprep.subr.mxu0 0.0
      %6699 = vmatpush2.msra.mxu0 0.0
      %6700 = vmatprep.mubr.f32.mxu0 0.0
      %6701 = vmatmul.mubr.f32.gmra.mxu0 %v228
      %v6702 = vpop.f32.mrf.mxu0
      %v6703 = vadd.f32 %v6478, %v6702
      %v6704 = vpop.f32.mrf.mxu0
      %6705 = vmatprep.mubr.f32.mxu0 0.0
      %6706 = vmatmul.mubr.f32.gmra.mxu0 %v229
      %v6707 = vpop.f32.mrf.mxu0
      %v6708 = vadd.f32 %v6483, %v6707
      %v6709 = vpop.f32.mrf.mxu0
      %6710 = vmatprep.mubr.f32.mxu0 0.0
      %6711 = vmatmul.mubr.f32.gmra.mxu0 %v230
      %v6712 = vpop.f32.mrf.mxu0
      %v6713 = vadd.f32 %v6488, %v6712
      %v6714 = vpop.f32.mrf.mxu0
      %6715 = vmatprep.mubr.f32.mxu0 0.0
      %6716 = vmatmul.mubr.f32.gmra.mxu0 %v231
      %v6717 = vpop.f32.mrf.mxu0
      %v6718 = vadd.f32 %v6493, %v6717
      %v6719 = vpop.f32.mrf.mxu0
      %6720 = vmatprep.mubr.f32.mxu0 0.0
      %6721 = vmatmul.mubr.f32.gmra.mxu0 %v232
      %v6722 = vpop.f32.mrf.mxu0
      %v6723 = vadd.f32 %v6498, %v6722
      %v6724 = vpop.f32.mrf.mxu0
      %6725 = vmatprep.mubr.f32.mxu0 0.0
      %6726 = vmatmul.mubr.f32.gmra.mxu0 %v233
      %v6727 = vpop.f32.mrf.mxu0
      %v6728 = vadd.f32 %v6503, %v6727
      %v6729 = vpop.f32.mrf.mxu0
      %6730 = vmatprep.mubr.f32.mxu0 0.0
      %6731 = vmatmul.mubr.f32.gmra.mxu0 %v234
      %v6732 = vpop.f32.mrf.mxu0
      %v6733 = vadd.f32 %v6508, %v6732
      %v6734 = vpop.f32.mrf.mxu0
      %6735 = vmatprep.mubr.f32.mxu0 0.0
      %6736 = vmatmul.mubr.f32.gmra.mxu0 %v235
      %v6737 = vpop.f32.mrf.mxu0
      %v6738 = vadd.f32 %v6513, %v6737
      %v6739 = vpop.f32.mrf.mxu0
      %6740 = vmatprep.mubr.f32.mxu0 0.0
      %6741 = vmatmul.mubr.f32.gmra.mxu0 %v236
      %v6742 = vpop.f32.mrf.mxu0
      %v6743 = vadd.f32 %v6518, %v6742
      %v6744 = vpop.f32.mrf.mxu0
      %6745 = vmatprep.mubr.f32.mxu0 0.0
      %6746 = vmatmul.mubr.f32.gmra.mxu0 %v237
      %v6747 = vpop.f32.mrf.mxu0
      %v6748 = vadd.f32 %v6523, %v6747
      %v6749 = vpop.f32.mrf.mxu0
      %6750 = vmatprep.mubr.f32.mxu0 0.0
      %6751 = vmatmul.mubr.f32.gmra.mxu0 %v238
      %v6752 = vpop.f32.mrf.mxu0
      %v6753 = vadd.f32 %v6528, %v6752
      %v6754 = vpop.f32.mrf.mxu0
      %6755 = vmatprep.mubr.f32.mxu0 0.0
      %6756 = vmatmul.mubr.f32.gmra.mxu0 %v239
      %v6757 = vpop.f32.mrf.mxu0
      %v6758 = vadd.f32 %v6533, %v6757
      %v6759 = vpop.f32.mrf.mxu0
      %6760 = vmatprep.mubr.f32.mxu0 0.0
      %6761 = vmatmul.mubr.f32.gmra.mxu0 %v240
      %v6762 = vpop.f32.mrf.mxu0
      %v6763 = vadd.f32 %v6538, %v6762
      %v6764 = vpop.f32.mrf.mxu0
      %6765 = vmatprep.mubr.f32.mxu0 0.0
      %6766 = vmatmul.mubr.f32.gmra.mxu0 %v241
      %v6767 = vpop.f32.mrf.mxu0
      %v6768 = vadd.f32 %v6543, %v6767
      %v6769 = vpop.f32.mrf.mxu0
      %6770 = vmatprep.mubr.f32.mxu0 0.0
      %6771 = vmatmul.mubr.f32.gmra.mxu0 %v242
      %v6772 = vpop.f32.mrf.mxu0
      %v6773 = vadd.f32 %v6548, %v6772
      %v6774 = vpop.f32.mrf.mxu0
      %6775 = vmatprep.mubr.f32.mxu0 0.0
      %6776 = vmatmul.mubr.f32.gmra.mxu0 %v243
      %v6777 = vpop.f32.mrf.mxu0
      %v6778 = vadd.f32 %v6553, %v6777
      %v6779 = vpop.f32.mrf.mxu0
      %6780 = vmatprep.mubr.f32.mxu0 0.0
      %6781 = vmatmul.mubr.f32.gmra.mxu0 %v244
      %v6782 = vpop.f32.mrf.mxu0
      %v6783 = vadd.f32 %v6558, %v6782
      %v6784 = vpop.f32.mrf.mxu0
      %6785 = vmatprep.mubr.f32.mxu0 0.0
      %6786 = vmatmul.mubr.f32.gmra.mxu0 %v245
      %v6787 = vpop.f32.mrf.mxu0
      %v6788 = vadd.f32 %v6563, %v6787
      %v6789 = vpop.f32.mrf.mxu0
      %6790 = vmatprep.mubr.f32.mxu0 0.0
      %6791 = vmatmul.mubr.f32.gmra.mxu0 %v246
      %v6792 = vpop.f32.mrf.mxu0
      %v6793 = vadd.f32 %v6568, %v6792
      %v6794 = vpop.f32.mrf.mxu0
      %6795 = vmatprep.mubr.f32.mxu0 0.0
      %6796 = vmatmul.mubr.f32.gmra.mxu0 %v247
      %v6797 = vpop.f32.mrf.mxu0
      %v6798 = vadd.f32 %v6573, %v6797
      %v6799 = vpop.f32.mrf.mxu0
      %6800 = vmatprep.mubr.f32.mxu0 0.0
      %6801 = vmatmul.mubr.f32.gmra.mxu0 %v248
      %v6802 = vpop.f32.mrf.mxu0
      %v6803 = vadd.f32 %v6578, %v6802
      %v6804 = vpop.f32.mrf.mxu0
      %6805 = vmatprep.mubr.f32.mxu0 0.0
      %6806 = vmatmul.mubr.f32.gmra.mxu0 %v249
      %v6807 = vpop.f32.mrf.mxu0
      %v6808 = vadd.f32 %v6583, %v6807
      %v6809 = vpop.f32.mrf.mxu0
      %6810 = vmatprep.mubr.f32.mxu0 0.0
      %6811 = vmatmul.mubr.f32.gmra.mxu0 %v250
      %v6812 = vpop.f32.mrf.mxu0
      %v6813 = vadd.f32 %v6588, %v6812
      %v6814 = vpop.f32.mrf.mxu0
      %6815 = vmatprep.mubr.f32.mxu0 0.0
      %6816 = vmatmul.mubr.f32.gmra.mxu0 %v251
      %v6817 = vpop.f32.mrf.mxu0
      %v6818 = vadd.f32 %v6593, %v6817
      %v6819 = vpop.f32.mrf.mxu0
      %6820 = vmatprep.mubr.f32.mxu0 0.0
      %6821 = vmatmul.mubr.f32.gmra.mxu0 %v252
      %v6822 = vpop.f32.mrf.mxu0
      %v6823 = vadd.f32 %v6598, %v6822
      %v6824 = vpop.f32.mrf.mxu0
      %6825 = vmatprep.mubr.f32.mxu0 0.0
      %6826 = vmatmul.mubr.f32.gmra.mxu0 %v253
      %v6827 = vpop.f32.mrf.mxu0
      %v6828 = vadd.f32 %v6603, %v6827
      %v6829 = vpop.f32.mrf.mxu0
      %6830 = vmatprep.mubr.f32.mxu0 0.0
      %6831 = vmatmul.mubr.f32.gmra.mxu0 %v254
      %v6832 = vpop.f32.mrf.mxu0
      %v6833 = vadd.f32 %v6608, %v6832
      %v6834 = vpop.f32.mrf.mxu0
      %6835 = vmatprep.mubr.f32.mxu0 0.0
      %6836 = vmatmul.mubr.f32.gmra.mxu0 %v255
      %v6837 = vpop.f32.mrf.mxu0
      %v6838 = vadd.f32 %v6613, %v6837
      %v6839 = vpop.f32.mrf.mxu0
      %6840 = vmatprep.mubr.f32.mxu0 0.0
      %6841 = vmatmul.mubr.f32.gmra.mxu0 %v256
      %v6842 = vpop.f32.mrf.mxu0
      %v6843 = vadd.f32 %v6618, %v6842
      %v6844 = vpop.f32.mrf.mxu0
      %6845 = vmatprep.mubr.f32.mxu0 0.0
      %6846 = vmatmul.mubr.f32.gmra.mxu0 %v257
      %v6847 = vpop.f32.mrf.mxu0
      %v6848 = vadd.f32 %v6623, %v6847
      %v6849 = vpop.f32.mrf.mxu0
      %6850 = vmatprep.mubr.f32.mxu0 0.0
      %6851 = vmatmul.mubr.f32.gmra.mxu0 %v258
      %v6852 = vpop.f32.mrf.mxu0
      %v6853 = vadd.f32 %v6628, %v6852
      %v6854 = vpop.f32.mrf.mxu0
      %6855 = vmatprep.mubr.f32.mxu0 0.0
      %6856 = vmatmul.mubr.f32.gmra.mxu0 %v259
      %v6857 = vpop.f32.mrf.mxu0
      %v6858 = vadd.f32 %v6633, %v6857
      %v6859 = vpop.f32.mrf.mxu0
      %6860 = vdwg.mxu0
      %v6861 = vlaneseq
      %v6862 = vshrl.u32 %v6861, 7
      %v6863 = vsub.s32 0, %v6862
      %v6864 = vrot.slane %v6125, %v6863
      %v6865 = vadd.f32 %v6703, %v6864
      %v6866 = vadd.f32 %v6708, %v6864
      %v6867 = vadd.f32 %v6713, %v6864
      %v6868 = vadd.f32 %v6718, %v6864
      %v6869 = vadd.f32 %v6723, %v6864
      %v6870 = vadd.f32 %v6728, %v6864
      %v6871 = vadd.f32 %v6733, %v6864
      %v6872 = vadd.f32 %v6738, %v6864
      %v6873 = vadd.f32 %v6743, %v6864
      %v6874 = vadd.f32 %v6748, %v6864
      %v6875 = vadd.f32 %v6753, %v6864
      %v6876 = vadd.f32 %v6758, %v6864
      %v6877 = vadd.f32 %v6763, %v6864
      %v6878 = vadd.f32 %v6768, %v6864
      %v6879 = vadd.f32 %v6773, %v6864
      %v6880 = vadd.f32 %v6778, %v6864
      %v6881 = vadd.f32 %v6783, %v6864
      %v6882 = vadd.f32 %v6788, %v6864
      %v6883 = vadd.f32 %v6793, %v6864
      %v6884 = vadd.f32 %v6798, %v6864
      %v6885 = vadd.f32 %v6803, %v6864
      %v6886 = vadd.f32 %v6808, %v6864
      %v6887 = vadd.f32 %v6813, %v6864
      %v6888 = vadd.f32 %v6818, %v6864
      %v6889 = vadd.f32 %v6823, %v6864
      %v6890 = vadd.f32 %v6828, %v6864
      %v6891 = vadd.f32 %v6833, %v6864
      %v6892 = vadd.f32 %v6838, %v6864
      %v6893 = vadd.f32 %v6843, %v6864
      %v6894 = vadd.f32 %v6848, %v6864
      %v6895 = vadd.f32 %v6853, %v6864
      %v6896 = vadd.f32 %v6858, %v6864
      %v6897 = vmax.f32 %v6865, 0.0
      %v6898 = vmax.f32 %v6866, 0.0
      %v6899 = vmax.f32 %v6867, 0.0
      %v6900 = vmax.f32 %v6868, 0.0
      %v6901 = vmax.f32 %v6869, 0.0
      %v6902 = vmax.f32 %v6870, 0.0
      %v6903 = vmax.f32 %v6871, 0.0
      %v6904 = vmax.f32 %v6872, 0.0
      %v6905 = vmax.f32 %v6873, 0.0
      %v6906 = vmax.f32 %v6874, 0.0
      %v6907 = vmax.f32 %v6875, 0.0
      %v6908 = vmax.f32 %v6876, 0.0
      %v6909 = vmax.f32 %v6877, 0.0
      %v6910 = vmax.f32 %v6878, 0.0
      %v6911 = vmax.f32 %v6879, 0.0
      %v6912 = vmax.f32 %v6880, 0.0
      %v6913 = vmax.f32 %v6881, 0.0
      %v6914 = vmax.f32 %v6882, 0.0
      %v6915 = vmax.f32 %v6883, 0.0
      %v6916 = vmax.f32 %v6884, 0.0
      %v6917 = vmax.f32 %v6885, 0.0
      %v6918 = vmax.f32 %v6886, 0.0
      %v6919 = vmax.f32 %v6887, 0.0
      %v6920 = vmax.f32 %v6888, 0.0
      %v6921 = vmax.f32 %v6889, 0.0
      %v6922 = vmax.f32 %v6890, 0.0
      %v6923 = vmax.f32 %v6891, 0.0
      %v6924 = vmax.f32 %v6892, 0.0
      %v6925 = vmax.f32 %v6893, 0.0
      %v6926 = vmax.f32 %v6894, 0.0
      %v6927 = vmax.f32 %v6895, 0.0
      %v6928 = vmax.f32 %v6896, 0.0
      %v6929 = vlaneseq
      %v6930 = vshrl.u32 %v6929, 7
      %v6931 = vsub.s32 0, %v6930
      %v6932 = vrot.slane %v6126, %v6931
      %v6934 = vsel %vm5004, %v6897, 0
      %v6937 = vsel %vm5004, %v6898, 0
      %v6940 = vsel %vm5004, %v6899, 0
      %v6943 = vsel %vm5004, %v6900, 0
      %v6946 = vsel %vm5004, %v6901, 0
      %v6949 = vsel %vm5004, %v6902, 0
      %v6952 = vsel %vm5004, %v6903, 0
      %v6955 = vsel %vm5004, %v6904, 0
      %v6958 = vsel %vm5004, %v6905, 0
      %v6961 = vsel %vm5004, %v6906, 0
      %v6964 = vsel %vm5004, %v6907, 0
      %v6967 = vsel %vm5004, %v6908, 0
      %v6970 = vsel %vm5004, %v6909, 0
      %v6973 = vsel %vm5004, %v6910, 0
      %v6976 = vsel %vm5004, %v6911, 0
      %v6979 = vsel %vm5004, %v6912, 0
      %v6982 = vsel %vm5004, %v6913, 0
      %v6985 = vsel %vm5004, %v6914, 0
      %v6988 = vsel %vm5004, %v6915, 0
      %v6991 = vsel %vm5004, %v6916, 0
      %v6994 = vsel %vm5004, %v6917, 0
      %v6997 = vsel %vm5004, %v6918, 0
      %v7000 = vsel %vm5004, %v6919, 0
      %v7003 = vsel %vm5004, %v6920, 0
      %v7006 = vsel %vm5004, %v6921, 0
      %v7009 = vsel %vm5004, %v6922, 0
      %v7012 = vsel %vm5004, %v6923, 0
      %v7015 = vsel %vm5004, %v6924, 0
      %v7018 = vsel %vm5004, %v6925, 0
      %v7021 = vsel %vm5004, %v6926, 0
      %v7024 = vsel %vm5004, %v6927, 0
      %v7027 = vsel %vm5004, %v6928, 0
      %7029 = vmatprep.subr.mxu0 0.0
      %7030 = vmatpush1.msra.mxu0 0.0
      %7031 = vmatprep.subr.mxu0 0.0
      %7032 = vmatpush1.msra.mxu0 0.0
      %7033 = vmatprep.subr.mxu0 0.0
      %7034 = vmatpush1.msra.mxu0 0.0
      %7035 = vmatprep.subr.mxu0 0.0
      %7036 = vmatpush1.msra.mxu0 0.0
      %7037 = vmatprep.subr.mxu0 0.0
      %7038 = vmatpush1.msra.mxu0 0.0
      %7039 = vmatprep.subr.mxu0 0.0
      %7040 = vmatpush1.msra.mxu0 0.0
      %7041 = vmatprep.subr.mxu0 0.0
      %7042 = vmatpush1.msra.mxu0 0.0
      %7043 = vmatprep.subr.mxu0 0.0
      %7044 = vmatpush1.msra.mxu0 0.0
      %7045 = vmatprep.subr.mxu0 0.0
      %7046 = vmatpush1.msra.mxu0 0.0
      %7047 = vmatprep.subr.mxu0 0.0
      %7048 = vmatpush1.msra.mxu0 0.0
      %7049 = vmatprep.subr.mxu0 0.0
      %7050 = vmatpush1.msra.mxu0 0.0
      %7051 = vmatprep.subr.mxu0 0.0
      %7052 = vmatpush1.msra.mxu0 0.0
      %7053 = vmatprep.subr.mxu0 0.0
      %7054 = vmatpush1.msra.mxu0 %v6116
      %7055 = vmatprep.subr.mxu0 0.0
      %7056 = vmatpush1.msra.mxu0 %v6115
      %7057 = vmatprep.subr.mxu0 0.0
      %7058 = vmatpush1.msra.mxu0 %v6114
      %7059 = vmatprep.subr.mxu0 0.0
      %7060 = vmatpush1.msra.mxu0 %v6113
      %7061 = vmatprep.subr.mxu0 0.0
      %7062 = vmatpush2.msra.mxu0 0.0
      %7063 = vmatprep.subr.mxu0 0.0
      %7064 = vmatpush2.msra.mxu0 0.0
      %7065 = vmatprep.subr.mxu0 0.0
      %7066 = vmatpush2.msra.mxu0 0.0
      %7067 = vmatprep.subr.mxu0 0.0
      %7068 = vmatpush2.msra.mxu0 0.0
      %7069 = vmatprep.subr.mxu0 0.0
      %7070 = vmatpush2.msra.mxu0 0.0
      %7071 = vmatprep.subr.mxu0 0.0
      %7072 = vmatpush2.msra.mxu0 0.0
      %7073 = vmatprep.subr.mxu0 0.0
      %7074 = vmatpush2.msra.mxu0 0.0
      %7075 = vmatprep.subr.mxu0 0.0
      %7076 = vmatpush2.msra.mxu0 0.0
      %7077 = vmatprep.subr.mxu0 0.0
      %7078 = vmatpush2.msra.mxu0 0.0
      %7079 = vmatprep.subr.mxu0 0.0
      %7080 = vmatpush2.msra.mxu0 0.0
      %7081 = vmatprep.subr.mxu0 0.0
      %7082 = vmatpush2.msra.mxu0 0.0
      %7083 = vmatprep.subr.mxu0 0.0
      %7084 = vmatpush2.msra.mxu0 0.0
      %7085 = vmatprep.subr.mxu0 0.0
      %7086 = vmatpush2.msra.mxu0 0.0
      %7087 = vmatprep.subr.mxu0 0.0
      %7088 = vmatpush2.msra.mxu0 0.0
      %7089 = vmatprep.subr.mxu0 0.0
      %7090 = vmatpush2.msra.mxu0 0.0
      %7091 = vmatprep.subr.mxu0 0.0
      %7092 = vmatpush2.msra.mxu0 0.0
      %7093 = vmatprep.mubr.f32.mxu0 0.0
      %7094 = vmatmul.mubr.f32.gmra.mxu0 %v6934
      %v7095 = vpop.f32.mrf.mxu0
      %v7096 = vadd.f32 %v6932, %v7095
      %v7097 = vpop.f32.mrf.mxu0
      %7098 = vmatprep.mubr.f32.mxu0 0.0
      %7099 = vmatmul.mubr.f32.gmra.mxu0 %v6937
      %v7100 = vpop.f32.mrf.mxu0
      %v7101 = vadd.f32 %v6932, %v7100
      %v7102 = vpop.f32.mrf.mxu0
      %7103 = vmatprep.mubr.f32.mxu0 0.0
      %7104 = vmatmul.mubr.f32.gmra.mxu0 %v6940
      %v7105 = vpop.f32.mrf.mxu0
      %v7106 = vadd.f32 %v6932, %v7105
      %v7107 = vpop.f32.mrf.mxu0
      %7108 = vmatprep.mubr.f32.mxu0 0.0
      %7109 = vmatmul.mubr.f32.gmra.mxu0 %v6943
      %v7110 = vpop.f32.mrf.mxu0
      %v7111 = vadd.f32 %v6932, %v7110
      %v7112 = vpop.f32.mrf.mxu0
      %7113 = vmatprep.mubr.f32.mxu0 0.0
      %7114 = vmatmul.mubr.f32.gmra.mxu0 %v6946
      %v7115 = vpop.f32.mrf.mxu0
      %v7116 = vadd.f32 %v6932, %v7115
      %v7117 = vpop.f32.mrf.mxu0
      %7118 = vmatprep.mubr.f32.mxu0 0.0
      %7119 = vmatmul.mubr.f32.gmra.mxu0 %v6949
      %v7120 = vpop.f32.mrf.mxu0
      %v7121 = vadd.f32 %v6932, %v7120
      %v7122 = vpop.f32.mrf.mxu0
      %7123 = vmatprep.mubr.f32.mxu0 0.0
      %7124 = vmatmul.mubr.f32.gmra.mxu0 %v6952
      %v7125 = vpop.f32.mrf.mxu0
      %v7126 = vadd.f32 %v6932, %v7125
      %v7127 = vpop.f32.mrf.mxu0
      %7128 = vmatprep.mubr.f32.mxu0 0.0
      %7129 = vmatmul.mubr.f32.gmra.mxu0 %v6955
      %v7130 = vpop.f32.mrf.mxu0
      %v7131 = vadd.f32 %v6932, %v7130
      %v7132 = vpop.f32.mrf.mxu0
      %7133 = vmatprep.mubr.f32.mxu0 0.0
      %7134 = vmatmul.mubr.f32.gmra.mxu0 %v6958
      %v7135 = vpop.f32.mrf.mxu0
      %v7136 = vadd.f32 %v6932, %v7135
      %v7137 = vpop.f32.mrf.mxu0
      %7138 = vmatprep.mubr.f32.mxu0 0.0
      %7139 = vmatmul.mubr.f32.gmra.mxu0 %v6961
      %v7140 = vpop.f32.mrf.mxu0
      %v7141 = vadd.f32 %v6932, %v7140
      %v7142 = vpop.f32.mrf.mxu0
      %7143 = vmatprep.mubr.f32.mxu0 0.0
      %7144 = vmatmul.mubr.f32.gmra.mxu0 %v6964
      %v7145 = vpop.f32.mrf.mxu0
      %v7146 = vadd.f32 %v6932, %v7145
      %v7147 = vpop.f32.mrf.mxu0
      %7148 = vmatprep.mubr.f32.mxu0 0.0
      %7149 = vmatmul.mubr.f32.gmra.mxu0 %v6967
      %v7150 = vpop.f32.mrf.mxu0
      %v7151 = vadd.f32 %v6932, %v7150
      %v7152 = vpop.f32.mrf.mxu0
      %7153 = vmatprep.mubr.f32.mxu0 0.0
      %7154 = vmatmul.mubr.f32.gmra.mxu0 %v6970
      %v7155 = vpop.f32.mrf.mxu0
      %v7156 = vadd.f32 %v6932, %v7155
      %v7157 = vpop.f32.mrf.mxu0
      %7158 = vmatprep.mubr.f32.mxu0 0.0
      %7159 = vmatmul.mubr.f32.gmra.mxu0 %v6973
      %v7160 = vpop.f32.mrf.mxu0
      %v7161 = vadd.f32 %v6932, %v7160
      %v7162 = vpop.f32.mrf.mxu0
      %7163 = vmatprep.mubr.f32.mxu0 0.0
      %7164 = vmatmul.mubr.f32.gmra.mxu0 %v6976
      %v7165 = vpop.f32.mrf.mxu0
      %v7166 = vadd.f32 %v6932, %v7165
      %v7167 = vpop.f32.mrf.mxu0
      %7168 = vmatprep.mubr.f32.mxu0 0.0
      %7169 = vmatmul.mubr.f32.gmra.mxu0 %v6979
      %v7170 = vpop.f32.mrf.mxu0
      %v7171 = vadd.f32 %v6932, %v7170
      %v7172 = vpop.f32.mrf.mxu0
      %7173 = vmatprep.mubr.f32.mxu0 0.0
      %7174 = vmatmul.mubr.f32.gmra.mxu0 %v6982
      %v7175 = vpop.f32.mrf.mxu0
      %v7176 = vadd.f32 %v6932, %v7175
      %v7177 = vpop.f32.mrf.mxu0
      %7178 = vmatprep.mubr.f32.mxu0 0.0
      %7179 = vmatmul.mubr.f32.gmra.mxu0 %v6985
      %v7180 = vpop.f32.mrf.mxu0
      %v7181 = vadd.f32 %v6932, %v7180
      %v7182 = vpop.f32.mrf.mxu0
      %7183 = vmatprep.mubr.f32.mxu0 0.0
      %7184 = vmatmul.mubr.f32.gmra.mxu0 %v6988
      %v7185 = vpop.f32.mrf.mxu0
      %v7186 = vadd.f32 %v6932, %v7185
      %v7187 = vpop.f32.mrf.mxu0
      %7188 = vmatprep.mubr.f32.mxu0 0.0
      %7189 = vmatmul.mubr.f32.gmra.mxu0 %v6991
      %v7190 = vpop.f32.mrf.mxu0
      %v7191 = vadd.f32 %v6932, %v7190
      %v7192 = vpop.f32.mrf.mxu0
      %7193 = vmatprep.mubr.f32.mxu0 0.0
      %7194 = vmatmul.mubr.f32.gmra.mxu0 %v6994
      %v7195 = vpop.f32.mrf.mxu0
      %v7196 = vadd.f32 %v6932, %v7195
      %v7197 = vpop.f32.mrf.mxu0
      %7198 = vmatprep.mubr.f32.mxu0 0.0
      %7199 = vmatmul.mubr.f32.gmra.mxu0 %v6997
      %v7200 = vpop.f32.mrf.mxu0
      %v7201 = vadd.f32 %v6932, %v7200
      %v7202 = vpop.f32.mrf.mxu0
      %7203 = vmatprep.mubr.f32.mxu0 0.0
      %7204 = vmatmul.mubr.f32.gmra.mxu0 %v7000
      %v7205 = vpop.f32.mrf.mxu0
      %v7206 = vadd.f32 %v6932, %v7205
      %v7207 = vpop.f32.mrf.mxu0
      %7208 = vmatprep.mubr.f32.mxu0 0.0
      %7209 = vmatmul.mubr.f32.gmra.mxu0 %v7003
      %v7210 = vpop.f32.mrf.mxu0
      %v7211 = vadd.f32 %v6932, %v7210
      %v7212 = vpop.f32.mrf.mxu0
      %7213 = vmatprep.mubr.f32.mxu0 0.0
      %7214 = vmatmul.mubr.f32.gmra.mxu0 %v7006
      %v7215 = vpop.f32.mrf.mxu0
      %v7216 = vadd.f32 %v6932, %v7215
      %v7217 = vpop.f32.mrf.mxu0
      %7218 = vmatprep.mubr.f32.mxu0 0.0
      %7219 = vmatmul.mubr.f32.gmra.mxu0 %v7009
      %v7220 = vpop.f32.mrf.mxu0
      %v7221 = vadd.f32 %v6932, %v7220
      %v7222 = vpop.f32.mrf.mxu0
      %7223 = vmatprep.mubr.f32.mxu0 0.0
      %7224 = vmatmul.mubr.f32.gmra.mxu0 %v7012
      %v7225 = vpop.f32.mrf.mxu0
      %v7226 = vadd.f32 %v6932, %v7225
      %v7227 = vpop.f32.mrf.mxu0
      %7228 = vmatprep.mubr.f32.mxu0 0.0
      %7229 = vmatmul.mubr.f32.gmra.mxu0 %v7015
      %v7230 = vpop.f32.mrf.mxu0
      %v7231 = vadd.f32 %v6932, %v7230
      %v7232 = vpop.f32.mrf.mxu0
      %7233 = vmatprep.mubr.f32.mxu0 0.0
      %7234 = vmatmul.mubr.f32.gmra.mxu0 %v7018
      %v7235 = vpop.f32.mrf.mxu0
      %v7236 = vadd.f32 %v6932, %v7235
      %v7237 = vpop.f32.mrf.mxu0
      %7238 = vmatprep.mubr.f32.mxu0 0.0
      %7239 = vmatmul.mubr.f32.gmra.mxu0 %v7021
      %v7240 = vpop.f32.mrf.mxu0
      %v7241 = vadd.f32 %v6932, %v7240
      %v7242 = vpop.f32.mrf.mxu0
      %7243 = vmatprep.mubr.f32.mxu0 0.0
      %7244 = vmatmul.mubr.f32.gmra.mxu0 %v7024
      %v7245 = vpop.f32.mrf.mxu0
      %v7246 = vadd.f32 %v6932, %v7245
      %v7247 = vpop.f32.mrf.mxu0
      %7248 = vmatprep.mubr.f32.mxu0 0.0
      %7249 = vmatmul.mubr.f32.gmra.mxu0 %v7027
      %v7250 = vpop.f32.mrf.mxu0
      %v7251 = vadd.f32 %v6932, %v7250
      %v7252 = vpop.f32.mrf.mxu0
      %7253 = vdwg.mxu0
      %7254 = vmatprep.subr.mxu0 0.0
      %7255 = vmatpush1.msra.mxu0 %v7171
      %7256 = vmatprep.subr.mxu0 0.0
      %7257 = vmatpush1.msra.mxu0 %v7166
      %7258 = vmatprep.subr.mxu0 0.0
      %7259 = vmatpush1.msra.mxu0 %v7161
      %7260 = vmatprep.subr.mxu0 0.0
      %7261 = vmatpush1.msra.mxu0 %v7156
      %7262 = vmatprep.subr.mxu0 0.0
      %7263 = vmatpush1.msra.mxu0 %v7151
      %7264 = vmatprep.subr.mxu0 0.0
      %7265 = vmatpush1.msra.mxu0 %v7146
      %7266 = vmatprep.subr.mxu0 0.0
      %7267 = vmatpush1.msra.mxu0 %v7141
      %7268 = vmatprep.subr.mxu0 0.0
      %7269 = vmatpush1.msra.mxu0 %v7136
      %7270 = vmatprep.subr.mxu0 0.0
      %7271 = vmatpush1.msra.mxu0 %v7131
      %7272 = vmatprep.subr.mxu0 0.0
      %7273 = vmatpush1.msra.mxu0 %v7126
      %7274 = vmatprep.subr.mxu0 0.0
      %7275 = vmatpush1.msra.mxu0 %v7121
      %7276 = vmatprep.subr.mxu0 0.0
      %7277 = vmatpush1.msra.mxu0 %v7116
      %7278 = vmatprep.subr.mxu0 0.0
      %7279 = vmatpush1.msra.mxu0 %v7111
      %7280 = vmatprep.subr.mxu0 0.0
      %7281 = vmatpush1.msra.mxu0 %v7106
      %7282 = vmatprep.subr.mxu0 0.0
      %7283 = vmatpush1.msra.mxu0 %v7101
      %7284 = vmatprep.subr.mxu0 0.0
      %7285 = vmatpush1.msra.mxu0 %v7096
      %7286 = vmatprep.subr.mxu0 0.0
      %7287 = vmatpush2.msra.mxu0 %v7251
      %7288 = vmatprep.subr.mxu0 0.0
      %7289 = vmatpush2.msra.mxu0 %v7246
      %7290 = vmatprep.subr.mxu0 0.0
      %7291 = vmatpush2.msra.mxu0 %v7241
      %7292 = vmatprep.subr.mxu0 0.0
      %7293 = vmatpush2.msra.mxu0 %v7236
      %7294 = vmatprep.subr.mxu0 0.0
      %7295 = vmatpush2.msra.mxu0 %v7231
      %7296 = vmatprep.subr.mxu0 0.0
      %7297 = vmatpush2.msra.mxu0 %v7226
      %7298 = vmatprep.subr.mxu0 0.0
      %7299 = vmatpush2.msra.mxu0 %v7221
      %7300 = vmatprep.subr.mxu0 0.0
      %7301 = vmatpush2.msra.mxu0 %v7216
      %7302 = vmatprep.subr.mxu0 0.0
      %7303 = vmatpush2.msra.mxu0 %v7211
      %7304 = vmatprep.subr.mxu0 0.0
      %7305 = vmatpush2.msra.mxu0 %v7206
      %7306 = vmatprep.subr.mxu0 0.0
      %7307 = vmatpush2.msra.mxu0 %v7201
      %7308 = vmatprep.subr.mxu0 0.0
      %7309 = vmatpush2.msra.mxu0 %v7196
      %7310 = vmatprep.subr.mxu0 0.0
      %7311 = vmatpush2.msra.mxu0 %v7191
      %7312 = vmatprep.subr.mxu0 0.0
      %7313 = vmatpush2.msra.mxu0 %v7186
      %7314 = vmatprep.subr.mxu0 0.0
      %7315 = vmatpush2.msra.mxu0 %v7181
      %7316 = vmatprep.subr.mxu0 0.0
      %7317 = vmatpush2.msra.mxu0 %v7176
      %7318 = vmatprep.mubr.f32.mxu0 %v293
      %7319 = vmatmul.mubr.f32.gmra.mxu0 %v292
      %v7320 = vpop.f32.mrf.mxu0
      %v7321 = vadd.f32 0.0, %v7320
      %v7322 = vpop.f32.mrf.mxu0
      %7323 = vmatprep.mubr.f32.mxu0 %v295
      %7324 = vmatmul.mubr.f32.gmra.mxu0 %v294
      %v7325 = vpop.f32.mrf.mxu0
      %v7326 = vadd.f32 0.0, %v7325
      %v7327 = vpop.f32.mrf.mxu0
      %7328 = vmatprep.mubr.f32.mxu0 %v297
      %7329 = vmatmul.mubr.f32.gmra.mxu0 %v296
      %v7330 = vpop.f32.mrf.mxu0
      %v7331 = vadd.f32 0.0, %v7330
      %v7332 = vpop.f32.mrf.mxu0
      %7333 = vmatprep.mubr.f32.mxu0 %v299
      %7334 = vmatmul.mubr.f32.gmra.mxu0 %v298
      %v7335 = vpop.f32.mrf.mxu0
      %v7336 = vadd.f32 0.0, %v7335
      %v7337 = vpop.f32.mrf.mxu0
      %7338 = vmatprep.mubr.f32.mxu0 %v301
      %7339 = vmatmul.mubr.f32.gmra.mxu0 %v300
      %v7340 = vpop.f32.mrf.mxu0
      %v7341 = vadd.f32 0.0, %v7340
      %v7342 = vpop.f32.mrf.mxu0
      %7343 = vmatprep.mubr.f32.mxu0 %v303
      %7344 = vmatmul.mubr.f32.gmra.mxu0 %v302
      %v7345 = vpop.f32.mrf.mxu0
      %v7346 = vadd.f32 0.0, %v7345
      %v7347 = vpop.f32.mrf.mxu0
      %7348 = vmatprep.mubr.f32.mxu0 %v305
      %7349 = vmatmul.mubr.f32.gmra.mxu0 %v304
      %v7350 = vpop.f32.mrf.mxu0
      %v7351 = vadd.f32 0.0, %v7350
      %v7352 = vpop.f32.mrf.mxu0
      %7353 = vmatprep.mubr.f32.mxu0 %v307
      %7354 = vmatmul.mubr.f32.gmra.mxu0 %v306
      %v7355 = vpop.f32.mrf.mxu0
      %v7356 = vadd.f32 0.0, %v7355
      %v7357 = vpop.f32.mrf.mxu0
      %7358 = vmatprep.mubr.f32.mxu0 %v309
      %7359 = vmatmul.mubr.f32.gmra.mxu0 %v308
      %v7360 = vpop.f32.mrf.mxu0
      %v7361 = vadd.f32 0.0, %v7360
      %v7362 = vpop.f32.mrf.mxu0
      %7363 = vmatprep.mubr.f32.mxu0 %v311
      %7364 = vmatmul.mubr.f32.gmra.mxu0 %v310
      %v7365 = vpop.f32.mrf.mxu0
      %v7366 = vadd.f32 0.0, %v7365
      %v7367 = vpop.f32.mrf.mxu0
      %7368 = vmatprep.mubr.f32.mxu0 %v313
      %7369 = vmatmul.mubr.f32.gmra.mxu0 %v312
      %v7370 = vpop.f32.mrf.mxu0
      %v7371 = vadd.f32 0.0, %v7370
      %v7372 = vpop.f32.mrf.mxu0
      %7373 = vmatprep.mubr.f32.mxu0 %v315
      %7374 = vmatmul.mubr.f32.gmra.mxu0 %v314
      %v7375 = vpop.f32.mrf.mxu0
      %v7376 = vadd.f32 0.0, %v7375
      %v7377 = vpop.f32.mrf.mxu0
      %7378 = vmatprep.mubr.f32.mxu0 %v317
      %7379 = vmatmul.mubr.f32.gmra.mxu0 %v316
      %v7380 = vpop.f32.mrf.mxu0
      %v7381 = vadd.f32 0.0, %v7380
      %v7382 = vpop.f32.mrf.mxu0
      %7383 = vmatprep.mubr.f32.mxu0 %v319
      %7384 = vmatmul.mubr.f32.gmra.mxu0 %v318
      %v7385 = vpop.f32.mrf.mxu0
      %v7386 = vadd.f32 0.0, %v7385
      %v7387 = vpop.f32.mrf.mxu0
      %7388 = vmatprep.mubr.f32.mxu0 %v321
      %7389 = vmatmul.mubr.f32.gmra.mxu0 %v320
      %v7390 = vpop.f32.mrf.mxu0
      %v7391 = vadd.f32 0.0, %v7390
      %v7392 = vpop.f32.mrf.mxu0
      %7393 = vmatprep.mubr.f32.mxu0 %v323
      %7394 = vmatmul.mubr.f32.gmra.mxu0 %v322
      %v7395 = vpop.f32.mrf.mxu0
      %v7396 = vadd.f32 0.0, %v7395
      %v7397 = vpop.f32.mrf.mxu0
      %7398 = vdwg.mxu0
      %v7400 = vsel %vm5004, %v7321, 0
      %v7403 = vsel %vm5004, %v7326, 0
      %v7406 = vsel %vm5004, %v7331, 0
      %v7409 = vsel %vm5004, %v7336, 0
      %v7412 = vsel %vm5004, %v7341, 0
      %v7415 = vsel %vm5004, %v7346, 0
      %v7418 = vsel %vm5004, %v7351, 0
      %v7421 = vsel %vm5004, %v7356, 0
      %v7424 = vsel %vm5004, %v7361, 0
      %v7427 = vsel %vm5004, %v7366, 0
      %v7430 = vsel %vm5004, %v7371, 0
      %v7433 = vsel %vm5004, %v7376, 0
      %v7436 = vsel %vm5004, %v7381, 0
      %v7439 = vsel %vm5004, %v7386, 0
      %v7442 = vsel %vm5004, %v7391, 0
      %v7445 = vsel %vm5004, %v7396, 0
      %7447 = vmatprep.subr.mxu0 0.0
      %7448 = vmatpush1.msra.mxu0 0.0
      %7449 = vmatprep.subr.mxu0 0.0
      %7450 = vmatpush1.msra.mxu0 0.0
      %7451 = vmatprep.subr.mxu0 0.0
      %7452 = vmatpush1.msra.mxu0 0.0
      %7453 = vmatprep.subr.mxu0 0.0
      %7454 = vmatpush1.msra.mxu0 0.0
      %7455 = vmatprep.subr.mxu0 0.0
      %7456 = vmatpush1.msra.mxu0 0.0
      %7457 = vmatprep.subr.mxu0 0.0
      %7458 = vmatpush1.msra.mxu0 0.0
      %7459 = vmatprep.subr.mxu0 0.0
      %7460 = vmatpush1.msra.mxu0 0.0
      %7461 = vmatprep.subr.mxu0 0.0
      %7462 = vmatpush1.msra.mxu0 0.0
      %7463 = vmatprep.subr.mxu0 0.0
      %7464 = vmatpush1.msra.mxu0 0.0
      %7465 = vmatprep.subr.mxu0 0.0
      %7466 = vmatpush1.msra.mxu0 0.0
      %7467 = vmatprep.subr.mxu0 0.0
      %7468 = vmatpush1.msra.mxu0 0.0
      %7469 = vmatprep.subr.mxu0 0.0
      %7470 = vmatpush1.msra.mxu0 0.0
      %7471 = vmatprep.subr.mxu0 0.0
      %7472 = vmatpush1.msra.mxu0 %v6120
      %7473 = vmatprep.subr.mxu0 0.0
      %7474 = vmatpush1.msra.mxu0 %v6119
      %7475 = vmatprep.subr.mxu0 0.0
      %7476 = vmatpush1.msra.mxu0 %v6118
      %7477 = vmatprep.subr.mxu0 0.0
      %7478 = vmatpush1.msra.mxu0 %v6117
      %7479 = vmatprep.subr.mxu0 0.0
      %7480 = vmatpush2.msra.mxu0 0.0
      %7481 = vmatprep.subr.mxu0 0.0
      %7482 = vmatpush2.msra.mxu0 0.0
      %7483 = vmatprep.subr.mxu0 0.0
      %7484 = vmatpush2.msra.mxu0 0.0
      %7485 = vmatprep.subr.mxu0 0.0
      %7486 = vmatpush2.msra.mxu0 0.0
      %7487 = vmatprep.subr.mxu0 0.0
      %7488 = vmatpush2.msra.mxu0 0.0
      %7489 = vmatprep.subr.mxu0 0.0
      %7490 = vmatpush2.msra.mxu0 0.0
      %7491 = vmatprep.subr.mxu0 0.0
      %7492 = vmatpush2.msra.mxu0 0.0
      %7493 = vmatprep.subr.mxu0 0.0
      %7494 = vmatpush2.msra.mxu0 0.0
      %7495 = vmatprep.subr.mxu0 0.0
      %7496 = vmatpush2.msra.mxu0 0.0
      %7497 = vmatprep.subr.mxu0 0.0
      %7498 = vmatpush2.msra.mxu0 0.0
      %7499 = vmatprep.subr.mxu0 0.0
      %7500 = vmatpush2.msra.mxu0 0.0
      %7501 = vmatprep.subr.mxu0 0.0
      %7502 = vmatpush2.msra.mxu0 0.0
      %7503 = vmatprep.subr.mxu0 0.0
      %7504 = vmatpush2.msra.mxu0 0.0
      %7505 = vmatprep.subr.mxu0 0.0
      %7506 = vmatpush2.msra.mxu0 0.0
      %7507 = vmatprep.subr.mxu0 0.0
      %7508 = vmatpush2.msra.mxu0 0.0
      %7509 = vmatprep.subr.mxu0 0.0
      %7510 = vmatpush2.msra.mxu0 0.0
      %7511 = vmatprep.mubr.f32.mxu0 0.0
      %7512 = vmatmul.mubr.f32.gmra.mxu0 %v7400
      %v7513 = vpop.f32.mrf.mxu0
      %v7514 = vadd.f32 0.0, %v7513
      %v7515 = vpop.f32.mrf.mxu0
      %7516 = vmatprep.mubr.f32.mxu0 0.0
      %7517 = vmatmul.mubr.f32.gmra.mxu0 %v7403
      %v7518 = vpop.f32.mrf.mxu0
      %v7519 = vadd.f32 0.0, %v7518
      %v7520 = vpop.f32.mrf.mxu0
      %7521 = vmatprep.mubr.f32.mxu0 0.0
      %7522 = vmatmul.mubr.f32.gmra.mxu0 %v7406
      %v7523 = vpop.f32.mrf.mxu0
      %v7524 = vadd.f32 0.0, %v7523
      %v7525 = vpop.f32.mrf.mxu0
      %7526 = vmatprep.mubr.f32.mxu0 0.0
      %7527 = vmatmul.mubr.f32.gmra.mxu0 %v7409
      %v7528 = vpop.f32.mrf.mxu0
      %v7529 = vadd.f32 0.0, %v7528
      %v7530 = vpop.f32.mrf.mxu0
      %7531 = vmatprep.mubr.f32.mxu0 0.0
      %7532 = vmatmul.mubr.f32.gmra.mxu0 %v7412
      %v7533 = vpop.f32.mrf.mxu0
      %v7534 = vadd.f32 0.0, %v7533
      %v7535 = vpop.f32.mrf.mxu0
      %7536 = vmatprep.mubr.f32.mxu0 0.0
      %7537 = vmatmul.mubr.f32.gmra.mxu0 %v7415
      %v7538 = vpop.f32.mrf.mxu0
      %v7539 = vadd.f32 0.0, %v7538
      %v7540 = vpop.f32.mrf.mxu0
      %7541 = vmatprep.mubr.f32.mxu0 0.0
      %7542 = vmatmul.mubr.f32.gmra.mxu0 %v7418
      %v7543 = vpop.f32.mrf.mxu0
      %v7544 = vadd.f32 0.0, %v7543
      %v7545 = vpop.f32.mrf.mxu0
      %7546 = vmatprep.mubr.f32.mxu0 0.0
      %7547 = vmatmul.mubr.f32.gmra.mxu0 %v7421
      %v7548 = vpop.f32.mrf.mxu0
      %v7549 = vadd.f32 0.0, %v7548
      %v7550 = vpop.f32.mrf.mxu0
      %7551 = vmatprep.mubr.f32.mxu0 0.0
      %7552 = vmatmul.mubr.f32.gmra.mxu0 %v7424
      %v7553 = vpop.f32.mrf.mxu0
      %v7554 = vadd.f32 0.0, %v7553
      %v7555 = vpop.f32.mrf.mxu0
      %7556 = vmatprep.mubr.f32.mxu0 0.0
      %7557 = vmatmul.mubr.f32.gmra.mxu0 %v7427
      %v7558 = vpop.f32.mrf.mxu0
      %v7559 = vadd.f32 0.0, %v7558
      %v7560 = vpop.f32.mrf.mxu0
      %7561 = vmatprep.mubr.f32.mxu0 0.0
      %7562 = vmatmul.mubr.f32.gmra.mxu0 %v7430
      %v7563 = vpop.f32.mrf.mxu0
      %v7564 = vadd.f32 0.0, %v7563
      %v7565 = vpop.f32.mrf.mxu0
      %7566 = vmatprep.mubr.f32.mxu0 0.0
      %7567 = vmatmul.mubr.f32.gmra.mxu0 %v7433
      %v7568 = vpop.f32.mrf.mxu0
      %v7569 = vadd.f32 0.0, %v7568
      %v7570 = vpop.f32.mrf.mxu0
      %7571 = vmatprep.mubr.f32.mxu0 0.0
      %7572 = vmatmul.mubr.f32.gmra.mxu0 %v7436
      %v7573 = vpop.f32.mrf.mxu0
      %v7574 = vadd.f32 0.0, %v7573
      %v7575 = vpop.f32.mrf.mxu0
      %7576 = vmatprep.mubr.f32.mxu0 0.0
      %7577 = vmatmul.mubr.f32.gmra.mxu0 %v7439
      %v7578 = vpop.f32.mrf.mxu0
      %v7579 = vadd.f32 0.0, %v7578
      %v7580 = vpop.f32.mrf.mxu0
      %7581 = vmatprep.mubr.f32.mxu0 0.0
      %7582 = vmatmul.mubr.f32.gmra.mxu0 %v7442
      %v7583 = vpop.f32.mrf.mxu0
      %v7584 = vadd.f32 0.0, %v7583
      %v7585 = vpop.f32.mrf.mxu0
      %7586 = vmatprep.mubr.f32.mxu0 0.0
      %7587 = vmatmul.mubr.f32.gmra.mxu0 %v7445
      %v7588 = vpop.f32.mrf.mxu0
      %v7589 = vadd.f32 0.0, %v7588
      %v7590 = vpop.f32.mrf.mxu0
      %7591 = vdwg.mxu0
      %7608 = vrot.lane.b32.xlu0 %v7514, 64
      %v7609 = vpop.permute.xlu0 %7608
      %7610 = vrot.lane.b32.xlu0 %v7519, 64
      %v7611 = vpop.permute.xlu0 %7610
      %7612 = vrot.lane.b32.xlu0 %v7524, 64
      %v7613 = vpop.permute.xlu0 %7612
      %7614 = vrot.lane.b32.xlu0 %v7529, 64
      %v7615 = vpop.permute.xlu0 %7614
      %7616 = vrot.lane.b32.xlu0 %v7534, 64
      %v7617 = vpop.permute.xlu0 %7616
      %7618 = vrot.lane.b32.xlu0 %v7539, 64
      %v7619 = vpop.permute.xlu0 %7618
      %7620 = vrot.lane.b32.xlu0 %v7544, 64
      %v7621 = vpop.permute.xlu0 %7620
      %7622 = vrot.lane.b32.xlu0 %v7549, 64
      %v7623 = vpop.permute.xlu0 %7622
      %7624 = vrot.lane.b32.xlu0 %v7554, 64
      %v7625 = vpop.permute.xlu0 %7624
      %7626 = vrot.lane.b32.xlu0 %v7559, 64
      %v7627 = vpop.permute.xlu0 %7626
      %7628 = vrot.lane.b32.xlu0 %v7564, 64
      %v7629 = vpop.permute.xlu0 %7628
      %7630 = vrot.lane.b32.xlu0 %v7569, 64
      %v7631 = vpop.permute.xlu0 %7630
      %7632 = vrot.lane.b32.xlu0 %v7574, 64
      %v7633 = vpop.permute.xlu0 %7632
      %7634 = vrot.lane.b32.xlu0 %v7579, 64
      %v7635 = vpop.permute.xlu0 %7634
      %7636 = vrot.lane.b32.xlu0 %v7584, 64
      %v7637 = vpop.permute.xlu0 %7636
      %7638 = vrot.lane.b32.xlu0 %v7589, 64
      %v7639 = vpop.permute.xlu0 %7638
      %v7656 = vadd.f32 %v6244, %v7609
      %v7657 = vadd.f32 %v6249, %v7611
      %v7658 = vadd.f32 %v6254, %v7613
      %v7659 = vadd.f32 %v6259, %v7615
      %v7660 = vadd.f32 %v6264, %v7617
      %v7661 = vadd.f32 %v6269, %v7619
      %v7662 = vadd.f32 %v6274, %v7621
      %v7663 = vadd.f32 %v6279, %v7623
      %v7664 = vadd.f32 %v6284, %v7625
      %v7665 = vadd.f32 %v6289, %v7627
      %v7666 = vadd.f32 %v6294, %v7629
      %v7667 = vadd.f32 %v6299, %v7631
      %v7668 = vadd.f32 %v6304, %v7633
      %v7669 = vadd.f32 %v6309, %v7635
      %v7670 = vadd.f32 %v6314, %v7637
      %v7671 = vadd.f32 %v6319, %v7639
      %v7672 = vlaneseq
      %v7673 = vshrl.u32 %v7672, 7
      %v7674 = vsub.s32 0, %v7673
      %v7675 = vrot.slane %v6127, %v7674
      %7677 = vrot.lane.b32.xlu0 %v7675, 64
      %v7678 = vpop.permute.xlu0 %7677
      %v7680 = vadd.f32 %v7656, %v7678
      %v7681 = vadd.f32 %v7657, %v7678
      %v7682 = vadd.f32 %v7658, %v7678
      %v7683 = vadd.f32 %v7659, %v7678
      %v7684 = vadd.f32 %v7660, %v7678
      %v7685 = vadd.f32 %v7661, %v7678
      %v7686 = vadd.f32 %v7662, %v7678
      %v7687 = vadd.f32 %v7663, %v7678
      %v7688 = vadd.f32 %v7664, %v7678
      %v7689 = vadd.f32 %v7665, %v7678
      %v7690 = vadd.f32 %v7666, %v7678
      %v7691 = vadd.f32 %v7667, %v7678
      %v7692 = vadd.f32 %v7668, %v7678
      %v7693 = vadd.f32 %v7669, %v7678
      %v7694 = vadd.f32 %v7670, %v7678
      %v7695 = vadd.f32 %v7671, %v7678
      %v7696 = vmax.f32 %v7680, 0.0
      %v7697 = vmax.f32 %v7681, 0.0
      %v7698 = vmax.f32 %v7682, 0.0
      %v7699 = vmax.f32 %v7683, 0.0
      %v7700 = vmax.f32 %v7684, 0.0
      %v7701 = vmax.f32 %v7685, 0.0
      %v7702 = vmax.f32 %v7686, 0.0
      %v7703 = vmax.f32 %v7687, 0.0
      %v7704 = vmax.f32 %v7688, 0.0
      %v7705 = vmax.f32 %v7689, 0.0
      %v7706 = vmax.f32 %v7690, 0.0
      %v7707 = vmax.f32 %v7691, 0.0
      %v7708 = vmax.f32 %v7692, 0.0
      %v7709 = vmax.f32 %v7693, 0.0
      %v7710 = vmax.f32 %v7694, 0.0
      %v7711 = vmax.f32 %v7695, 0.0
      %v7712 = vlaneseq
      %v7713 = vshrl.u32 %v7712, 7
      %v7714 = vsub.s32 0, %v7713
      %v7715 = vrot.slane %v6128, %v7714
      %7732 = vrot.lane.b32.xlu0 %v7696, 64
      %v7733 = vpop.permute.xlu0 %7732
      %7734 = vrot.lane.b32.xlu0 %v7697, 64
      %v7735 = vpop.permute.xlu0 %7734
      %7736 = vrot.lane.b32.xlu0 %v7698, 64
      %v7737 = vpop.permute.xlu0 %7736
      %7738 = vrot.lane.b32.xlu0 %v7699, 64
      %v7739 = vpop.permute.xlu0 %7738
      %7740 = vrot.lane.b32.xlu0 %v7700, 64
      %v7741 = vpop.permute.xlu0 %7740
      %7742 = vrot.lane.b32.xlu0 %v7701, 64
      %v7743 = vpop.permute.xlu0 %7742
      %7744 = vrot.lane.b32.xlu0 %v7702, 64
      %v7745 = vpop.permute.xlu0 %7744
      %7746 = vrot.lane.b32.xlu0 %v7703, 64
      %v7747 = vpop.permute.xlu0 %7746
      %7748 = vrot.lane.b32.xlu0 %v7704, 64
      %v7749 = vpop.permute.xlu0 %7748
      %7750 = vrot.lane.b32.xlu0 %v7705, 64
      %v7751 = vpop.permute.xlu0 %7750
      %7752 = vrot.lane.b32.xlu0 %v7706, 64
      %v7753 = vpop.permute.xlu0 %7752
      %7754 = vrot.lane.b32.xlu0 %v7707, 64
      %v7755 = vpop.permute.xlu0 %7754
      %7756 = vrot.lane.b32.xlu0 %v7708, 64
      %v7757 = vpop.permute.xlu0 %7756
      %7758 = vrot.lane.b32.xlu0 %v7709, 64
      %v7759 = vpop.permute.xlu0 %7758
      %7760 = vrot.lane.b32.xlu0 %v7710, 64
      %v7761 = vpop.permute.xlu0 %7760
      %7762 = vrot.lane.b32.xlu0 %v7711, 64
      %v7763 = vpop.permute.xlu0 %7762
      %v7764 = vsel %vm5004, %v7733, 0
      %v7766 = vsel %vm5004, %v7735, 0
      %v7768 = vsel %vm5004, %v7737, 0
      %v7770 = vsel %vm5004, %v7739, 0
      %v7772 = vsel %vm5004, %v7741, 0
      %v7774 = vsel %vm5004, %v7743, 0
      %v7776 = vsel %vm5004, %v7745, 0
      %v7778 = vsel %vm5004, %v7747, 0
      %v7780 = vsel %vm5004, %v7749, 0
      %v7782 = vsel %vm5004, %v7751, 0
      %v7784 = vsel %vm5004, %v7753, 0
      %v7786 = vsel %vm5004, %v7755, 0
      %v7788 = vsel %vm5004, %v7757, 0
      %v7790 = vsel %vm5004, %v7759, 0
      %v7792 = vsel %vm5004, %v7761, 0
      %v7794 = vsel %vm5004, %v7763, 0
      %7796 = vmatprep.subr.mxu0 0.0
      %7797 = vmatpush1.msra.mxu0 0.0
      %7798 = vmatprep.subr.mxu0 0.0
      %7799 = vmatpush1.msra.mxu0 0.0
      %7800 = vmatprep.subr.mxu0 0.0
      %7801 = vmatpush1.msra.mxu0 0.0
      %7802 = vmatprep.subr.mxu0 0.0
      %7803 = vmatpush1.msra.mxu0 0.0
      %7804 = vmatprep.subr.mxu0 0.0
      %7805 = vmatpush1.msra.mxu0 0.0
      %7806 = vmatprep.subr.mxu0 0.0
      %7807 = vmatpush1.msra.mxu0 0.0
      %7808 = vmatprep.subr.mxu0 0.0
      %7809 = vmatpush1.msra.mxu0 0.0
      %7810 = vmatprep.subr.mxu0 0.0
      %7811 = vmatpush1.msra.mxu0 0.0
      %7812 = vmatprep.subr.mxu0 0.0
      %7813 = vmatpush1.msra.mxu0 0.0
      %7814 = vmatprep.subr.mxu0 0.0
      %7815 = vmatpush1.msra.mxu0 0.0
      %7816 = vmatprep.subr.mxu0 0.0
      %7817 = vmatpush1.msra.mxu0 0.0
      %7818 = vmatprep.subr.mxu0 0.0
      %7819 = vmatpush1.msra.mxu0 0.0
      %7820 = vmatprep.subr.mxu0 0.0
      %7821 = vmatpush1.msra.mxu0 %v6124
      %7822 = vmatprep.subr.mxu0 0.0
      %7823 = vmatpush1.msra.mxu0 %v6123
      %7824 = vmatprep.subr.mxu0 0.0
      %7825 = vmatpush1.msra.mxu0 %v6122
      %7826 = vmatprep.subr.mxu0 0.0
      %7827 = vmatpush1.msra.mxu0 %v6121
      %7828 = vmatprep.subr.mxu0 0.0
      %7829 = vmatpush2.msra.mxu0 0.0
      %7830 = vmatprep.subr.mxu0 0.0
      %7831 = vmatpush2.msra.mxu0 0.0
      %7832 = vmatprep.subr.mxu0 0.0
      %7833 = vmatpush2.msra.mxu0 0.0
      %7834 = vmatprep.subr.mxu0 0.0
      %7835 = vmatpush2.msra.mxu0 0.0
      %7836 = vmatprep.subr.mxu0 0.0
      %7837 = vmatpush2.msra.mxu0 0.0
      %7838 = vmatprep.subr.mxu0 0.0
      %7839 = vmatpush2.msra.mxu0 0.0
      %7840 = vmatprep.subr.mxu0 0.0
      %7841 = vmatpush2.msra.mxu0 0.0
      %7842 = vmatprep.subr.mxu0 0.0
      %7843 = vmatpush2.msra.mxu0 0.0
      %7844 = vmatprep.subr.mxu0 0.0
      %7845 = vmatpush2.msra.mxu0 0.0
      %7846 = vmatprep.subr.mxu0 0.0
      %7847 = vmatpush2.msra.mxu0 0.0
      %7848 = vmatprep.subr.mxu0 0.0
      %7849 = vmatpush2.msra.mxu0 0.0
      %7850 = vmatprep.subr.mxu0 0.0
      %7851 = vmatpush2.msra.mxu0 0.0
      %7852 = vmatprep.subr.mxu0 0.0
      %7853 = vmatpush2.msra.mxu0 0.0
      %7854 = vmatprep.subr.mxu0 0.0
      %7855 = vmatpush2.msra.mxu0 0.0
      %7856 = vmatprep.subr.mxu0 0.0
      %7857 = vmatpush2.msra.mxu0 0.0
      %7858 = vmatprep.subr.mxu0 0.0
      %7859 = vmatpush2.msra.mxu0 0.0
      %7860 = vmatprep.mubr.f32.mxu0 0.0
      %7861 = vmatmul.mubr.f32.gmra.mxu0 %v7764
      %v7862 = vpop.f32.mrf.mxu0
      %v7863 = vadd.f32 %v7715, %v7862
      %v7864 = vpop.f32.mrf.mxu0
      %7865 = vmatprep.mubr.f32.mxu0 0.0
      %7866 = vmatmul.mubr.f32.gmra.mxu0 %v7766
      %v7867 = vpop.f32.mrf.mxu0
      %v7868 = vadd.f32 %v7715, %v7867
      %v7869 = vpop.f32.mrf.mxu0
      %7870 = vmatprep.mubr.f32.mxu0 0.0
      %7871 = vmatmul.mubr.f32.gmra.mxu0 %v7768
      %v7872 = vpop.f32.mrf.mxu0
      %v7873 = vadd.f32 %v7715, %v7872
      %v7874 = vpop.f32.mrf.mxu0
      %7875 = vmatprep.mubr.f32.mxu0 0.0
      %7876 = vmatmul.mubr.f32.gmra.mxu0 %v7770
      %v7877 = vpop.f32.mrf.mxu0
      %v7878 = vadd.f32 %v7715, %v7877
      %v7879 = vpop.f32.mrf.mxu0
      %7880 = vmatprep.mubr.f32.mxu0 0.0
      %7881 = vmatmul.mubr.f32.gmra.mxu0 %v7772
      %v7882 = vpop.f32.mrf.mxu0
      %v7883 = vadd.f32 %v7715, %v7882
      %v7884 = vpop.f32.mrf.mxu0
      %7885 = vmatprep.mubr.f32.mxu0 0.0
      %7886 = vmatmul.mubr.f32.gmra.mxu0 %v7774
      %v7887 = vpop.f32.mrf.mxu0
      %v7888 = vadd.f32 %v7715, %v7887
      %v7889 = vpop.f32.mrf.mxu0
      %7890 = vmatprep.mubr.f32.mxu0 0.0
      %7891 = vmatmul.mubr.f32.gmra.mxu0 %v7776
      %v7892 = vpop.f32.mrf.mxu0
      %v7893 = vadd.f32 %v7715, %v7892
      %v7894 = vpop.f32.mrf.mxu0
      %7895 = vmatprep.mubr.f32.mxu0 0.0
      %7896 = vmatmul.mubr.f32.gmra.mxu0 %v7778
      %v7897 = vpop.f32.mrf.mxu0
      %v7898 = vadd.f32 %v7715, %v7897
      %v7899 = vpop.f32.mrf.mxu0
      %7900 = vmatprep.mubr.f32.mxu0 0.0
      %7901 = vmatmul.mubr.f32.gmra.mxu0 %v7780
      %v7902 = vpop.f32.mrf.mxu0
      %v7903 = vadd.f32 %v7715, %v7902
      %v7904 = vpop.f32.mrf.mxu0
      %7905 = vmatprep.mubr.f32.mxu0 0.0
      %7906 = vmatmul.mubr.f32.gmra.mxu0 %v7782
      %v7907 = vpop.f32.mrf.mxu0
      %v7908 = vadd.f32 %v7715, %v7907
      %v7909 = vpop.f32.mrf.mxu0
      %7910 = vmatprep.mubr.f32.mxu0 0.0
      %7911 = vmatmul.mubr.f32.gmra.mxu0 %v7784
      %v7912 = vpop.f32.mrf.mxu0
      %v7913 = vadd.f32 %v7715, %v7912
      %v7914 = vpop.f32.mrf.mxu0
      %7915 = vmatprep.mubr.f32.mxu0 0.0
      %7916 = vmatmul.mubr.f32.gmra.mxu0 %v7786
      %v7917 = vpop.f32.mrf.mxu0
      %v7918 = vadd.f32 %v7715, %v7917
      %v7919 = vpop.f32.mrf.mxu0
      %7920 = vmatprep.mubr.f32.mxu0 0.0
      %7921 = vmatmul.mubr.f32.gmra.mxu0 %v7788
      %v7922 = vpop.f32.mrf.mxu0
      %v7923 = vadd.f32 %v7715, %v7922
      %v7924 = vpop.f32.mrf.mxu0
      %7925 = vmatprep.mubr.f32.mxu0 0.0
      %7926 = vmatmul.mubr.f32.gmra.mxu0 %v7790
      %v7927 = vpop.f32.mrf.mxu0
      %v7928 = vadd.f32 %v7715, %v7927
      %v7929 = vpop.f32.mrf.mxu0
      %7930 = vmatprep.mubr.f32.mxu0 0.0
      %7931 = vmatmul.mubr.f32.gmra.mxu0 %v7792
      %v7932 = vpop.f32.mrf.mxu0
      %v7933 = vadd.f32 %v7715, %v7932
      %v7934 = vpop.f32.mrf.mxu0
      %7935 = vmatprep.mubr.f32.mxu0 0.0
      %7936 = vmatmul.mubr.f32.gmra.mxu0 %v7794
      %v7937 = vpop.f32.mrf.mxu0
      %v7938 = vadd.f32 %v7715, %v7937
      %v7939 = vpop.f32.mrf.mxu0
      %7940 = vdwg.mxu0
      %7957 = vrot.lane.b32.xlu0 %v6331, 32
      %v7958 = vpop.permute.xlu0 %7957
      %7959 = vrot.lane.b32.xlu0 %v6332, 32
      %v7960 = vpop.permute.xlu0 %7959
      %7961 = vrot.lane.b32.xlu0 %v6333, 32
      %v7962 = vpop.permute.xlu0 %7961
      %7963 = vrot.lane.b32.xlu0 %v6334, 32
      %v7964 = vpop.permute.xlu0 %7963
      %7965 = vrot.lane.b32.xlu0 %v6335, 32
      %v7966 = vpop.permute.xlu0 %7965
      %7967 = vrot.lane.b32.xlu0 %v6336, 32
      %v7968 = vpop.permute.xlu0 %7967
      %7969 = vrot.lane.b32.xlu0 %v6337, 32
      %v7970 = vpop.permute.xlu0 %7969
      %7971 = vrot.lane.b32.xlu0 %v6338, 32
      %v7972 = vpop.permute.xlu0 %7971
      %7973 = vrot.lane.b32.xlu0 %v6339, 32
      %v7974 = vpop.permute.xlu0 %7973
      %7975 = vrot.lane.b32.xlu0 %v6340, 32
      %v7976 = vpop.permute.xlu0 %7975
      %7977 = vrot.lane.b32.xlu0 %v6341, 32
      %v7978 = vpop.permute.xlu0 %7977
      %7979 = vrot.lane.b32.xlu0 %v6342, 32
      %v7980 = vpop.permute.xlu0 %7979
      %7981 = vrot.lane.b32.xlu0 %v6343, 32
      %v7982 = vpop.permute.xlu0 %7981
      %7983 = vrot.lane.b32.xlu0 %v6344, 32
      %v7984 = vpop.permute.xlu0 %7983
      %7985 = vrot.lane.b32.xlu0 %v6345, 32
      %v7986 = vpop.permute.xlu0 %7985
      %7987 = vrot.lane.b32.xlu0 %v6346, 32
      %v7988 = vpop.permute.xlu0 %7987
      %v8005 = vadd.f32 %v7863, %v7958
      %v8006 = vadd.f32 %v7868, %v7960
      %v8007 = vadd.f32 %v7873, %v7962
      %v8008 = vadd.f32 %v7878, %v7964
      %v8009 = vadd.f32 %v7883, %v7966
      %v8010 = vadd.f32 %v7888, %v7968
      %v8011 = vadd.f32 %v7893, %v7970
      %v8012 = vadd.f32 %v7898, %v7972
      %v8013 = vadd.f32 %v7903, %v7974
      %v8014 = vadd.f32 %v7908, %v7976
      %v8015 = vadd.f32 %v7913, %v7978
      %v8016 = vadd.f32 %v7918, %v7980
      %v8017 = vadd.f32 %v7923, %v7982
      %v8018 = vadd.f32 %v7928, %v7984
      %v8019 = vadd.f32 %v7933, %v7986
      %v8020 = vadd.f32 %v7938, %v7988
      %v8021 = vmax.f32 %v8005, 0.0
      %v8022 = vmax.f32 %v8006, 0.0
      %v8023 = vmax.f32 %v8007, 0.0
      %v8024 = vmax.f32 %v8008, 0.0
      %v8025 = vmax.f32 %v8009, 0.0
      %v8026 = vmax.f32 %v8010, 0.0
      %v8027 = vmax.f32 %v8011, 0.0
      %v8028 = vmax.f32 %v8012, 0.0
      %v8029 = vmax.f32 %v8013, 0.0
      %v8030 = vmax.f32 %v8014, 0.0
      %v8031 = vmax.f32 %v8015, 0.0
      %v8032 = vmax.f32 %v8016, 0.0
      %v8033 = vmax.f32 %v8017, 0.0
      %v8034 = vmax.f32 %v8018, 0.0
      %v8035 = vmax.f32 %v8019, 0.0
      %v8036 = vmax.f32 %v8020, 0.0
      %v8037 = vld [vmem:[%s4 + $0x168] sm:$0xff]
      %v8038 = vld [vmem:[%s4 + $0x170] sm:$0xff]
      %v8039 = vld [vmem:[%s4 + $0x178] sm:$0xff]
      %v8040 = vld [vmem:[%s4 + $0x180] sm:$0xff]
      %v8041 = vld [vmem:[%s4 + $0x188] sm:$0xff]
      %v8042 = vld [vmem:[%s4 + $0x190] sm:$0xff]
      %v8043 = vld [vmem:[%s4 + $0x198] sm:$0xff]
      %v8044 = vld [vmem:[%s4 + $0x1a0] sm:$0xff]
      %v8045 = vld [vmem:[%s4 + $0x1a8] sm:$0xff]
      %v8046 = vld [vmem:[%s4 + $0x1b0] sm:$0xff]
      %v8047 = vld [vmem:[%s4 + $0x1b8] sm:$0xff]
      %v8048 = vld [vmem:[%s4 + $0x1c0] sm:$0xff]
      %v8049 = vld [vmem:[%s4 + $0x1c8] sm:$0xff]
      %v8050 = vld [vmem:[%s4 + $0x1d0] sm:$0xff]
      %v8051 = vld [vmem:[%s4 + $0x1d8] sm:$0xff]
      %v8052 = vld [vmem:[%s4 + $0x1e0] sm:$0xff]
      %v8053 = vld [vmem:[%s4 + $0x1e8] sm:$0x1]
      %v8054 = vld [vmem:[%s4 + $0x1e9] sm:$0x1]
      %v8055 = vld [vmem:[%s4 + $0x1ea] sm:$0x1]
      %v8056 = vld [vmem:[%s4 + $0x1eb] sm:$0x1]
      %v8058 = vsel %vm5004, %v8021, 0
      %v8061 = vsel %vm5004, %v8022, 0
      %v8064 = vsel %vm5004, %v8023, 0
      %v8067 = vsel %vm5004, %v8024, 0
      %v8070 = vsel %vm5004, %v8025, 0
      %v8073 = vsel %vm5004, %v8026, 0
      %v8076 = vsel %vm5004, %v8027, 0
      %v8079 = vsel %vm5004, %v8028, 0
      %v8082 = vsel %vm5004, %v8029, 0
      %v8085 = vsel %vm5004, %v8030, 0
      %v8088 = vsel %vm5004, %v8031, 0
      %v8091 = vsel %vm5004, %v8032, 0
      %v8094 = vsel %vm5004, %v8033, 0
      %v8097 = vsel %vm5004, %v8034, 0
      %v8100 = vsel %vm5004, %v8035, 0
      %v8103 = vsel %vm5004, %v8036, 0
      %8105 = vmatprep.subr.mxu0 0.0
      %8106 = vmatpush1.msra.mxu0 0.0
      %8107 = vmatprep.subr.mxu0 0.0
      %8108 = vmatpush1.msra.mxu0 0.0
      %8109 = vmatprep.subr.mxu0 0.0
      %8110 = vmatpush1.msra.mxu0 0.0
      %8111 = vmatprep.subr.mxu0 0.0
      %8112 = vmatpush1.msra.mxu0 0.0
      %8113 = vmatprep.subr.mxu0 0.0
      %8114 = vmatpush1.msra.mxu0 0.0
      %8115 = vmatprep.subr.mxu0 0.0
      %8116 = vmatpush1.msra.mxu0 0.0
      %8117 = vmatprep.subr.mxu0 0.0
      %8118 = vmatpush1.msra.mxu0 0.0
      %8119 = vmatprep.subr.mxu0 0.0
      %8120 = vmatpush1.msra.mxu0 0.0
      %8121 = vmatprep.subr.mxu0 0.0
      %8122 = vmatpush1.msra.mxu0 0.0
      %8123 = vmatprep.subr.mxu0 0.0
      %8124 = vmatpush1.msra.mxu0 0.0
      %8125 = vmatprep.subr.mxu0 0.0
      %8126 = vmatpush1.msra.mxu0 0.0
      %8127 = vmatprep.subr.mxu0 0.0
      %8128 = vmatpush1.msra.mxu0 0.0
      %8129 = vmatprep.subr.mxu0 0.0
      %8130 = vmatpush1.msra.mxu0 %v8040
      %8131 = vmatprep.subr.mxu0 0.0
      %8132 = vmatpush1.msra.mxu0 %v8039
      %8133 = vmatprep.subr.mxu0 0.0
      %8134 = vmatpush1.msra.mxu0 %v8038
      %8135 = vmatprep.subr.mxu0 0.0
      %8136 = vmatpush1.msra.mxu0 %v8037
      %8137 = vmatprep.subr.mxu0 0.0
      %8138 = vmatpush2.msra.mxu0 0.0
      %8139 = vmatprep.subr.mxu0 0.0
      %8140 = vmatpush2.msra.mxu0 0.0
      %8141 = vmatprep.subr.mxu0 0.0
      %8142 = vmatpush2.msra.mxu0 0.0
      %8143 = vmatprep.subr.mxu0 0.0
      %8144 = vmatpush2.msra.mxu0 0.0
      %8145 = vmatprep.subr.mxu0 0.0
      %8146 = vmatpush2.msra.mxu0 0.0
      %8147 = vmatprep.subr.mxu0 0.0
      %8148 = vmatpush2.msra.mxu0 0.0
      %8149 = vmatprep.subr.mxu0 0.0
      %8150 = vmatpush2.msra.mxu0 0.0
      %8151 = vmatprep.subr.mxu0 0.0
      %8152 = vmatpush2.msra.mxu0 0.0
      %8153 = vmatprep.subr.mxu0 0.0
      %8154 = vmatpush2.msra.mxu0 0.0
      %8155 = vmatprep.subr.mxu0 0.0
      %8156 = vmatpush2.msra.mxu0 0.0
      %8157 = vmatprep.subr.mxu0 0.0
      %8158 = vmatpush2.msra.mxu0 0.0
      %8159 = vmatprep.subr.mxu0 0.0
      %8160 = vmatpush2.msra.mxu0 0.0
      %8161 = vmatprep.subr.mxu0 0.0
      %8162 = vmatpush2.msra.mxu0 0.0
      %8163 = vmatprep.subr.mxu0 0.0
      %8164 = vmatpush2.msra.mxu0 0.0
      %8165 = vmatprep.subr.mxu0 0.0
      %8166 = vmatpush2.msra.mxu0 0.0
      %8167 = vmatprep.subr.mxu0 0.0
      %8168 = vmatpush2.msra.mxu0 0.0
      %8169 = vmatprep.mubr.f32.mxu0 0.0
      %8170 = vmatmul.mubr.f32.gmra.mxu0 %v8058
      %v8171 = vpop.f32.mrf.mxu0
      %v8172 = vadd.f32 0.0, %v8171
      %v8173 = vpop.f32.mrf.mxu0
      %8174 = vmatprep.mubr.f32.mxu0 0.0
      %8175 = vmatmul.mubr.f32.gmra.mxu0 %v8061
      %v8176 = vpop.f32.mrf.mxu0
      %v8177 = vadd.f32 0.0, %v8176
      %v8178 = vpop.f32.mrf.mxu0
      %8179 = vmatprep.mubr.f32.mxu0 0.0
      %8180 = vmatmul.mubr.f32.gmra.mxu0 %v8064
      %v8181 = vpop.f32.mrf.mxu0
      %v8182 = vadd.f32 0.0, %v8181
      %v8183 = vpop.f32.mrf.mxu0
      %8184 = vmatprep.mubr.f32.mxu0 0.0
      %8185 = vmatmul.mubr.f32.gmra.mxu0 %v8067
      %v8186 = vpop.f32.mrf.mxu0
      %v8187 = vadd.f32 0.0, %v8186
      %v8188 = vpop.f32.mrf.mxu0
      %8189 = vmatprep.mubr.f32.mxu0 0.0
      %8190 = vmatmul.mubr.f32.gmra.mxu0 %v8070
      %v8191 = vpop.f32.mrf.mxu0
      %v8192 = vadd.f32 0.0, %v8191
      %v8193 = vpop.f32.mrf.mxu0
      %8194 = vmatprep.mubr.f32.mxu0 0.0
      %8195 = vmatmul.mubr.f32.gmra.mxu0 %v8073
      %v8196 = vpop.f32.mrf.mxu0
      %v8197 = vadd.f32 0.0, %v8196
      %v8198 = vpop.f32.mrf.mxu0
      %8199 = vmatprep.mubr.f32.mxu0 0.0
      %8200 = vmatmul.mubr.f32.gmra.mxu0 %v8076
      %v8201 = vpop.f32.mrf.mxu0
      %v8202 = vadd.f32 0.0, %v8201
      %v8203 = vpop.f32.mrf.mxu0
      %8204 = vmatprep.mubr.f32.mxu0 0.0
      %8205 = vmatmul.mubr.f32.gmra.mxu0 %v8079
      %v8206 = vpop.f32.mrf.mxu0
      %v8207 = vadd.f32 0.0, %v8206
      %v8208 = vpop.f32.mrf.mxu0
      %8209 = vmatprep.mubr.f32.mxu0 0.0
      %8210 = vmatmul.mubr.f32.gmra.mxu0 %v8082
      %v8211 = vpop.f32.mrf.mxu0
      %v8212 = vadd.f32 0.0, %v8211
      %v8213 = vpop.f32.mrf.mxu0
      %8214 = vmatprep.mubr.f32.mxu0 0.0
      %8215 = vmatmul.mubr.f32.gmra.mxu0 %v8085
      %v8216 = vpop.f32.mrf.mxu0
      %v8217 = vadd.f32 0.0, %v8216
      %v8218 = vpop.f32.mrf.mxu0
      %8219 = vmatprep.mubr.f32.mxu0 0.0
      %8220 = vmatmul.mubr.f32.gmra.mxu0 %v8088
      %v8221 = vpop.f32.mrf.mxu0
      %v8222 = vadd.f32 0.0, %v8221
      %v8223 = vpop.f32.mrf.mxu0
      %8224 = vmatprep.mubr.f32.mxu0 0.0
      %8225 = vmatmul.mubr.f32.gmra.mxu0 %v8091
      %v8226 = vpop.f32.mrf.mxu0
      %v8227 = vadd.f32 0.0, %v8226
      %v8228 = vpop.f32.mrf.mxu0
      %8229 = vmatprep.mubr.f32.mxu0 0.0
      %8230 = vmatmul.mubr.f32.gmra.mxu0 %v8094
      %v8231 = vpop.f32.mrf.mxu0
      %v8232 = vadd.f32 0.0, %v8231
      %v8233 = vpop.f32.mrf.mxu0
      %8234 = vmatprep.mubr.f32.mxu0 0.0
      %8235 = vmatmul.mubr.f32.gmra.mxu0 %v8097
      %v8236 = vpop.f32.mrf.mxu0
      %v8237 = vadd.f32 0.0, %v8236
      %v8238 = vpop.f32.mrf.mxu0
      %8239 = vmatprep.mubr.f32.mxu0 0.0
      %8240 = vmatmul.mubr.f32.gmra.mxu0 %v8100
      %v8241 = vpop.f32.mrf.mxu0
      %v8242 = vadd.f32 0.0, %v8241
      %v8243 = vpop.f32.mrf.mxu0
      %8244 = vmatprep.mubr.f32.mxu0 0.0
      %8245 = vmatmul.mubr.f32.gmra.mxu0 %v8103
      %v8246 = vpop.f32.mrf.mxu0
      %v8247 = vadd.f32 0.0, %v8246
      %v8248 = vpop.f32.mrf.mxu0
      %8249 = vdwg.mxu0
      %v8250 = vld [vmem:[%s4 + $0x1ec] sm:$0x1]
      %v8251 = vlaneseq
      %v8252 = vshrl.u32 %v8251, 7
      %v8253 = vsub.s32 0, %v8252
      %v8254 = vrot.slane %v8250, %v8253
      %8256 = vrot.lane.b32.xlu0 %v8254, 96
      %v8257 = vpop.permute.xlu0 %8256
      %v8259 = vadd.f32 %v8172, %v8257
      %v8260 = vadd.f32 %v8177, %v8257
      %v8261 = vadd.f32 %v8182, %v8257
      %v8262 = vadd.f32 %v8187, %v8257
      %v8263 = vadd.f32 %v8192, %v8257
      %v8264 = vadd.f32 %v8197, %v8257
      %v8265 = vadd.f32 %v8202, %v8257
      %v8266 = vadd.f32 %v8207, %v8257
      %v8267 = vadd.f32 %v8212, %v8257
      %v8268 = vadd.f32 %v8217, %v8257
      %v8269 = vadd.f32 %v8222, %v8257
      %v8270 = vadd.f32 %v8227, %v8257
      %v8271 = vadd.f32 %v8232, %v8257
      %v8272 = vadd.f32 %v8237, %v8257
      %v8273 = vadd.f32 %v8242, %v8257
      %v8274 = vadd.f32 %v8247, %v8257
      %8291 = vrot.lane.b32.xlu0 %v8172, 96
      %v8292 = vpop.permute.xlu0 %8291
      %8293 = vrot.lane.b32.xlu0 %v8177, 96
      %v8294 = vpop.permute.xlu0 %8293
      %8295 = vrot.lane.b32.xlu0 %v8182, 96
      %v8296 = vpop.permute.xlu0 %8295
      %8297 = vrot.lane.b32.xlu0 %v8187, 96
      %v8298 = vpop.permute.xlu0 %8297
      %8299 = vrot.lane.b32.xlu0 %v8192, 96
      %v8300 = vpop.permute.xlu0 %8299
      %8301 = vrot.lane.b32.xlu0 %v8197, 96
      %v8302 = vpop.permute.xlu0 %8301
      %8303 = vrot.lane.b32.xlu0 %v8202, 96
      %v8304 = vpop.permute.xlu0 %8303
      %8305 = vrot.lane.b32.xlu0 %v8207, 96
      %v8306 = vpop.permute.xlu0 %8305
      %8307 = vrot.lane.b32.xlu0 %v8212, 96
      %v8308 = vpop.permute.xlu0 %8307
      %8309 = vrot.lane.b32.xlu0 %v8217, 96
      %v8310 = vpop.permute.xlu0 %8309
      %8311 = vrot.lane.b32.xlu0 %v8222, 96
      %v8312 = vpop.permute.xlu0 %8311
      %8313 = vrot.lane.b32.xlu0 %v8227, 96
      %v8314 = vpop.permute.xlu0 %8313
      %8315 = vrot.lane.b32.xlu0 %v8232, 96
      %v8316 = vpop.permute.xlu0 %8315
      %8317 = vrot.lane.b32.xlu0 %v8237, 96
      %v8318 = vpop.permute.xlu0 %8317
      %8319 = vrot.lane.b32.xlu0 %v8242, 96
      %v8320 = vpop.permute.xlu0 %8319
      %8321 = vrot.lane.b32.xlu0 %v8247, 96
      %v8322 = vpop.permute.xlu0 %8321
      %8339 = vmatprep.subr.mxu0 0.0
      %8340 = vmatpush1.msra.mxu0 %v8322
      %8341 = vmatprep.subr.mxu0 0.0
      %8342 = vmatpush1.msra.mxu0 %v8320
      %8343 = vmatprep.subr.mxu0 0.0
      %8344 = vmatpush1.msra.mxu0 %v8318
      %8345 = vmatprep.subr.mxu0 0.0
      %8346 = vmatpush1.msra.mxu0 %v8316
      %8347 = vmatprep.subr.mxu0 0.0
      %8348 = vmatpush1.msra.mxu0 %v8314
      %8349 = vmatprep.subr.mxu0 0.0
      %8350 = vmatpush1.msra.mxu0 %v8312
      %8351 = vmatprep.subr.mxu0 0.0
      %8352 = vmatpush1.msra.mxu0 %v8310
      %8353 = vmatprep.subr.mxu0 0.0
      %8354 = vmatpush1.msra.mxu0 %v8308
      %8355 = vmatprep.subr.mxu0 0.0
      %8356 = vmatpush1.msra.mxu0 %v8306
      %8357 = vmatprep.subr.mxu0 0.0
      %8358 = vmatpush1.msra.mxu0 %v8304
      %8359 = vmatprep.subr.mxu0 0.0
      %8360 = vmatpush1.msra.mxu0 %v8302
      %8361 = vmatprep.subr.mxu0 0.0
      %8362 = vmatpush1.msra.mxu0 %v8300
      %8363 = vmatprep.subr.mxu0 0.0
      %8364 = vmatpush1.msra.mxu0 %v8298
      %8365 = vmatprep.subr.mxu0 0.0
      %8366 = vmatpush1.msra.mxu0 %v8296
      %8367 = vmatprep.subr.mxu0 0.0
      %8368 = vmatpush1.msra.mxu0 %v8294
      %8369 = vmatprep.subr.mxu0 0.0
      %8370 = vmatpush1.msra.mxu0 %v8292
      %8371 = vmatprep.subr.mxu0 0.0
      %8372 = vmatpush2.msra.mxu0 0.0
      %8373 = vmatprep.subr.mxu0 0.0
      %8374 = vmatpush2.msra.mxu0 0.0
      %8375 = vmatprep.subr.mxu0 0.0
      %8376 = vmatpush2.msra.mxu0 0.0
      %8377 = vmatprep.subr.mxu0 0.0
      %8378 = vmatpush2.msra.mxu0 0.0
      %8379 = vmatprep.subr.mxu0 0.0
      %8380 = vmatpush2.msra.mxu0 0.0
      %8381 = vmatprep.subr.mxu0 0.0
      %8382 = vmatpush2.msra.mxu0 0.0
      %8383 = vmatprep.subr.mxu0 0.0
      %8384 = vmatpush2.msra.mxu0 0.0
      %8385 = vmatprep.subr.mxu0 0.0
      %8386 = vmatpush2.msra.mxu0 0.0
      %8387 = vmatprep.subr.mxu0 0.0
      %8388 = vmatpush2.msra.mxu0 0.0
      %8389 = vmatprep.subr.mxu0 0.0
      %8390 = vmatpush2.msra.mxu0 0.0
      %8391 = vmatprep.subr.mxu0 0.0
      %8392 = vmatpush2.msra.mxu0 0.0
      %8393 = vmatprep.subr.mxu0 0.0
      %8394 = vmatpush2.msra.mxu0 0.0
      %8395 = vmatprep.subr.mxu0 0.0
      %8396 = vmatpush2.msra.mxu0 0.0
      %8397 = vmatprep.subr.mxu0 0.0
      %8398 = vmatpush2.msra.mxu0 0.0
      %8399 = vmatprep.subr.mxu0 0.0
      %8400 = vmatpush2.msra.mxu0 0.0
      %8401 = vmatprep.subr.mxu0 0.0
      %8402 = vmatpush2.msra.mxu0 0.0
      %8403 = vmatprep.mubr.f32.mxu0 0.0
      %8404 = vmatmul.mubr.f32.gmra.mxu0 %v260
      %v8405 = vpop.f32.mrf.mxu0
      %v8406 = vadd.f32 0.0, %v8405
      %v8407 = vpop.f32.mrf.mxu0
      %8408 = vmatprep.mubr.f32.mxu0 0.0
      %8409 = vmatmul.mubr.f32.gmra.mxu0 %v261
      %v8410 = vpop.f32.mrf.mxu0
      %v8411 = vadd.f32 0.0, %v8410
      %v8412 = vpop.f32.mrf.mxu0
      %8413 = vmatprep.mubr.f32.mxu0 0.0
      %8414 = vmatmul.mubr.f32.gmra.mxu0 %v262
      %v8415 = vpop.f32.mrf.mxu0
      %v8416 = vadd.f32 0.0, %v8415
      %v8417 = vpop.f32.mrf.mxu0
      %8418 = vmatprep.mubr.f32.mxu0 0.0
      %8419 = vmatmul.mubr.f32.gmra.mxu0 %v263
      %v8420 = vpop.f32.mrf.mxu0
      %v8421 = vadd.f32 0.0, %v8420
      %v8422 = vpop.f32.mrf.mxu0
      %8423 = vmatprep.mubr.f32.mxu0 0.0
      %8424 = vmatmul.mubr.f32.gmra.mxu0 %v264
      %v8425 = vpop.f32.mrf.mxu0
      %v8426 = vadd.f32 0.0, %v8425
      %v8427 = vpop.f32.mrf.mxu0
      %8428 = vmatprep.mubr.f32.mxu0 0.0
      %8429 = vmatmul.mubr.f32.gmra.mxu0 %v265
      %v8430 = vpop.f32.mrf.mxu0
      %v8431 = vadd.f32 0.0, %v8430
      %v8432 = vpop.f32.mrf.mxu0
      %8433 = vmatprep.mubr.f32.mxu0 0.0
      %8434 = vmatmul.mubr.f32.gmra.mxu0 %v266
      %v8435 = vpop.f32.mrf.mxu0
      %v8436 = vadd.f32 0.0, %v8435
      %v8437 = vpop.f32.mrf.mxu0
      %8438 = vmatprep.mubr.f32.mxu0 0.0
      %8439 = vmatmul.mubr.f32.gmra.mxu0 %v267
      %v8440 = vpop.f32.mrf.mxu0
      %v8441 = vadd.f32 0.0, %v8440
      %v8442 = vpop.f32.mrf.mxu0
      %8443 = vmatprep.mubr.f32.mxu0 0.0
      %8444 = vmatmul.mubr.f32.gmra.mxu0 %v268
      %v8445 = vpop.f32.mrf.mxu0
      %v8446 = vadd.f32 0.0, %v8445
      %v8447 = vpop.f32.mrf.mxu0
      %8448 = vmatprep.mubr.f32.mxu0 0.0
      %8449 = vmatmul.mubr.f32.gmra.mxu0 %v269
      %v8450 = vpop.f32.mrf.mxu0
      %v8451 = vadd.f32 0.0, %v8450
      %v8452 = vpop.f32.mrf.mxu0
      %8453 = vmatprep.mubr.f32.mxu0 0.0
      %8454 = vmatmul.mubr.f32.gmra.mxu0 %v270
      %v8455 = vpop.f32.mrf.mxu0
      %v8456 = vadd.f32 0.0, %v8455
      %v8457 = vpop.f32.mrf.mxu0
      %8458 = vmatprep.mubr.f32.mxu0 0.0
      %8459 = vmatmul.mubr.f32.gmra.mxu0 %v271
      %v8460 = vpop.f32.mrf.mxu0
      %v8461 = vadd.f32 0.0, %v8460
      %v8462 = vpop.f32.mrf.mxu0
      %8463 = vmatprep.mubr.f32.mxu0 0.0
      %8464 = vmatmul.mubr.f32.gmra.mxu0 %v272
      %v8465 = vpop.f32.mrf.mxu0
      %v8466 = vadd.f32 0.0, %v8465
      %v8467 = vpop.f32.mrf.mxu0
      %8468 = vmatprep.mubr.f32.mxu0 0.0
      %8469 = vmatmul.mubr.f32.gmra.mxu0 %v273
      %v8470 = vpop.f32.mrf.mxu0
      %v8471 = vadd.f32 0.0, %v8470
      %v8472 = vpop.f32.mrf.mxu0
      %8473 = vmatprep.mubr.f32.mxu0 0.0
      %8474 = vmatmul.mubr.f32.gmra.mxu0 %v274
      %v8475 = vpop.f32.mrf.mxu0
      %v8476 = vadd.f32 0.0, %v8475
      %v8477 = vpop.f32.mrf.mxu0
      %8478 = vmatprep.mubr.f32.mxu0 0.0
      %8479 = vmatmul.mubr.f32.gmra.mxu0 %v275
      %v8480 = vpop.f32.mrf.mxu0
      %v8481 = vadd.f32 0.0, %v8480
      %v8482 = vpop.f32.mrf.mxu0
      %8483 = vmatprep.mubr.f32.mxu0 0.0
      %8484 = vmatmul.mubr.f32.gmra.mxu0 %v276
      %v8485 = vpop.f32.mrf.mxu0
      %v8486 = vadd.f32 0.0, %v8485
      %v8487 = vpop.f32.mrf.mxu0
      %8488 = vmatprep.mubr.f32.mxu0 0.0
      %8489 = vmatmul.mubr.f32.gmra.mxu0 %v277
      %v8490 = vpop.f32.mrf.mxu0
      %v8491 = vadd.f32 0.0, %v8490
      %v8492 = vpop.f32.mrf.mxu0
      %8493 = vmatprep.mubr.f32.mxu0 0.0
      %8494 = vmatmul.mubr.f32.gmra.mxu0 %v278
      %v8495 = vpop.f32.mrf.mxu0
      %v8496 = vadd.f32 0.0, %v8495
      %v8497 = vpop.f32.mrf.mxu0
      %8498 = vmatprep.mubr.f32.mxu0 0.0
      %8499 = vmatmul.mubr.f32.gmra.mxu0 %v279
      %v8500 = vpop.f32.mrf.mxu0
      %v8501 = vadd.f32 0.0, %v8500
      %v8502 = vpop.f32.mrf.mxu0
      %8503 = vmatprep.mubr.f32.mxu0 0.0
      %8504 = vmatmul.mubr.f32.gmra.mxu0 %v280
      %v8505 = vpop.f32.mrf.mxu0
      %v8506 = vadd.f32 0.0, %v8505
      %v8507 = vpop.f32.mrf.mxu0
      %8508 = vmatprep.mubr.f32.mxu0 0.0
      %8509 = vmatmul.mubr.f32.gmra.mxu0 %v281
      %v8510 = vpop.f32.mrf.mxu0
      %v8511 = vadd.f32 0.0, %v8510
      %v8512 = vpop.f32.mrf.mxu0
      %8513 = vmatprep.mubr.f32.mxu0 0.0
      %8514 = vmatmul.mubr.f32.gmra.mxu0 %v282
      %v8515 = vpop.f32.mrf.mxu0
      %v8516 = vadd.f32 0.0, %v8515
      %v8517 = vpop.f32.mrf.mxu0
      %8518 = vmatprep.mubr.f32.mxu0 0.0
      %8519 = vmatmul.mubr.f32.gmra.mxu0 %v283
      %v8520 = vpop.f32.mrf.mxu0
      %v8521 = vadd.f32 0.0, %v8520
      %v8522 = vpop.f32.mrf.mxu0
      %8523 = vmatprep.mubr.f32.mxu0 0.0
      %8524 = vmatmul.mubr.f32.gmra.mxu0 %v284
      %v8525 = vpop.f32.mrf.mxu0
      %v8526 = vadd.f32 0.0, %v8525
      %v8527 = vpop.f32.mrf.mxu0
      %8528 = vmatprep.mubr.f32.mxu0 0.0
      %8529 = vmatmul.mubr.f32.gmra.mxu0 %v285
      %v8530 = vpop.f32.mrf.mxu0
      %v8531 = vadd.f32 0.0, %v8530
      %v8532 = vpop.f32.mrf.mxu0
      %8533 = vmatprep.mubr.f32.mxu0 0.0
      %8534 = vmatmul.mubr.f32.gmra.mxu0 %v286
      %v8535 = vpop.f32.mrf.mxu0
      %v8536 = vadd.f32 0.0, %v8535
      %v8537 = vpop.f32.mrf.mxu0
      %8538 = vmatprep.mubr.f32.mxu0 0.0
      %8539 = vmatmul.mubr.f32.gmra.mxu0 %v287
      %v8540 = vpop.f32.mrf.mxu0
      %v8541 = vadd.f32 0.0, %v8540
      %v8542 = vpop.f32.mrf.mxu0
      %8543 = vmatprep.mubr.f32.mxu0 0.0
      %8544 = vmatmul.mubr.f32.gmra.mxu0 %v288
      %v8545 = vpop.f32.mrf.mxu0
      %v8546 = vadd.f32 0.0, %v8545
      %v8547 = vpop.f32.mrf.mxu0
      %8548 = vmatprep.mubr.f32.mxu0 0.0
      %8549 = vmatmul.mubr.f32.gmra.mxu0 %v289
      %v8550 = vpop.f32.mrf.mxu0
      %v8551 = vadd.f32 0.0, %v8550
      %v8552 = vpop.f32.mrf.mxu0
      %8553 = vmatprep.mubr.f32.mxu0 0.0
      %8554 = vmatmul.mubr.f32.gmra.mxu0 %v290
      %v8555 = vpop.f32.mrf.mxu0
      %v8556 = vadd.f32 0.0, %v8555
      %v8557 = vpop.f32.mrf.mxu0
      %8558 = vmatprep.mubr.f32.mxu0 0.0
      %8559 = vmatmul.mubr.f32.gmra.mxu0 %v291
      %v8560 = vpop.f32.mrf.mxu0
      %v8561 = vadd.f32 0.0, %v8560
      %v8562 = vpop.f32.mrf.mxu0
      %8563 = vdwg.mxu0
      %8564 = vmatprep.subr.mxu0 0.0
      %8565 = vmatpush1.msra.mxu0 %v8247
      %8566 = vmatprep.subr.mxu0 0.0
      %8567 = vmatpush1.msra.mxu0 %v8242
      %8568 = vmatprep.subr.mxu0 0.0
      %8569 = vmatpush1.msra.mxu0 %v8237
      %8570 = vmatprep.subr.mxu0 0.0
      %8571 = vmatpush1.msra.mxu0 %v8232
      %8572 = vmatprep.subr.mxu0 0.0
      %8573 = vmatpush1.msra.mxu0 %v8227
      %8574 = vmatprep.subr.mxu0 0.0
      %8575 = vmatpush1.msra.mxu0 %v8222
      %8576 = vmatprep.subr.mxu0 0.0
      %8577 = vmatpush1.msra.mxu0 %v8217
      %8578 = vmatprep.subr.mxu0 0.0
      %8579 = vmatpush1.msra.mxu0 %v8212
      %8580 = vmatprep.subr.mxu0 0.0
      %8581 = vmatpush1.msra.mxu0 %v8207
      %8582 = vmatprep.subr.mxu0 0.0
      %8583 = vmatpush1.msra.mxu0 %v8202
      %8584 = vmatprep.subr.mxu0 0.0
      %8585 = vmatpush1.msra.mxu0 %v8197
      %8586 = vmatprep.subr.mxu0 0.0
      %8587 = vmatpush1.msra.mxu0 %v8192
      %8588 = vmatprep.subr.mxu0 0.0
      %8589 = vmatpush1.msra.mxu0 %v8187
      %8590 = vmatprep.subr.mxu0 0.0
      %8591 = vmatpush1.msra.mxu0 %v8182
      %8592 = vmatprep.subr.mxu0 0.0
      %8593 = vmatpush1.msra.mxu0 %v8177
      %8594 = vmatprep.subr.mxu0 0.0
      %8595 = vmatpush1.msra.mxu0 %v8172
      %8596 = vmatprep.subr.mxu0 0.0
      %8597 = vmatpush2.msra.mxu0 0.0
      %8598 = vmatprep.subr.mxu0 0.0
      %8599 = vmatpush2.msra.mxu0 0.0
      %8600 = vmatprep.subr.mxu0 0.0
      %8601 = vmatpush2.msra.mxu0 0.0
      %8602 = vmatprep.subr.mxu0 0.0
      %8603 = vmatpush2.msra.mxu0 0.0
      %8604 = vmatprep.subr.mxu0 0.0
      %8605 = vmatpush2.msra.mxu0 0.0
      %8606 = vmatprep.subr.mxu0 0.0
      %8607 = vmatpush2.msra.mxu0 0.0
      %8608 = vmatprep.subr.mxu0 0.0
      %8609 = vmatpush2.msra.mxu0 0.0
      %8610 = vmatprep.subr.mxu0 0.0
      %8611 = vmatpush2.msra.mxu0 0.0
      %8612 = vmatprep.subr.mxu0 0.0
      %8613 = vmatpush2.msra.mxu0 0.0
      %8614 = vmatprep.subr.mxu0 0.0
      %8615 = vmatpush2.msra.mxu0 0.0
      %8616 = vmatprep.subr.mxu0 0.0
      %8617 = vmatpush2.msra.mxu0 0.0
      %8618 = vmatprep.subr.mxu0 0.0
      %8619 = vmatpush2.msra.mxu0 0.0
      %8620 = vmatprep.subr.mxu0 0.0
      %8621 = vmatpush2.msra.mxu0 0.0
      %8622 = vmatprep.subr.mxu0 0.0
      %8623 = vmatpush2.msra.mxu0 0.0
      %8624 = vmatprep.subr.mxu0 0.0
      %8625 = vmatpush2.msra.mxu0 0.0
      %8626 = vmatprep.subr.mxu0 0.0
      %8627 = vmatpush2.msra.mxu0 0.0
      %8628 = vmatprep.mubr.f32.mxu0 0.0
      %8629 = vmatmul.mubr.f32.gmra.mxu0 %v228
      %v8630 = vpop.f32.mrf.mxu0
      %v8631 = vadd.f32 %v8406, %v8630
      %v8632 = vpop.f32.mrf.mxu0
      %8633 = vmatprep.mubr.f32.mxu0 0.0
      %8634 = vmatmul.mubr.f32.gmra.mxu0 %v229
      %v8635 = vpop.f32.mrf.mxu0
      %v8636 = vadd.f32 %v8411, %v8635
      %v8637 = vpop.f32.mrf.mxu0
      %8638 = vmatprep.mubr.f32.mxu0 0.0
      %8639 = vmatmul.mubr.f32.gmra.mxu0 %v230
      %v8640 = vpop.f32.mrf.mxu0
      %v8641 = vadd.f32 %v8416, %v8640
      %v8642 = vpop.f32.mrf.mxu0
      %8643 = vmatprep.mubr.f32.mxu0 0.0
      %8644 = vmatmul.mubr.f32.gmra.mxu0 %v231
      %v8645 = vpop.f32.mrf.mxu0
      %v8646 = vadd.f32 %v8421, %v8645
      %v8647 = vpop.f32.mrf.mxu0
      %8648 = vmatprep.mubr.f32.mxu0 0.0
      %8649 = vmatmul.mubr.f32.gmra.mxu0 %v232
      %v8650 = vpop.f32.mrf.mxu0
      %v8651 = vadd.f32 %v8426, %v8650
      %v8652 = vpop.f32.mrf.mxu0
      %8653 = vmatprep.mubr.f32.mxu0 0.0
      %8654 = vmatmul.mubr.f32.gmra.mxu0 %v233
      %v8655 = vpop.f32.mrf.mxu0
      %v8656 = vadd.f32 %v8431, %v8655
      %v8657 = vpop.f32.mrf.mxu0
      %8658 = vmatprep.mubr.f32.mxu0 0.0
      %8659 = vmatmul.mubr.f32.gmra.mxu0 %v234
      %v8660 = vpop.f32.mrf.mxu0
      %v8661 = vadd.f32 %v8436, %v8660
      %v8662 = vpop.f32.mrf.mxu0
      %8663 = vmatprep.mubr.f32.mxu0 0.0
      %8664 = vmatmul.mubr.f32.gmra.mxu0 %v235
      %v8665 = vpop.f32.mrf.mxu0
      %v8666 = vadd.f32 %v8441, %v8665
      %v8667 = vpop.f32.mrf.mxu0
      %8668 = vmatprep.mubr.f32.mxu0 0.0
      %8669 = vmatmul.mubr.f32.gmra.mxu0 %v236
      %v8670 = vpop.f32.mrf.mxu0
      %v8671 = vadd.f32 %v8446, %v8670
      %v8672 = vpop.f32.mrf.mxu0
      %8673 = vmatprep.mubr.f32.mxu0 0.0
      %8674 = vmatmul.mubr.f32.gmra.mxu0 %v237
      %v8675 = vpop.f32.mrf.mxu0
      %v8676 = vadd.f32 %v8451, %v8675
      %v8677 = vpop.f32.mrf.mxu0
      %8678 = vmatprep.mubr.f32.mxu0 0.0
      %8679 = vmatmul.mubr.f32.gmra.mxu0 %v238
      %v8680 = vpop.f32.mrf.mxu0
      %v8681 = vadd.f32 %v8456, %v8680
      %v8682 = vpop.f32.mrf.mxu0
      %8683 = vmatprep.mubr.f32.mxu0 0.0
      %8684 = vmatmul.mubr.f32.gmra.mxu0 %v239
      %v8685 = vpop.f32.mrf.mxu0
      %v8686 = vadd.f32 %v8461, %v8685
      %v8687 = vpop.f32.mrf.mxu0
      %8688 = vmatprep.mubr.f32.mxu0 0.0
      %8689 = vmatmul.mubr.f32.gmra.mxu0 %v240
      %v8690 = vpop.f32.mrf.mxu0
      %v8691 = vadd.f32 %v8466, %v8690
      %v8692 = vpop.f32.mrf.mxu0
      %8693 = vmatprep.mubr.f32.mxu0 0.0
      %8694 = vmatmul.mubr.f32.gmra.mxu0 %v241
      %v8695 = vpop.f32.mrf.mxu0
      %v8696 = vadd.f32 %v8471, %v8695
      %v8697 = vpop.f32.mrf.mxu0
      %8698 = vmatprep.mubr.f32.mxu0 0.0
      %8699 = vmatmul.mubr.f32.gmra.mxu0 %v242
      %v8700 = vpop.f32.mrf.mxu0
      %v8701 = vadd.f32 %v8476, %v8700
      %v8702 = vpop.f32.mrf.mxu0
      %8703 = vmatprep.mubr.f32.mxu0 0.0
      %8704 = vmatmul.mubr.f32.gmra.mxu0 %v243
      %v8705 = vpop.f32.mrf.mxu0
      %v8706 = vadd.f32 %v8481, %v8705
      %v8707 = vpop.f32.mrf.mxu0
      %8708 = vmatprep.mubr.f32.mxu0 0.0
      %8709 = vmatmul.mubr.f32.gmra.mxu0 %v244
      %v8710 = vpop.f32.mrf.mxu0
      %v8711 = vadd.f32 %v8486, %v8710
      %v8712 = vpop.f32.mrf.mxu0
      %8713 = vmatprep.mubr.f32.mxu0 0.0
      %8714 = vmatmul.mubr.f32.gmra.mxu0 %v245
      %v8715 = vpop.f32.mrf.mxu0
      %v8716 = vadd.f32 %v8491, %v8715
      %v8717 = vpop.f32.mrf.mxu0
      %8718 = vmatprep.mubr.f32.mxu0 0.0
      %8719 = vmatmul.mubr.f32.gmra.mxu0 %v246
      %v8720 = vpop.f32.mrf.mxu0
      %v8721 = vadd.f32 %v8496, %v8720
      %v8722 = vpop.f32.mrf.mxu0
      %8723 = vmatprep.mubr.f32.mxu0 0.0
      %8724 = vmatmul.mubr.f32.gmra.mxu0 %v247
      %v8725 = vpop.f32.mrf.mxu0
      %v8726 = vadd.f32 %v8501, %v8725
      %v8727 = vpop.f32.mrf.mxu0
      %8728 = vmatprep.mubr.f32.mxu0 0.0
      %8729 = vmatmul.mubr.f32.gmra.mxu0 %v248
      %v8730 = vpop.f32.mrf.mxu0
      %v8731 = vadd.f32 %v8506, %v8730
      %v8732 = vpop.f32.mrf.mxu0
      %8733 = vmatprep.mubr.f32.mxu0 0.0
      %8734 = vmatmul.mubr.f32.gmra.mxu0 %v249
      %v8735 = vpop.f32.mrf.mxu0
      %v8736 = vadd.f32 %v8511, %v8735
      %v8737 = vpop.f32.mrf.mxu0
      %8738 = vmatprep.mubr.f32.mxu0 0.0
      %8739 = vmatmul.mubr.f32.gmra.mxu0 %v250
      %v8740 = vpop.f32.mrf.mxu0
      %v8741 = vadd.f32 %v8516, %v8740
      %v8742 = vpop.f32.mrf.mxu0
      %8743 = vmatprep.mubr.f32.mxu0 0.0
      %8744 = vmatmul.mubr.f32.gmra.mxu0 %v251
      %v8745 = vpop.f32.mrf.mxu0
      %v8746 = vadd.f32 %v8521, %v8745
      %v8747 = vpop.f32.mrf.mxu0
      %8748 = vmatprep.mubr.f32.mxu0 0.0
      %8749 = vmatmul.mubr.f32.gmra.mxu0 %v252
      %v8750 = vpop.f32.mrf.mxu0
      %v8751 = vadd.f32 %v8526, %v8750
      %v8752 = vpop.f32.mrf.mxu0
      %8753 = vmatprep.mubr.f32.mxu0 0.0
      %8754 = vmatmul.mubr.f32.gmra.mxu0 %v253
      %v8755 = vpop.f32.mrf.mxu0
      %v8756 = vadd.f32 %v8531, %v8755
      %v8757 = vpop.f32.mrf.mxu0
      %8758 = vmatprep.mubr.f32.mxu0 0.0
      %8759 = vmatmul.mubr.f32.gmra.mxu0 %v254
      %v8760 = vpop.f32.mrf.mxu0
      %v8761 = vadd.f32 %v8536, %v8760
      %v8762 = vpop.f32.mrf.mxu0
      %8763 = vmatprep.mubr.f32.mxu0 0.0
      %8764 = vmatmul.mubr.f32.gmra.mxu0 %v255
      %v8765 = vpop.f32.mrf.mxu0
      %v8766 = vadd.f32 %v8541, %v8765
      %v8767 = vpop.f32.mrf.mxu0
      %8768 = vmatprep.mubr.f32.mxu0 0.0
      %8769 = vmatmul.mubr.f32.gmra.mxu0 %v256
      %v8770 = vpop.f32.mrf.mxu0
      %v8771 = vadd.f32 %v8546, %v8770
      %v8772 = vpop.f32.mrf.mxu0
      %8773 = vmatprep.mubr.f32.mxu0 0.0
      %8774 = vmatmul.mubr.f32.gmra.mxu0 %v257
      %v8775 = vpop.f32.mrf.mxu0
      %v8776 = vadd.f32 %v8551, %v8775
      %v8777 = vpop.f32.mrf.mxu0
      %8778 = vmatprep.mubr.f32.mxu0 0.0
      %8779 = vmatmul.mubr.f32.gmra.mxu0 %v258
      %v8780 = vpop.f32.mrf.mxu0
      %v8781 = vadd.f32 %v8556, %v8780
      %v8782 = vpop.f32.mrf.mxu0
      %8783 = vmatprep.mubr.f32.mxu0 0.0
      %8784 = vmatmul.mubr.f32.gmra.mxu0 %v259
      %v8785 = vpop.f32.mrf.mxu0
      %v8786 = vadd.f32 %v8561, %v8785
      %v8787 = vpop.f32.mrf.mxu0
      %8788 = vdwg.mxu0
      %v8789 = vlaneseq
      %v8790 = vshrl.u32 %v8789, 7
      %v8791 = vsub.s32 0, %v8790
      %v8792 = vrot.slane %v8053, %v8791
      %v8793 = vadd.f32 %v8631, %v8792
      %v8794 = vadd.f32 %v8636, %v8792
      %v8795 = vadd.f32 %v8641, %v8792
      %v8796 = vadd.f32 %v8646, %v8792
      %v8797 = vadd.f32 %v8651, %v8792
      %v8798 = vadd.f32 %v8656, %v8792
      %v8799 = vadd.f32 %v8661, %v8792
      %v8800 = vadd.f32 %v8666, %v8792
      %v8801 = vadd.f32 %v8671, %v8792
      %v8802 = vadd.f32 %v8676, %v8792
      %v8803 = vadd.f32 %v8681, %v8792
      %v8804 = vadd.f32 %v8686, %v8792
      %v8805 = vadd.f32 %v8691, %v8792
      %v8806 = vadd.f32 %v8696, %v8792
      %v8807 = vadd.f32 %v8701, %v8792
      %v8808 = vadd.f32 %v8706, %v8792
      %v8809 = vadd.f32 %v8711, %v8792
      %v8810 = vadd.f32 %v8716, %v8792
      %v8811 = vadd.f32 %v8721, %v8792
      %v8812 = vadd.f32 %v8726, %v8792
      %v8813 = vadd.f32 %v8731, %v8792
      %v8814 = vadd.f32 %v8736, %v8792
      %v8815 = vadd.f32 %v8741, %v8792
      %v8816 = vadd.f32 %v8746, %v8792
      %v8817 = vadd.f32 %v8751, %v8792
      %v8818 = vadd.f32 %v8756, %v8792
      %v8819 = vadd.f32 %v8761, %v8792
      %v8820 = vadd.f32 %v8766, %v8792
      %v8821 = vadd.f32 %v8771, %v8792
      %v8822 = vadd.f32 %v8776, %v8792
      %v8823 = vadd.f32 %v8781, %v8792
      %v8824 = vadd.f32 %v8786, %v8792
      %v8825 = vmax.f32 %v8793, 0.0
      %v8826 = vmax.f32 %v8794, 0.0
      %v8827 = vmax.f32 %v8795, 0.0
      %v8828 = vmax.f32 %v8796, 0.0
      %v8829 = vmax.f32 %v8797, 0.0
      %v8830 = vmax.f32 %v8798, 0.0
      %v8831 = vmax.f32 %v8799, 0.0
      %v8832 = vmax.f32 %v8800, 0.0
      %v8833 = vmax.f32 %v8801, 0.0
      %v8834 = vmax.f32 %v8802, 0.0
      %v8835 = vmax.f32 %v8803, 0.0
      %v8836 = vmax.f32 %v8804, 0.0
      %v8837 = vmax.f32 %v8805, 0.0
      %v8838 = vmax.f32 %v8806, 0.0
      %v8839 = vmax.f32 %v8807, 0.0
      %v8840 = vmax.f32 %v8808, 0.0
      %v8841 = vmax.f32 %v8809, 0.0
      %v8842 = vmax.f32 %v8810, 0.0
      %v8843 = vmax.f32 %v8811, 0.0
      %v8844 = vmax.f32 %v8812, 0.0
      %v8845 = vmax.f32 %v8813, 0.0
      %v8846 = vmax.f32 %v8814, 0.0
      %v8847 = vmax.f32 %v8815, 0.0
      %v8848 = vmax.f32 %v8816, 0.0
      %v8849 = vmax.f32 %v8817, 0.0
      %v8850 = vmax.f32 %v8818, 0.0
      %v8851 = vmax.f32 %v8819, 0.0
      %v8852 = vmax.f32 %v8820, 0.0
      %v8853 = vmax.f32 %v8821, 0.0
      %v8854 = vmax.f32 %v8822, 0.0
      %v8855 = vmax.f32 %v8823, 0.0
      %v8856 = vmax.f32 %v8824, 0.0
      %v8857 = vlaneseq
      %v8858 = vshrl.u32 %v8857, 7
      %v8859 = vsub.s32 0, %v8858
      %v8860 = vrot.slane %v8054, %v8859
      %v8862 = vsel %vm5004, %v8825, 0
      %v8865 = vsel %vm5004, %v8826, 0
      %v8868 = vsel %vm5004, %v8827, 0
      %v8871 = vsel %vm5004, %v8828, 0
      %v8874 = vsel %vm5004, %v8829, 0
      %v8877 = vsel %vm5004, %v8830, 0
      %v8880 = vsel %vm5004, %v8831, 0
      %v8883 = vsel %vm5004, %v8832, 0
      %v8886 = vsel %vm5004, %v8833, 0
      %v8889 = vsel %vm5004, %v8834, 0
      %v8892 = vsel %vm5004, %v8835, 0
      %v8895 = vsel %vm5004, %v8836, 0
      %v8898 = vsel %vm5004, %v8837, 0
      %v8901 = vsel %vm5004, %v8838, 0
      %v8904 = vsel %vm5004, %v8839, 0
      %v8907 = vsel %vm5004, %v8840, 0
      %v8910 = vsel %vm5004, %v8841, 0
      %v8913 = vsel %vm5004, %v8842, 0
      %v8916 = vsel %vm5004, %v8843, 0
      %v8919 = vsel %vm5004, %v8844, 0
      %v8922 = vsel %vm5004, %v8845, 0
      %v8925 = vsel %vm5004, %v8846, 0
      %v8928 = vsel %vm5004, %v8847, 0
      %v8931 = vsel %vm5004, %v8848, 0
      %v8934 = vsel %vm5004, %v8849, 0
      %v8937 = vsel %vm5004, %v8850, 0
      %v8940 = vsel %vm5004, %v8851, 0
      %v8943 = vsel %vm5004, %v8852, 0
      %v8946 = vsel %vm5004, %v8853, 0
      %v8949 = vsel %vm5004, %v8854, 0
      %v8952 = vsel %vm5004, %v8855, 0
      %v8955 = vsel %vm5004, %v8856, 0
      %8957 = vmatprep.subr.mxu0 0.0
      %8958 = vmatpush1.msra.mxu0 0.0
      %8959 = vmatprep.subr.mxu0 0.0
      %8960 = vmatpush1.msra.mxu0 0.0
      %8961 = vmatprep.subr.mxu0 0.0
      %8962 = vmatpush1.msra.mxu0 0.0
      %8963 = vmatprep.subr.mxu0 0.0
      %8964 = vmatpush1.msra.mxu0 0.0
      %8965 = vmatprep.subr.mxu0 0.0
      %8966 = vmatpush1.msra.mxu0 0.0
      %8967 = vmatprep.subr.mxu0 0.0
      %8968 = vmatpush1.msra.mxu0 0.0
      %8969 = vmatprep.subr.mxu0 0.0
      %8970 = vmatpush1.msra.mxu0 0.0
      %8971 = vmatprep.subr.mxu0 0.0
      %8972 = vmatpush1.msra.mxu0 0.0
      %8973 = vmatprep.subr.mxu0 0.0
      %8974 = vmatpush1.msra.mxu0 0.0
      %8975 = vmatprep.subr.mxu0 0.0
      %8976 = vmatpush1.msra.mxu0 0.0
      %8977 = vmatprep.subr.mxu0 0.0
      %8978 = vmatpush1.msra.mxu0 0.0
      %8979 = vmatprep.subr.mxu0 0.0
      %8980 = vmatpush1.msra.mxu0 0.0
      %8981 = vmatprep.subr.mxu0 0.0
      %8982 = vmatpush1.msra.mxu0 %v8044
      %8983 = vmatprep.subr.mxu0 0.0
      %8984 = vmatpush1.msra.mxu0 %v8043
      %8985 = vmatprep.subr.mxu0 0.0
      %8986 = vmatpush1.msra.mxu0 %v8042
      %8987 = vmatprep.subr.mxu0 0.0
      %8988 = vmatpush1.msra.mxu0 %v8041
      %8989 = vmatprep.subr.mxu0 0.0
      %8990 = vmatpush2.msra.mxu0 0.0
      %8991 = vmatprep.subr.mxu0 0.0
      %8992 = vmatpush2.msra.mxu0 0.0
      %8993 = vmatprep.subr.mxu0 0.0
      %8994 = vmatpush2.msra.mxu0 0.0
      %8995 = vmatprep.subr.mxu0 0.0
      %8996 = vmatpush2.msra.mxu0 0.0
      %8997 = vmatprep.subr.mxu0 0.0
      %8998 = vmatpush2.msra.mxu0 0.0
      %8999 = vmatprep.subr.mxu0 0.0
      %9000 = vmatpush2.msra.mxu0 0.0
      %9001 = vmatprep.subr.mxu0 0.0
      %9002 = vmatpush2.msra.mxu0 0.0
      %9003 = vmatprep.subr.mxu0 0.0
      %9004 = vmatpush2.msra.mxu0 0.0
      %9005 = vmatprep.subr.mxu0 0.0
      %9006 = vmatpush2.msra.mxu0 0.0
      %9007 = vmatprep.subr.mxu0 0.0
      %9008 = vmatpush2.msra.mxu0 0.0
      %9009 = vmatprep.subr.mxu0 0.0
      %9010 = vmatpush2.msra.mxu0 0.0
      %9011 = vmatprep.subr.mxu0 0.0
      %9012 = vmatpush2.msra.mxu0 0.0
      %9013 = vmatprep.subr.mxu0 0.0
      %9014 = vmatpush2.msra.mxu0 0.0
      %9015 = vmatprep.subr.mxu0 0.0
      %9016 = vmatpush2.msra.mxu0 0.0
      %9017 = vmatprep.subr.mxu0 0.0
      %9018 = vmatpush2.msra.mxu0 0.0
      %9019 = vmatprep.subr.mxu0 0.0
      %9020 = vmatpush2.msra.mxu0 0.0
      %9021 = vmatprep.mubr.f32.mxu0 0.0
      %9022 = vmatmul.mubr.f32.gmra.mxu0 %v8862
      %v9023 = vpop.f32.mrf.mxu0
      %v9024 = vadd.f32 %v8860, %v9023
      %v9025 = vpop.f32.mrf.mxu0
      %9026 = vmatprep.mubr.f32.mxu0 0.0
      %9027 = vmatmul.mubr.f32.gmra.mxu0 %v8865
      %v9028 = vpop.f32.mrf.mxu0
      %v9029 = vadd.f32 %v8860, %v9028
      %v9030 = vpop.f32.mrf.mxu0
      %9031 = vmatprep.mubr.f32.mxu0 0.0
      %9032 = vmatmul.mubr.f32.gmra.mxu0 %v8868
      %v9033 = vpop.f32.mrf.mxu0
      %v9034 = vadd.f32 %v8860, %v9033
      %v9035 = vpop.f32.mrf.mxu0
      %9036 = vmatprep.mubr.f32.mxu0 0.0
      %9037 = vmatmul.mubr.f32.gmra.mxu0 %v8871
      %v9038 = vpop.f32.mrf.mxu0
      %v9039 = vadd.f32 %v8860, %v9038
      %v9040 = vpop.f32.mrf.mxu0
      %9041 = vmatprep.mubr.f32.mxu0 0.0
      %9042 = vmatmul.mubr.f32.gmra.mxu0 %v8874
      %v9043 = vpop.f32.mrf.mxu0
      %v9044 = vadd.f32 %v8860, %v9043
      %v9045 = vpop.f32.mrf.mxu0
      %9046 = vmatprep.mubr.f32.mxu0 0.0
      %9047 = vmatmul.mubr.f32.gmra.mxu0 %v8877
      %v9048 = vpop.f32.mrf.mxu0
      %v9049 = vadd.f32 %v8860, %v9048
      %v9050 = vpop.f32.mrf.mxu0
      %9051 = vmatprep.mubr.f32.mxu0 0.0
      %9052 = vmatmul.mubr.f32.gmra.mxu0 %v8880
      %v9053 = vpop.f32.mrf.mxu0
      %v9054 = vadd.f32 %v8860, %v9053
      %v9055 = vpop.f32.mrf.mxu0
      %9056 = vmatprep.mubr.f32.mxu0 0.0
      %9057 = vmatmul.mubr.f32.gmra.mxu0 %v8883
      %v9058 = vpop.f32.mrf.mxu0
      %v9059 = vadd.f32 %v8860, %v9058
      %v9060 = vpop.f32.mrf.mxu0
      %9061 = vmatprep.mubr.f32.mxu0 0.0
      %9062 = vmatmul.mubr.f32.gmra.mxu0 %v8886
      %v9063 = vpop.f32.mrf.mxu0
      %v9064 = vadd.f32 %v8860, %v9063
      %v9065 = vpop.f32.mrf.mxu0
      %9066 = vmatprep.mubr.f32.mxu0 0.0
      %9067 = vmatmul.mubr.f32.gmra.mxu0 %v8889
      %v9068 = vpop.f32.mrf.mxu0
      %v9069 = vadd.f32 %v8860, %v9068
      %v9070 = vpop.f32.mrf.mxu0
      %9071 = vmatprep.mubr.f32.mxu0 0.0
      %9072 = vmatmul.mubr.f32.gmra.mxu0 %v8892
      %v9073 = vpop.f32.mrf.mxu0
      %v9074 = vadd.f32 %v8860, %v9073
      %v9075 = vpop.f32.mrf.mxu0
      %9076 = vmatprep.mubr.f32.mxu0 0.0
      %9077 = vmatmul.mubr.f32.gmra.mxu0 %v8895
      %v9078 = vpop.f32.mrf.mxu0
      %v9079 = vadd.f32 %v8860, %v9078
      %v9080 = vpop.f32.mrf.mxu0
      %9081 = vmatprep.mubr.f32.mxu0 0.0
      %9082 = vmatmul.mubr.f32.gmra.mxu0 %v8898
      %v9083 = vpop.f32.mrf.mxu0
      %v9084 = vadd.f32 %v8860, %v9083
      %v9085 = vpop.f32.mrf.mxu0
      %9086 = vmatprep.mubr.f32.mxu0 0.0
      %9087 = vmatmul.mubr.f32.gmra.mxu0 %v8901
      %v9088 = vpop.f32.mrf.mxu0
      %v9089 = vadd.f32 %v8860, %v9088
      %v9090 = vpop.f32.mrf.mxu0
      %9091 = vmatprep.mubr.f32.mxu0 0.0
      %9092 = vmatmul.mubr.f32.gmra.mxu0 %v8904
      %v9093 = vpop.f32.mrf.mxu0
      %v9094 = vadd.f32 %v8860, %v9093
      %v9095 = vpop.f32.mrf.mxu0
      %9096 = vmatprep.mubr.f32.mxu0 0.0
      %9097 = vmatmul.mubr.f32.gmra.mxu0 %v8907
      %v9098 = vpop.f32.mrf.mxu0
      %v9099 = vadd.f32 %v8860, %v9098
      %v9100 = vpop.f32.mrf.mxu0
      %9101 = vmatprep.mubr.f32.mxu0 0.0
      %9102 = vmatmul.mubr.f32.gmra.mxu0 %v8910
      %v9103 = vpop.f32.mrf.mxu0
      %v9104 = vadd.f32 %v8860, %v9103
      %v9105 = vpop.f32.mrf.mxu0
      %9106 = vmatprep.mubr.f32.mxu0 0.0
      %9107 = vmatmul.mubr.f32.gmra.mxu0 %v8913
      %v9108 = vpop.f32.mrf.mxu0
      %v9109 = vadd.f32 %v8860, %v9108
      %v9110 = vpop.f32.mrf.mxu0
      %9111 = vmatprep.mubr.f32.mxu0 0.0
      %9112 = vmatmul.mubr.f32.gmra.mxu0 %v8916
      %v9113 = vpop.f32.mrf.mxu0
      %v9114 = vadd.f32 %v8860, %v9113
      %v9115 = vpop.f32.mrf.mxu0
      %9116 = vmatprep.mubr.f32.mxu0 0.0
      %9117 = vmatmul.mubr.f32.gmra.mxu0 %v8919
      %v9118 = vpop.f32.mrf.mxu0
      %v9119 = vadd.f32 %v8860, %v9118
      %v9120 = vpop.f32.mrf.mxu0
      %9121 = vmatprep.mubr.f32.mxu0 0.0
      %9122 = vmatmul.mubr.f32.gmra.mxu0 %v8922
      %v9123 = vpop.f32.mrf.mxu0
      %v9124 = vadd.f32 %v8860, %v9123
      %v9125 = vpop.f32.mrf.mxu0
      %9126 = vmatprep.mubr.f32.mxu0 0.0
      %9127 = vmatmul.mubr.f32.gmra.mxu0 %v8925
      %v9128 = vpop.f32.mrf.mxu0
      %v9129 = vadd.f32 %v8860, %v9128
      %v9130 = vpop.f32.mrf.mxu0
      %9131 = vmatprep.mubr.f32.mxu0 0.0
      %9132 = vmatmul.mubr.f32.gmra.mxu0 %v8928
      %v9133 = vpop.f32.mrf.mxu0
      %v9134 = vadd.f32 %v8860, %v9133
      %v9135 = vpop.f32.mrf.mxu0
      %9136 = vmatprep.mubr.f32.mxu0 0.0
      %9137 = vmatmul.mubr.f32.gmra.mxu0 %v8931
      %v9138 = vpop.f32.mrf.mxu0
      %v9139 = vadd.f32 %v8860, %v9138
      %v9140 = vpop.f32.mrf.mxu0
      %9141 = vmatprep.mubr.f32.mxu0 0.0
      %9142 = vmatmul.mubr.f32.gmra.mxu0 %v8934
      %v9143 = vpop.f32.mrf.mxu0
      %v9144 = vadd.f32 %v8860, %v9143
      %v9145 = vpop.f32.mrf.mxu0
      %9146 = vmatprep.mubr.f32.mxu0 0.0
      %9147 = vmatmul.mubr.f32.gmra.mxu0 %v8937
      %v9148 = vpop.f32.mrf.mxu0
      %v9149 = vadd.f32 %v8860, %v9148
      %v9150 = vpop.f32.mrf.mxu0
      %9151 = vmatprep.mubr.f32.mxu0 0.0
      %9152 = vmatmul.mubr.f32.gmra.mxu0 %v8940
      %v9153 = vpop.f32.mrf.mxu0
      %v9154 = vadd.f32 %v8860, %v9153
      %v9155 = vpop.f32.mrf.mxu0
      %9156 = vmatprep.mubr.f32.mxu0 0.0
      %9157 = vmatmul.mubr.f32.gmra.mxu0 %v8943
      %v9158 = vpop.f32.mrf.mxu0
      %v9159 = vadd.f32 %v8860, %v9158
      %v9160 = vpop.f32.mrf.mxu0
      %9161 = vmatprep.mubr.f32.mxu0 0.0
      %9162 = vmatmul.mubr.f32.gmra.mxu0 %v8946
      %v9163 = vpop.f32.mrf.mxu0
      %v9164 = vadd.f32 %v8860, %v9163
      %v9165 = vpop.f32.mrf.mxu0
      %9166 = vmatprep.mubr.f32.mxu0 0.0
      %9167 = vmatmul.mubr.f32.gmra.mxu0 %v8949
      %v9168 = vpop.f32.mrf.mxu0
      %v9169 = vadd.f32 %v8860, %v9168
      %v9170 = vpop.f32.mrf.mxu0
      %9171 = vmatprep.mubr.f32.mxu0 0.0
      %9172 = vmatmul.mubr.f32.gmra.mxu0 %v8952
      %v9173 = vpop.f32.mrf.mxu0
      %v9174 = vadd.f32 %v8860, %v9173
      %v9175 = vpop.f32.mrf.mxu0
      %9176 = vmatprep.mubr.f32.mxu0 0.0
      %9177 = vmatmul.mubr.f32.gmra.mxu0 %v8955
      %v9178 = vpop.f32.mrf.mxu0
      %v9179 = vadd.f32 %v8860, %v9178
      %v9180 = vpop.f32.mrf.mxu0
      %9181 = vdwg.mxu0
      %9182 = vmatprep.subr.mxu0 0.0
      %9183 = vmatpush1.msra.mxu0 %v9099
      %9184 = vmatprep.subr.mxu0 0.0
      %9185 = vmatpush1.msra.mxu0 %v9094
      %9186 = vmatprep.subr.mxu0 0.0
      %9187 = vmatpush1.msra.mxu0 %v9089
      %9188 = vmatprep.subr.mxu0 0.0
      %9189 = vmatpush1.msra.mxu0 %v9084
      %9190 = vmatprep.subr.mxu0 0.0
      %9191 = vmatpush1.msra.mxu0 %v9079
      %9192 = vmatprep.subr.mxu0 0.0
      %9193 = vmatpush1.msra.mxu0 %v9074
      %9194 = vmatprep.subr.mxu0 0.0
      %9195 = vmatpush1.msra.mxu0 %v9069
      %9196 = vmatprep.subr.mxu0 0.0
      %9197 = vmatpush1.msra.mxu0 %v9064
      %9198 = vmatprep.subr.mxu0 0.0
      %9199 = vmatpush1.msra.mxu0 %v9059
      %9200 = vmatprep.subr.mxu0 0.0
      %9201 = vmatpush1.msra.mxu0 %v9054
      %9202 = vmatprep.subr.mxu0 0.0
      %9203 = vmatpush1.msra.mxu0 %v9049
      %9204 = vmatprep.subr.mxu0 0.0
      %9205 = vmatpush1.msra.mxu0 %v9044
      %9206 = vmatprep.subr.mxu0 0.0
      %9207 = vmatpush1.msra.mxu0 %v9039
      %9208 = vmatprep.subr.mxu0 0.0
      %9209 = vmatpush1.msra.mxu0 %v9034
      %9210 = vmatprep.subr.mxu0 0.0
      %9211 = vmatpush1.msra.mxu0 %v9029
      %9212 = vmatprep.subr.mxu0 0.0
      %9213 = vmatpush1.msra.mxu0 %v9024
      %9214 = vmatprep.subr.mxu0 0.0
      %9215 = vmatpush2.msra.mxu0 %v9179
      %9216 = vmatprep.subr.mxu0 0.0
      %9217 = vmatpush2.msra.mxu0 %v9174
      %9218 = vmatprep.subr.mxu0 0.0
      %9219 = vmatpush2.msra.mxu0 %v9169
      %9220 = vmatprep.subr.mxu0 0.0
      %9221 = vmatpush2.msra.mxu0 %v9164
      %9222 = vmatprep.subr.mxu0 0.0
      %9223 = vmatpush2.msra.mxu0 %v9159
      %9224 = vmatprep.subr.mxu0 0.0
      %9225 = vmatpush2.msra.mxu0 %v9154
      %9226 = vmatprep.subr.mxu0 0.0
      %9227 = vmatpush2.msra.mxu0 %v9149
      %9228 = vmatprep.subr.mxu0 0.0
      %9229 = vmatpush2.msra.mxu0 %v9144
      %9230 = vmatprep.subr.mxu0 0.0
      %9231 = vmatpush2.msra.mxu0 %v9139
      %9232 = vmatprep.subr.mxu0 0.0
      %9233 = vmatpush2.msra.mxu0 %v9134
      %9234 = vmatprep.subr.mxu0 0.0
      %9235 = vmatpush2.msra.mxu0 %v9129
      %9236 = vmatprep.subr.mxu0 0.0
      %9237 = vmatpush2.msra.mxu0 %v9124
      %9238 = vmatprep.subr.mxu0 0.0
      %9239 = vmatpush2.msra.mxu0 %v9119
      %9240 = vmatprep.subr.mxu0 0.0
      %9241 = vmatpush2.msra.mxu0 %v9114
      %9242 = vmatprep.subr.mxu0 0.0
      %9243 = vmatpush2.msra.mxu0 %v9109
      %9244 = vmatprep.subr.mxu0 0.0
      %9245 = vmatpush2.msra.mxu0 %v9104
      %9246 = vmatprep.mubr.f32.mxu0 %v293
      %9247 = vmatmul.mubr.f32.gmra.mxu0 %v292
      %v9248 = vpop.f32.mrf.mxu0
      %v9249 = vadd.f32 0.0, %v9248
      %v9250 = vpop.f32.mrf.mxu0
      %9251 = vmatprep.mubr.f32.mxu0 %v295
      %9252 = vmatmul.mubr.f32.gmra.mxu0 %v294
      %v9253 = vpop.f32.mrf.mxu0
      %v9254 = vadd.f32 0.0, %v9253
      %v9255 = vpop.f32.mrf.mxu0
      %9256 = vmatprep.mubr.f32.mxu0 %v297
      %9257 = vmatmul.mubr.f32.gmra.mxu0 %v296
      %v9258 = vpop.f32.mrf.mxu0
      %v9259 = vadd.f32 0.0, %v9258
      %v9260 = vpop.f32.mrf.mxu0
      %9261 = vmatprep.mubr.f32.mxu0 %v299
      %9262 = vmatmul.mubr.f32.gmra.mxu0 %v298
      %v9263 = vpop.f32.mrf.mxu0
      %v9264 = vadd.f32 0.0, %v9263
      %v9265 = vpop.f32.mrf.mxu0
      %9266 = vmatprep.mubr.f32.mxu0 %v301
      %9267 = vmatmul.mubr.f32.gmra.mxu0 %v300
      %v9268 = vpop.f32.mrf.mxu0
      %v9269 = vadd.f32 0.0, %v9268
      %v9270 = vpop.f32.mrf.mxu0
      %9271 = vmatprep.mubr.f32.mxu0 %v303
      %9272 = vmatmul.mubr.f32.gmra.mxu0 %v302
      %v9273 = vpop.f32.mrf.mxu0
      %v9274 = vadd.f32 0.0, %v9273
      %v9275 = vpop.f32.mrf.mxu0
      %9276 = vmatprep.mubr.f32.mxu0 %v305
      %9277 = vmatmul.mubr.f32.gmra.mxu0 %v304
      %v9278 = vpop.f32.mrf.mxu0
      %v9279 = vadd.f32 0.0, %v9278
      %v9280 = vpop.f32.mrf.mxu0
      %9281 = vmatprep.mubr.f32.mxu0 %v307
      %9282 = vmatmul.mubr.f32.gmra.mxu0 %v306
      %v9283 = vpop.f32.mrf.mxu0
      %v9284 = vadd.f32 0.0, %v9283
      %v9285 = vpop.f32.mrf.mxu0
      %9286 = vmatprep.mubr.f32.mxu0 %v309
      %9287 = vmatmul.mubr.f32.gmra.mxu0 %v308
      %v9288 = vpop.f32.mrf.mxu0
      %v9289 = vadd.f32 0.0, %v9288
      %v9290 = vpop.f32.mrf.mxu0
      %9291 = vmatprep.mubr.f32.mxu0 %v311
      %9292 = vmatmul.mubr.f32.gmra.mxu0 %v310
      %v9293 = vpop.f32.mrf.mxu0
      %v9294 = vadd.f32 0.0, %v9293
      %v9295 = vpop.f32.mrf.mxu0
      %9296 = vmatprep.mubr.f32.mxu0 %v313
      %9297 = vmatmul.mubr.f32.gmra.mxu0 %v312
      %v9298 = vpop.f32.mrf.mxu0
      %v9299 = vadd.f32 0.0, %v9298
      %v9300 = vpop.f32.mrf.mxu0
      %9301 = vmatprep.mubr.f32.mxu0 %v315
      %9302 = vmatmul.mubr.f32.gmra.mxu0 %v314
      %v9303 = vpop.f32.mrf.mxu0
      %v9304 = vadd.f32 0.0, %v9303
      %v9305 = vpop.f32.mrf.mxu0
      %9306 = vmatprep.mubr.f32.mxu0 %v317
      %9307 = vmatmul.mubr.f32.gmra.mxu0 %v316
      %v9308 = vpop.f32.mrf.mxu0
      %v9309 = vadd.f32 0.0, %v9308
      %v9310 = vpop.f32.mrf.mxu0
      %9311 = vmatprep.mubr.f32.mxu0 %v319
      %9312 = vmatmul.mubr.f32.gmra.mxu0 %v318
      %v9313 = vpop.f32.mrf.mxu0
      %v9314 = vadd.f32 0.0, %v9313
      %v9315 = vpop.f32.mrf.mxu0
      %9316 = vmatprep.mubr.f32.mxu0 %v321
      %9317 = vmatmul.mubr.f32.gmra.mxu0 %v320
      %v9318 = vpop.f32.mrf.mxu0
      %v9319 = vadd.f32 0.0, %v9318
      %v9320 = vpop.f32.mrf.mxu0
      %9321 = vmatprep.mubr.f32.mxu0 %v323
      %9322 = vmatmul.mubr.f32.gmra.mxu0 %v322
      %v9323 = vpop.f32.mrf.mxu0
      %v9324 = vadd.f32 0.0, %v9323
      %v9325 = vpop.f32.mrf.mxu0
      %9326 = vdwg.mxu0
      %v9328 = vsel %vm5004, %v9249, 0
      %v9331 = vsel %vm5004, %v9254, 0
      %v9334 = vsel %vm5004, %v9259, 0
      %v9337 = vsel %vm5004, %v9264, 0
      %v9340 = vsel %vm5004, %v9269, 0
      %v9343 = vsel %vm5004, %v9274, 0
      %v9346 = vsel %vm5004, %v9279, 0
      %v9349 = vsel %vm5004, %v9284, 0
      %v9352 = vsel %vm5004, %v9289, 0
      %v9355 = vsel %vm5004, %v9294, 0
      %v9358 = vsel %vm5004, %v9299, 0
      %v9361 = vsel %vm5004, %v9304, 0
      %v9364 = vsel %vm5004, %v9309, 0
      %v9367 = vsel %vm5004, %v9314, 0
      %v9370 = vsel %vm5004, %v9319, 0
      %v9373 = vsel %vm5004, %v9324, 0
      %9375 = vmatprep.subr.mxu0 0.0
      %9376 = vmatpush1.msra.mxu0 0.0
      %9377 = vmatprep.subr.mxu0 0.0
      %9378 = vmatpush1.msra.mxu0 0.0
      %9379 = vmatprep.subr.mxu0 0.0
      %9380 = vmatpush1.msra.mxu0 0.0
      %9381 = vmatprep.subr.mxu0 0.0
      %9382 = vmatpush1.msra.mxu0 0.0
      %9383 = vmatprep.subr.mxu0 0.0
      %9384 = vmatpush1.msra.mxu0 0.0
      %9385 = vmatprep.subr.mxu0 0.0
      %9386 = vmatpush1.msra.mxu0 0.0
      %9387 = vmatprep.subr.mxu0 0.0
      %9388 = vmatpush1.msra.mxu0 0.0
      %9389 = vmatprep.subr.mxu0 0.0
      %9390 = vmatpush1.msra.mxu0 0.0
      %9391 = vmatprep.subr.mxu0 0.0
      %9392 = vmatpush1.msra.mxu0 0.0
      %9393 = vmatprep.subr.mxu0 0.0
      %9394 = vmatpush1.msra.mxu0 0.0
      %9395 = vmatprep.subr.mxu0 0.0
      %9396 = vmatpush1.msra.mxu0 0.0
      %9397 = vmatprep.subr.mxu0 0.0
      %9398 = vmatpush1.msra.mxu0 0.0
      %9399 = vmatprep.subr.mxu0 0.0
      %9400 = vmatpush1.msra.mxu0 %v8048
      %9401 = vmatprep.subr.mxu0 0.0
      %9402 = vmatpush1.msra.mxu0 %v8047
      %9403 = vmatprep.subr.mxu0 0.0
      %9404 = vmatpush1.msra.mxu0 %v8046
      %9405 = vmatprep.subr.mxu0 0.0
      %9406 = vmatpush1.msra.mxu0 %v8045
      %9407 = vmatprep.subr.mxu0 0.0
      %9408 = vmatpush2.msra.mxu0 0.0
      %9409 = vmatprep.subr.mxu0 0.0
      %9410 = vmatpush2.msra.mxu0 0.0
      %9411 = vmatprep.subr.mxu0 0.0
      %9412 = vmatpush2.msra.mxu0 0.0
      %9413 = vmatprep.subr.mxu0 0.0
      %9414 = vmatpush2.msra.mxu0 0.0
      %9415 = vmatprep.subr.mxu0 0.0
      %9416 = vmatpush2.msra.mxu0 0.0
      %9417 = vmatprep.subr.mxu0 0.0
      %9418 = vmatpush2.msra.mxu0 0.0
      %9419 = vmatprep.subr.mxu0 0.0
      %9420 = vmatpush2.msra.mxu0 0.0
      %9421 = vmatprep.subr.mxu0 0.0
      %9422 = vmatpush2.msra.mxu0 0.0
      %9423 = vmatprep.subr.mxu0 0.0
      %9424 = vmatpush2.msra.mxu0 0.0
      %9425 = vmatprep.subr.mxu0 0.0
      %9426 = vmatpush2.msra.mxu0 0.0
      %9427 = vmatprep.subr.mxu0 0.0
      %9428 = vmatpush2.msra.mxu0 0.0
      %9429 = vmatprep.subr.mxu0 0.0
      %9430 = vmatpush2.msra.mxu0 0.0
      %9431 = vmatprep.subr.mxu0 0.0
      %9432 = vmatpush2.msra.mxu0 0.0
      %9433 = vmatprep.subr.mxu0 0.0
      %9434 = vmatpush2.msra.mxu0 0.0
      %9435 = vmatprep.subr.mxu0 0.0
      %9436 = vmatpush2.msra.mxu0 0.0
      %9437 = vmatprep.subr.mxu0 0.0
      %9438 = vmatpush2.msra.mxu0 0.0
      %9439 = vmatprep.mubr.f32.mxu0 0.0
      %9440 = vmatmul.mubr.f32.gmra.mxu0 %v9328
      %v9441 = vpop.f32.mrf.mxu0
      %v9442 = vadd.f32 0.0, %v9441
      %v9443 = vpop.f32.mrf.mxu0
      %9444 = vmatprep.mubr.f32.mxu0 0.0
      %9445 = vmatmul.mubr.f32.gmra.mxu0 %v9331
      %v9446 = vpop.f32.mrf.mxu0
      %v9447 = vadd.f32 0.0, %v9446
      %v9448 = vpop.f32.mrf.mxu0
      %9449 = vmatprep.mubr.f32.mxu0 0.0
      %9450 = vmatmul.mubr.f32.gmra.mxu0 %v9334
      %v9451 = vpop.f32.mrf.mxu0
      %v9452 = vadd.f32 0.0, %v9451
      %v9453 = vpop.f32.mrf.mxu0
      %9454 = vmatprep.mubr.f32.mxu0 0.0
      %9455 = vmatmul.mubr.f32.gmra.mxu0 %v9337
      %v9456 = vpop.f32.mrf.mxu0
      %v9457 = vadd.f32 0.0, %v9456
      %v9458 = vpop.f32.mrf.mxu0
      %9459 = vmatprep.mubr.f32.mxu0 0.0
      %9460 = vmatmul.mubr.f32.gmra.mxu0 %v9340
      %v9461 = vpop.f32.mrf.mxu0
      %v9462 = vadd.f32 0.0, %v9461
      %v9463 = vpop.f32.mrf.mxu0
      %9464 = vmatprep.mubr.f32.mxu0 0.0
      %9465 = vmatmul.mubr.f32.gmra.mxu0 %v9343
      %v9466 = vpop.f32.mrf.mxu0
      %v9467 = vadd.f32 0.0, %v9466
      %v9468 = vpop.f32.mrf.mxu0
      %9469 = vmatprep.mubr.f32.mxu0 0.0
      %9470 = vmatmul.mubr.f32.gmra.mxu0 %v9346
      %v9471 = vpop.f32.mrf.mxu0
      %v9472 = vadd.f32 0.0, %v9471
      %v9473 = vpop.f32.mrf.mxu0
      %9474 = vmatprep.mubr.f32.mxu0 0.0
      %9475 = vmatmul.mubr.f32.gmra.mxu0 %v9349
      %v9476 = vpop.f32.mrf.mxu0
      %v9477 = vadd.f32 0.0, %v9476
      %v9478 = vpop.f32.mrf.mxu0
      %9479 = vmatprep.mubr.f32.mxu0 0.0
      %9480 = vmatmul.mubr.f32.gmra.mxu0 %v9352
      %v9481 = vpop.f32.mrf.mxu0
      %v9482 = vadd.f32 0.0, %v9481
      %v9483 = vpop.f32.mrf.mxu0
      %9484 = vmatprep.mubr.f32.mxu0 0.0
      %9485 = vmatmul.mubr.f32.gmra.mxu0 %v9355
      %v9486 = vpop.f32.mrf.mxu0
      %v9487 = vadd.f32 0.0, %v9486
      %v9488 = vpop.f32.mrf.mxu0
      %9489 = vmatprep.mubr.f32.mxu0 0.0
      %9490 = vmatmul.mubr.f32.gmra.mxu0 %v9358
      %v9491 = vpop.f32.mrf.mxu0
      %v9492 = vadd.f32 0.0, %v9491
      %v9493 = vpop.f32.mrf.mxu0
      %9494 = vmatprep.mubr.f32.mxu0 0.0
      %9495 = vmatmul.mubr.f32.gmra.mxu0 %v9361
      %v9496 = vpop.f32.mrf.mxu0
      %v9497 = vadd.f32 0.0, %v9496
      %v9498 = vpop.f32.mrf.mxu0
      %9499 = vmatprep.mubr.f32.mxu0 0.0
      %9500 = vmatmul.mubr.f32.gmra.mxu0 %v9364
      %v9501 = vpop.f32.mrf.mxu0
      %v9502 = vadd.f32 0.0, %v9501
      %v9503 = vpop.f32.mrf.mxu0
      %9504 = vmatprep.mubr.f32.mxu0 0.0
      %9505 = vmatmul.mubr.f32.gmra.mxu0 %v9367
      %v9506 = vpop.f32.mrf.mxu0
      %v9507 = vadd.f32 0.0, %v9506
      %v9508 = vpop.f32.mrf.mxu0
      %9509 = vmatprep.mubr.f32.mxu0 0.0
      %9510 = vmatmul.mubr.f32.gmra.mxu0 %v9370
      %v9511 = vpop.f32.mrf.mxu0
      %v9512 = vadd.f32 0.0, %v9511
      %v9513 = vpop.f32.mrf.mxu0
      %9514 = vmatprep.mubr.f32.mxu0 0.0
      %9515 = vmatmul.mubr.f32.gmra.mxu0 %v9373
      %v9516 = vpop.f32.mrf.mxu0
      %v9517 = vadd.f32 0.0, %v9516
      %v9518 = vpop.f32.mrf.mxu0
      %9519 = vdwg.mxu0
      %9536 = vrot.lane.b32.xlu0 %v9442, 64
      %v9537 = vpop.permute.xlu0 %9536
      %9538 = vrot.lane.b32.xlu0 %v9447, 64
      %v9539 = vpop.permute.xlu0 %9538
      %9540 = vrot.lane.b32.xlu0 %v9452, 64
      %v9541 = vpop.permute.xlu0 %9540
      %9542 = vrot.lane.b32.xlu0 %v9457, 64
      %v9543 = vpop.permute.xlu0 %9542
      %9544 = vrot.lane.b32.xlu0 %v9462, 64
      %v9545 = vpop.permute.xlu0 %9544
      %9546 = vrot.lane.b32.xlu0 %v9467, 64
      %v9547 = vpop.permute.xlu0 %9546
      %9548 = vrot.lane.b32.xlu0 %v9472, 64
      %v9549 = vpop.permute.xlu0 %9548
      %9550 = vrot.lane.b32.xlu0 %v9477, 64
      %v9551 = vpop.permute.xlu0 %9550
      %9552 = vrot.lane.b32.xlu0 %v9482, 64
      %v9553 = vpop.permute.xlu0 %9552
      %9554 = vrot.lane.b32.xlu0 %v9487, 64
      %v9555 = vpop.permute.xlu0 %9554
      %9556 = vrot.lane.b32.xlu0 %v9492, 64
      %v9557 = vpop.permute.xlu0 %9556
      %9558 = vrot.lane.b32.xlu0 %v9497, 64
      %v9559 = vpop.permute.xlu0 %9558
      %9560 = vrot.lane.b32.xlu0 %v9502, 64
      %v9561 = vpop.permute.xlu0 %9560
      %9562 = vrot.lane.b32.xlu0 %v9507, 64
      %v9563 = vpop.permute.xlu0 %9562
      %9564 = vrot.lane.b32.xlu0 %v9512, 64
      %v9565 = vpop.permute.xlu0 %9564
      %9566 = vrot.lane.b32.xlu0 %v9517, 64
      %v9567 = vpop.permute.xlu0 %9566
      %v9584 = vadd.f32 %v8172, %v9537
      %v9585 = vadd.f32 %v8177, %v9539
      %v9586 = vadd.f32 %v8182, %v9541
      %v9587 = vadd.f32 %v8187, %v9543
      %v9588 = vadd.f32 %v8192, %v9545
      %v9589 = vadd.f32 %v8197, %v9547
      %v9590 = vadd.f32 %v8202, %v9549
      %v9591 = vadd.f32 %v8207, %v9551
      %v9592 = vadd.f32 %v8212, %v9553
      %v9593 = vadd.f32 %v8217, %v9555
      %v9594 = vadd.f32 %v8222, %v9557
      %v9595 = vadd.f32 %v8227, %v9559
      %v9596 = vadd.f32 %v8232, %v9561
      %v9597 = vadd.f32 %v8237, %v9563
      %v9598 = vadd.f32 %v8242, %v9565
      %v9599 = vadd.f32 %v8247, %v9567
      %v9600 = vlaneseq
      %v9601 = vshrl.u32 %v9600, 7
      %v9602 = vsub.s32 0, %v9601
      %v9603 = vrot.slane %v8055, %v9602
      %9605 = vrot.lane.b32.xlu0 %v9603, 64
      %v9606 = vpop.permute.xlu0 %9605
      %v9608 = vadd.f32 %v9584, %v9606
      %v9609 = vadd.f32 %v9585, %v9606
      %v9610 = vadd.f32 %v9586, %v9606
      %v9611 = vadd.f32 %v9587, %v9606
      %v9612 = vadd.f32 %v9588, %v9606
      %v9613 = vadd.f32 %v9589, %v9606
      %v9614 = vadd.f32 %v9590, %v9606
      %v9615 = vadd.f32 %v9591, %v9606
      %v9616 = vadd.f32 %v9592, %v9606
      %v9617 = vadd.f32 %v9593, %v9606
      %v9618 = vadd.f32 %v9594, %v9606
      %v9619 = vadd.f32 %v9595, %v9606
      %v9620 = vadd.f32 %v9596, %v9606
      %v9621 = vadd.f32 %v9597, %v9606
      %v9622 = vadd.f32 %v9598, %v9606
      %v9623 = vadd.f32 %v9599, %v9606
      %v9624 = vmax.f32 %v9608, 0.0
      %v9625 = vmax.f32 %v9609, 0.0
      %v9626 = vmax.f32 %v9610, 0.0
      %v9627 = vmax.f32 %v9611, 0.0
      %v9628 = vmax.f32 %v9612, 0.0
      %v9629 = vmax.f32 %v9613, 0.0
      %v9630 = vmax.f32 %v9614, 0.0
      %v9631 = vmax.f32 %v9615, 0.0
      %v9632 = vmax.f32 %v9616, 0.0
      %v9633 = vmax.f32 %v9617, 0.0
      %v9634 = vmax.f32 %v9618, 0.0
      %v9635 = vmax.f32 %v9619, 0.0
      %v9636 = vmax.f32 %v9620, 0.0
      %v9637 = vmax.f32 %v9621, 0.0
      %v9638 = vmax.f32 %v9622, 0.0
      %v9639 = vmax.f32 %v9623, 0.0
      %v9640 = vlaneseq
      %v9641 = vshrl.u32 %v9640, 7
      %v9642 = vsub.s32 0, %v9641
      %v9643 = vrot.slane %v8056, %v9642
      %9660 = vrot.lane.b32.xlu0 %v9624, 64
      %v9661 = vpop.permute.xlu0 %9660
      %9662 = vrot.lane.b32.xlu0 %v9625, 64
      %v9663 = vpop.permute.xlu0 %9662
      %9664 = vrot.lane.b32.xlu0 %v9626, 64
      %v9665 = vpop.permute.xlu0 %9664
      %9666 = vrot.lane.b32.xlu0 %v9627, 64
      %v9667 = vpop.permute.xlu0 %9666
      %9668 = vrot.lane.b32.xlu0 %v9628, 64
      %v9669 = vpop.permute.xlu0 %9668
      %9670 = vrot.lane.b32.xlu0 %v9629, 64
      %v9671 = vpop.permute.xlu0 %9670
      %9672 = vrot.lane.b32.xlu0 %v9630, 64
      %v9673 = vpop.permute.xlu0 %9672
      %9674 = vrot.lane.b32.xlu0 %v9631, 64
      %v9675 = vpop.permute.xlu0 %9674
      %9676 = vrot.lane.b32.xlu0 %v9632, 64
      %v9677 = vpop.permute.xlu0 %9676
      %9678 = vrot.lane.b32.xlu0 %v9633, 64
      %v9679 = vpop.permute.xlu0 %9678
      %9680 = vrot.lane.b32.xlu0 %v9634, 64
      %v9681 = vpop.permute.xlu0 %9680
      %9682 = vrot.lane.b32.xlu0 %v9635, 64
      %v9683 = vpop.permute.xlu0 %9682
      %9684 = vrot.lane.b32.xlu0 %v9636, 64
      %v9685 = vpop.permute.xlu0 %9684
      %9686 = vrot.lane.b32.xlu0 %v9637, 64
      %v9687 = vpop.permute.xlu0 %9686
      %9688 = vrot.lane.b32.xlu0 %v9638, 64
      %v9689 = vpop.permute.xlu0 %9688
      %9690 = vrot.lane.b32.xlu0 %v9639, 64
      %v9691 = vpop.permute.xlu0 %9690
      %v9692 = vsel %vm5004, %v9661, 0
      %v9694 = vsel %vm5004, %v9663, 0
      %v9696 = vsel %vm5004, %v9665, 0
      %v9698 = vsel %vm5004, %v9667, 0
      %v9700 = vsel %vm5004, %v9669, 0
      %v9702 = vsel %vm5004, %v9671, 0
      %v9704 = vsel %vm5004, %v9673, 0
      %v9706 = vsel %vm5004, %v9675, 0
      %v9708 = vsel %vm5004, %v9677, 0
      %v9710 = vsel %vm5004, %v9679, 0
      %v9712 = vsel %vm5004, %v9681, 0
      %v9714 = vsel %vm5004, %v9683, 0
      %v9716 = vsel %vm5004, %v9685, 0
      %v9718 = vsel %vm5004, %v9687, 0
      %v9720 = vsel %vm5004, %v9689, 0
      %v9722 = vsel %vm5004, %v9691, 0
      %9724 = vmatprep.subr.mxu0 0.0
      %9725 = vmatpush1.msra.mxu0 0.0
      %9726 = vmatprep.subr.mxu0 0.0
      %9727 = vmatpush1.msra.mxu0 0.0
      %9728 = vmatprep.subr.mxu0 0.0
      %9729 = vmatpush1.msra.mxu0 0.0
      %9730 = vmatprep.subr.mxu0 0.0
      %9731 = vmatpush1.msra.mxu0 0.0
      %9732 = vmatprep.subr.mxu0 0.0
      %9733 = vmatpush1.msra.mxu0 0.0
      %9734 = vmatprep.subr.mxu0 0.0
      %9735 = vmatpush1.msra.mxu0 0.0
      %9736 = vmatprep.subr.mxu0 0.0
      %9737 = vmatpush1.msra.mxu0 0.0
      %9738 = vmatprep.subr.mxu0 0.0
      %9739 = vmatpush1.msra.mxu0 0.0
      %9740 = vmatprep.subr.mxu0 0.0
      %9741 = vmatpush1.msra.mxu0 0.0
      %9742 = vmatprep.subr.mxu0 0.0
      %9743 = vmatpush1.msra.mxu0 0.0
      %9744 = vmatprep.subr.mxu0 0.0
      %9745 = vmatpush1.msra.mxu0 0.0
      %9746 = vmatprep.subr.mxu0 0.0
      %9747 = vmatpush1.msra.mxu0 0.0
      %9748 = vmatprep.subr.mxu0 0.0
      %9749 = vmatpush1.msra.mxu0 %v8052
      %9750 = vmatprep.subr.mxu0 0.0
      %9751 = vmatpush1.msra.mxu0 %v8051
      %9752 = vmatprep.subr.mxu0 0.0
      %9753 = vmatpush1.msra.mxu0 %v8050
      %9754 = vmatprep.subr.mxu0 0.0
      %9755 = vmatpush1.msra.mxu0 %v8049
      %9756 = vmatprep.subr.mxu0 0.0
      %9757 = vmatpush2.msra.mxu0 0.0
      %9758 = vmatprep.subr.mxu0 0.0
      %9759 = vmatpush2.msra.mxu0 0.0
      %9760 = vmatprep.subr.mxu0 0.0
      %9761 = vmatpush2.msra.mxu0 0.0
      %9762 = vmatprep.subr.mxu0 0.0
      %9763 = vmatpush2.msra.mxu0 0.0
      %9764 = vmatprep.subr.mxu0 0.0
      %9765 = vmatpush2.msra.mxu0 0.0
      %9766 = vmatprep.subr.mxu0 0.0
      %9767 = vmatpush2.msra.mxu0 0.0
      %9768 = vmatprep.subr.mxu0 0.0
      %9769 = vmatpush2.msra.mxu0 0.0
      %9770 = vmatprep.subr.mxu0 0.0
      %9771 = vmatpush2.msra.mxu0 0.0
      %9772 = vmatprep.subr.mxu0 0.0
      %9773 = vmatpush2.msra.mxu0 0.0
      %9774 = vmatprep.subr.mxu0 0.0
      %9775 = vmatpush2.msra.mxu0 0.0
      %9776 = vmatprep.subr.mxu0 0.0
      %9777 = vmatpush2.msra.mxu0 0.0
      %9778 = vmatprep.subr.mxu0 0.0
      %9779 = vmatpush2.msra.mxu0 0.0
      %9780 = vmatprep.subr.mxu0 0.0
      %9781 = vmatpush2.msra.mxu0 0.0
      %9782 = vmatprep.subr.mxu0 0.0
      %9783 = vmatpush2.msra.mxu0 0.0
      %9784 = vmatprep.subr.mxu0 0.0
      %9785 = vmatpush2.msra.mxu0 0.0
      %9786 = vmatprep.subr.mxu0 0.0
      %9787 = vmatpush2.msra.mxu0 0.0
      %9788 = vmatprep.mubr.f32.mxu0 0.0
      %9789 = vmatmul.mubr.f32.gmra.mxu0 %v9692
      %v9790 = vpop.f32.mrf.mxu0
      %v9791 = vadd.f32 %v9643, %v9790
      %v9792 = vpop.f32.mrf.mxu0
      %9793 = vmatprep.mubr.f32.mxu0 0.0
      %9794 = vmatmul.mubr.f32.gmra.mxu0 %v9694
      %v9795 = vpop.f32.mrf.mxu0
      %v9796 = vadd.f32 %v9643, %v9795
      %v9797 = vpop.f32.mrf.mxu0
      %9798 = vmatprep.mubr.f32.mxu0 0.0
      %9799 = vmatmul.mubr.f32.gmra.mxu0 %v9696
      %v9800 = vpop.f32.mrf.mxu0
      %v9801 = vadd.f32 %v9643, %v9800
      %v9802 = vpop.f32.mrf.mxu0
      %9803 = vmatprep.mubr.f32.mxu0 0.0
      %9804 = vmatmul.mubr.f32.gmra.mxu0 %v9698
      %v9805 = vpop.f32.mrf.mxu0
      %v9806 = vadd.f32 %v9643, %v9805
      %v9807 = vpop.f32.mrf.mxu0
      %9808 = vmatprep.mubr.f32.mxu0 0.0
      %9809 = vmatmul.mubr.f32.gmra.mxu0 %v9700
      %v9810 = vpop.f32.mrf.mxu0
      %v9811 = vadd.f32 %v9643, %v9810
      %v9812 = vpop.f32.mrf.mxu0
      %9813 = vmatprep.mubr.f32.mxu0 0.0
      %9814 = vmatmul.mubr.f32.gmra.mxu0 %v9702
      %v9815 = vpop.f32.mrf.mxu0
      %v9816 = vadd.f32 %v9643, %v9815
      %v9817 = vpop.f32.mrf.mxu0
      %9818 = vmatprep.mubr.f32.mxu0 0.0
      %9819 = vmatmul.mubr.f32.gmra.mxu0 %v9704
      %v9820 = vpop.f32.mrf.mxu0
      %v9821 = vadd.f32 %v9643, %v9820
      %v9822 = vpop.f32.mrf.mxu0
      %9823 = vmatprep.mubr.f32.mxu0 0.0
      %9824 = vmatmul.mubr.f32.gmra.mxu0 %v9706
      %v9825 = vpop.f32.mrf.mxu0
      %v9826 = vadd.f32 %v9643, %v9825
      %v9827 = vpop.f32.mrf.mxu0
      %9828 = vmatprep.mubr.f32.mxu0 0.0
      %9829 = vmatmul.mubr.f32.gmra.mxu0 %v9708
      %v9830 = vpop.f32.mrf.mxu0
      %v9831 = vadd.f32 %v9643, %v9830
      %v9832 = vpop.f32.mrf.mxu0
      %9833 = vmatprep.mubr.f32.mxu0 0.0
      %9834 = vmatmul.mubr.f32.gmra.mxu0 %v9710
      %v9835 = vpop.f32.mrf.mxu0
      %v9836 = vadd.f32 %v9643, %v9835
      %v9837 = vpop.f32.mrf.mxu0
      %9838 = vmatprep.mubr.f32.mxu0 0.0
      %9839 = vmatmul.mubr.f32.gmra.mxu0 %v9712
      %v9840 = vpop.f32.mrf.mxu0
      %v9841 = vadd.f32 %v9643, %v9840
      %v9842 = vpop.f32.mrf.mxu0
      %9843 = vmatprep.mubr.f32.mxu0 0.0
      %9844 = vmatmul.mubr.f32.gmra.mxu0 %v9714
      %v9845 = vpop.f32.mrf.mxu0
      %v9846 = vadd.f32 %v9643, %v9845
      %v9847 = vpop.f32.mrf.mxu0
      %9848 = vmatprep.mubr.f32.mxu0 0.0
      %9849 = vmatmul.mubr.f32.gmra.mxu0 %v9716
      %v9850 = vpop.f32.mrf.mxu0
      %v9851 = vadd.f32 %v9643, %v9850
      %v9852 = vpop.f32.mrf.mxu0
      %9853 = vmatprep.mubr.f32.mxu0 0.0
      %9854 = vmatmul.mubr.f32.gmra.mxu0 %v9718
      %v9855 = vpop.f32.mrf.mxu0
      %v9856 = vadd.f32 %v9643, %v9855
      %v9857 = vpop.f32.mrf.mxu0
      %9858 = vmatprep.mubr.f32.mxu0 0.0
      %9859 = vmatmul.mubr.f32.gmra.mxu0 %v9720
      %v9860 = vpop.f32.mrf.mxu0
      %v9861 = vadd.f32 %v9643, %v9860
      %v9862 = vpop.f32.mrf.mxu0
      %9863 = vmatprep.mubr.f32.mxu0 0.0
      %9864 = vmatmul.mubr.f32.gmra.mxu0 %v9722
      %v9865 = vpop.f32.mrf.mxu0
      %v9866 = vadd.f32 %v9643, %v9865
      %v9867 = vpop.f32.mrf.mxu0
      %9868 = vdwg.mxu0
      %9885 = vrot.lane.b32.xlu0 %v8259, 32
      %v9886 = vpop.permute.xlu0 %9885
      %9887 = vrot.lane.b32.xlu0 %v8260, 32
      %v9888 = vpop.permute.xlu0 %9887
      %9889 = vrot.lane.b32.xlu0 %v8261, 32
      %v9890 = vpop.permute.xlu0 %9889
      %9891 = vrot.lane.b32.xlu0 %v8262, 32
      %v9892 = vpop.permute.xlu0 %9891
      %9893 = vrot.lane.b32.xlu0 %v8263, 32
      %v9894 = vpop.permute.xlu0 %9893
      %9895 = vrot.lane.b32.xlu0 %v8264, 32
      %v9896 = vpop.permute.xlu0 %9895
      %9897 = vrot.lane.b32.xlu0 %v8265, 32
      %v9898 = vpop.permute.xlu0 %9897
      %9899 = vrot.lane.b32.xlu0 %v8266, 32
      %v9900 = vpop.permute.xlu0 %9899
      %9901 = vrot.lane.b32.xlu0 %v8267, 32
      %v9902 = vpop.permute.xlu0 %9901
      %9903 = vrot.lane.b32.xlu0 %v8268, 32
      %v9904 = vpop.permute.xlu0 %9903
      %9905 = vrot.lane.b32.xlu0 %v8269, 32
      %v9906 = vpop.permute.xlu0 %9905
      %9907 = vrot.lane.b32.xlu0 %v8270, 32
      %v9908 = vpop.permute.xlu0 %9907
      %9909 = vrot.lane.b32.xlu0 %v8271, 32
      %v9910 = vpop.permute.xlu0 %9909
      %9911 = vrot.lane.b32.xlu0 %v8272, 32
      %v9912 = vpop.permute.xlu0 %9911
      %9913 = vrot.lane.b32.xlu0 %v8273, 32
      %v9914 = vpop.permute.xlu0 %9913
      %9915 = vrot.lane.b32.xlu0 %v8274, 32
      %v9916 = vpop.permute.xlu0 %9915
      %v9933 = vadd.f32 %v9791, %v9886
      %v9934 = vadd.f32 %v9796, %v9888
      %v9935 = vadd.f32 %v9801, %v9890
      %v9936 = vadd.f32 %v9806, %v9892
      %v9937 = vadd.f32 %v9811, %v9894
      %v9938 = vadd.f32 %v9816, %v9896
      %v9939 = vadd.f32 %v9821, %v9898
      %v9940 = vadd.f32 %v9826, %v9900
      %v9941 = vadd.f32 %v9831, %v9902
      %v9942 = vadd.f32 %v9836, %v9904
      %v9943 = vadd.f32 %v9841, %v9906
      %v9944 = vadd.f32 %v9846, %v9908
      %v9945 = vadd.f32 %v9851, %v9910
      %v9946 = vadd.f32 %v9856, %v9912
      %v9947 = vadd.f32 %v9861, %v9914
      %v9948 = vadd.f32 %v9866, %v9916
      %v9949 = vmax.f32 %v9933, 0.0
      %v9950 = vmax.f32 %v9934, 0.0
      %v9951 = vmax.f32 %v9935, 0.0
      %v9952 = vmax.f32 %v9936, 0.0
      %v9953 = vmax.f32 %v9937, 0.0
      %v9954 = vmax.f32 %v9938, 0.0
      %v9955 = vmax.f32 %v9939, 0.0
      %v9956 = vmax.f32 %v9940, 0.0
      %v9957 = vmax.f32 %v9941, 0.0
      %v9958 = vmax.f32 %v9942, 0.0
      %v9959 = vmax.f32 %v9943, 0.0
      %v9960 = vmax.f32 %v9944, 0.0
      %v9961 = vmax.f32 %v9945, 0.0
      %v9962 = vmax.f32 %v9946, 0.0
      %v9963 = vmax.f32 %v9947, 0.0
      %v9964 = vmax.f32 %v9948, 0.0
      %v9965 = vld [vmem:[%s4 + $0x1f0] sm:$0x1]
      %v9966 = vld [vmem:[%s4 + $0x1f1] sm:$0x1]
      %v9967 = vsel %vm5004, %v9949, 0.0
      %9968 = vadd.xlane.f32.xlu0 %v9967
      %v9969 = vpop.xlane.xlu0 %9968
      %v9970 = vsel %vm5004, %v9950, 0.0
      %9971 = vadd.xlane.f32.xlu0 %v9970
      %v9972 = vpop.xlane.xlu0 %9971
      %v9973 = vsel %vm5004, %v9951, 0.0
      %9974 = vadd.xlane.f32.xlu0 %v9973
      %v9975 = vpop.xlane.xlu0 %9974
      %v9976 = vsel %vm5004, %v9952, 0.0
      %9977 = vadd.xlane.f32.xlu0 %v9976
      %v9978 = vpop.xlane.xlu0 %9977
      %v9979 = vsel %vm5004, %v9953, 0.0
      %9980 = vadd.xlane.f32.xlu0 %v9979
      %v9981 = vpop.xlane.xlu0 %9980
      %v9982 = vsel %vm5004, %v9954, 0.0
      %9983 = vadd.xlane.f32.xlu0 %v9982
      %v9984 = vpop.xlane.xlu0 %9983
      %v9985 = vsel %vm5004, %v9955, 0.0
      %9986 = vadd.xlane.f32.xlu0 %v9985
      %v9987 = vpop.xlane.xlu0 %9986
      %v9988 = vsel %vm5004, %v9956, 0.0
      %9989 = vadd.xlane.f32.xlu0 %v9988
      %v9990 = vpop.xlane.xlu0 %9989
      %v9991 = vsel %vm5004, %v9957, 0.0
      %9992 = vadd.xlane.f32.xlu0 %v9991
      %v9993 = vpop.xlane.xlu0 %9992
      %v9994 = vsel %vm5004, %v9958, 0.0
      %9995 = vadd.xlane.f32.xlu0 %v9994
      %v9996 = vpop.xlane.xlu0 %9995
      %v9997 = vsel %vm5004, %v9959, 0.0
      %9998 = vadd.xlane.f32.xlu0 %v9997
      %v9999 = vpop.xlane.xlu0 %9998
      %v10000 = vsel %vm5004, %v9960, 0.0
      %10001 = vadd.xlane.f32.xlu0 %v10000
      %v10002 = vpop.xlane.xlu0 %10001
      %v10003 = vsel %vm5004, %v9961, 0.0
      %10004 = vadd.xlane.f32.xlu0 %v10003
      %v10005 = vpop.xlane.xlu0 %10004
      %v10006 = vsel %vm5004, %v9962, 0.0
      %10007 = vadd.xlane.f32.xlu0 %v10006
      %v10008 = vpop.xlane.xlu0 %10007
      %v10009 = vsel %vm5004, %v9963, 0.0
      %10010 = vadd.xlane.f32.xlu0 %v10009
      %v10011 = vpop.xlane.xlu0 %10010
      %v10012 = vsel %vm5004, %v9964, 0.0
      %10013 = vadd.xlane.f32.xlu0 %v10012
      %v10014 = vpop.xlane.xlu0 %10013
      %v10015 = vrcp.pop 32.0
      %v10016 = vmul.f32 %v9969, %v10015
      %v10017 = vmul.f32 %v9972, %v10015
      %v10018 = vmul.f32 %v9975, %v10015
      %v10019 = vmul.f32 %v9978, %v10015
      %v10020 = vmul.f32 %v9981, %v10015
      %v10021 = vmul.f32 %v9984, %v10015
      %v10022 = vmul.f32 %v9987, %v10015
      %v10023 = vmul.f32 %v9990, %v10015
      %v10024 = vmul.f32 %v9993, %v10015
      %v10025 = vmul.f32 %v9996, %v10015
      %v10026 = vmul.f32 %v9999, %v10015
      %v10027 = vmul.f32 %v10002, %v10015
      %v10028 = vmul.f32 %v10005, %v10015
      %v10029 = vmul.f32 %v10008, %v10015
      %v10030 = vmul.f32 %v10011, %v10015
      %v10031 = vmul.f32 %v10014, %v10015
      %v10032 = vsub.f32 %v9949, %v10016
      %v10033 = vsub.f32 %v9950, %v10017
      %v10034 = vsub.f32 %v9951, %v10018
      %v10035 = vsub.f32 %v9952, %v10019
      %v10036 = vsub.f32 %v9953, %v10020
      %v10037 = vsub.f32 %v9954, %v10021
      %v10038 = vsub.f32 %v9955, %v10022
      %v10039 = vsub.f32 %v9956, %v10023
      %v10040 = vsub.f32 %v9957, %v10024
      %v10041 = vsub.f32 %v9958, %v10025
      %v10042 = vsub.f32 %v9959, %v10026
      %v10043 = vsub.f32 %v9960, %v10027
      %v10044 = vsub.f32 %v9961, %v10028
      %v10045 = vsub.f32 %v9962, %v10029
      %v10046 = vsub.f32 %v9963, %v10030
      %v10047 = vsub.f32 %v9964, %v10031
      %v10048 = vmul.f32 %v10032, %v10032
      %v10049 = vmul.f32 %v10033, %v10033
      %v10050 = vmul.f32 %v10034, %v10034
      %v10051 = vmul.f32 %v10035, %v10035
      %v10052 = vmul.f32 %v10036, %v10036
      %v10053 = vmul.f32 %v10037, %v10037
      %v10054 = vmul.f32 %v10038, %v10038
      %v10055 = vmul.f32 %v10039, %v10039
      %v10056 = vmul.f32 %v10040, %v10040
      %v10057 = vmul.f32 %v10041, %v10041
      %v10058 = vmul.f32 %v10042, %v10042
      %v10059 = vmul.f32 %v10043, %v10043
      %v10060 = vmul.f32 %v10044, %v10044
      %v10061 = vmul.f32 %v10045, %v10045
      %v10062 = vmul.f32 %v10046, %v10046
      %v10063 = vmul.f32 %v10047, %v10047
      %v10064 = vsel %vm5004, %v10048, 0.0
      %10065 = vadd.xlane.f32.xlu0 %v10064
      %v10066 = vpop.xlane.xlu0 %10065
      %v10067 = vsel %vm5004, %v10049, 0.0
      %10068 = vadd.xlane.f32.xlu0 %v10067
      %v10069 = vpop.xlane.xlu0 %10068
      %v10070 = vsel %vm5004, %v10050, 0.0
      %10071 = vadd.xlane.f32.xlu0 %v10070
      %v10072 = vpop.xlane.xlu0 %10071
      %v10073 = vsel %vm5004, %v10051, 0.0
      %10074 = vadd.xlane.f32.xlu0 %v10073
      %v10075 = vpop.xlane.xlu0 %10074
      %v10076 = vsel %vm5004, %v10052, 0.0
      %10077 = vadd.xlane.f32.xlu0 %v10076
      %v10078 = vpop.xlane.xlu0 %10077
      %v10079 = vsel %vm5004, %v10053, 0.0
      %10080 = vadd.xlane.f32.xlu0 %v10079
      %v10081 = vpop.xlane.xlu0 %10080
      %v10082 = vsel %vm5004, %v10054, 0.0
      %10083 = vadd.xlane.f32.xlu0 %v10082
      %v10084 = vpop.xlane.xlu0 %10083
      %v10085 = vsel %vm5004, %v10055, 0.0
      %10086 = vadd.xlane.f32.xlu0 %v10085
      %v10087 = vpop.xlane.xlu0 %10086
      %v10088 = vsel %vm5004, %v10056, 0.0
      %10089 = vadd.xlane.f32.xlu0 %v10088
      %v10090 = vpop.xlane.xlu0 %10089
      %v10091 = vsel %vm5004, %v10057, 0.0
      %10092 = vadd.xlane.f32.xlu0 %v10091
      %v10093 = vpop.xlane.xlu0 %10092
      %v10094 = vsel %vm5004, %v10058, 0.0
      %10095 = vadd.xlane.f32.xlu0 %v10094
      %v10096 = vpop.xlane.xlu0 %10095
      %v10097 = vsel %vm5004, %v10059, 0.0
      %10098 = vadd.xlane.f32.xlu0 %v10097
      %v10099 = vpop.xlane.xlu0 %10098
      %v10100 = vsel %vm5004, %v10060, 0.0
      %10101 = vadd.xlane.f32.xlu0 %v10100
      %v10102 = vpop.xlane.xlu0 %10101
      %v10103 = vsel %vm5004, %v10061, 0.0
      %10104 = vadd.xlane.f32.xlu0 %v10103
      %v10105 = vpop.xlane.xlu0 %10104
      %v10106 = vsel %vm5004, %v10062, 0.0
      %10107 = vadd.xlane.f32.xlu0 %v10106
      %v10108 = vpop.xlane.xlu0 %10107
      %v10109 = vsel %vm5004, %v10063, 0.0
      %10110 = vadd.xlane.f32.xlu0 %v10109
      %v10111 = vpop.xlane.xlu0 %10110
      %v10112 = vmul.f32 %v10066, %v10015
      %v10113 = vmul.f32 %v10069, %v10015
      %v10114 = vmul.f32 %v10072, %v10015
      %v10115 = vmul.f32 %v10075, %v10015
      %v10116 = vmul.f32 %v10078, %v10015
      %v10117 = vmul.f32 %v10081, %v10015
      %v10118 = vmul.f32 %v10084, %v10015
      %v10119 = vmul.f32 %v10087, %v10015
      %v10120 = vmul.f32 %v10090, %v10015
      %v10121 = vmul.f32 %v10093, %v10015
      %v10122 = vmul.f32 %v10096, %v10015
      %v10123 = vmul.f32 %v10099, %v10015
      %v10124 = vmul.f32 %v10102, %v10015
      %v10125 = vmul.f32 %v10105, %v10015
      %v10126 = vmul.f32 %v10108, %v10015
      %v10127 = vmul.f32 %v10111, %v10015
      %v10128 = vadd.f32 %v10112, 1e-05
      %v10129 = vadd.f32 %v10113, 1e-05
      %v10130 = vadd.f32 %v10114, 1e-05
      %v10131 = vadd.f32 %v10115, 1e-05
      %v10132 = vadd.f32 %v10116, 1e-05
      %v10133 = vadd.f32 %v10117, 1e-05
      %v10134 = vadd.f32 %v10118, 1e-05
      %v10135 = vadd.f32 %v10119, 1e-05
      %v10136 = vadd.f32 %v10120, 1e-05
      %v10137 = vadd.f32 %v10121, 1e-05
      %v10138 = vadd.f32 %v10122, 1e-05
      %v10139 = vadd.f32 %v10123, 1e-05
      %v10140 = vadd.f32 %v10124, 1e-05
      %v10141 = vadd.f32 %v10125, 1e-05
      %v10142 = vadd.f32 %v10126, 1e-05
      %v10143 = vadd.f32 %v10127, 1e-05
      %v10144 = vrsqrt.pop %v10128
      %v10145 = vrsqrt.pop %v10129
      %v10146 = vrsqrt.pop %v10130
      %v10147 = vrsqrt.pop %v10131
      %v10148 = vrsqrt.pop %v10132
      %v10149 = vrsqrt.pop %v10133
      %v10150 = vrsqrt.pop %v10134
      %v10151 = vrsqrt.pop %v10135
      %v10152 = vrsqrt.pop %v10136
      %v10153 = vrsqrt.pop %v10137
      %v10154 = vrsqrt.pop %v10138
      %v10155 = vrsqrt.pop %v10139
      %v10156 = vrsqrt.pop %v10140
      %v10157 = vrsqrt.pop %v10141
      %v10158 = vrsqrt.pop %v10142
      %v10159 = vrsqrt.pop %v10143
      %v10160 = vmul.f32 %v10032, %v10144
      %v10161 = vmul.f32 %v10033, %v10145
      %v10162 = vmul.f32 %v10034, %v10146
      %v10163 = vmul.f32 %v10035, %v10147
      %v10164 = vmul.f32 %v10036, %v10148
      %v10165 = vmul.f32 %v10037, %v10149
      %v10166 = vmul.f32 %v10038, %v10150
      %v10167 = vmul.f32 %v10039, %v10151
      %v10168 = vmul.f32 %v10040, %v10152
      %v10169 = vmul.f32 %v10041, %v10153
      %v10170 = vmul.f32 %v10042, %v10154
      %v10171 = vmul.f32 %v10043, %v10155
      %v10172 = vmul.f32 %v10044, %v10156
      %v10173 = vmul.f32 %v10045, %v10157
      %v10174 = vmul.f32 %v10046, %v10158
      %v10175 = vmul.f32 %v10047, %v10159
      %v10176 = vlaneseq
      %v10177 = vshrl.u32 %v10176, 7
      %v10178 = vsub.s32 0, %v10177
      %v10179 = vrot.slane %v9965, %v10178
      %v10180 = vmul.f32 %v10160, %v10179
      %v10181 = vmul.f32 %v10161, %v10179
      %v10182 = vmul.f32 %v10162, %v10179
      %v10183 = vmul.f32 %v10163, %v10179
      %v10184 = vmul.f32 %v10164, %v10179
      %v10185 = vmul.f32 %v10165, %v10179
      %v10186 = vmul.f32 %v10166, %v10179
      %v10187 = vmul.f32 %v10167, %v10179
      %v10188 = vmul.f32 %v10168, %v10179
      %v10189 = vmul.f32 %v10169, %v10179
      %v10190 = vmul.f32 %v10170, %v10179
      %v10191 = vmul.f32 %v10171, %v10179
      %v10192 = vmul.f32 %v10172, %v10179
      %v10193 = vmul.f32 %v10173, %v10179
      %v10194 = vmul.f32 %v10174, %v10179
      %v10195 = vmul.f32 %v10175, %v10179
      %v10196 = vlaneseq
      %v10197 = vshrl.u32 %v10196, 7
      %v10198 = vsub.s32 0, %v10197
      %v10199 = vrot.slane %v9966, %v10198
      %v10200 = vadd.f32 %v10180, %v10199
      %v10201 = vadd.f32 %v10181, %v10199
      %v10202 = vadd.f32 %v10182, %v10199
      %v10203 = vadd.f32 %v10183, %v10199
      %v10204 = vadd.f32 %v10184, %v10199
      %v10205 = vadd.f32 %v10185, %v10199
      %v10206 = vadd.f32 %v10186, %v10199
      %v10207 = vadd.f32 %v10187, %v10199
      %v10208 = vadd.f32 %v10188, %v10199
      %v10209 = vadd.f32 %v10189, %v10199
      %v10210 = vadd.f32 %v10190, %v10199
      %v10211 = vadd.f32 %v10191, %v10199
      %v10212 = vadd.f32 %v10192, %v10199
      %v10213 = vadd.f32 %v10193, %v10199
      %v10214 = vadd.f32 %v10194, %v10199
      %v10215 = vadd.f32 %v10195, %v10199
      %10216 = vst.msk [vmem:[%s226] sm:$0xff] %vm5004, %v10200
      %10217 = vst.msk [vmem:[%s226 + $0x8] sm:$0xff] %vm5004, %v10201
      %10218 = vst.msk [vmem:[%s226 + $0x10] sm:$0xff] %vm5004, %v10202
      %10219 = vst.msk [vmem:[%s226 + $0x18] sm:$0xff] %vm5004, %v10203
      %10220 = vst.msk [vmem:[%s226 + $0x20] sm:$0xff] %vm5004, %v10204
      %10221 = vst.msk [vmem:[%s226 + $0x28] sm:$0xff] %vm5004, %v10205
      %10222 = vst.msk [vmem:[%s226 + $0x30] sm:$0xff] %vm5004, %v10206
      %10223 = vst.msk [vmem:[%s226 + $0x38] sm:$0xff] %vm5004, %v10207
      %10224 = vst.msk [vmem:[%s226 + $0x40] sm:$0xff] %vm5004, %v10208
      %10225 = vst.msk [vmem:[%s226 + $0x48] sm:$0xff] %vm5004, %v10209
      %10226 = vst.msk [vmem:[%s226 + $0x50] sm:$0xff] %vm5004, %v10210
      %10227 = vst.msk [vmem:[%s226 + $0x58] sm:$0xff] %vm5004, %v10211
      %10228 = vst.msk [vmem:[%s226 + $0x60] sm:$0xff] %vm5004, %v10212
      %10229 = vst.msk [vmem:[%s226 + $0x68] sm:$0xff] %vm5004, %v10213
      %10230 = vst.msk [vmem:[%s226 + $0x70] sm:$0xff] %vm5004, %v10214
      %10231 = vst.msk [vmem:[%s226 + $0x78] sm:$0xff] %vm5004, %v10215
      %s10232 = smul.u32 16, %s16
      %p10233 = scmp.lt.s32.totalorder %s10232, 31
      %s10234 = scalar_select %p10233, %s10232, 31
      %s10235 = smul.addr %s10234, 8
      %s10236 = scalar_lea.vmem %s5, %s10235
      // Predicated region
      $region41: #{gnn_hypernetwork4_forward.1} parent=39 // pred_check
        %p10237 = pneg %p144
      $region42: #{gnn_hypernetwork4_forward.1} parent=39 // pred_check_branch
        %10239 = sbr.rel (%p10237) target = $region44
      $region43: #{gnn_hypernetwork4_forward.1} parent=39 // pred_region
        %s10240 = smul.u32 16, %s16
      $region44: #{gnn_hypernetwork4_forward.1} parent=39 // pred_fallthru
        _
    $region40: #{gnn_hypernetwork4_forward.1} parent=5 // pred_fallthru
      _
    %p10241 = scmp.le.s32.totalorder 2, %s11
    // Predicated region
    $region45: #{gnn_hypernetwork4_forward.1} parent=5 // pred_check
      %p10242 = pneg %p10241
    $region46: #{gnn_hypernetwork4_forward.1} parent=5 // pred_check_branch
      %10244 = sbr.rel (%p10242) target = $region48
    $region47: #{gnn_hypernetwork4_forward.1} parent=5 // pred_region
      %s10245 = ssub.s32 %s11, 2
      // Predicated region
      $region49: #{gnn_hypernetwork4_forward.1} parent=47 // pred_check
        %p10246 = pneg %p150
      $region50: #{gnn_hypernetwork4_forward.1} parent=47 // pred_check_branch
        %10248 = sbr.rel (%p10246) target = $region52
      $region51: #{gnn_hypernetwork4_forward.1} parent=47 // pred_region
        %s10249 = smul.u32 16, %s17
        %p10250 = scmp.lt.s32.totalorder %s10249, 31
        %s10251 = scalar_select %p10250, %s10249, 31
        %s10252 = smul.addr %s10251, 8
        %s10253 = scalar_lea.vmem %s5, %s10252
      $region52: #{gnn_hypernetwork4_forward.1} parent=47 // pred_fallthru
        _
    $region48: #{gnn_hypernetwork4_forward.1} parent=5 // pred_fallthru
      _
  $region6: #{gnn_hypernetwork4_forward.1} parent=0 // loop_footer
    %s15 = sadd.s32 1, %s11
  $region7: #{gnn_hypernetwork4_forward.1} parent=0 // loop_footer_branch
    %10 = sbr.rel target = $region3
  $region8: #{gnn_hypernetwork4_forward.1} parent=0 // loop_exit
    _

</llo_original>
